<compile_context>
chip_gen: v6e
topology: v6e:2x2x1
jax: 0.10.0
libtpu: 0.0.40
codegen_flags: <defaults>
</compile_context>

<pallas_src>
import functools

import numpy as np

import jax
import jax.numpy as jnp
from jax import lax
from jax.experimental import pallas as pl
from jax.experimental.pallas import tpu as pltpu


_PAD = 128   # left/right zero-pad (columns) of the activation staging buffer


def _make_dense_block_kernel(layer_cins, growth, n, h, w, eps):
    """Fused DenseBlock kernel; grid axis = layer index (sequential)."""
    s = h * w
    ns = n * s
    c0 = layer_cins[0]
    cin_max = layer_cins[-1]
    taps = [(dy, dx) for dy in (-1, 0, 1) for dx in (-1, 0, 1)]  # (ky,kx) row-major

    def kernel(x_ref, mask_ref, gamma_ref, beta_ref, w_ref, out_ref, act_ref):
        l = pl.program_id(0)

        # ---- one-time init (first grid step only) ---------------------------
        @pl.when(l == 0)
        def _init():
            # Zero only the pad columns: they emulate the conv's spatial zero
            # padding and stay zero for every layer (the data region is fully
            # overwritten each layer).
            zpad = jnp.zeros((cin_max, _PAD), act_ref.dtype)
            act_ref[:, 0:_PAD] = zpad
            act_ref[:, _PAD + ns:_PAD + ns + _PAD] = zpad
            # Input channels go straight into the resident output block.
            for img in range(n):
                out_ref[img, 0:c0, :] = x_ref[img]

        # ---- one statically-shaped branch per layer -------------------------
        for li, cin in enumerate(layer_cins):

            @pl.when(l == li)
            def _layer(cin=cin):
                # BatchNorm batch stats (training mode, biased variance).
                # Row sums / sums of squares via MXU dots (MXU is nearly idle).
                ones_s = jnp.ones((s, 8), jnp.float32)
                sum_f = jnp.zeros((cin, 8), jnp.float32)
                sum_f2 = jnp.zeros((cin, 8), jnp.float32)
                for img in range(n):
                    f = out_ref[img, 0:cin, :]
                    sum_f = sum_f + jnp.dot(
                        f, ones_s, preferred_element_type=jnp.float32)
                    sum_f2 = sum_f2 + jnp.dot(
                        f * f, ones_s, preferred_element_type=jnp.float32)
                mean = sum_f[:, 0:1] * (1.0 / ns)                       # (cin,1)
                var = jnp.maximum(sum_f2[:, 0:1] * (1.0 / ns) - mean * mean, 0.0)
                scale = gamma_ref[0, 0:cin, :] * lax.rsqrt(var + eps)   # (cin,1)
                shift = beta_ref[0, 0:cin, :] - mean * scale

                # Normalize + ReLU, stage bf16 activations per image (keeps
                # vreg pressure low; column starts are 128-aligned).
                for img in range(n):
                    f = out_ref[img, 0:cin, :]
                    a = jnp.maximum(f * scale + shift, 0.0)
                    act_ref[0:cin, _PAD + img * s:_PAD + (img + 1) * s] = (
                        a.astype(act_ref.dtype))

                # 3x3 conv = 9 accumulating MXU dots over shifted, border-masked
                # bf16 views of the staging buffer (no im2col staging buffer).
                acc = jnp.zeros((growth, ns), jnp.float32)
                for t, (dy, dx) in enumerate(taps):
                    start = _PAD + dy * w + dx                          # static
                    v = act_ref[0:cin, start:start + ns]
                    if not (dy == 0 and dx == 0):
                        # TODO(synk): on v5e keep this multiply in f32 (no bf16 VALU).
                        v = v * mask_ref[t:t + 1, :]
                    w_t = w_ref[0, t * growth:(t + 1) * growth, 0:cin]
                    acc = acc + jnp.dot(
                        w_t, v, preferred_element_type=jnp.float32)

                # Append the layer's new channels directly to the output block
                # (lane-dense stores, 256-wide per image).
                for img in range(n):
                    out_ref[img, cin:cin + growth, :] = (
                        acc[:, img * s:(img + 1) * s].astype(out_ref.dtype))

    return kernel


def dense_block_forward(x_nchw, params, drop_rate=0.0, eps=1e-5):
    """DenseBlock.forward. Input/output are NCHW like PyTorch (training-mode BN)."""
    # TODO(synk): dropout (dropRate > 0) not implemented; default 0.0 is a no-op.
    assert drop_rate == 0.0

    n, c0, h, w = x_nchw.shape
    growth = params[0]["w"].shape[-1]
    nlayers = len(params)
    layer_cins = [c0 + i * growth for i in range(nlayers)]
    cin_max = layer_cins[-1]
    c_total = c0 + nlayers * growth
    s = h * w
    ns = n * s
    assert w + 1 <= _PAD, "image width must fit in the 128-column shift pad"

    # Input: NCHW -> (N, C0, H*W); no transposes anywhere at the call boundary.
    x3 = x_nchw.reshape(n, c0, s)

    # Static per-tap border masks (0/1, exact in bf16): mask[t, p] == 1 iff the
    # (dy,dx) neighbour of flat output pixel p lies inside its own image.
    idx = np.arange(ns)
    xq = idx % w
    yq = (idx % s) // w
    masks_np = np.zeros((9, ns), np.float32)
    t = 0
    for dy in (-1, 0, 1):
        for dx in (-1, 0, 1):
            ok = (yq + dy >= 0) & (yq + dy < h) & (xq + dx >= 0) & (xq + dx < w)
            masks_np[t] = ok
            t += 1
    masks = jnp.asarray(masks_np, dtype=jnp.bfloat16)

    # Per-layer params, zero-padded to uniform shapes (numerically exact — the
    # kernel only reads the first cin rows/cols) and stacked so each layer's
    # params stream in as one pipelined DMA per grid step.
    gammas, betas, ws = [], [], []
    for p, cin in zip(params, layer_cins):
        g = p["gamma"].reshape(cin, 1).astype(jnp.float32)
        b = p["beta"].reshape(cin, 1).astype(jnp.float32)
        gammas.append(jnp.pad(g, ((0, cin_max - cin), (0, 0))))
        betas.append(jnp.pad(b, ((0, cin_max - cin), (0, 0))))
        # (3,3,cin,growth) -> rows grouped per tap: (9*growth, cin); pad K.
        w2 = jnp.transpose(p["w"], (0, 1, 3, 2)).reshape(9 * growth, cin)
        w2 = jnp.pad(w2, ((0, 0), (0, cin_max - cin)))
        ws.append(w2.astype(jnp.bfloat16))
    gamma_s = jnp.stack(gammas)              # (nlayers, cin_max, 1)        f32
    beta_s = jnp.stack(betas)                # (nlayers, cin_max, 1)        f32
    w_s = jnp.stack(ws)                      # (nlayers, 9*growth, cin_max) bf16

    kernel = _make_dense_block_kernel(layer_cins, growth, n, h, w, eps)

    in_specs = [
        pl.BlockSpec((n, c0, s), lambda l: (0, 0, 0)),                 # input
        pl.BlockSpec((9, ns), lambda l: (0, 0)),                       # masks
        pl.BlockSpec((1, cin_max, 1), lambda l: (l, 0, 0)),            # gamma[l]
        pl.BlockSpec((1, cin_max, 1), lambda l: (l, 0, 0)),            # beta[l]
        pl.BlockSpec((1, 9 * growth, cin_max), lambda l: (l, 0, 0)),   # w[l]
    ]

    out = pl.pallas_call(
        kernel,
        out_shape=jax.ShapeDtypeStruct((n, c_total, s), x_nchw.dtype),
        grid_spec=pltpu.PrefetchScalarGridSpec(
            num_scalar_prefetch=0,
            grid=(nlayers,),
            in_specs=in_specs,
            # Constant index map => the output block stays resident in VMEM for
            # all layers and doubles as the growing channel-concat feature map.
            out_specs=pl.BlockSpec((n, c_total, s), lambda l: (0, 0, 0)),
            scratch_shapes=[
                # Flat bf16 activation staging buffer with a 128-column zero
                # pad on both sides (emulates the conv's spatial padding).
                pltpu.VMEM((cin_max, ns + 2 * _PAD), jnp.bfloat16),
            ]),
        # Layers are sequentially dependent -> 'arbitrary'.
        # TODO(synk): add an NS-chunk axis (2-pass BN) marked 'parallel' for v7x.
        compiler_params=pltpu.CompilerParams(
            dimension_semantics=("arbitrary",),
            vmem_limit_bytes=64 * 1024 * 1024),
    )(x3, masks, gamma_s, beta_s, w_s)

    return out.reshape(n, c_total, h, w)


def make_dense_block_params(key, nb_layers, in_planes, growth_rate):
    """Deterministic parameter init (matches the shapes of DenseBlock.__init__)."""
    params = []
    for i in range(nb_layers):
        cin = in_planes + i * growth_rate
        key, wk = jax.random.split(key)
        # Conv2d(cin, growth_rate, 3, padding=1, bias=False); kaiming-style scale.
        wgt = jax.random.normal(wk, (3, 3, cin, growth_rate), jnp.float32)
        wgt = wgt * (2.0 / (9.0 * cin)) ** 0.5
        gamma = jnp.ones((cin,), jnp.float32)    # BatchNorm2d default weight
        beta = jnp.zeros((cin,), jnp.float32)    # BatchNorm2d default bias
        params.append({"gamma": gamma, "beta": beta, "w": wgt})
    return params


def _reference_forward(x_nchw, params, eps=1e-5, conv_dtype=jnp.float32):
    """Pure-JAX reference. conv_dtype=bfloat16 matches the kernel's MXU precision."""
    x = jnp.transpose(x_nchw, (0, 2, 3, 1))      # NCHW -> NHWC
    for p in params:
        mean = jnp.mean(x, axis=(0, 1, 2))
        var = jnp.var(x, axis=(0, 1, 2))
        act = jnp.maximum((x - mean) / jnp.sqrt(var + eps) * p["gamma"] + p["beta"], 0.0)
        conv = lax.conv_general_dilated(
            act.astype(conv_dtype), p["w"].astype(conv_dtype),
            window_strides=(1, 1), padding="SAME",
            dimension_numbers=("NHWC", "HWIO", "NHWC"),
            preferred_element_type=jnp.float32)
        x = jnp.concatenate([x, conv.astype(x.dtype)], axis=-1)
    return jnp.transpose(x, (0, 3, 1, 2))        # NHWC -> NCHW


if __name__ == "__main__":
    # Small DenseBlock: nb_layers=3, in_planes=16, growth_rate=16, 16x16 images.
    nb_layers, in_planes, growth_rate = 3, 16, 16
    batch, spatial = 2, 16

    key = jax.random.PRNGKey(0)
    key, xk = jax.random.split(key)
    x = jax.random.normal(xk, (batch, in_planes, spatial, spatial), jnp.float32)

    params = make_dense_block_params(key, nb_layers, in_planes, growth_rate)

    fwd = jax.jit(functools.partial(dense_block_forward, params=params))
    out = fwd(x)
    jax.block_until_ready(out)

    expected_c = in_planes + nb_layers * growth_rate
    assert out.shape == (batch, expected_c, spatial, spatial), out.shape

    # Tight check against a precision-matched reference (bf16 conv operands,
    # f32 accumulation — same data path as the kernel's MXU matmuls).
    ref_bf16 = _reference_forward(x, params, conv_dtype=jnp.bfloat16)
    err_bf16 = float(jnp.max(jnp.abs(out - ref_bf16)))
    assert jnp.allclose(out, ref_bf16, atol=1e-2, rtol=1e-2), err_bf16

    # Loose sanity check against the full-f32 reference (kernel uses bf16 MXU
    # operands, so a small mixed-precision gap is expected).
    ref_f32 = _reference_forward(x, params, conv_dtype=jnp.float32)
    err_f32 = float(jnp.max(jnp.abs(out - ref_f32)))
    assert jnp.allclose(out, ref_f32, atol=1.5e-1, rtol=1e-1), err_f32

    print("KERNEL_OK")
</pallas_src>

<mosaic_0001>
module attributes {stable_mosaic.version = 11 : i64} {
  func.func @kernel(%arg0: i32, %arg1: memref<2x16x256xf32, #tpu.memory_space<vmem>>, %arg2: memref<9x512xbf16, #tpu.memory_space<vmem>>, %arg3: memref<1x48x1xf32, #tpu.memory_space<vmem>>, %arg4: memref<1x48x1xf32, #tpu.memory_space<vmem>>, %arg5: memref<1x144x48xbf16, #tpu.memory_space<vmem>>, %arg6: memref<2x64x256xf32, #tpu.memory_space<vmem>>, %arg7: memref<48x768xbf16, #tpu.memory_space<vmem>>) attributes {dimension_semantics = [#tpu.dimension_semantics<arbitrary>], iteration_bounds = array<i64: 3>, scalar_prefetch = 0 : i64, scratch_operands = 1 : i64, tpu.core_type = #tpu.core_type<tc>, window_params = [{pipeline_mode = #tpu.pipeline_mode<synchronous>, transform_indices = @transform_0, window_bounds = array<i64: 2, 16, 256>}, {pipeline_mode = #tpu.pipeline_mode<synchronous>, transform_indices = @transform_1, window_bounds = array<i64: 9, 512>}, {transform_indices = @transform_2, window_bounds = array<i64: 1, 48, 1>}, {transform_indices = @transform_3, window_bounds = array<i64: 1, 48, 1>}, {transform_indices = @transform_4, window_bounds = array<i64: 1, 144, 48>}, {pipeline_mode = #tpu.pipeline_mode<synchronous>, transform_indices = @transform_5, window_bounds = array<i64: 2, 64, 256>}]} {
    %c0_i32 = arith.constant 0 : i32
    %0 = arith.cmpi eq, %arg0, %c0_i32 : i32
    %1 = arith.extui %0 : i1 to i32
    %c0_i32_0 = arith.constant 0 : i32
    %2 = arith.cmpi ne, %1, %c0_i32_0 : i32
    scf.if %2 {
      %cst = arith.constant 0.000000e+00 : bf16
      %12 = vector.broadcast %cst : bf16 to vector<48x128xbf16>
      %c0 = arith.constant 0 : index
      %c0_5 = arith.constant 0 : index
      %13 = vector.load %arg7[%c0, %c0_5] : memref<48x768xbf16, #tpu.memory_space<vmem>>, vector<48x128xbf16>
      tpu.vector_store %arg7[%c0, %c0_5], %12 {strides = array<i32>} : memref<48x768xbf16, #tpu.memory_space<vmem>>, vector<48x128xbf16>,
      %c0_6 = arith.constant 0 : index
      %c640 = arith.constant 640 : index
      %14 = vector.load %arg7[%c0_6, %c640] : memref<48x768xbf16, #tpu.memory_space<vmem>>, vector<48x128xbf16>
      tpu.vector_store %arg7[%c0_6, %c640], %12 {strides = array<i32>} : memref<48x768xbf16, #tpu.memory_space<vmem>>, vector<48x128xbf16>,
      %c0_7 = arith.constant 0 : index
      %c0_8 = arith.constant 0 : index
      %c0_9 = arith.constant 0 : index
      %15 = vector.load %arg1[%c0_7, %c0_8, %c0_9] : memref<2x16x256xf32, #tpu.memory_space<vmem>>, vector<1x16x256xf32>
      %16 = vector.shape_cast %15 : vector<1x16x256xf32> to vector<16x256xf32>
      %c0_10 = arith.constant 0 : index
      %c0_11 = arith.constant 0 : index
      %c0_12 = arith.constant 0 : index
      %17 = vector.load %arg6[%c0_10, %c0_11, %c0_12] : memref<2x64x256xf32, #tpu.memory_space<vmem>>, vector<1x16x256xf32>
      %18 = vector.shape_cast %17 : vector<1x16x256xf32> to vector<16x256xf32>
      %19 = vector.shape_cast %16 : vector<16x256xf32> to vector<1x16x256xf32>
      tpu.vector_store %arg6[%c0_10, %c0_11, %c0_12], %19 {strides = array<i32>} : memref<2x64x256xf32, #tpu.memory_space<vmem>>, vector<1x16x256xf32>,
      %c1 = arith.constant 1 : index
      %c0_13 = arith.constant 0 : index
      %c0_14 = arith.constant 0 : index
      %20 = vector.load %arg1[%c1, %c0_13, %c0_14] : memref<2x16x256xf32, #tpu.memory_space<vmem>>, vector<1x16x256xf32>
      %21 = vector.shape_cast %20 : vector<1x16x256xf32> to vector<16x256xf32>
      %c1_15 = arith.constant 1 : index
      %c0_16 = arith.constant 0 : index
      %c0_17 = arith.constant 0 : index
      %22 = vector.load %arg6[%c1_15, %c0_16, %c0_17] : memref<2x64x256xf32, #tpu.memory_space<vmem>>, vector<1x16x256xf32>
      %23 = vector.shape_cast %22 : vector<1x16x256xf32> to vector<16x256xf32>
      %24 = vector.shape_cast %21 : vector<16x256xf32> to vector<1x16x256xf32>
      tpu.vector_store %arg6[%c1_15, %c0_16, %c0_17], %24 {strides = array<i32>} : memref<2x64x256xf32, #tpu.memory_space<vmem>>, vector<1x16x256xf32>,
    } else {
    }
    %c0_i32_1 = arith.constant 0 : i32
    %3 = arith.cmpi eq, %arg0, %c0_i32_1 : i32
    %4 = arith.extui %3 : i1 to i32
    %c0_i32_2 = arith.constant 0 : i32
    %5 = arith.cmpi ne, %4, %c0_i32_2 : i32
    scf.if %5 {
      %cst = arith.constant 1.000000e+00 : f32
      %12 = vector.broadcast %cst : f32 to vector<256x8xf32>
      %cst_5 = arith.constant 0.000000e+00 : f32
      %13 = vector.broadcast %cst_5 : f32 to vector<16x8xf32>
      %cst_6 = arith.constant 0.000000e+00 : f32
      %14 = vector.broadcast %cst_6 : f32 to vector<16x8xf32>
      %c0 = arith.constant 0 : index
      %c0_7 = arith.constant 0 : index
      %c0_8 = arith.constant 0 : index
      %15 = vector.load %arg6[%c0, %c0_7, %c0_8] : memref<2x64x256xf32, #tpu.memory_space<vmem>>, vector<1x16x256xf32>
      %16 = vector.shape_cast %15 : vector<1x16x256xf32> to vector<16x256xf32>
      %cst_9 = arith.constant dense<0.000000e+00> : vector<16x8xf32>
      %17 = tpu.matmul %16, %12, %cst_9 {dimension_numbers = #tpu.dot_dimension_numbers<[1], [0], [0], [1], [0, 0, 1, 1], [], []>} : vector<16x256xf32>, vector<256x8xf32>, vector<16x8xf32> -> vector<16x8xf32>
      %18 = arith.addf %13, %17 : vector<16x8xf32>
      %19 = arith.mulf %16, %16 : vector<16x256xf32>
      %cst_10 = arith.constant dense<0.000000e+00> : vector<16x8xf32>
      %20 = tpu.matmul %19, %12, %cst_10 {dimension_numbers = #tpu.dot_dimension_numbers<[1], [0], [0], [1], [0, 0, 1, 1], [], []>} : vector<16x256xf32>, vector<256x8xf32>, vector<16x8xf32> -> vector<16x8xf32>
      %21 = arith.addf %14, %20 : vector<16x8xf32>
      %c1 = arith.constant 1 : index
      %c0_11 = arith.constant 0 : index
      %c0_12 = arith.constant 0 : index
      %22 = vector.load %arg6[%c1, %c0_11, %c0_12] : memref<2x64x256xf32, #tpu.memory_space<vmem>>, vector<1x16x256xf32>
      %23 = vector.shape_cast %22 : vector<1x16x256xf32> to vector<16x256xf32>
      %cst_13 = arith.constant dense<0.000000e+00> : vector<16x8xf32>
      %24 = tpu.matmul %23, %12, %cst_13 {dimension_numbers = #tpu.dot_dimension_numbers<[1], [0], [0], [1], [0, 0, 1, 1], [], []>} : vector<16x256xf32>, vector<256x8xf32>, vector<16x8xf32> -> vector<16x8xf32>
      %25 = arith.addf %18, %24 : vector<16x8xf32>
      %26 = arith.mulf %23, %23 : vector<16x256xf32>
      %cst_14 = arith.constant dense<0.000000e+00> : vector<16x8xf32>
      %27 = tpu.matmul %26, %12, %cst_14 {dimension_numbers = #tpu.dot_dimension_numbers<[1], [0], [0], [1], [0, 0, 1, 1], [], []>} : vector<16x256xf32>, vector<256x8xf32>, vector<16x8xf32> -> vector<16x8xf32>
      %28 = arith.addf %21, %27 : vector<16x8xf32>
      %29 = vector.extract_strided_slice %25 {offsets = [0, 0], sizes = [16, 1], strides = [1, 1]} : vector<16x8xf32> to vector<16x1xf32>
      %cst_15 = arith.constant 0.001953125 : f32
      %30 = vector.broadcast %cst_15 : f32 to vector<16x1xf32>
      %31 = arith.mulf %29, %30 : vector<16x1xf32>
      %32 = vector.extract_strided_slice %28 {offsets = [0, 0], sizes = [16, 1], strides = [1, 1]} : vector<16x8xf32> to vector<16x1xf32>
      %cst_16 = arith.constant 0.001953125 : f32
      %33 = vector.broadcast %cst_16 : f32 to vector<16x1xf32>
      %34 = arith.mulf %32, %33 : vector<16x1xf32>
      %35 = arith.mulf %31, %31 : vector<16x1xf32>
      %36 = arith.subf %34, %35 : vector<16x1xf32>
      %cst_17 = arith.constant 0.000000e+00 : f32
      %37 = vector.broadcast %cst_17 : f32 to vector<16x1xf32>
      %38 = arith.maximumf %36, %37 : vector<16x1xf32>
      %c0_18 = arith.constant 0 : index
      %c0_19 = arith.constant 0 : index
      %c0_20 = arith.constant 0 : index
      %39 = vector.load %arg3[%c0_18, %c0_19, %c0_20] : memref<1x48x1xf32, #tpu.memory_space<vmem>>, vector<1x16x1xf32>
      %40 = vector.shape_cast %39 : vector<1x16x1xf32> to vector<16x1xf32>
      %cst_21 = arith.constant 9.99999974E-6 : f32
      %41 = vector.broadcast %cst_21 : f32 to vector<16x1xf32>
      %42 = arith.addf %38, %41 : vector<16x1xf32>
      %43 = math.rsqrt %42 : vector<16x1xf32>
      %44 = arith.mulf %40, %43 : vector<16x1xf32>
      %c0_22 = arith.constant 0 : index
      %c0_23 = arith.constant 0 : index
      %c0_24 = arith.constant 0 : index
      %45 = vector.load %arg4[%c0_22, %c0_23, %c0_24] : memref<1x48x1xf32, #tpu.memory_space<vmem>>, vector<1x16x1xf32>
      %46 = vector.shape_cast %45 : vector<1x16x1xf32> to vector<16x1xf32>
      %47 = arith.mulf %31, %44 : vector<16x1xf32>
      %48 = arith.subf %46, %47 : vector<16x1xf32>
      %c0_25 = arith.constant 0 : index
      %c0_26 = arith.constant 0 : index
      %c0_27 = arith.constant 0 : index
      %49 = vector.load %arg6[%c0_25, %c0_26, %c0_27] : memref<2x64x256xf32, #tpu.memory_space<vmem>>, vector<1x16x256xf32>
      %50 = vector.shape_cast %49 : vector<1x16x256xf32> to vector<16x256xf32>
      %51 = vector.broadcast %44 : vector<16x1xf32> to vector<16x256xf32>
      %52 = arith.mulf %50, %51 : vector<16x256xf32>
      %53 = vector.broadcast %48 : vector<16x1xf32> to vector<16x256xf32>
      %54 = arith.addf %52, %53 : vector<16x256xf32>
      %cst_28 = arith.constant 0.000000e+00 : f32
      %55 = vector.broadcast %cst_28 : f32 to vector<16x256xf32>
      %56 = arith.maximumf %54, %55 : vector<16x256xf32>
      %57 = arith.truncf %56 : vector<16x256xf32> to vector<16x256xbf16>
      %c0_29 = arith.constant 0 : index
      %c128 = arith.constant 128 : index
      %58 = vector.load %arg7[%c0_29, %c128] : memref<48x768xbf16, #tpu.memory_space<vmem>>, vector<16x256xbf16>
      tpu.vector_store %arg7[%c0_29, %c128], %57 {strides = array<i32>} : memref<48x768xbf16, #tpu.memory_space<vmem>>, vector<16x256xbf16>,
      %c1_30 = arith.constant 1 : index
      %c0_31 = arith.constant 0 : index
      %c0_32 = arith.constant 0 : index
      %59 = vector.load %arg6[%c1_30, %c0_31, %c0_32] : memref<2x64x256xf32, #tpu.memory_space<vmem>>, vector<1x16x256xf32>
      %60 = vector.shape_cast %59 : vector<1x16x256xf32> to vector<16x256xf32>
      %61 = vector.broadcast %44 : vector<16x1xf32> to vector<16x256xf32>
      %62 = arith.mulf %60, %61 : vector<16x256xf32>
      %63 = vector.broadcast %48 : vector<16x1xf32> to vector<16x256xf32>
      %64 = arith.addf %62, %63 : vector<16x256xf32>
      %cst_33 = arith.constant 0.000000e+00 : f32
      %65 = vector.broadcast %cst_33 : f32 to vector<16x256xf32>
      %66 = arith.maximumf %64, %65 : vector<16x256xf32>
      %67 = arith.truncf %66 : vector<16x256xf32> to vector<16x256xbf16>
      %c0_34 = arith.constant 0 : index
      %c384 = arith.constant 384 : index
      %68 = vector.load %arg7[%c0_34, %c384] : memref<48x768xbf16, #tpu.memory_space<vmem>>, vector<16x256xbf16>
      tpu.vector_store %arg7[%c0_34, %c384], %67 {strides = array<i32>} : memref<48x768xbf16, #tpu.memory_space<vmem>>, vector<16x256xbf16>,
      %cst_35 = arith.constant 0.000000e+00 : f32
      %69 = vector.broadcast %cst_35 : f32 to vector<16x512xf32>
      %c0_36 = arith.constant 0 : index
      %c111 = arith.constant 111 : index
      %70 = vector.load %arg7[%c0_36, %c111] : memref<48x768xbf16, #tpu.memory_space<vmem>>, vector<16x512xbf16>
      %c0_37 = arith.constant 0 : index
      %c0_38 = arith.constant 0 : index
      %71 = vector.load %arg2[%c0_37, %c0_38] : memref<9x512xbf16, #tpu.memory_space<vmem>>, vector<1x512xbf16>
      %72 = vector.broadcast %71 : vector<1x512xbf16> to vector<16x512xbf16>
      %73 = arith.mulf %70, %72 : vector<16x512xbf16>
      %c0_39 = arith.constant 0 : index
      %c0_40 = arith.constant 0 : index
      %c0_41 = arith.constant 0 : index
      %74 = vector.load %arg5[%c0_39, %c0_40, %c0_41] : memref<1x144x48xbf16, #tpu.memory_space<vmem>>, vector<1x16x16xbf16>
      %75 = vector.shape_cast %74 : vector<1x16x16xbf16> to vector<16x16xbf16>
      %cst_42 = arith.constant dense<0.000000e+00> : vector<16x512xf32>
      %76 = tpu.matmul %75, %73, %cst_42 {dimension_numbers = #tpu.dot_dimension_numbers<[1], [0], [0], [1], [0, 0, 1, 1], [], []>} : vector<16x16xbf16>, vector<16x512xbf16>, vector<16x512xf32> -> vector<16x512xf32>
      %77 = arith.addf %69, %76 : vector<16x512xf32>
      %c0_43 = arith.constant 0 : index
      %c112 = arith.constant 112 : index
      %78 = vector.load %arg7[%c0_43, %c112] : memref<48x768xbf16, #tpu.memory_space<vmem>>, vector<16x512xbf16>
      %c1_44 = arith.constant 1 : index
      %c0_45 = arith.constant 0 : index
      %79 = vector.load %arg2[%c1_44, %c0_45] : memref<9x512xbf16, #tpu.memory_space<vmem>>, vector<1x512xbf16>
      %80 = vector.broadcast %79 : vector<1x512xbf16> to vector<16x512xbf16>
      %81 = arith.mulf %78, %80 : vector<16x512xbf16>
      %c0_46 = arith.constant 0 : index
      %c16 = arith.constant 16 : index
      %c0_47 = arith.constant 0 : index
      %82 = vector.load %arg5[%c0_46, %c16, %c0_47] : memref<1x144x48xbf16, #tpu.memory_space<vmem>>, vector<1x16x16xbf16>
      %83 = vector.shape_cast %82 : vector<1x16x16xbf16> to vector<16x16xbf16>
      %cst_48 = arith.constant dense<0.000000e+00> : vector<16x512xf32>
      %84 = tpu.matmul %83, %81, %cst_48 {dimension_numbers = #tpu.dot_dimension_numbers<[1], [0], [0], [1], [0, 0, 1, 1], [], []>} : vector<16x16xbf16>, vector<16x512xbf16>, vector<16x512xf32> -> vector<16x512xf32>
      %85 = arith.addf %77, %84 : vector<16x512xf32>
      %c0_49 = arith.constant 0 : index
      %c113 = arith.constant 113 : index
      %86 = vector.load %arg7[%c0_49, %c113] : memref<48x768xbf16, #tpu.memory_space<vmem>>, vector<16x512xbf16>
      %c2 = arith.constant 2 : index
      %c0_50 = arith.constant 0 : index
      %87 = vector.load %arg2[%c2, %c0_50] : memref<9x512xbf16, #tpu.memory_space<vmem>>, vector<1x512xbf16>
      %88 = vector.broadcast %87 : vector<1x512xbf16> to vector<16x512xbf16>
      %89 = arith.mulf %86, %88 : vector<16x512xbf16>
      %c0_51 = arith.constant 0 : index
      %c32 = arith.constant 32 : index
      %c0_52 = arith.constant 0 : index
      %90 = vector.load %arg5[%c0_51, %c32, %c0_52] : memref<1x144x48xbf16, #tpu.memory_space<vmem>>, vector<1x16x16xbf16>
      %91 = vector.shape_cast %90 : vector<1x16x16xbf16> to vector<16x16xbf16>
      %cst_53 = arith.constant dense<0.000000e+00> : vector<16x512xf32>
      %92 = tpu.matmul %91, %89, %cst_53 {dimension_numbers = #tpu.dot_dimension_numbers<[1], [0], [0], [1], [0, 0, 1, 1], [], []>} : vector<16x16xbf16>, vector<16x512xbf16>, vector<16x512xf32> -> vector<16x512xf32>
      %93 = arith.addf %85, %92 : vector<16x512xf32>
      %c0_54 = arith.constant 0 : index
      %c127 = arith.constant 127 : index
      %94 = vector.load %arg7[%c0_54, %c127] : memref<48x768xbf16, #tpu.memory_space<vmem>>, vector<16x512xbf16>
      %c3 = arith.constant 3 : index
      %c0_55 = arith.constant 0 : index
      %95 = vector.load %arg2[%c3, %c0_55] : memref<9x512xbf16, #tpu.memory_space<vmem>>, vector<1x512xbf16>
      %96 = vector.broadcast %95 : vector<1x512xbf16> to vector<16x512xbf16>
      %97 = arith.mulf %94, %96 : vector<16x512xbf16>
      %c0_56 = arith.constant 0 : index
      %c48 = arith.constant 48 : index
      %c0_57 = arith.constant 0 : index
      %98 = vector.load %arg5[%c0_56, %c48, %c0_57] : memref<1x144x48xbf16, #tpu.memory_space<vmem>>, vector<1x16x16xbf16>
      %99 = vector.shape_cast %98 : vector<1x16x16xbf16> to vector<16x16xbf16>
      %cst_58 = arith.constant dense<0.000000e+00> : vector<16x512xf32>
      %100 = tpu.matmul %99, %97, %cst_58 {dimension_numbers = #tpu.dot_dimension_numbers<[1], [0], [0], [1], [0, 0, 1, 1], [], []>} : vector<16x16xbf16>, vector<16x512xbf16>, vector<16x512xf32> -> vector<16x512xf32>
      %101 = arith.addf %93, %100 : vector<16x512xf32>
      %c0_59 = arith.constant 0 : index
      %c128_60 = arith.constant 128 : index
      %102 = vector.load %arg7[%c0_59, %c128_60] : memref<48x768xbf16, #tpu.memory_space<vmem>>, vector<16x512xbf16>
      %c0_61 = arith.constant 0 : index
      %c64 = arith.constant 64 : index
      %c0_62 = arith.constant 0 : index
      %103 = vector.load %arg5[%c0_61, %c64, %c0_62] : memref<1x144x48xbf16, #tpu.memory_space<vmem>>, vector<1x16x16xbf16>
      %104 = vector.shape_cast %103 : vector<1x16x16xbf16> to vector<16x16xbf16>
      %cst_63 = arith.constant dense<0.000000e+00> : vector<16x512xf32>
      %105 = tpu.matmul %104, %102, %cst_63 {dimension_numbers = #tpu.dot_dimension_numbers<[1], [0], [0], [1], [0, 0, 1, 1], [], []>} : vector<16x16xbf16>, vector<16x512xbf16>, vector<16x512xf32> -> vector<16x512xf32>
      %106 = arith.addf %101, %105 : vector<16x512xf32>
      %c0_64 = arith.constant 0 : index
      %c129 = arith.constant 129 : index
      %107 = vector.load %arg7[%c0_64, %c129] : memref<48x768xbf16, #tpu.memory_space<vmem>>, vector<16x512xbf16>
      %c5 = arith.constant 5 : index
      %c0_65 = arith.constant 0 : index
      %108 = vector.load %arg2[%c5, %c0_65] : memref<9x512xbf16, #tpu.memory_space<vmem>>, vector<1x512xbf16>
      %109 = vector.broadcast %108 : vector<1x512xbf16> to vector<16x512xbf16>
      %110 = arith.mulf %107, %109 : vector<16x512xbf16>
      %c0_66 = arith.constant 0 : index
      %c80 = arith.constant 80 : index
      %c0_67 = arith.constant 0 : index
      %111 = vector.load %arg5[%c0_66, %c80, %c0_67] : memref<1x144x48xbf16, #tpu.memory_space<vmem>>, vector<1x16x16xbf16>
      %112 = vector.shape_cast %111 : vector<1x16x16xbf16> to vector<16x16xbf16>
      %cst_68 = arith.constant dense<0.000000e+00> : vector<16x512xf32>
      %113 = tpu.matmul %112, %110, %cst_68 {dimension_numbers = #tpu.dot_dimension_numbers<[1], [0], [0], [1], [0, 0, 1, 1], [], []>} : vector<16x16xbf16>, vector<16x512xbf16>, vector<16x512xf32> -> vector<16x512xf32>
      %114 = arith.addf %106, %113 : vector<16x512xf32>
      %c0_69 = arith.constant 0 : index
      %c143 = arith.constant 143 : index
      %115 = vector.load %arg7[%c0_69, %c143] : memref<48x768xbf16, #tpu.memory_space<vmem>>, vector<16x512xbf16>
      %c6 = arith.constant 6 : index
      %c0_70 = arith.constant 0 : index
      %116 = vector.load %arg2[%c6, %c0_70] : memref<9x512xbf16, #tpu.memory_space<vmem>>, vector<1x512xbf16>
      %117 = vector.broadcast %116 : vector<1x512xbf16> to vector<16x512xbf16>
      %118 = arith.mulf %115, %117 : vector<16x512xbf16>
      %c0_71 = arith.constant 0 : index
      %c96 = arith.constant 96 : index
      %c0_72 = arith.constant 0 : index
      %119 = vector.load %arg5[%c0_71, %c96, %c0_72] : memref<1x144x48xbf16, #tpu.memory_space<vmem>>, vector<1x16x16xbf16>
      %120 = vector.shape_cast %119 : vector<1x16x16xbf16> to vector<16x16xbf16>
      %cst_73 = arith.constant dense<0.000000e+00> : vector<16x512xf32>
      %121 = tpu.matmul %120, %118, %cst_73 {dimension_numbers = #tpu.dot_dimension_numbers<[1], [0], [0], [1], [0, 0, 1, 1], [], []>} : vector<16x16xbf16>, vector<16x512xbf16>, vector<16x512xf32> -> vector<16x512xf32>
      %122 = arith.addf %114, %121 : vector<16x512xf32>
      %c0_74 = arith.constant 0 : index
      %c144 = arith.constant 144 : index
      %123 = vector.load %arg7[%c0_74, %c144] : memref<48x768xbf16, #tpu.memory_space<vmem>>, vector<16x512xbf16>
      %c7 = arith.constant 7 : index
      %c0_75 = arith.constant 0 : index
      %124 = vector.load %arg2[%c7, %c0_75] : memref<9x512xbf16, #tpu.memory_space<vmem>>, vector<1x512xbf16>
      %125 = vector.broadcast %124 : vector<1x512xbf16> to vector<16x512xbf16>
      %126 = arith.mulf %123, %125 : vector<16x512xbf16>
      %c0_76 = arith.constant 0 : index
      %c112_77 = arith.constant 112 : index
      %c0_78 = arith.constant 0 : index
      %127 = vector.load %arg5[%c0_76, %c112_77, %c0_78] : memref<1x144x48xbf16, #tpu.memory_space<vmem>>, vector<1x16x16xbf16>
      %128 = vector.shape_cast %127 : vector<1x16x16xbf16> to vector<16x16xbf16>
      %cst_79 = arith.constant dense<0.000000e+00> : vector<16x512xf32>
      %129 = tpu.matmul %128, %126, %cst_79 {dimension_numbers = #tpu.dot_dimension_numbers<[1], [0], [0], [1], [0, 0, 1, 1], [], []>} : vector<16x16xbf16>, vector<16x512xbf16>, vector<16x512xf32> -> vector<16x512xf32>
      %130 = arith.addf %122, %129 : vector<16x512xf32>
      %c0_80 = arith.constant 0 : index
      %c145 = arith.constant 145 : index
      %131 = vector.load %arg7[%c0_80, %c145] : memref<48x768xbf16, #tpu.memory_space<vmem>>, vector<16x512xbf16>
      %c8 = arith.constant 8 : index
      %c0_81 = arith.constant 0 : index
      %132 = vector.load %arg2[%c8, %c0_81] : memref<9x512xbf16, #tpu.memory_space<vmem>>, vector<1x512xbf16>
      %133 = vector.broadcast %132 : vector<1x512xbf16> to vector<16x512xbf16>
      %134 = arith.mulf %131, %133 : vector<16x512xbf16>
      %c0_82 = arith.constant 0 : index
      %c128_83 = arith.constant 128 : index
      %c0_84 = arith.constant 0 : index
      %135 = vector.load %arg5[%c0_82, %c128_83, %c0_84] : memref<1x144x48xbf16, #tpu.memory_space<vmem>>, vector<1x16x16xbf16>
      %136 = vector.shape_cast %135 : vector<1x16x16xbf16> to vector<16x16xbf16>
      %cst_85 = arith.constant dense<0.000000e+00> : vector<16x512xf32>
      %137 = tpu.matmul %136, %134, %cst_85 {dimension_numbers = #tpu.dot_dimension_numbers<[1], [0], [0], [1], [0, 0, 1, 1], [], []>} : vector<16x16xbf16>, vector<16x512xbf16>, vector<16x512xf32> -> vector<16x512xf32>
      %138 = arith.addf %130, %137 : vector<16x512xf32>
      %139 = vector.extract_strided_slice %138 {offsets = [0, 0], sizes = [16, 256], strides = [1, 1]} : vector<16x512xf32> to vector<16x256xf32>
      %c0_86 = arith.constant 0 : index
      %c16_87 = arith.constant 16 : index
      %c0_88 = arith.constant 0 : index
      %140 = vector.load %arg6[%c0_86, %c16_87, %c0_88] : memref<2x64x256xf32, #tpu.memory_space<vmem>>, vector<1x16x256xf32>
      %141 = vector.shape_cast %140 : vector<1x16x256xf32> to vector<16x256xf32>
      %142 = vector.shape_cast %139 : vector<16x256xf32> to vector<1x16x256xf32>
      tpu.vector_store %arg6[%c0_86, %c16_87, %c0_88], %142 {strides = array<i32>} : memref<2x64x256xf32, #tpu.memory_space<vmem>>, vector<1x16x256xf32>,
      %143 = vector.extract_strided_slice %138 {offsets = [0, 256], sizes = [16, 256], strides = [1, 1]} : vector<16x512xf32> to vector<16x256xf32>
      %c1_89 = arith.constant 1 : index
      %c16_90 = arith.constant 16 : index
      %c0_91 = arith.constant 0 : index
      %144 = vector.load %arg6[%c1_89, %c16_90, %c0_91] : memref<2x64x256xf32, #tpu.memory_space<vmem>>, vector<1x16x256xf32>
      %145 = vector.shape_cast %144 : vector<1x16x256xf32> to vector<16x256xf32>
      %146 = vector.shape_cast %143 : vector<16x256xf32> to vector<1x16x256xf32>
      tpu.vector_store %arg6[%c1_89, %c16_90, %c0_91], %146 {strides = array<i32>} : memref<2x64x256xf32, #tpu.memory_space<vmem>>, vector<1x16x256xf32>,
    } else {
    }
    %c1_i32 = arith.constant 1 : i32
    %6 = arith.cmpi eq, %arg0, %c1_i32 : i32
    %7 = arith.extui %6 : i1 to i32
    %c0_i32_3 = arith.constant 0 : i32
    %8 = arith.cmpi ne, %7, %c0_i32_3 : i32
    scf.if %8 {
      %cst = arith.constant 1.000000e+00 : f32
      %12 = vector.broadcast %cst : f32 to vector<256x8xf32>
      %cst_5 = arith.constant 0.000000e+00 : f32
      %13 = vector.broadcast %cst_5 : f32 to vector<32x8xf32>
      %cst_6 = arith.constant 0.000000e+00 : f32
      %14 = vector.broadcast %cst_6 : f32 to vector<32x8xf32>
      %c0 = arith.constant 0 : index
      %c0_7 = arith.constant 0 : index
      %c0_8 = arith.constant 0 : index
      %15 = vector.load %arg6[%c0, %c0_7, %c0_8] : memref<2x64x256xf32, #tpu.memory_space<vmem>>, vector<1x32x256xf32>
      %16 = vector.shape_cast %15 : vector<1x32x256xf32> to vector<32x256xf32>
      %cst_9 = arith.constant dense<0.000000e+00> : vector<32x8xf32>
      %17 = tpu.matmul %16, %12, %cst_9 {dimension_numbers = #tpu.dot_dimension_numbers<[1], [0], [0], [1], [0, 0, 1, 1], [], []>} : vector<32x256xf32>, vector<256x8xf32>, vector<32x8xf32> -> vector<32x8xf32>
      %18 = arith.addf %13, %17 : vector<32x8xf32>
      %19 = arith.mulf %16, %16 : vector<32x256xf32>
      %cst_10 = arith.constant dense<0.000000e+00> : vector<32x8xf32>
      %20 = tpu.matmul %19, %12, %cst_10 {dimension_numbers = #tpu.dot_dimension_numbers<[1], [0], [0], [1], [0, 0, 1, 1], [], []>} : vector<32x256xf32>, vector<256x8xf32>, vector<32x8xf32> -> vector<32x8xf32>
      %21 = arith.addf %14, %20 : vector<32x8xf32>
      %c1 = arith.constant 1 : index
      %c0_11 = arith.constant 0 : index
      %c0_12 = arith.constant 0 : index
      %22 = vector.load %arg6[%c1, %c0_11, %c0_12] : memref<2x64x256xf32, #tpu.memory_space<vmem>>, vector<1x32x256xf32>
      %23 = vector.shape_cast %22 : vector<1x32x256xf32> to vector<32x256xf32>
      %cst_13 = arith.constant dense<0.000000e+00> : vector<32x8xf32>
      %24 = tpu.matmul %23, %12, %cst_13 {dimension_numbers = #tpu.dot_dimension_numbers<[1], [0], [0], [1], [0, 0, 1, 1], [], []>} : vector<32x256xf32>, vector<256x8xf32>, vector<32x8xf32> -> vector<32x8xf32>
      %25 = arith.addf %18, %24 : vector<32x8xf32>
      %26 = arith.mulf %23, %23 : vector<32x256xf32>
      %cst_14 = arith.constant dense<0.000000e+00> : vector<32x8xf32>
      %27 = tpu.matmul %26, %12, %cst_14 {dimension_numbers = #tpu.dot_dimension_numbers<[1], [0], [0], [1], [0, 0, 1, 1], [], []>} : vector<32x256xf32>, vector<256x8xf32>, vector<32x8xf32> -> vector<32x8xf32>
      %28 = arith.addf %21, %27 : vector<32x8xf32>
      %29 = vector.extract_strided_slice %25 {offsets = [0, 0], sizes = [32, 1], strides = [1, 1]} : vector<32x8xf32> to vector<32x1xf32>
      %cst_15 = arith.constant 0.001953125 : f32
      %30 = vector.broadcast %cst_15 : f32 to vector<32x1xf32>
      %31 = arith.mulf %29, %30 : vector<32x1xf32>
      %32 = vector.extract_strided_slice %28 {offsets = [0, 0], sizes = [32, 1], strides = [1, 1]} : vector<32x8xf32> to vector<32x1xf32>
      %cst_16 = arith.constant 0.001953125 : f32
      %33 = vector.broadcast %cst_16 : f32 to vector<32x1xf32>
      %34 = arith.mulf %32, %33 : vector<32x1xf32>
      %35 = arith.mulf %31, %31 : vector<32x1xf32>
      %36 = arith.subf %34, %35 : vector<32x1xf32>
      %cst_17 = arith.constant 0.000000e+00 : f32
      %37 = vector.broadcast %cst_17 : f32 to vector<32x1xf32>
      %38 = arith.maximumf %36, %37 : vector<32x1xf32>
      %c0_18 = arith.constant 0 : index
      %c0_19 = arith.constant 0 : index
      %c0_20 = arith.constant 0 : index
      %39 = vector.load %arg3[%c0_18, %c0_19, %c0_20] : memref<1x48x1xf32, #tpu.memory_space<vmem>>, vector<1x32x1xf32>
      %40 = vector.shape_cast %39 : vector<1x32x1xf32> to vector<32x1xf32>
      %cst_21 = arith.constant 9.99999974E-6 : f32
      %41 = vector.broadcast %cst_21 : f32 to vector<32x1xf32>
      %42 = arith.addf %38, %41 : vector<32x1xf32>
      %43 = math.rsqrt %42 : vector<32x1xf32>
      %44 = arith.mulf %40, %43 : vector<32x1xf32>
      %c0_22 = arith.constant 0 : index
      %c0_23 = arith.constant 0 : index
      %c0_24 = arith.constant 0 : index
      %45 = vector.load %arg4[%c0_22, %c0_23, %c0_24] : memref<1x48x1xf32, #tpu.memory_space<vmem>>, vector<1x32x1xf32>
      %46 = vector.shape_cast %45 : vector<1x32x1xf32> to vector<32x1xf32>
      %47 = arith.mulf %31, %44 : vector<32x1xf32>
      %48 = arith.subf %46, %47 : vector<32x1xf32>
      %c0_25 = arith.constant 0 : index
      %c0_26 = arith.constant 0 : index
      %c0_27 = arith.constant 0 : index
      %49 = vector.load %arg6[%c0_25, %c0_26, %c0_27] : memref<2x64x256xf32, #tpu.memory_space<vmem>>, vector<1x32x256xf32>
      %50 = vector.shape_cast %49 : vector<1x32x256xf32> to vector<32x256xf32>
      %51 = vector.broadcast %44 : vector<32x1xf32> to vector<32x256xf32>
      %52 = arith.mulf %50, %51 : vector<32x256xf32>
      %53 = vector.broadcast %48 : vector<32x1xf32> to vector<32x256xf32>
      %54 = arith.addf %52, %53 : vector<32x256xf32>
      %cst_28 = arith.constant 0.000000e+00 : f32
      %55 = vector.broadcast %cst_28 : f32 to vector<32x256xf32>
      %56 = arith.maximumf %54, %55 : vector<32x256xf32>
      %57 = arith.truncf %56 : vector<32x256xf32> to vector<32x256xbf16>
      %c0_29 = arith.constant 0 : index
      %c128 = arith.constant 128 : index
      %58 = vector.load %arg7[%c0_29, %c128] : memref<48x768xbf16, #tpu.memory_space<vmem>>, vector<32x256xbf16>
      tpu.vector_store %arg7[%c0_29, %c128], %57 {strides = array<i32>} : memref<48x768xbf16, #tpu.memory_space<vmem>>, vector<32x256xbf16>,
      %c1_30 = arith.constant 1 : index
      %c0_31 = arith.constant 0 : index
      %c0_32 = arith.constant 0 : index
      %59 = vector.load %arg6[%c1_30, %c0_31, %c0_32] : memref<2x64x256xf32, #tpu.memory_space<vmem>>, vector<1x32x256xf32>
      %60 = vector.shape_cast %59 : vector<1x32x256xf32> to vector<32x256xf32>
      %61 = vector.broadcast %44 : vector<32x1xf32> to vector<32x256xf32>
      %62 = arith.mulf %60, %61 : vector<32x256xf32>
      %63 = vector.broadcast %48 : vector<32x1xf32> to vector<32x256xf32>
      %64 = arith.addf %62, %63 : vector<32x256xf32>
      %cst_33 = arith.constant 0.000000e+00 : f32
      %65 = vector.broadcast %cst_33 : f32 to vector<32x256xf32>
      %66 = arith.maximumf %64, %65 : vector<32x256xf32>
      %67 = arith.truncf %66 : vector<32x256xf32> to vector<32x256xbf16>
      %c0_34 = arith.constant 0 : index
      %c384 = arith.constant 384 : index
      %68 = vector.load %arg7[%c0_34, %c384] : memref<48x768xbf16, #tpu.memory_space<vmem>>, vector<32x256xbf16>
      tpu.vector_store %arg7[%c0_34, %c384], %67 {strides = array<i32>} : memref<48x768xbf16, #tpu.memory_space<vmem>>, vector<32x256xbf16>,
      %cst_35 = arith.constant 0.000000e+00 : f32
      %69 = vector.broadcast %cst_35 : f32 to vector<16x512xf32>
      %c0_36 = arith.constant 0 : index
      %c111 = arith.constant 111 : index
      %70 = vector.load %arg7[%c0_36, %c111] : memref<48x768xbf16, #tpu.memory_space<vmem>>, vector<32x512xbf16>
      %c0_37 = arith.constant 0 : index
      %c0_38 = arith.constant 0 : index
      %71 = vector.load %arg2[%c0_37, %c0_38] : memref<9x512xbf16, #tpu.memory_space<vmem>>, vector<1x512xbf16>
      %72 = vector.broadcast %71 : vector<1x512xbf16> to vector<32x512xbf16>
      %73 = arith.mulf %70, %72 : vector<32x512xbf16>
      %c0_39 = arith.constant 0 : index
      %c0_40 = arith.constant 0 : index
      %c0_41 = arith.constant 0 : index
      %74 = vector.load %arg5[%c0_39, %c0_40, %c0_41] : memref<1x144x48xbf16, #tpu.memory_space<vmem>>, vector<1x16x32xbf16>
      %75 = vector.shape_cast %74 : vector<1x16x32xbf16> to vector<16x32xbf16>
      %cst_42 = arith.constant dense<0.000000e+00> : vector<16x512xf32>
      %76 = tpu.matmul %75, %73, %cst_42 {dimension_numbers = #tpu.dot_dimension_numbers<[1], [0], [0], [1], [0, 0, 1, 1], [], []>} : vector<16x32xbf16>, vector<32x512xbf16>, vector<16x512xf32> -> vector<16x512xf32>
      %77 = arith.addf %69, %76 : vector<16x512xf32>
      %c0_43 = arith.constant 0 : index
      %c112 = arith.constant 112 : index
      %78 = vector.load %arg7[%c0_43, %c112] : memref<48x768xbf16, #tpu.memory_space<vmem>>, vector<32x512xbf16>
      %c1_44 = arith.constant 1 : index
      %c0_45 = arith.constant 0 : index
      %79 = vector.load %arg2[%c1_44, %c0_45] : memref<9x512xbf16, #tpu.memory_space<vmem>>, vector<1x512xbf16>
      %80 = vector.broadcast %79 : vector<1x512xbf16> to vector<32x512xbf16>
      %81 = arith.mulf %78, %80 : vector<32x512xbf16>
      %c0_46 = arith.constant 0 : index
      %c16 = arith.constant 16 : index
      %c0_47 = arith.constant 0 : index
      %82 = vector.load %arg5[%c0_46, %c16, %c0_47] : memref<1x144x48xbf16, #tpu.memory_space<vmem>>, vector<1x16x32xbf16>
      %83 = vector.shape_cast %82 : vector<1x16x32xbf16> to vector<16x32xbf16>
      %cst_48 = arith.constant dense<0.000000e+00> : vector<16x512xf32>
      %84 = tpu.matmul %83, %81, %cst_48 {dimension_numbers = #tpu.dot_dimension_numbers<[1], [0], [0], [1], [0, 0, 1, 1], [], []>} : vector<16x32xbf16>, vector<32x512xbf16>, vector<16x512xf32> -> vector<16x512xf32>
      %85 = arith.addf %77, %84 : vector<16x512xf32>
      %c0_49 = arith.constant 0 : index
      %c113 = arith.constant 113 : index
      %86 = vector.load %arg7[%c0_49, %c113] : memref<48x768xbf16, #tpu.memory_space<vmem>>, vector<32x512xbf16>
      %c2 = arith.constant 2 : index
      %c0_50 = arith.constant 0 : index
      %87 = vector.load %arg2[%c2, %c0_50] : memref<9x512xbf16, #tpu.memory_space<vmem>>, vector<1x512xbf16>
      %88 = vector.broadcast %87 : vector<1x512xbf16> to vector<32x512xbf16>
      %89 = arith.mulf %86, %88 : vector<32x512xbf16>
      %c0_51 = arith.constant 0 : index
      %c32 = arith.constant 32 : index
      %c0_52 = arith.constant 0 : index
      %90 = vector.load %arg5[%c0_51, %c32, %c0_52] : memref<1x144x48xbf16, #tpu.memory_space<vmem>>, vector<1x16x32xbf16>
      %91 = vector.shape_cast %90 : vector<1x16x32xbf16> to vector<16x32xbf16>
      %cst_53 = arith.constant dense<0.000000e+00> : vector<16x512xf32>
      %92 = tpu.matmul %91, %89, %cst_53 {dimension_numbers = #tpu.dot_dimension_numbers<[1], [0], [0], [1], [0, 0, 1, 1], [], []>} : vector<16x32xbf16>, vector<32x512xbf16>, vector<16x512xf32> -> vector<16x512xf32>
      %93 = arith.addf %85, %92 : vector<16x512xf32>
      %c0_54 = arith.constant 0 : index
      %c127 = arith.constant 127 : index
      %94 = vector.load %arg7[%c0_54, %c127] : memref<48x768xbf16, #tpu.memory_space<vmem>>, vector<32x512xbf16>
      %c3 = arith.constant 3 : index
      %c0_55 = arith.constant 0 : index
      %95 = vector.load %arg2[%c3, %c0_55] : memref<9x512xbf16, #tpu.memory_space<vmem>>, vector<1x512xbf16>
      %96 = vector.broadcast %95 : vector<1x512xbf16> to vector<32x512xbf16>
      %97 = arith.mulf %94, %96 : vector<32x512xbf16>
      %c0_56 = arith.constant 0 : index
      %c48 = arith.constant 48 : index
      %c0_57 = arith.constant 0 : index
      %98 = vector.load %arg5[%c0_56, %c48, %c0_57] : memref<1x144x48xbf16, #tpu.memory_space<vmem>>, vector<1x16x32xbf16>
      %99 = vector.shape_cast %98 : vector<1x16x32xbf16> to vector<16x32xbf16>
      %cst_58 = arith.constant dense<0.000000e+00> : vector<16x512xf32>
      %100 = tpu.matmul %99, %97, %cst_58 {dimension_numbers = #tpu.dot_dimension_numbers<[1], [0], [0], [1], [0, 0, 1, 1], [], []>} : vector<16x32xbf16>, vector<32x512xbf16>, vector<16x512xf32> -> vector<16x512xf32>
      %101 = arith.addf %93, %100 : vector<16x512xf32>
      %c0_59 = arith.constant 0 : index
      %c128_60 = arith.constant 128 : index
      %102 = vector.load %arg7[%c0_59, %c128_60] : memref<48x768xbf16, #tpu.memory_space<vmem>>, vector<32x512xbf16>
      %c0_61 = arith.constant 0 : index
      %c64 = arith.constant 64 : index
      %c0_62 = arith.constant 0 : index
      %103 = vector.load %arg5[%c0_61, %c64, %c0_62] : memref<1x144x48xbf16, #tpu.memory_space<vmem>>, vector<1x16x32xbf16>
      %104 = vector.shape_cast %103 : vector<1x16x32xbf16> to vector<16x32xbf16>
      %cst_63 = arith.constant dense<0.000000e+00> : vector<16x512xf32>
      %105 = tpu.matmul %104, %102, %cst_63 {dimension_numbers = #tpu.dot_dimension_numbers<[1], [0], [0], [1], [0, 0, 1, 1], [], []>} : vector<16x32xbf16>, vector<32x512xbf16>, vector<16x512xf32> -> vector<16x512xf32>
      %106 = arith.addf %101, %105 : vector<16x512xf32>
      %c0_64 = arith.constant 0 : index
      %c129 = arith.constant 129 : index
      %107 = vector.load %arg7[%c0_64, %c129] : memref<48x768xbf16, #tpu.memory_space<vmem>>, vector<32x512xbf16>
      %c5 = arith.constant 5 : index
      %c0_65 = arith.constant 0 : index
      %108 = vector.load %arg2[%c5, %c0_65] : memref<9x512xbf16, #tpu.memory_space<vmem>>, vector<1x512xbf16>
      %109 = vector.broadcast %108 : vector<1x512xbf16> to vector<32x512xbf16>
      %110 = arith.mulf %107, %109 : vector<32x512xbf16>
      %c0_66 = arith.constant 0 : index
      %c80 = arith.constant 80 : index
      %c0_67 = arith.constant 0 : index
      %111 = vector.load %arg5[%c0_66, %c80, %c0_67] : memref<1x144x48xbf16, #tpu.memory_space<vmem>>, vector<1x16x32xbf16>
      %112 = vector.shape_cast %111 : vector<1x16x32xbf16> to vector<16x32xbf16>
      %cst_68 = arith.constant dense<0.000000e+00> : vector<16x512xf32>
      %113 = tpu.matmul %112, %110, %cst_68 {dimension_numbers = #tpu.dot_dimension_numbers<[1], [0], [0], [1], [0, 0, 1, 1], [], []>} : vector<16x32xbf16>, vector<32x512xbf16>, vector<16x512xf32> -> vector<16x512xf32>
      %114 = arith.addf %106, %113 : vector<16x512xf32>
      %c0_69 = arith.constant 0 : index
      %c143 = arith.constant 143 : index
      %115 = vector.load %arg7[%c0_69, %c143] : memref<48x768xbf16, #tpu.memory_space<vmem>>, vector<32x512xbf16>
      %c6 = arith.constant 6 : index
      %c0_70 = arith.constant 0 : index
      %116 = vector.load %arg2[%c6, %c0_70] : memref<9x512xbf16, #tpu.memory_space<vmem>>, vector<1x512xbf16>
      %117 = vector.broadcast %116 : vector<1x512xbf16> to vector<32x512xbf16>
      %118 = arith.mulf %115, %117 : vector<32x512xbf16>
      %c0_71 = arith.constant 0 : index
      %c96 = arith.constant 96 : index
      %c0_72 = arith.constant 0 : index
      %119 = vector.load %arg5[%c0_71, %c96, %c0_72] : memref<1x144x48xbf16, #tpu.memory_space<vmem>>, vector<1x16x32xbf16>
      %120 = vector.shape_cast %119 : vector<1x16x32xbf16> to vector<16x32xbf16>
      %cst_73 = arith.constant dense<0.000000e+00> : vector<16x512xf32>
      %121 = tpu.matmul %120, %118, %cst_73 {dimension_numbers = #tpu.dot_dimension_numbers<[1], [0], [0], [1], [0, 0, 1, 1], [], []>} : vector<16x32xbf16>, vector<32x512xbf16>, vector<16x512xf32> -> vector<16x512xf32>
      %122 = arith.addf %114, %121 : vector<16x512xf32>
      %c0_74 = arith.constant 0 : index
      %c144 = arith.constant 144 : index
      %123 = vector.load %arg7[%c0_74, %c144] : memref<48x768xbf16, #tpu.memory_space<vmem>>, vector<32x512xbf16>
      %c7 = arith.constant 7 : index
      %c0_75 = arith.constant 0 : index
      %124 = vector.load %arg2[%c7, %c0_75] : memref<9x512xbf16, #tpu.memory_space<vmem>>, vector<1x512xbf16>
      %125 = vector.broadcast %124 : vector<1x512xbf16> to vector<32x512xbf16>
      %126 = arith.mulf %123, %125 : vector<32x512xbf16>
      %c0_76 = arith.constant 0 : index
      %c112_77 = arith.constant 112 : index
      %c0_78 = arith.constant 0 : index
      %127 = vector.load %arg5[%c0_76, %c112_77, %c0_78] : memref<1x144x48xbf16, #tpu.memory_space<vmem>>, vector<1x16x32xbf16>
      %128 = vector.shape_cast %127 : vector<1x16x32xbf16> to vector<16x32xbf16>
      %cst_79 = arith.constant dense<0.000000e+00> : vector<16x512xf32>
      %129 = tpu.matmul %128, %126, %cst_79 {dimension_numbers = #tpu.dot_dimension_numbers<[1], [0], [0], [1], [0, 0, 1, 1], [], []>} : vector<16x32xbf16>, vector<32x512xbf16>, vector<16x512xf32> -> vector<16x512xf32>
      %130 = arith.addf %122, %129 : vector<16x512xf32>
      %c0_80 = arith.constant 0 : index
      %c145 = arith.constant 145 : index
      %131 = vector.load %arg7[%c0_80, %c145] : memref<48x768xbf16, #tpu.memory_space<vmem>>, vector<32x512xbf16>
      %c8 = arith.constant 8 : index
      %c0_81 = arith.constant 0 : index
      %132 = vector.load %arg2[%c8, %c0_81] : memref<9x512xbf16, #tpu.memory_space<vmem>>, vector<1x512xbf16>
      %133 = vector.broadcast %132 : vector<1x512xbf16> to vector<32x512xbf16>
      %134 = arith.mulf %131, %133 : vector<32x512xbf16>
      %c0_82 = arith.constant 0 : index
      %c128_83 = arith.constant 128 : index
      %c0_84 = arith.constant 0 : index
      %135 = vector.load %arg5[%c0_82, %c128_83, %c0_84] : memref<1x144x48xbf16, #tpu.memory_space<vmem>>, vector<1x16x32xbf16>
      %136 = vector.shape_cast %135 : vector<1x16x32xbf16> to vector<16x32xbf16>
      %cst_85 = arith.constant dense<0.000000e+00> : vector<16x512xf32>
      %137 = tpu.matmul %136, %134, %cst_85 {dimension_numbers = #tpu.dot_dimension_numbers<[1], [0], [0], [1], [0, 0, 1, 1], [], []>} : vector<16x32xbf16>, vector<32x512xbf16>, vector<16x512xf32> -> vector<16x512xf32>
      %138 = arith.addf %130, %137 : vector<16x512xf32>
      %139 = vector.extract_strided_slice %138 {offsets = [0, 0], sizes = [16, 256], strides = [1, 1]} : vector<16x512xf32> to vector<16x256xf32>
      %c0_86 = arith.constant 0 : index
      %c32_87 = arith.constant 32 : index
      %c0_88 = arith.constant 0 : index
      %140 = vector.load %arg6[%c0_86, %c32_87, %c0_88] : memref<2x64x256xf32, #tpu.memory_space<vmem>>, vector<1x16x256xf32>
      %141 = vector.shape_cast %140 : vector<1x16x256xf32> to vector<16x256xf32>
      %142 = vector.shape_cast %139 : vector<16x256xf32> to vector<1x16x256xf32>
      tpu.vector_store %arg6[%c0_86, %c32_87, %c0_88], %142 {strides = array<i32>} : memref<2x64x256xf32, #tpu.memory_space<vmem>>, vector<1x16x256xf32>,
      %143 = vector.extract_strided_slice %138 {offsets = [0, 256], sizes = [16, 256], strides = [1, 1]} : vector<16x512xf32> to vector<16x256xf32>
      %c1_89 = arith.constant 1 : index
      %c32_90 = arith.constant 32 : index
      %c0_91 = arith.constant 0 : index
      %144 = vector.load %arg6[%c1_89, %c32_90, %c0_91] : memref<2x64x256xf32, #tpu.memory_space<vmem>>, vector<1x16x256xf32>
      %145 = vector.shape_cast %144 : vector<1x16x256xf32> to vector<16x256xf32>
      %146 = vector.shape_cast %143 : vector<16x256xf32> to vector<1x16x256xf32>
      tpu.vector_store %arg6[%c1_89, %c32_90, %c0_91], %146 {strides = array<i32>} : memref<2x64x256xf32, #tpu.memory_space<vmem>>, vector<1x16x256xf32>,
    } else {
    }
    %c2_i32 = arith.constant 2 : i32
    %9 = arith.cmpi eq, %arg0, %c2_i32 : i32
    %10 = arith.extui %9 : i1 to i32
    %c0_i32_4 = arith.constant 0 : i32
    %11 = arith.cmpi ne, %10, %c0_i32_4 : i32
    scf.if %11 {
      %cst = arith.constant 1.000000e+00 : f32
      %12 = vector.broadcast %cst : f32 to vector<256x8xf32>
      %cst_5 = arith.constant 0.000000e+00 : f32
      %13 = vector.broadcast %cst_5 : f32 to vector<48x8xf32>
      %cst_6 = arith.constant 0.000000e+00 : f32
      %14 = vector.broadcast %cst_6 : f32 to vector<48x8xf32>
      %c0 = arith.constant 0 : index
      %c0_7 = arith.constant 0 : index
      %c0_8 = arith.constant 0 : index
      %15 = vector.load %arg6[%c0, %c0_7, %c0_8] : memref<2x64x256xf32, #tpu.memory_space<vmem>>, vector<1x48x256xf32>
      %16 = vector.shape_cast %15 : vector<1x48x256xf32> to vector<48x256xf32>
      %cst_9 = arith.constant dense<0.000000e+00> : vector<48x8xf32>
      %17 = tpu.matmul %16, %12, %cst_9 {dimension_numbers = #tpu.dot_dimension_numbers<[1], [0], [0], [1], [0, 0, 1, 1], [], []>} : vector<48x256xf32>, vector<256x8xf32>, vector<48x8xf32> -> vector<48x8xf32>
      %18 = arith.addf %13, %17 : vector<48x8xf32>
      %19 = arith.mulf %16, %16 : vector<48x256xf32>
      %cst_10 = arith.constant dense<0.000000e+00> : vector<48x8xf32>
      %20 = tpu.matmul %19, %12, %cst_10 {dimension_numbers = #tpu.dot_dimension_numbers<[1], [0], [0], [1], [0, 0, 1, 1], [], []>} : vector<48x256xf32>, vector<256x8xf32>, vector<48x8xf32> -> vector<48x8xf32>
      %21 = arith.addf %14, %20 : vector<48x8xf32>
      %c1 = arith.constant 1 : index
      %c0_11 = arith.constant 0 : index
      %c0_12 = arith.constant 0 : index
      %22 = vector.load %arg6[%c1, %c0_11, %c0_12] : memref<2x64x256xf32, #tpu.memory_space<vmem>>, vector<1x48x256xf32>
      %23 = vector.shape_cast %22 : vector<1x48x256xf32> to vector<48x256xf32>
      %cst_13 = arith.constant dense<0.000000e+00> : vector<48x8xf32>
      %24 = tpu.matmul %23, %12, %cst_13 {dimension_numbers = #tpu.dot_dimension_numbers<[1], [0], [0], [1], [0, 0, 1, 1], [], []>} : vector<48x256xf32>, vector<256x8xf32>, vector<48x8xf32> -> vector<48x8xf32>
      %25 = arith.addf %18, %24 : vector<48x8xf32>
      %26 = arith.mulf %23, %23 : vector<48x256xf32>
      %cst_14 = arith.constant dense<0.000000e+00> : vector<48x8xf32>
      %27 = tpu.matmul %26, %12, %cst_14 {dimension_numbers = #tpu.dot_dimension_numbers<[1], [0], [0], [1], [0, 0, 1, 1], [], []>} : vector<48x256xf32>, vector<256x8xf32>, vector<48x8xf32> -> vector<48x8xf32>
      %28 = arith.addf %21, %27 : vector<48x8xf32>
      %29 = vector.extract_strided_slice %25 {offsets = [0, 0], sizes = [48, 1], strides = [1, 1]} : vector<48x8xf32> to vector<48x1xf32>
      %cst_15 = arith.constant 0.001953125 : f32
      %30 = vector.broadcast %cst_15 : f32 to vector<48x1xf32>
      %31 = arith.mulf %29, %30 : vector<48x1xf32>
      %32 = vector.extract_strided_slice %28 {offsets = [0, 0], sizes = [48, 1], strides = [1, 1]} : vector<48x8xf32> to vector<48x1xf32>
      %cst_16 = arith.constant 0.001953125 : f32
      %33 = vector.broadcast %cst_16 : f32 to vector<48x1xf32>
      %34 = arith.mulf %32, %33 : vector<48x1xf32>
      %35 = arith.mulf %31, %31 : vector<48x1xf32>
      %36 = arith.subf %34, %35 : vector<48x1xf32>
      %cst_17 = arith.constant 0.000000e+00 : f32
      %37 = vector.broadcast %cst_17 : f32 to vector<48x1xf32>
      %38 = arith.maximumf %36, %37 : vector<48x1xf32>
      %c0_18 = arith.constant 0 : index
      %c0_19 = arith.constant 0 : index
      %c0_20 = arith.constant 0 : index
      %39 = vector.load %arg3[%c0_18, %c0_19, %c0_20] : memref<1x48x1xf32, #tpu.memory_space<vmem>>, vector<1x48x1xf32>
      %40 = vector.shape_cast %39 : vector<1x48x1xf32> to vector<48x1xf32>
      %cst_21 = arith.constant 9.99999974E-6 : f32
      %41 = vector.broadcast %cst_21 : f32 to vector<48x1xf32>
      %42 = arith.addf %38, %41 : vector<48x1xf32>
      %43 = math.rsqrt %42 : vector<48x1xf32>
      %44 = arith.mulf %40, %43 : vector<48x1xf32>
      %c0_22 = arith.constant 0 : index
      %c0_23 = arith.constant 0 : index
      %c0_24 = arith.constant 0 : index
      %45 = vector.load %arg4[%c0_22, %c0_23, %c0_24] : memref<1x48x1xf32, #tpu.memory_space<vmem>>, vector<1x48x1xf32>
      %46 = vector.shape_cast %45 : vector<1x48x1xf32> to vector<48x1xf32>
      %47 = arith.mulf %31, %44 : vector<48x1xf32>
      %48 = arith.subf %46, %47 : vector<48x1xf32>
      %c0_25 = arith.constant 0 : index
      %c0_26 = arith.constant 0 : index
      %c0_27 = arith.constant 0 : index
      %49 = vector.load %arg6[%c0_25, %c0_26, %c0_27] : memref<2x64x256xf32, #tpu.memory_space<vmem>>, vector<1x48x256xf32>
      %50 = vector.shape_cast %49 : vector<1x48x256xf32> to vector<48x256xf32>
      %51 = vector.broadcast %44 : vector<48x1xf32> to vector<48x256xf32>
      %52 = arith.mulf %50, %51 : vector<48x256xf32>
      %53 = vector.broadcast %48 : vector<48x1xf32> to vector<48x256xf32>
      %54 = arith.addf %52, %53 : vector<48x256xf32>
      %cst_28 = arith.constant 0.000000e+00 : f32
      %55 = vector.broadcast %cst_28 : f32 to vector<48x256xf32>
      %56 = arith.maximumf %54, %55 : vector<48x256xf32>
      %57 = arith.truncf %56 : vector<48x256xf32> to vector<48x256xbf16>
      %c0_29 = arith.constant 0 : index
      %c128 = arith.constant 128 : index
      %58 = vector.load %arg7[%c0_29, %c128] : memref<48x768xbf16, #tpu.memory_space<vmem>>, vector<48x256xbf16>
      tpu.vector_store %arg7[%c0_29, %c128], %57 {strides = array<i32>} : memref<48x768xbf16, #tpu.memory_space<vmem>>, vector<48x256xbf16>,
      %c1_30 = arith.constant 1 : index
      %c0_31 = arith.constant 0 : index
      %c0_32 = arith.constant 0 : index
      %59 = vector.load %arg6[%c1_30, %c0_31, %c0_32] : memref<2x64x256xf32, #tpu.memory_space<vmem>>, vector<1x48x256xf32>
      %60 = vector.shape_cast %59 : vector<1x48x256xf32> to vector<48x256xf32>
      %61 = vector.broadcast %44 : vector<48x1xf32> to vector<48x256xf32>
      %62 = arith.mulf %60, %61 : vector<48x256xf32>
      %63 = vector.broadcast %48 : vector<48x1xf32> to vector<48x256xf32>
      %64 = arith.addf %62, %63 : vector<48x256xf32>
      %cst_33 = arith.constant 0.000000e+00 : f32
      %65 = vector.broadcast %cst_33 : f32 to vector<48x256xf32>
      %66 = arith.maximumf %64, %65 : vector<48x256xf32>
      %67 = arith.truncf %66 : vector<48x256xf32> to vector<48x256xbf16>
      %c0_34 = arith.constant 0 : index
      %c384 = arith.constant 384 : index
      %68 = vector.load %arg7[%c0_34, %c384] : memref<48x768xbf16, #tpu.memory_space<vmem>>, vector<48x256xbf16>
      tpu.vector_store %arg7[%c0_34, %c384], %67 {strides = array<i32>} : memref<48x768xbf16, #tpu.memory_space<vmem>>, vector<48x256xbf16>,
      %cst_35 = arith.constant 0.000000e+00 : f32
      %69 = vector.broadcast %cst_35 : f32 to vector<16x512xf32>
      %c0_36 = arith.constant 0 : index
      %c111 = arith.constant 111 : index
      %70 = vector.load %arg7[%c0_36, %c111] : memref<48x768xbf16, #tpu.memory_space<vmem>>, vector<48x512xbf16>
      %c0_37 = arith.constant 0 : index
      %c0_38 = arith.constant 0 : index
      %71 = vector.load %arg2[%c0_37, %c0_38] : memref<9x512xbf16, #tpu.memory_space<vmem>>, vector<1x512xbf16>
      %72 = vector.broadcast %71 : vector<1x512xbf16> to vector<48x512xbf16>
      %73 = arith.mulf %70, %72 : vector<48x512xbf16>
      %c0_39 = arith.constant 0 : index
      %c0_40 = arith.constant 0 : index
      %c0_41 = arith.constant 0 : index
      %74 = vector.load %arg5[%c0_39, %c0_40, %c0_41] : memref<1x144x48xbf16, #tpu.memory_space<vmem>>, vector<1x16x48xbf16>
      %75 = vector.shape_cast %74 : vector<1x16x48xbf16> to vector<16x48xbf16>
      %cst_42 = arith.constant dense<0.000000e+00> : vector<16x512xf32>
      %76 = tpu.matmul %75, %73, %cst_42 {dimension_numbers = #tpu.dot_dimension_numbers<[1], [0], [0], [1], [0, 0, 1, 1], [], []>} : vector<16x48xbf16>, vector<48x512xbf16>, vector<16x512xf32> -> vector<16x512xf32>
      %77 = arith.addf %69, %76 : vector<16x512xf32>
      %c0_43 = arith.constant 0 : index
      %c112 = arith.constant 112 : index
      %78 = vector.load %arg7[%c0_43, %c112] : memref<48x768xbf16, #tpu.memory_space<vmem>>, vector<48x512xbf16>
      %c1_44 = arith.constant 1 : index
      %c0_45 = arith.constant 0 : index
      %79 = vector.load %arg2[%c1_44, %c0_45] : memref<9x512xbf16, #tpu.memory_space<vmem>>, vector<1x512xbf16>
      %80 = vector.broadcast %79 : vector<1x512xbf16> to vector<48x512xbf16>
      %81 = arith.mulf %78, %80 : vector<48x512xbf16>
      %c0_46 = arith.constant 0 : index
      %c16 = arith.constant 16 : index
      %c0_47 = arith.constant 0 : index
      %82 = vector.load %arg5[%c0_46, %c16, %c0_47] : memref<1x144x48xbf16, #tpu.memory_space<vmem>>, vector<1x16x48xbf16>
      %83 = vector.shape_cast %82 : vector<1x16x48xbf16> to vector<16x48xbf16>
      %cst_48 = arith.constant dense<0.000000e+00> : vector<16x512xf32>
      %84 = tpu.matmul %83, %81, %cst_48 {dimension_numbers = #tpu.dot_dimension_numbers<[1], [0], [0], [1], [0, 0, 1, 1], [], []>} : vector<16x48xbf16>, vector<48x512xbf16>, vector<16x512xf32> -> vector<16x512xf32>
      %85 = arith.addf %77, %84 : vector<16x512xf32>
      %c0_49 = arith.constant 0 : index
      %c113 = arith.constant 113 : index
      %86 = vector.load %arg7[%c0_49, %c113] : memref<48x768xbf16, #tpu.memory_space<vmem>>, vector<48x512xbf16>
      %c2 = arith.constant 2 : index
      %c0_50 = arith.constant 0 : index
      %87 = vector.load %arg2[%c2, %c0_50] : memref<9x512xbf16, #tpu.memory_space<vmem>>, vector<1x512xbf16>
      %88 = vector.broadcast %87 : vector<1x512xbf16> to vector<48x512xbf16>
      %89 = arith.mulf %86, %88 : vector<48x512xbf16>
      %c0_51 = arith.constant 0 : index
      %c32 = arith.constant 32 : index
      %c0_52 = arith.constant 0 : index
      %90 = vector.load %arg5[%c0_51, %c32, %c0_52] : memref<1x144x48xbf16, #tpu.memory_space<vmem>>, vector<1x16x48xbf16>
      %91 = vector.shape_cast %90 : vector<1x16x48xbf16> to vector<16x48xbf16>
      %cst_53 = arith.constant dense<0.000000e+00> : vector<16x512xf32>
      %92 = tpu.matmul %91, %89, %cst_53 {dimension_numbers = #tpu.dot_dimension_numbers<[1], [0], [0], [1], [0, 0, 1, 1], [], []>} : vector<16x48xbf16>, vector<48x512xbf16>, vector<16x512xf32> -> vector<16x512xf32>
      %93 = arith.addf %85, %92 : vector<16x512xf32>
      %c0_54 = arith.constant 0 : index
      %c127 = arith.constant 127 : index
      %94 = vector.load %arg7[%c0_54, %c127] : memref<48x768xbf16, #tpu.memory_space<vmem>>, vector<48x512xbf16>
      %c3 = arith.constant 3 : index
      %c0_55 = arith.constant 0 : index
      %95 = vector.load %arg2[%c3, %c0_55] : memref<9x512xbf16, #tpu.memory_space<vmem>>, vector<1x512xbf16>
      %96 = vector.broadcast %95 : vector<1x512xbf16> to vector<48x512xbf16>
      %97 = arith.mulf %94, %96 : vector<48x512xbf16>
      %c0_56 = arith.constant 0 : index
      %c48 = arith.constant 48 : index
      %c0_57 = arith.constant 0 : index
      %98 = vector.load %arg5[%c0_56, %c48, %c0_57] : memref<1x144x48xbf16, #tpu.memory_space<vmem>>, vector<1x16x48xbf16>
      %99 = vector.shape_cast %98 : vector<1x16x48xbf16> to vector<16x48xbf16>
      %cst_58 = arith.constant dense<0.000000e+00> : vector<16x512xf32>
      %100 = tpu.matmul %99, %97, %cst_58 {dimension_numbers = #tpu.dot_dimension_numbers<[1], [0], [0], [1], [0, 0, 1, 1], [], []>} : vector<16x48xbf16>, vector<48x512xbf16>, vector<16x512xf32> -> vector<16x512xf32>
      %101 = arith.addf %93, %100 : vector<16x512xf32>
      %c0_59 = arith.constant 0 : index
      %c128_60 = arith.constant 128 : index
      %102 = vector.load %arg7[%c0_59, %c128_60] : memref<48x768xbf16, #tpu.memory_space<vmem>>, vector<48x512xbf16>
      %c0_61 = arith.constant 0 : index
      %c64 = arith.constant 64 : index
      %c0_62 = arith.constant 0 : index
      %103 = vector.load %arg5[%c0_61, %c64, %c0_62] : memref<1x144x48xbf16, #tpu.memory_space<vmem>>, vector<1x16x48xbf16>
      %104 = vector.shape_cast %103 : vector<1x16x48xbf16> to vector<16x48xbf16>
      %cst_63 = arith.constant dense<0.000000e+00> : vector<16x512xf32>
      %105 = tpu.matmul %104, %102, %cst_63 {dimension_numbers = #tpu.dot_dimension_numbers<[1], [0], [0], [1], [0, 0, 1, 1], [], []>} : vector<16x48xbf16>, vector<48x512xbf16>, vector<16x512xf32> -> vector<16x512xf32>
      %106 = arith.addf %101, %105 : vector<16x512xf32>
      %c0_64 = arith.constant 0 : index
      %c129 = arith.constant 129 : index
      %107 = vector.load %arg7[%c0_64, %c129] : memref<48x768xbf16, #tpu.memory_space<vmem>>, vector<48x512xbf16>
      %c5 = arith.constant 5 : index
      %c0_65 = arith.constant 0 : index
      %108 = vector.load %arg2[%c5, %c0_65] : memref<9x512xbf16, #tpu.memory_space<vmem>>, vector<1x512xbf16>
      %109 = vector.broadcast %108 : vector<1x512xbf16> to vector<48x512xbf16>
      %110 = arith.mulf %107, %109 : vector<48x512xbf16>
      %c0_66 = arith.constant 0 : index
      %c80 = arith.constant 80 : index
      %c0_67 = arith.constant 0 : index
      %111 = vector.load %arg5[%c0_66, %c80, %c0_67] : memref<1x144x48xbf16, #tpu.memory_space<vmem>>, vector<1x16x48xbf16>
      %112 = vector.shape_cast %111 : vector<1x16x48xbf16> to vector<16x48xbf16>
      %cst_68 = arith.constant dense<0.000000e+00> : vector<16x512xf32>
      %113 = tpu.matmul %112, %110, %cst_68 {dimension_numbers = #tpu.dot_dimension_numbers<[1], [0], [0], [1], [0, 0, 1, 1], [], []>} : vector<16x48xbf16>, vector<48x512xbf16>, vector<16x512xf32> -> vector<16x512xf32>
      %114 = arith.addf %106, %113 : vector<16x512xf32>
      %c0_69 = arith.constant 0 : index
      %c143 = arith.constant 143 : index
      %115 = vector.load %arg7[%c0_69, %c143] : memref<48x768xbf16, #tpu.memory_space<vmem>>, vector<48x512xbf16>
      %c6 = arith.constant 6 : index
      %c0_70 = arith.constant 0 : index
      %116 = vector.load %arg2[%c6, %c0_70] : memref<9x512xbf16, #tpu.memory_space<vmem>>, vector<1x512xbf16>
      %117 = vector.broadcast %116 : vector<1x512xbf16> to vector<48x512xbf16>
      %118 = arith.mulf %115, %117 : vector<48x512xbf16>
      %c0_71 = arith.constant 0 : index
      %c96 = arith.constant 96 : index
      %c0_72 = arith.constant 0 : index
      %119 = vector.load %arg5[%c0_71, %c96, %c0_72] : memref<1x144x48xbf16, #tpu.memory_space<vmem>>, vector<1x16x48xbf16>
      %120 = vector.shape_cast %119 : vector<1x16x48xbf16> to vector<16x48xbf16>
      %cst_73 = arith.constant dense<0.000000e+00> : vector<16x512xf32>
      %121 = tpu.matmul %120, %118, %cst_73 {dimension_numbers = #tpu.dot_dimension_numbers<[1], [0], [0], [1], [0, 0, 1, 1], [], []>} : vector<16x48xbf16>, vector<48x512xbf16>, vector<16x512xf32> -> vector<16x512xf32>
      %122 = arith.addf %114, %121 : vector<16x512xf32>
      %c0_74 = arith.constant 0 : index
      %c144 = arith.constant 144 : index
      %123 = vector.load %arg7[%c0_74, %c144] : memref<48x768xbf16, #tpu.memory_space<vmem>>, vector<48x512xbf16>
      %c7 = arith.constant 7 : index
      %c0_75 = arith.constant 0 : index
      %124 = vector.load %arg2[%c7, %c0_75] : memref<9x512xbf16, #tpu.memory_space<vmem>>, vector<1x512xbf16>
      %125 = vector.broadcast %124 : vector<1x512xbf16> to vector<48x512xbf16>
      %126 = arith.mulf %123, %125 : vector<48x512xbf16>
      %c0_76 = arith.constant 0 : index
      %c112_77 = arith.constant 112 : index
      %c0_78 = arith.constant 0 : index
      %127 = vector.load %arg5[%c0_76, %c112_77, %c0_78] : memref<1x144x48xbf16, #tpu.memory_space<vmem>>, vector<1x16x48xbf16>
      %128 = vector.shape_cast %127 : vector<1x16x48xbf16> to vector<16x48xbf16>
      %cst_79 = arith.constant dense<0.000000e+00> : vector<16x512xf32>
      %129 = tpu.matmul %128, %126, %cst_79 {dimension_numbers = #tpu.dot_dimension_numbers<[1], [0], [0], [1], [0, 0, 1, 1], [], []>} : vector<16x48xbf16>, vector<48x512xbf16>, vector<16x512xf32> -> vector<16x512xf32>
      %130 = arith.addf %122, %129 : vector<16x512xf32>
      %c0_80 = arith.constant 0 : index
      %c145 = arith.constant 145 : index
      %131 = vector.load %arg7[%c0_80, %c145] : memref<48x768xbf16, #tpu.memory_space<vmem>>, vector<48x512xbf16>
      %c8 = arith.constant 8 : index
      %c0_81 = arith.constant 0 : index
      %132 = vector.load %arg2[%c8, %c0_81] : memref<9x512xbf16, #tpu.memory_space<vmem>>, vector<1x512xbf16>
      %133 = vector.broadcast %132 : vector<1x512xbf16> to vector<48x512xbf16>
      %134 = arith.mulf %131, %133 : vector<48x512xbf16>
      %c0_82 = arith.constant 0 : index
      %c128_83 = arith.constant 128 : index
      %c0_84 = arith.constant 0 : index
      %135 = vector.load %arg5[%c0_82, %c128_83, %c0_84] : memref<1x144x48xbf16, #tpu.memory_space<vmem>>, vector<1x16x48xbf16>
      %136 = vector.shape_cast %135 : vector<1x16x48xbf16> to vector<16x48xbf16>
      %cst_85 = arith.constant dense<0.000000e+00> : vector<16x512xf32>
      %137 = tpu.matmul %136, %134, %cst_85 {dimension_numbers = #tpu.dot_dimension_numbers<[1], [0], [0], [1], [0, 0, 1, 1], [], []>} : vector<16x48xbf16>, vector<48x512xbf16>, vector<16x512xf32> -> vector<16x512xf32>
      %138 = arith.addf %130, %137 : vector<16x512xf32>
      %139 = vector.extract_strided_slice %138 {offsets = [0, 0], sizes = [16, 256], strides = [1, 1]} : vector<16x512xf32> to vector<16x256xf32>
      %c0_86 = arith.constant 0 : index
      %c48_87 = arith.constant 48 : index
      %c0_88 = arith.constant 0 : index
      %140 = vector.load %arg6[%c0_86, %c48_87, %c0_88] : memref<2x64x256xf32, #tpu.memory_space<vmem>>, vector<1x16x256xf32>
      %141 = vector.shape_cast %140 : vector<1x16x256xf32> to vector<16x256xf32>
      %142 = vector.shape_cast %139 : vector<16x256xf32> to vector<1x16x256xf32>
      tpu.vector_store %arg6[%c0_86, %c48_87, %c0_88], %142 {strides = array<i32>} : memref<2x64x256xf32, #tpu.memory_space<vmem>>, vector<1x16x256xf32>,
      %143 = vector.extract_strided_slice %138 {offsets = [0, 256], sizes = [16, 256], strides = [1, 1]} : vector<16x512xf32> to vector<16x256xf32>
      %c1_89 = arith.constant 1 : index
      %c48_90 = arith.constant 48 : index
      %c0_91 = arith.constant 0 : index
      %144 = vector.load %arg6[%c1_89, %c48_90, %c0_91] : memref<2x64x256xf32, #tpu.memory_space<vmem>>, vector<1x16x256xf32>
      %145 = vector.shape_cast %144 : vector<1x16x256xf32> to vector<16x256xf32>
      %146 = vector.shape_cast %143 : vector<16x256xf32> to vector<1x16x256xf32>
      tpu.vector_store %arg6[%c1_89, %c48_90, %c0_91], %146 {strides = array<i32>} : memref<2x64x256xf32, #tpu.memory_space<vmem>>, vector<1x16x256xf32>,
    } else {
    }
    return
  }
  func.func @transform_0(%arg0: i32) -> (i32, i32, i32) {
    %c0_i32 = arith.constant 0 : i32
    %c0_i32_0 = arith.constant 0 : i32
    %c0_i32_1 = arith.constant 0 : i32
    %c0_i32_2 = arith.constant 0 : i32
    return %c0_i32, %c0_i32_0, %c0_i32_1 : i32, i32, i32
  }
  func.func @transform_1(%arg0: i32) -> (i32, i32) {
    %c0_i32 = arith.constant 0 : i32
    %c0_i32_0 = arith.constant 0 : i32
    %c0_i32_1 = arith.constant 0 : i32
    return %c0_i32, %c0_i32_0 : i32, i32
  }
  func.func @transform_2(%arg0: i32) -> (i32, i32, i32) {
    %c0_i32 = arith.constant 0 : i32
    %c0_i32_0 = arith.constant 0 : i32
    %c0_i32_1 = arith.constant 0 : i32
    return %arg0, %c0_i32, %c0_i32_0 : i32, i32, i32
  }
  func.func @transform_3(%arg0: i32) -> (i32, i32, i32) {
    %c0_i32 = arith.constant 0 : i32
    %c0_i32_0 = arith.constant 0 : i32
    %c0_i32_1 = arith.constant 0 : i32
    return %arg0, %c0_i32, %c0_i32_0 : i32, i32, i32
  }
  func.func @transform_4(%arg0: i32) -> (i32, i32, i32) {
    %c0_i32 = arith.constant 0 : i32
    %c0_i32_0 = arith.constant 0 : i32
    %c0_i32_1 = arith.constant 0 : i32
    return %arg0, %c0_i32, %c0_i32_0 : i32, i32, i32
  }
  func.func @transform_5(%arg0: i32) -> (i32, i32, i32) {
    %c0_i32 = arith.constant 0 : i32
    %c0_i32_0 = arith.constant 0 : i32
    %c0_i32_1 = arith.constant 0 : i32
    %c0_i32_2 = arith.constant 0 : i32
    return %c0_i32, %c0_i32_0, %c0_i32_1 : i32, i32, i32
  }
}

</mosaic_0001>

<llo_original>
// kernel: dense_block_forward.1
$region0: #{dense_block_forward.1}
  #allocation0 [shape = 'u32[]', space=smem, size = 0x4, offset = 0x4, fixed_abs, tag = 'smem constant byte address 0x4 - core index']
  #allocation1 [shape = 'u32[144,128]{1,0:T(1,128)}', space=vmem, size = 0x12000, scoped, tag = 'internal scratch']
  #allocation2 [shape = 'bf16[48,768]{1,0:T(8,128)(2,1)}', space=vmem, size = 0x12000, scoped, tag = 'scratch operand']
  %s0 = inlined_call_operand.vmem [shape: f32[2,16,256], index: 0, kind: input, shape index: {}]
  %s1 = inlined_call_operand.vmem [shape: bf16[9,512], index: 1, kind: input, shape index: {}]
  %s2 = inlined_call_operand.vmem [shape: f32[3,48,1], index: 2, kind: input, shape index: {}]
  %s3 = inlined_call_operand.vmem [shape: f32[3,48,1], index: 3, kind: input, shape index: {}]
  %s4 = inlined_call_operand.vmem [shape: bf16[3,144,48], index: 4, kind: input, shape index: {}]
  %s5 = inlined_call_operand.vmem [shape: f32[2,64,256], index: 5, kind: output, shape index: {}]
  %s6 = sld [smem:[#allocation0]]
  $region65: #{dense_block_forward.1} parent=0
    _
  %s8 = ssub.s32 1, %s6
  %s9 = scalar_select 0, %s8, %s6
  loop: start=0, step=1, limit=5
  $region2: #{dense_block_forward.1} parent=0 // loop_pre_header
    _
  $region3: #{dense_block_forward.1} parent=0 // loop_header
    %s11 = sphi 0, %s15
    %p12 = scmp.ge.s32.totalorder %s11, 5
    %s19 = sphi 0, %s19
    %s21 = sphi 0, %s19
    %s22 = sphi 0, %s21
    %s36 = sphi 0, %s22
    %s40 = sphi 0, %s40
    %s42 = sphi 0, %s40
    %s43 = sphi 0, %s42
    %s57 = sphi 0, %s43
    %s63 = sphi 0, %s65
    %s66 = sphi 0, %s63
    %s67 = sphi 0, %s66
    %s83 = sphi 0, %s67
    %s89 = sphi 0, %s91
    %s92 = sphi 0, %s89
    %s93 = sphi 0, %s92
    %s109 = sphi 0, %s93
    %s115 = sphi 0, %s117
    %s118 = sphi 0, %s115
    %s119 = sphi 0, %s118
    %s135 = sphi 0, %s119
    %s139 = sphi 0, %s139
    %s141 = sphi 0, %s139
    %s142 = sphi 0, %s141
    %s156 = sphi 0, %s142
  $region4: #{dense_block_forward.1} parent=0 // loop_header_branch
    %14 = sbr.rel (%p12) target = $region8
  $region5: #{dense_block_forward.1} parent=0 // loop_body
    %s16 = ssub.s32 %s11, 1
    %s17 = ssub.s32 %s11, 2
    %s18 = sadd.s32 %s11, 1
    %s20 = sadd.s32 %s19, 1
    %p23 = scmp.eq.s32.totalorder %s11, 2
    %p24 = scmp.ne.s32.totalorder %s19, %s21
    %p25 = scmp.eq.s32.totalorder %s11, 0
    %p26 = por %p24, %p25
    %p27 = scmp.ne.s32.totalorder %s19, %s21
    %p28 = scmp.eq.s32.totalorder %s16, 2
    %p29 = por %p27, %p28
    %p30 = scmp.ne.s32.totalorder %s21, %s22
    %p31 = scmp.eq.s32.totalorder %s16, 0
    %p32 = por %p30, %p31
    %p33 = scmp.ne.s32.totalorder %s21, %s22
    %p34 = scmp.eq.s32.totalorder %s17, 2
    %p35 = por %p33, %p34
    %p37 = scmp.ne.s32.totalorder %s22, %s36
    %p38 = scmp.eq.s32.totalorder %s17, 0
    %p39 = por %p37, %p38
    %s41 = sadd.s32 %s40, 1
    %p44 = scmp.eq.s32.totalorder %s11, 2
    %p45 = scmp.ne.s32.totalorder %s40, %s42
    %p46 = scmp.eq.s32.totalorder %s11, 0
    %p47 = por %p45, %p46
    %p48 = scmp.ne.s32.totalorder %s40, %s42
    %p49 = scmp.eq.s32.totalorder %s16, 2
    %p50 = por %p48, %p49
    %p51 = scmp.ne.s32.totalorder %s42, %s43
    %p52 = scmp.eq.s32.totalorder %s16, 0
    %p53 = por %p51, %p52
    %p54 = scmp.ne.s32.totalorder %s42, %s43
    %p55 = scmp.eq.s32.totalorder %s17, 2
    %p56 = por %p54, %p55
    %p58 = scmp.ne.s32.totalorder %s43, %s57
    %p59 = scmp.eq.s32.totalorder %s17, 0
    %p60 = por %p58, %p59
    %s61 = ssub.s32 %s11, %s18
    %p62 = scmp.eq.s32.totalorder %s61, 0
    %s64 = sadd.s32 %s63, 1
    %s65 = scalar_select %p62, %s63, %s64
    %p68 = pneg %p62
    %p69 = scmp.eq.s32.totalorder %s11, 2
    %p70 = por %p68, %p69
    %p71 = scmp.ne.s32.totalorder %s63, %s66
    %p72 = scmp.eq.s32.totalorder %s11, 0
    %p73 = por %p71, %p72
    %p74 = scmp.ne.s32.totalorder %s63, %s66
    %p75 = scmp.eq.s32.totalorder %s16, 2
    %p76 = por %p74, %p75
    %p77 = scmp.ne.s32.totalorder %s66, %s67
    %p78 = scmp.eq.s32.totalorder %s16, 0
    %p79 = por %p77, %p78
    %p80 = scmp.ne.s32.totalorder %s66, %s67
    %p81 = scmp.eq.s32.totalorder %s17, 2
    %p82 = por %p80, %p81
    %p84 = scmp.ne.s32.totalorder %s67, %s83
    %p85 = scmp.eq.s32.totalorder %s17, 0
    %p86 = por %p84, %p85
    %s87 = ssub.s32 %s11, %s18
    %p88 = scmp.eq.s32.totalorder %s87, 0
    %s90 = sadd.s32 %s89, 1
    %s91 = scalar_select %p88, %s89, %s90
    %p94 = pneg %p88
    %p95 = scmp.eq.s32.totalorder %s11, 2
    %p96 = por %p94, %p95
    %p97 = scmp.ne.s32.totalorder %s89, %s92
    %p98 = scmp.eq.s32.totalorder %s11, 0
    %p99 = por %p97, %p98
    %p100 = scmp.ne.s32.totalorder %s89, %s92
    %p101 = scmp.eq.s32.totalorder %s16, 2
    %p102 = por %p100, %p101
    %p103 = scmp.ne.s32.totalorder %s92, %s93
    %p104 = scmp.eq.s32.totalorder %s16, 0
    %p105 = por %p103, %p104
    %p106 = scmp.ne.s32.totalorder %s92, %s93
    %p107 = scmp.eq.s32.totalorder %s17, 2
    %p108 = por %p106, %p107
    %p110 = scmp.ne.s32.totalorder %s93, %s109
    %p111 = scmp.eq.s32.totalorder %s17, 0
    %p112 = por %p110, %p111
    %s113 = ssub.s32 %s11, %s18
    %p114 = scmp.eq.s32.totalorder %s113, 0
    %s116 = sadd.s32 %s115, 1
    %s117 = scalar_select %p114, %s115, %s116
    %p120 = pneg %p114
    %p121 = scmp.eq.s32.totalorder %s11, 2
    %p122 = por %p120, %p121
    %p123 = scmp.ne.s32.totalorder %s115, %s118
    %p124 = scmp.eq.s32.totalorder %s11, 0
    %p125 = por %p123, %p124
    %p126 = scmp.ne.s32.totalorder %s115, %s118
    %p127 = scmp.eq.s32.totalorder %s16, 2
    %p128 = por %p126, %p127
    %p129 = scmp.ne.s32.totalorder %s118, %s119
    %p130 = scmp.eq.s32.totalorder %s16, 0
    %p131 = por %p129, %p130
    %p132 = scmp.ne.s32.totalorder %s118, %s119
    %p133 = scmp.eq.s32.totalorder %s17, 2
    %p134 = por %p132, %p133
    %p136 = scmp.ne.s32.totalorder %s119, %s135
    %p137 = scmp.eq.s32.totalorder %s17, 0
    %p138 = por %p136, %p137
    %s140 = sadd.s32 %s139, 1
    %p143 = scmp.eq.s32.totalorder %s11, 2
    %p144 = scmp.ne.s32.totalorder %s139, %s141
    %p145 = scmp.eq.s32.totalorder %s11, 0
    %p146 = por %p144, %p145
    %p147 = scmp.ne.s32.totalorder %s139, %s141
    %p148 = scmp.eq.s32.totalorder %s16, 2
    %p149 = por %p147, %p148
    %p150 = scmp.ne.s32.totalorder %s141, %s142
    %p151 = scmp.eq.s32.totalorder %s16, 0
    %p152 = por %p150, %p151
    %p153 = scmp.ne.s32.totalorder %s141, %s142
    %p154 = scmp.eq.s32.totalorder %s17, 2
    %p155 = por %p153, %p154
    %p157 = scmp.ne.s32.totalorder %s142, %s156
    %p158 = scmp.eq.s32.totalorder %s17, 0
    %p159 = por %p157, %p158
    %p160 = scmp.le.s32.totalorder 1, %s11
    %p161 = scmp.lt.s32.totalorder %s11, 4
    %p162 = pnand %p160, %p161
    %p163 = pneg %p162
    // Predicated region
    $region9: #{dense_block_forward.1} parent=5 // pred_check
      _
    $region10: #{dense_block_forward.1} parent=5 // pred_check_branch
      %165 = sbr.rel (%p162) target = $region12
    $region11: #{dense_block_forward.1} parent=5 // pred_region
      %s166 = ssub.s32 %s11, 1
      // Predicated region
      $region13: #{dense_block_forward.1} parent=11 // pred_check
        %p167 = pneg %p32
      $region14: #{dense_block_forward.1} parent=11 // pred_check_branch
        %169 = sbr.rel (%p167) target = $region16
      $region15: #{dense_block_forward.1} parent=11 // pred_region
        _
      $region16: #{dense_block_forward.1} parent=11 // pred_fallthru
        _
      // Predicated region
      $region17: #{dense_block_forward.1} parent=11 // pred_check
        %p170 = pneg %p53
      $region18: #{dense_block_forward.1} parent=11 // pred_check_branch
        %172 = sbr.rel (%p170) target = $region20
      $region19: #{dense_block_forward.1} parent=11 // pred_region
        _
      $region20: #{dense_block_forward.1} parent=11 // pred_fallthru
        _
    $region12: #{dense_block_forward.1} parent=5 // pred_fallthru
      _
    %p173 = scmp.lt.s32.totalorder %s11, 3
    // Predicated region
    $region21: #{dense_block_forward.1} parent=5 // pred_check
      %p174 = pneg %p173
    $region22: #{dense_block_forward.1} parent=5 // pred_check_branch
      %176 = sbr.rel (%p174) target = $region24
    $region23: #{dense_block_forward.1} parent=5 // pred_region
      // Predicated region
      $region25: #{dense_block_forward.1} parent=23 // pred_check
        %p177 = pneg %p73
      $region26: #{dense_block_forward.1} parent=23 // pred_check_branch
        %179 = sbr.rel (%p177) target = $region28
      $region27: #{dense_block_forward.1} parent=23 // pred_region
        %p180 = scmp.lt.s32.totalorder %s11, 2
        %s181 = scalar_select %p180, %s11, 2
        %s182 = smul.addr %s181, 6
        %s183 = smul.addr %s182, 8
        %s184 = scalar_lea.vmem %s2, %s183
      $region28: #{dense_block_forward.1} parent=23 // pred_fallthru
        _
      // Predicated region
      $region29: #{dense_block_forward.1} parent=23 // pred_check
        %p185 = pneg %p99
      $region30: #{dense_block_forward.1} parent=23 // pred_check_branch
        %187 = sbr.rel (%p185) target = $region32
      $region31: #{dense_block_forward.1} parent=23 // pred_region
        %p188 = scmp.lt.s32.totalorder %s11, 2
        %s189 = scalar_select %p188, %s11, 2
        %s190 = smul.addr %s189, 6
        %s191 = smul.addr %s190, 8
        %s192 = scalar_lea.vmem %s3, %s191
      $region32: #{dense_block_forward.1} parent=23 // pred_fallthru
        _
      // Predicated region
      $region33: #{dense_block_forward.1} parent=23 // pred_check
        %p193 = pneg %p125
      $region34: #{dense_block_forward.1} parent=23 // pred_check_branch
        %195 = sbr.rel (%p193) target = $region36
      $region35: #{dense_block_forward.1} parent=23 // pred_region
        %p196 = scmp.lt.s32.totalorder %s11, 2
        %s197 = scalar_select %p196, %s11, 2
        %s198 = smul.addr %s197, 18
        %s199 = smul.addr %s198, 4
        %s200 = scalar_lea.vmem %s4, %s199
      $region36: #{dense_block_forward.1} parent=23 // pred_fallthru
        _
    $region24: #{dense_block_forward.1} parent=5 // pred_fallthru
      _
    %p201 = scmp.le.s32.totalorder 1, %s11
    %p202 = scmp.lt.s32.totalorder %s11, 4
    %p203 = pnand %p201, %p202
    %p204 = pneg %p203
    // Predicated region
    $region37: #{dense_block_forward.1} parent=5 // pred_check
      _
    $region38: #{dense_block_forward.1} parent=5 // pred_check_branch
      %206 = sbr.rel (%p203) target = $region40
    $region39: #{dense_block_forward.1} parent=5 // pred_region
      %s207 = ssub.s32 %s11, 1
      %p208 = pneg %p32
      %p209 = pneg %p29
      %p210 = pneg %p53
      %p211 = pneg %p50
      %p212 = scmp.lt.s32.totalorder %s16, 2
      %s213 = scalar_select %p212, %s16, 2
      %s214 = smul.addr %s213, 6
      %s215 = smul.addr %s214, 8
      %s216 = scalar_lea.vmem %s2, %s215
      %p217 = pneg %p79
      %p218 = pneg %p76
      %p219 = scmp.lt.s32.totalorder %s16, 2
      %s220 = scalar_select %p219, %s16, 2
      %s221 = smul.addr %s220, 6
      %s222 = smul.addr %s221, 8
      %s223 = scalar_lea.vmem %s3, %s222
      %p224 = pneg %p105
      %p225 = pneg %p102
      %p226 = scmp.lt.s32.totalorder %s16, 2
      %s227 = scalar_select %p226, %s16, 2
      %s228 = smul.addr %s227, 18
      %s229 = smul.addr %s228, 4
      %s230 = scalar_lea.vmem %s4, %s229
      %p231 = pneg %p131
      %p232 = pneg %p128
      %p233 = pneg %p152
      %p234 = pneg %p149
      %p235 = scmp.lt.s32.totalorder %s16, 2
      %s236 = scalar_select %p235, %s16, 2
      %s237 = smul.addr %s236, 6
      %s238 = smul.addr %s237, 8
      %s239 = scalar_lea.vmem %s2, %s238
      %p240 = scmp.lt.s32.totalorder %s16, 2
      %s241 = scalar_select %p240, %s16, 2
      %s242 = smul.addr %s241, 6
      %s243 = smul.addr %s242, 8
      %s244 = scalar_lea.vmem %s3, %s243
      %p245 = scmp.lt.s32.totalorder %s16, 2
      %s246 = scalar_select %p245, %s16, 2
      %s247 = smul.addr %s246, 18
      %s248 = smul.addr %s247, 4
      %s249 = scalar_lea.vmem %s4, %s248
      %p251 = scmp.eq.s32.totalorder %s16, 0
      // Predicated region
      $region41: #{dense_block_forward.1} parent=39 // pred_check
        %p252 = pneg %p251
      $region42: #{dense_block_forward.1} parent=39 // pred_check_branch
        %254 = sbr.rel (%p252) target = $region44
      $region43: #{dense_block_forward.1} parent=39 // pred_region
        %255 = vst [vmem:[#allocation2] sm:$0xf] 0
        %256 = vst [vmem:[#allocation2 + $0x18] sm:$0xf] 0
        %257 = vst [vmem:[#allocation2 + $0x30] sm:$0xf] 0
        %258 = vst [vmem:[#allocation2 + $0x48] sm:$0xf] 0
        %259 = vst [vmem:[#allocation2 + $0x60] sm:$0xf] 0
        %260 = vst [vmem:[#allocation2 + $0x78] sm:$0xf] 0
        %261 = vst [vmem:[#allocation2 + $0x14] sm:$0xf] 0
        %262 = vst [vmem:[#allocation2 + $0x2c] sm:$0xf] 0
        %263 = vst [vmem:[#allocation2 + $0x44] sm:$0xf] 0
        %264 = vst [vmem:[#allocation2 + $0x5c] sm:$0xf] 0
        %265 = vst [vmem:[#allocation2 + $0x74] sm:$0xf] 0
        %266 = vst [vmem:[#allocation2 + $0x8c] sm:$0xf] 0
        %v267 = vld [vmem:[%s0] sm:$0xff]
        %v268 = vld [vmem:[%s0 + $0x8] sm:$0xff]
        %v269 = vld [vmem:[%s0 + $0x10] sm:$0xff]
        %v270 = vld [vmem:[%s0 + $0x18] sm:$0xff]
        %271 = vst [vmem:[%s5] sm:$0xff] %v267
        %272 = vst [vmem:[%s5 + $0x8] sm:$0xff] %v268
        %273 = vst [vmem:[%s5 + $0x10] sm:$0xff] %v269
        %274 = vst [vmem:[%s5 + $0x18] sm:$0xff] %v270
        %s275 = scalar_lea.vmem %s0, 32
        %v276 = vld [vmem:[%s275] sm:$0xff]
        %v277 = vld [vmem:[%s275 + $0x8] sm:$0xff]
        %v278 = vld [vmem:[%s275 + $0x10] sm:$0xff]
        %v279 = vld [vmem:[%s275 + $0x18] sm:$0xff]
        %s280 = scalar_lea.vmem %s5, 128
        %281 = vst [vmem:[%s280] sm:$0xff] %v276
        %282 = vst [vmem:[%s280 + $0x8] sm:$0xff] %v277
        %283 = vst [vmem:[%s280 + $0x10] sm:$0xff] %v278
        %284 = vst [vmem:[%s280 + $0x18] sm:$0xff] %v279
        %v285 = vld [vmem:[%s5] sm:$0xff]
        %v286 = vld [vmem:[%s5 + $0x8] sm:$0xff]
        %v287 = vld [vmem:[%s5 + $0x10] sm:$0xff]
        %v288 = vld [vmem:[%s5 + $0x18] sm:$0xff]
        %v289 = vmul.f32 %v285, %v285
        %v290 = vmul.f32 %v286, %v286
        %v291 = vmul.f32 %v287, %v287
        %v292 = vmul.f32 %v288, %v288
        %v293 = vld [vmem:[%s280] sm:$0xff]
        %v294 = vld [vmem:[%s280 + $0x8] sm:$0xff]
        %v295 = vld [vmem:[%s280 + $0x10] sm:$0xff]
        %v296 = vld [vmem:[%s280 + $0x18] sm:$0xff]
        %297 = vmatprep.subr.mxu0 0.0
        %298 = vmatpush1.msra.mxu0 1.0
        %299 = vmatprep.subr.mxu0 0.0
        %300 = vmatpush1.msra.mxu0 1.0
        %301 = vmatprep.subr.mxu0 0.0
        %302 = vmatpush1.msra.mxu0 1.0
        %303 = vmatprep.subr.mxu0 0.0
        %304 = vmatpush1.msra.mxu0 1.0
        %305 = vmatprep.subr.mxu0 0.0
        %306 = vmatpush1.msra.mxu0 1.0
        %307 = vmatprep.subr.mxu0 0.0
        %308 = vmatpush1.msra.mxu0 1.0
        %309 = vmatprep.subr.mxu0 0.0
        %310 = vmatpush1.msra.mxu0 1.0
        %311 = vmatprep.subr.mxu0 0.0
        %312 = vmatpush1.msra.mxu0 1.0
        %313 = vmatprep.subr.mxu0 0.0
        %314 = vmatpush1.msra.mxu0 1.0
        %315 = vmatprep.subr.mxu0 0.0
        %316 = vmatpush1.msra.mxu0 1.0
        %317 = vmatprep.subr.mxu0 0.0
        %318 = vmatpush1.msra.mxu0 1.0
        %319 = vmatprep.subr.mxu0 0.0
        %320 = vmatpush1.msra.mxu0 1.0
        %321 = vmatprep.subr.mxu0 0.0
        %322 = vmatpush1.msra.mxu0 1.0
        %323 = vmatprep.subr.mxu0 0.0
        %324 = vmatpush1.msra.mxu0 1.0
        %325 = vmatprep.subr.mxu0 0.0
        %326 = vmatpush1.msra.mxu0 1.0
        %327 = vmatprep.subr.mxu0 0.0
        %328 = vmatpush1.msra.mxu0 1.0
        %329 = vmatprep.subr.mxu0 0.0
        %330 = vmatpush2.msra.mxu0 1.0
        %331 = vmatprep.subr.mxu0 0.0
        %332 = vmatpush2.msra.mxu0 1.0
        %333 = vmatprep.subr.mxu0 0.0
        %334 = vmatpush2.msra.mxu0 1.0
        %335 = vmatprep.subr.mxu0 0.0
        %336 = vmatpush2.msra.mxu0 1.0
        %337 = vmatprep.subr.mxu0 0.0
        %338 = vmatpush2.msra.mxu0 1.0
        %339 = vmatprep.subr.mxu0 0.0
        %340 = vmatpush2.msra.mxu0 1.0
        %341 = vmatprep.subr.mxu0 0.0
        %342 = vmatpush2.msra.mxu0 1.0
        %343 = vmatprep.subr.mxu0 0.0
        %344 = vmatpush2.msra.mxu0 1.0
        %345 = vmatprep.subr.mxu0 0.0
        %346 = vmatpush2.msra.mxu0 1.0
        %347 = vmatprep.subr.mxu0 0.0
        %348 = vmatpush2.msra.mxu0 1.0
        %349 = vmatprep.subr.mxu0 0.0
        %350 = vmatpush2.msra.mxu0 1.0
        %351 = vmatprep.subr.mxu0 0.0
        %352 = vmatpush2.msra.mxu0 1.0
        %353 = vmatprep.subr.mxu0 0.0
        %354 = vmatpush2.msra.mxu0 1.0
        %355 = vmatprep.subr.mxu0 0.0
        %356 = vmatpush2.msra.mxu0 1.0
        %357 = vmatprep.subr.mxu0 0.0
        %358 = vmatpush2.msra.mxu0 1.0
        %359 = vmatprep.subr.mxu0 0.0
        %360 = vmatpush2.msra.mxu0 1.0
        %361 = vmatprep.mubr.f32.mxu0 %v294
        %362 = vmatmul.mubr.f32.gmra.mxu0 %v293
        %v363 = vpop.f32.mrf.mxu0
        %v364 = vadd.f32 0.0, %v363
        %v365 = vpop.f32.mrf.mxu0
        %366 = vmatprep.mubr.f32.mxu0 %v296
        %367 = vmatmul.mubr.f32.gmra.mxu0 %v295
        %v368 = vpop.f32.mrf.mxu0
        %v369 = vadd.f32 0.0, %v368
        %v370 = vpop.f32.mrf.mxu0
        %371 = vdwg.mxu0
        %372 = vmatprep.subr.mxu0 0.0
        %373 = vmatpush1.msra.mxu0 1.0
        %374 = vmatprep.subr.mxu0 0.0
        %375 = vmatpush1.msra.mxu0 1.0
        %376 = vmatprep.subr.mxu0 0.0
        %377 = vmatpush1.msra.mxu0 1.0
        %378 = vmatprep.subr.mxu0 0.0
        %379 = vmatpush1.msra.mxu0 1.0
        %380 = vmatprep.subr.mxu0 0.0
        %381 = vmatpush1.msra.mxu0 1.0
        %382 = vmatprep.subr.mxu0 0.0
        %383 = vmatpush1.msra.mxu0 1.0
        %384 = vmatprep.subr.mxu0 0.0
        %385 = vmatpush1.msra.mxu0 1.0
        %386 = vmatprep.subr.mxu0 0.0
        %387 = vmatpush1.msra.mxu0 1.0
        %388 = vmatprep.subr.mxu0 0.0
        %389 = vmatpush1.msra.mxu0 1.0
        %390 = vmatprep.subr.mxu0 0.0
        %391 = vmatpush1.msra.mxu0 1.0
        %392 = vmatprep.subr.mxu0 0.0
        %393 = vmatpush1.msra.mxu0 1.0
        %394 = vmatprep.subr.mxu0 0.0
        %395 = vmatpush1.msra.mxu0 1.0
        %396 = vmatprep.subr.mxu0 0.0
        %397 = vmatpush1.msra.mxu0 1.0
        %398 = vmatprep.subr.mxu0 0.0
        %399 = vmatpush1.msra.mxu0 1.0
        %400 = vmatprep.subr.mxu0 0.0
        %401 = vmatpush1.msra.mxu0 1.0
        %402 = vmatprep.subr.mxu0 0.0
        %403 = vmatpush1.msra.mxu0 1.0
        %404 = vmatprep.subr.mxu0 0.0
        %405 = vmatpush2.msra.mxu0 1.0
        %406 = vmatprep.subr.mxu0 0.0
        %407 = vmatpush2.msra.mxu0 1.0
        %408 = vmatprep.subr.mxu0 0.0
        %409 = vmatpush2.msra.mxu0 1.0
        %410 = vmatprep.subr.mxu0 0.0
        %411 = vmatpush2.msra.mxu0 1.0
        %412 = vmatprep.subr.mxu0 0.0
        %413 = vmatpush2.msra.mxu0 1.0
        %414 = vmatprep.subr.mxu0 0.0
        %415 = vmatpush2.msra.mxu0 1.0
        %416 = vmatprep.subr.mxu0 0.0
        %417 = vmatpush2.msra.mxu0 1.0
        %418 = vmatprep.subr.mxu0 0.0
        %419 = vmatpush2.msra.mxu0 1.0
        %420 = vmatprep.subr.mxu0 0.0
        %421 = vmatpush2.msra.mxu0 1.0
        %422 = vmatprep.subr.mxu0 0.0
        %423 = vmatpush2.msra.mxu0 1.0
        %424 = vmatprep.subr.mxu0 0.0
        %425 = vmatpush2.msra.mxu0 1.0
        %426 = vmatprep.subr.mxu0 0.0
        %427 = vmatpush2.msra.mxu0 1.0
        %428 = vmatprep.subr.mxu0 0.0
        %429 = vmatpush2.msra.mxu0 1.0
        %430 = vmatprep.subr.mxu0 0.0
        %431 = vmatpush2.msra.mxu0 1.0
        %432 = vmatprep.subr.mxu0 0.0
        %433 = vmatpush2.msra.mxu0 1.0
        %434 = vmatprep.subr.mxu0 0.0
        %435 = vmatpush2.msra.mxu0 1.0
        %436 = vmatprep.mubr.f32.mxu0 %v286
        %437 = vmatmul.mubr.f32.gmra.mxu0 %v285
        %v438 = vpop.f32.mrf.mxu0
        %v439 = vadd.f32 %v364, %v438
        %v440 = vpop.f32.mrf.mxu0
        %441 = vmatprep.mubr.f32.mxu0 %v288
        %442 = vmatmul.mubr.f32.gmra.mxu0 %v287
        %v443 = vpop.f32.mrf.mxu0
        %v444 = vadd.f32 %v369, %v443
        %v445 = vpop.f32.mrf.mxu0
        %446 = vdwg.mxu0
        %v447 = vmul.f32 %v293, %v293
        %v448 = vmul.f32 %v294, %v294
        %v449 = vmul.f32 %v295, %v295
        %v450 = vmul.f32 %v296, %v296
        %451 = vmatprep.subr.mxu0 0.0
        %452 = vmatpush1.msra.mxu0 1.0
        %453 = vmatprep.subr.mxu0 0.0
        %454 = vmatpush1.msra.mxu0 1.0
        %455 = vmatprep.subr.mxu0 0.0
        %456 = vmatpush1.msra.mxu0 1.0
        %457 = vmatprep.subr.mxu0 0.0
        %458 = vmatpush1.msra.mxu0 1.0
        %459 = vmatprep.subr.mxu0 0.0
        %460 = vmatpush1.msra.mxu0 1.0
        %461 = vmatprep.subr.mxu0 0.0
        %462 = vmatpush1.msra.mxu0 1.0
        %463 = vmatprep.subr.mxu0 0.0
        %464 = vmatpush1.msra.mxu0 1.0
        %465 = vmatprep.subr.mxu0 0.0
        %466 = vmatpush1.msra.mxu0 1.0
        %467 = vmatprep.subr.mxu0 0.0
        %468 = vmatpush1.msra.mxu0 1.0
        %469 = vmatprep.subr.mxu0 0.0
        %470 = vmatpush1.msra.mxu0 1.0
        %471 = vmatprep.subr.mxu0 0.0
        %472 = vmatpush1.msra.mxu0 1.0
        %473 = vmatprep.subr.mxu0 0.0
        %474 = vmatpush1.msra.mxu0 1.0
        %475 = vmatprep.subr.mxu0 0.0
        %476 = vmatpush1.msra.mxu0 1.0
        %477 = vmatprep.subr.mxu0 0.0
        %478 = vmatpush1.msra.mxu0 1.0
        %479 = vmatprep.subr.mxu0 0.0
        %480 = vmatpush1.msra.mxu0 1.0
        %481 = vmatprep.subr.mxu0 0.0
        %482 = vmatpush1.msra.mxu0 1.0
        %483 = vmatprep.subr.mxu0 0.0
        %484 = vmatpush2.msra.mxu0 1.0
        %485 = vmatprep.subr.mxu0 0.0
        %486 = vmatpush2.msra.mxu0 1.0
        %487 = vmatprep.subr.mxu0 0.0
        %488 = vmatpush2.msra.mxu0 1.0
        %489 = vmatprep.subr.mxu0 0.0
        %490 = vmatpush2.msra.mxu0 1.0
        %491 = vmatprep.subr.mxu0 0.0
        %492 = vmatpush2.msra.mxu0 1.0
        %493 = vmatprep.subr.mxu0 0.0
        %494 = vmatpush2.msra.mxu0 1.0
        %495 = vmatprep.subr.mxu0 0.0
        %496 = vmatpush2.msra.mxu0 1.0
        %497 = vmatprep.subr.mxu0 0.0
        %498 = vmatpush2.msra.mxu0 1.0
        %499 = vmatprep.subr.mxu0 0.0
        %500 = vmatpush2.msra.mxu0 1.0
        %501 = vmatprep.subr.mxu0 0.0
        %502 = vmatpush2.msra.mxu0 1.0
        %503 = vmatprep.subr.mxu0 0.0
        %504 = vmatpush2.msra.mxu0 1.0
        %505 = vmatprep.subr.mxu0 0.0
        %506 = vmatpush2.msra.mxu0 1.0
        %507 = vmatprep.subr.mxu0 0.0
        %508 = vmatpush2.msra.mxu0 1.0
        %509 = vmatprep.subr.mxu0 0.0
        %510 = vmatpush2.msra.mxu0 1.0
        %511 = vmatprep.subr.mxu0 0.0
        %512 = vmatpush2.msra.mxu0 1.0
        %513 = vmatprep.subr.mxu0 0.0
        %514 = vmatpush2.msra.mxu0 1.0
        %515 = vmatprep.mubr.f32.mxu0 %v448
        %516 = vmatmul.mubr.f32.gmra.mxu0 %v447
        %v517 = vpop.f32.mrf.mxu0
        %v518 = vadd.f32 0.0, %v517
        %v519 = vpop.f32.mrf.mxu0
        %520 = vmatprep.mubr.f32.mxu0 %v450
        %521 = vmatmul.mubr.f32.gmra.mxu0 %v449
        %v522 = vpop.f32.mrf.mxu0
        %v523 = vadd.f32 0.0, %v522
        %v524 = vpop.f32.mrf.mxu0
        %525 = vdwg.mxu0
        %526 = vmatprep.subr.mxu0 0.0
        %527 = vmatpush1.msra.mxu0 1.0
        %528 = vmatprep.subr.mxu0 0.0
        %529 = vmatpush1.msra.mxu0 1.0
        %530 = vmatprep.subr.mxu0 0.0
        %531 = vmatpush1.msra.mxu0 1.0
        %532 = vmatprep.subr.mxu0 0.0
        %533 = vmatpush1.msra.mxu0 1.0
        %534 = vmatprep.subr.mxu0 0.0
        %535 = vmatpush1.msra.mxu0 1.0
        %536 = vmatprep.subr.mxu0 0.0
        %537 = vmatpush1.msra.mxu0 1.0
        %538 = vmatprep.subr.mxu0 0.0
        %539 = vmatpush1.msra.mxu0 1.0
        %540 = vmatprep.subr.mxu0 0.0
        %541 = vmatpush1.msra.mxu0 1.0
        %542 = vmatprep.subr.mxu0 0.0
        %543 = vmatpush1.msra.mxu0 1.0
        %544 = vmatprep.subr.mxu0 0.0
        %545 = vmatpush1.msra.mxu0 1.0
        %546 = vmatprep.subr.mxu0 0.0
        %547 = vmatpush1.msra.mxu0 1.0
        %548 = vmatprep.subr.mxu0 0.0
        %549 = vmatpush1.msra.mxu0 1.0
        %550 = vmatprep.subr.mxu0 0.0
        %551 = vmatpush1.msra.mxu0 1.0
        %552 = vmatprep.subr.mxu0 0.0
        %553 = vmatpush1.msra.mxu0 1.0
        %554 = vmatprep.subr.mxu0 0.0
        %555 = vmatpush1.msra.mxu0 1.0
        %556 = vmatprep.subr.mxu0 0.0
        %557 = vmatpush1.msra.mxu0 1.0
        %558 = vmatprep.subr.mxu0 0.0
        %559 = vmatpush2.msra.mxu0 1.0
        %560 = vmatprep.subr.mxu0 0.0
        %561 = vmatpush2.msra.mxu0 1.0
        %562 = vmatprep.subr.mxu0 0.0
        %563 = vmatpush2.msra.mxu0 1.0
        %564 = vmatprep.subr.mxu0 0.0
        %565 = vmatpush2.msra.mxu0 1.0
        %566 = vmatprep.subr.mxu0 0.0
        %567 = vmatpush2.msra.mxu0 1.0
        %568 = vmatprep.subr.mxu0 0.0
        %569 = vmatpush2.msra.mxu0 1.0
        %570 = vmatprep.subr.mxu0 0.0
        %571 = vmatpush2.msra.mxu0 1.0
        %572 = vmatprep.subr.mxu0 0.0
        %573 = vmatpush2.msra.mxu0 1.0
        %574 = vmatprep.subr.mxu0 0.0
        %575 = vmatpush2.msra.mxu0 1.0
        %576 = vmatprep.subr.mxu0 0.0
        %577 = vmatpush2.msra.mxu0 1.0
        %578 = vmatprep.subr.mxu0 0.0
        %579 = vmatpush2.msra.mxu0 1.0
        %580 = vmatprep.subr.mxu0 0.0
        %581 = vmatpush2.msra.mxu0 1.0
        %582 = vmatprep.subr.mxu0 0.0
        %583 = vmatpush2.msra.mxu0 1.0
        %584 = vmatprep.subr.mxu0 0.0
        %585 = vmatpush2.msra.mxu0 1.0
        %586 = vmatprep.subr.mxu0 0.0
        %587 = vmatpush2.msra.mxu0 1.0
        %588 = vmatprep.subr.mxu0 0.0
        %589 = vmatpush2.msra.mxu0 1.0
        %590 = vmatprep.mubr.f32.mxu0 %v290
        %591 = vmatmul.mubr.f32.gmra.mxu0 %v289
        %v592 = vpop.f32.mrf.mxu0
        %v593 = vadd.f32 %v518, %v592
        %v594 = vpop.f32.mrf.mxu0
        %595 = vmatprep.mubr.f32.mxu0 %v292
        %596 = vmatmul.mubr.f32.gmra.mxu0 %v291
        %v597 = vpop.f32.mrf.mxu0
        %v598 = vadd.f32 %v523, %v597
        %v599 = vpop.f32.mrf.mxu0
        %600 = vdwg.mxu0
        %v601 = vmul.f32 %v439, 0.001953125
        %v602 = vmul.f32 %v444, 0.001953125
        %v603 = vmul.f32 %v593, 0.001953125
        %v604 = vmul.f32 %v598, 0.001953125
        %v605 = vmul.f32 %v601, %v601
        %v606 = vmul.f32 %v602, %v602
        %v607 = vsub.f32 %v603, %v605
        %v608 = vsub.f32 %v604, %v606
        %v609 = vmax.f32 %v607, 0.0
        %v610 = vmax.f32 %v608, 0.0
        %v611 = vld [vmem:[%s239] sm:$0xff]
        %v612 = vld [vmem:[%s239 + $0x8] sm:$0xff]
        %v613 = vadd.f32 %v609, 1e-05
        %v614 = vadd.f32 %v610, 1e-05
        %v615 = vrsqrt.pop %v613
        %v616 = vrsqrt.pop %v614
        %v617 = vmul.f32 %v611, %v615
        %v618 = vmul.f32 %v612, %v616
        %v619 = vld [vmem:[%s244] sm:$0xff]
        %v620 = vld [vmem:[%s244 + $0x8] sm:$0xff]
        %v621 = vmul.f32 %v601, %v617
        %v622 = vmul.f32 %v602, %v618
        %v623 = vsub.f32 %v619, %v621
        %v624 = vsub.f32 %v620, %v622
        %626 = vset.pattern.permute.xlu0 0
        %627 = vperm.xlu0 %626, %v617
        %v628 = vpop.permute.xlu0 %627
        %631 = vset.pattern.permute.xlu0 0
        %632 = vperm.xlu0 %631, %v618
        %v633 = vpop.permute.xlu0 %632
        %v635 = vmul.f32 %v285, %v628
        %v636 = vmul.f32 %v286, %v628
        %v637 = vmul.f32 %v287, %v633
        %v638 = vmul.f32 %v288, %v633
        %640 = vset.pattern.permute.xlu0 0
        %641 = vperm.xlu0 %640, %v623
        %v642 = vpop.permute.xlu0 %641
        %645 = vset.pattern.permute.xlu0 0
        %646 = vperm.xlu0 %645, %v624
        %v647 = vpop.permute.xlu0 %646
        %v649 = vadd.f32 %v635, %v642
        %v650 = vadd.f32 %v636, %v642
        %v651 = vadd.f32 %v637, %v647
        %v652 = vadd.f32 %v638, %v647
        %v653 = vmax.f32 %v649, 0.0
        %v654 = vmax.f32 %v650, 0.0
        %v655 = vmax.f32 %v651, 0.0
        %v656 = vmax.f32 %v652, 0.0
        %v657 = vpack.c.bf16 %v655, %v653
        %v658 = vpack.c.bf16 %v656, %v654
        %v661 = vunpack.c.l.b16 %v657
        %v662 = vunpack.c.l.b16 %v658
        %v663 = vunpack.c.h.b16 %v657
        %v664 = vunpack.c.h.b16 %v658
        %v665 = vpack.c.b16 %v662, %v661
        %v666 = vpack.c.b16 %v664, %v663
        %669 = vst [vmem:[#allocation2 + $0x4] sm:$0xff] %v665
        %670 = vst [vmem:[#allocation2 + $0x1c] sm:$0xff] %v666
        %v671 = vld [vmem:[%s280] sm:$0xff]
        %v672 = vld [vmem:[%s280 + $0x8] sm:$0xff]
        %v673 = vld [vmem:[%s280 + $0x10] sm:$0xff]
        %v674 = vld [vmem:[%s280 + $0x18] sm:$0xff]
        %v675 = vmul.f32 %v671, %v628
        %v676 = vmul.f32 %v672, %v628
        %v677 = vmul.f32 %v673, %v633
        %v678 = vmul.f32 %v674, %v633
        %v679 = vadd.f32 %v675, %v642
        %v680 = vadd.f32 %v676, %v642
        %v681 = vadd.f32 %v677, %v647
        %v682 = vadd.f32 %v678, %v647
        %v683 = vmax.f32 %v679, 0.0
        %v684 = vmax.f32 %v680, 0.0
        %v685 = vmax.f32 %v681, 0.0
        %v686 = vmax.f32 %v682, 0.0
        %v687 = vpack.c.bf16 %v685, %v683
        %v688 = vpack.c.bf16 %v686, %v684
        %v691 = vunpack.c.l.b16 %v687
        %v692 = vunpack.c.l.b16 %v688
        %v693 = vunpack.c.h.b16 %v687
        %v694 = vunpack.c.h.b16 %v688
        %v695 = vpack.c.b16 %v692, %v691
        %v696 = vpack.c.b16 %v694, %v693
        %699 = vst [vmem:[#allocation2 + $0xc] sm:$0xff] %v695
        %700 = vst [vmem:[#allocation2 + $0x24] sm:$0xff] %v696
        %v701 = vld [vmem:[#allocation2] sm:$0xff]
        %v702 = vld [vmem:[#allocation2 + $0x8] sm:$0xff]
        %v703 = vld [vmem:[#allocation2 + $0x10] sm:$0xf]
        %v704 = vld [vmem:[#allocation2 + $0x18] sm:$0xff]
        %v705 = vld [vmem:[#allocation2 + $0x20] sm:$0xff]
        %v706 = vld [vmem:[#allocation2 + $0x28] sm:$0xf]
        %v707 = vld [vmem:[%s1] sm:$0x11]
        %v708 = vld [vmem:[%s1 + $0x8] sm:$0x11]
        %v711 = vunpack.c.l.b16 %v707
        %v712 = vunpack.c.h.b16 %v707
        %v713 = vunpack.c.l.b16 %v708
        %v714 = vunpack.c.h.b16 %v708
        %v715 = vpack.c.b16 %v711, %v711
        %v716 = vpack.c.b16 %v712, %v712
        %v717 = vpack.c.b16 %v713, %v713
        %v718 = vpack.c.b16 %v714, %v714
        %v720 = vpack.i.b16 %v715, %v715
        %v722 = vlaneseq
        %v723 = vshrl.u32 %v722, 7
        %v724 = vsub.s32 0, %v723
        %v725 = vrot.slane %v720, %v724
        %v727 = vpack.i.b16 %v716, %v716
        %v729 = vlaneseq
        %v730 = vshrl.u32 %v729, 7
        %v731 = vsub.s32 0, %v730
        %v732 = vrot.slane %v727, %v731
        %v734 = vpack.i.b16 %v717, %v717
        %v736 = vlaneseq
        %v737 = vshrl.u32 %v736, 7
        %v738 = vsub.s32 0, %v737
        %v739 = vrot.slane %v734, %v738
        %v741 = vpack.i.b16 %v718, %v718
        %v743 = vlaneseq
        %v744 = vshrl.u32 %v743, 7
        %v745 = vsub.s32 0, %v744
        %v746 = vrot.slane %v741, %v745
        %v751 = vunpack.c.l.b16 %v725
        %v752 = vunpack.c.l.b16 %v732
        %v753 = vunpack.c.l.b16 %v739
        %v754 = vunpack.c.l.b16 %v746
        %v755 = vpack.c.b16 %v752, %v751
        %v756 = vpack.c.b16 %v754, %v753
        %757 = vrot.lane.b32.xlu0 %v755, 111
        %v758 = vpop.permute.xlu0 %757
        %759 = vrot.lane.b32.xlu0 %v756, 111
        %v760 = vpop.permute.xlu0 %759
        %v761 = vrot.slane %v758, 4
        %v762 = vrot.slane %v760, 4
        %vm763 = vcmask 908288
        %v764 = vsel %vm763, %v761, %v758
        %vm765 = vcmask 1043456
        %v766 = vsel %vm765, %v761, %v762
        %v767 = vsel %vm763, %v766, %v760
        %v771 = vmul.bf16 %v701, %v764
        %v772 = vmul.bf16 %v702, %v767
        %v773 = vmul.bf16 %v703, %v762
        %v774 = vmul.bf16 %v704, %v764
        %v775 = vmul.bf16 %v705, %v767
        %v776 = vmul.bf16 %v706, %v762
        %v777 = vld [vmem:[%s249] sm:$0xf]
        %v778 = vld [vmem:[%s249 + $0x4] sm:$0xf]
        %v779 = vshrl.u32 %v715, 16
        %v780 = vpack.i.b16 %v779, %v779
        %v782 = vlaneseq
        %v783 = vshrl.u32 %v782, 7
        %v784 = vsub.s32 0, %v783
        %v785 = vrot.slane %v780, %v784
        %v786 = vshrl.u32 %v716, 16
        %v787 = vpack.i.b16 %v786, %v786
        %v789 = vlaneseq
        %v790 = vshrl.u32 %v789, 7
        %v791 = vsub.s32 0, %v790
        %v792 = vrot.slane %v787, %v791
        %v793 = vshrl.u32 %v717, 16
        %v794 = vpack.i.b16 %v793, %v793
        %v796 = vlaneseq
        %v797 = vshrl.u32 %v796, 7
        %v798 = vsub.s32 0, %v797
        %v799 = vrot.slane %v794, %v798
        %v800 = vshrl.u32 %v718, 16
        %v801 = vpack.i.b16 %v800, %v800
        %v803 = vlaneseq
        %v804 = vshrl.u32 %v803, 7
        %v805 = vsub.s32 0, %v804
        %v806 = vrot.slane %v801, %v805
        %v811 = vunpack.c.l.b16 %v785
        %v812 = vunpack.c.l.b16 %v792
        %v813 = vunpack.c.l.b16 %v799
        %v814 = vunpack.c.l.b16 %v806
        %v815 = vpack.c.b16 %v812, %v811
        %v816 = vpack.c.b16 %v814, %v813
        %817 = vrot.lane.b32.xlu0 %v815, 112
        %v818 = vpop.permute.xlu0 %817
        %819 = vrot.lane.b32.xlu0 %v816, 112
        %v820 = vpop.permute.xlu0 %819
        %v821 = vrot.slane %v818, 4
        %v822 = vrot.slane %v820, 4
        %vm823 = vcmask 916480
        %v824 = vsel %vm823, %v821, %v818
        %v825 = vsel %vm765, %v821, %v822
        %v826 = vsel %vm823, %v825, %v820
        %v830 = vmul.bf16 %v701, %v824
        %v831 = vmul.bf16 %v702, %v826
        %v832 = vmul.bf16 %v703, %v822
        %v833 = vmul.bf16 %v704, %v824
        %v834 = vmul.bf16 %v705, %v826
        %v835 = vmul.bf16 %v706, %v822
        %v836 = vld [vmem:[%s249 + $0x8] sm:$0xf]
        %v837 = vld [vmem:[%s249 + $0xc] sm:$0xf]
        %v840 = vunpack.c.l.b16 %v836
        %v841 = vunpack.c.l.b16 %v837
        %v842 = vpack.c.b16 %v841, %v840
        %v849 = vunpack.c.l.b16 %v830
        %v850 = vunpack.c.h.b16 %v830
        %v851 = vunpack.c.l.b16 %v831
        %v852 = vunpack.c.h.b16 %v831
        %v853 = vunpack.c.l.b16 %v832
        %v854 = vunpack.c.l.b16 %v833
        %v855 = vunpack.c.h.b16 %v833
        %v856 = vunpack.c.l.b16 %v834
        %v857 = vunpack.c.h.b16 %v834
        %v858 = vunpack.c.l.b16 %v835
        %v859 = vpack.c.b16 %v854, %v849
        %v860 = vpack.c.b16 %v855, %v850
        %v861 = vpack.c.b16 %v856, %v851
        %v862 = vpack.c.b16 %v857, %v852
        %v863 = vpack.c.b16 %v858, %v853
        %864 = vrot.lane.b32.xlu0 %v859, 16
        %v865 = vpop.permute.xlu0 %864
        %866 = vrot.lane.b32.xlu0 %v860, 16
        %v867 = vpop.permute.xlu0 %866
        %868 = vrot.lane.b32.xlu0 %v861, 16
        %v869 = vpop.permute.xlu0 %868
        %870 = vrot.lane.b32.xlu0 %v862, 16
        %v871 = vpop.permute.xlu0 %870
        %872 = vrot.lane.b32.xlu0 %v863, 16
        %v873 = vpop.permute.xlu0 %872
        %vm874 = vcmask 130048
        %v875 = vsel %vm874, %v865, %v867
        %v876 = vsel %vm874, %v867, %v869
        %v877 = vsel %vm874, %v869, %v871
        %v878 = vsel %vm874, %v871, %v873
        %vm883 = vcmask 130048
        %v885 = vsel %vm883, %v842, 0
        %887 = vmatprep.subr.bf16.mxu0 0
        %888 = vmatpush1.bf16.msra.mxu0 0
        %889 = vmatprep.subr.bf16.mxu0 0
        %890 = vmatpush1.bf16.msra.mxu0 0
        %891 = vmatprep.subr.bf16.mxu0 0
        %892 = vmatpush1.bf16.msra.mxu0 0
        %893 = vmatprep.subr.bf16.mxu0 0
        %894 = vmatpush1.bf16.msra.mxu0 0
        %895 = vmatprep.subr.bf16.mxu0 0
        %896 = vmatpush1.bf16.msra.mxu0 0
        %897 = vmatprep.subr.bf16.mxu0 0
        %898 = vmatpush1.bf16.msra.mxu0 0
        %899 = vmatprep.subr.bf16.mxu0 0
        %900 = vmatpush1.bf16.msra.mxu0 0
        %901 = vmatprep.subr.bf16.mxu0 %v876
        %902 = vmatpush1.bf16.msra.mxu0 %v875
        %903 = vmatprep.subr.bf16.mxu0 0
        %904 = vmatpush2.bf16.msra.mxu0 0
        %905 = vmatprep.subr.bf16.mxu0 0
        %906 = vmatpush2.bf16.msra.mxu0 0
        %907 = vmatprep.subr.bf16.mxu0 0
        %908 = vmatpush2.bf16.msra.mxu0 0
        %909 = vmatprep.subr.bf16.mxu0 0
        %910 = vmatpush2.bf16.msra.mxu0 0
        %911 = vmatprep.subr.bf16.mxu0 0
        %912 = vmatpush2.bf16.msra.mxu0 0
        %913 = vmatprep.subr.bf16.mxu0 0
        %914 = vmatpush2.bf16.msra.mxu0 0
        %915 = vmatprep.subr.bf16.mxu0 0
        %916 = vmatpush2.bf16.msra.mxu0 0
        %917 = vmatprep.subr.bf16.mxu0 0
        %918 = vmatpush2.bf16.msra.mxu0 0
        %919 = vmatprep.mubr.bf16.mxu0 0
        %920 = vmatmul.mubr.bf16.gmra.mxu0 %v885
        %v921 = vpop.f32.mrf.mxu0
        %v922 = vadd.f32 0.0, %v921
        %v923 = vpop.f32.mrf.mxu0
        %v924 = vadd.f32 0.0, %v923
        %v925 = vpop.f32.mrf.mxu0
        %v926 = vadd.f32 0.0, %v925
        %v927 = vpop.f32.mrf.mxu0
        %v928 = vadd.f32 0.0, %v927
        %929 = vdwg.mxu0
        %930 = vmatprep.subr.bf16.mxu0 0
        %931 = vmatpush1.bf16.msra.mxu0 0
        %932 = vmatprep.subr.bf16.mxu0 0
        %933 = vmatpush1.bf16.msra.mxu0 0
        %934 = vmatprep.subr.bf16.mxu0 0
        %935 = vmatpush1.bf16.msra.mxu0 0
        %936 = vmatprep.subr.bf16.mxu0 0
        %937 = vmatpush1.bf16.msra.mxu0 0
        %938 = vmatprep.subr.bf16.mxu0 0
        %939 = vmatpush1.bf16.msra.mxu0 0
        %940 = vmatprep.subr.bf16.mxu0 0
        %941 = vmatpush1.bf16.msra.mxu0 0
        %942 = vmatprep.subr.bf16.mxu0 0
        %943 = vmatpush1.bf16.msra.mxu0 0
        %944 = vmatprep.subr.bf16.mxu0 %v878
        %945 = vmatpush1.bf16.msra.mxu0 %v877
        %946 = vmatprep.subr.bf16.mxu0 0
        %947 = vmatpush2.bf16.msra.mxu0 0
        %948 = vmatprep.subr.bf16.mxu0 0
        %949 = vmatpush2.bf16.msra.mxu0 0
        %950 = vmatprep.subr.bf16.mxu0 0
        %951 = vmatpush2.bf16.msra.mxu0 0
        %952 = vmatprep.subr.bf16.mxu0 0
        %953 = vmatpush2.bf16.msra.mxu0 0
        %954 = vmatprep.subr.bf16.mxu0 0
        %955 = vmatpush2.bf16.msra.mxu0 0
        %956 = vmatprep.subr.bf16.mxu0 0
        %957 = vmatpush2.bf16.msra.mxu0 0
        %958 = vmatprep.subr.bf16.mxu0 0
        %959 = vmatpush2.bf16.msra.mxu0 0
        %960 = vmatprep.subr.bf16.mxu0 0
        %961 = vmatpush2.bf16.msra.mxu0 0
        %962 = vmatprep.mubr.bf16.mxu0 0
        %963 = vmatmul.mubr.bf16.gmra.mxu0 %v885
        %v964 = vpop.f32.mrf.mxu0
        %v965 = vadd.f32 0.0, %v964
        %v966 = vpop.f32.mrf.mxu0
        %v967 = vadd.f32 0.0, %v966
        %v968 = vpop.f32.mrf.mxu0
        %v969 = vadd.f32 0.0, %v968
        %v970 = vpop.f32.mrf.mxu0
        %v971 = vadd.f32 0.0, %v970
        %972 = vdwg.mxu0
        %v975 = vunpack.c.l.b16 %v777
        %v976 = vunpack.c.l.b16 %v778
        %v977 = vpack.c.b16 %v976, %v975
        %v984 = vunpack.c.l.b16 %v771
        %v985 = vunpack.c.h.b16 %v771
        %v986 = vunpack.c.l.b16 %v772
        %v987 = vunpack.c.h.b16 %v772
        %v988 = vunpack.c.l.b16 %v773
        %v989 = vunpack.c.l.b16 %v774
        %v990 = vunpack.c.h.b16 %v774
        %v991 = vunpack.c.l.b16 %v775
        %v992 = vunpack.c.h.b16 %v775
        %v993 = vunpack.c.l.b16 %v776
        %v994 = vpack.c.b16 %v989, %v984
        %v995 = vpack.c.b16 %v990, %v985
        %v996 = vpack.c.b16 %v991, %v986
        %v997 = vpack.c.b16 %v992, %v987
        %v998 = vpack.c.b16 %v993, %v988
        %999 = vrot.lane.b32.xlu0 %v994, 17
        %v1000 = vpop.permute.xlu0 %999
        %1001 = vrot.lane.b32.xlu0 %v995, 17
        %v1002 = vpop.permute.xlu0 %1001
        %1003 = vrot.lane.b32.xlu0 %v996, 17
        %v1004 = vpop.permute.xlu0 %1003
        %1005 = vrot.lane.b32.xlu0 %v997, 17
        %v1006 = vpop.permute.xlu0 %1005
        %1007 = vrot.lane.b32.xlu0 %v998, 17
        %v1008 = vpop.permute.xlu0 %1007
        %vm1009 = vcmask 138240
        %v1010 = vsel %vm1009, %v1000, %v1002
        %v1011 = vsel %vm1009, %v1002, %v1004
        %v1012 = vsel %vm1009, %v1004, %v1006
        %v1013 = vsel %vm1009, %v1006, %v1008
        %v1019 = vsel %vm883, %v977, 0
        %1021 = vmatprep.subr.bf16.mxu0 0
        %1022 = vmatpush1.bf16.msra.mxu0 0
        %1023 = vmatprep.subr.bf16.mxu0 0
        %1024 = vmatpush1.bf16.msra.mxu0 0
        %1025 = vmatprep.subr.bf16.mxu0 0
        %1026 = vmatpush1.bf16.msra.mxu0 0
        %1027 = vmatprep.subr.bf16.mxu0 0
        %1028 = vmatpush1.bf16.msra.mxu0 0
        %1029 = vmatprep.subr.bf16.mxu0 0
        %1030 = vmatpush1.bf16.msra.mxu0 0
        %1031 = vmatprep.subr.bf16.mxu0 0
        %1032 = vmatpush1.bf16.msra.mxu0 0
        %1033 = vmatprep.subr.bf16.mxu0 0
        %1034 = vmatpush1.bf16.msra.mxu0 0
        %1035 = vmatprep.subr.bf16.mxu0 %v1011
        %1036 = vmatpush1.bf16.msra.mxu0 %v1010
        %1037 = vmatprep.subr.bf16.mxu0 0
        %1038 = vmatpush2.bf16.msra.mxu0 0
        %1039 = vmatprep.subr.bf16.mxu0 0
        %1040 = vmatpush2.bf16.msra.mxu0 0
        %1041 = vmatprep.subr.bf16.mxu0 0
        %1042 = vmatpush2.bf16.msra.mxu0 0
        %1043 = vmatprep.subr.bf16.mxu0 0
        %1044 = vmatpush2.bf16.msra.mxu0 0
        %1045 = vmatprep.subr.bf16.mxu0 0
        %1046 = vmatpush2.bf16.msra.mxu0 0
        %1047 = vmatprep.subr.bf16.mxu0 0
        %1048 = vmatpush2.bf16.msra.mxu0 0
        %1049 = vmatprep.subr.bf16.mxu0 0
        %1050 = vmatpush2.bf16.msra.mxu0 0
        %1051 = vmatprep.subr.bf16.mxu0 0
        %1052 = vmatpush2.bf16.msra.mxu0 0
        %1053 = vmatprep.mubr.bf16.mxu0 0
        %1054 = vmatmul.mubr.bf16.gmra.mxu0 %v1019
        %v1055 = vpop.f32.mrf.mxu0
        %v1056 = vadd.f32 %v922, %v1055
        %v1057 = vpop.f32.mrf.mxu0
        %v1058 = vadd.f32 %v924, %v1057
        %v1059 = vpop.f32.mrf.mxu0
        %v1060 = vadd.f32 %v926, %v1059
        %v1061 = vpop.f32.mrf.mxu0
        %v1062 = vadd.f32 %v928, %v1061
        %1063 = vdwg.mxu0
        %1064 = vmatprep.subr.bf16.mxu0 0
        %1065 = vmatpush1.bf16.msra.mxu0 0
        %1066 = vmatprep.subr.bf16.mxu0 0
        %1067 = vmatpush1.bf16.msra.mxu0 0
        %1068 = vmatprep.subr.bf16.mxu0 0
        %1069 = vmatpush1.bf16.msra.mxu0 0
        %1070 = vmatprep.subr.bf16.mxu0 0
        %1071 = vmatpush1.bf16.msra.mxu0 0
        %1072 = vmatprep.subr.bf16.mxu0 0
        %1073 = vmatpush1.bf16.msra.mxu0 0
        %1074 = vmatprep.subr.bf16.mxu0 0
        %1075 = vmatpush1.bf16.msra.mxu0 0
        %1076 = vmatprep.subr.bf16.mxu0 0
        %1077 = vmatpush1.bf16.msra.mxu0 0
        %1078 = vmatprep.subr.bf16.mxu0 %v1013
        %1079 = vmatpush1.bf16.msra.mxu0 %v1012
        %1080 = vmatprep.subr.bf16.mxu0 0
        %1081 = vmatpush2.bf16.msra.mxu0 0
        %1082 = vmatprep.subr.bf16.mxu0 0
        %1083 = vmatpush2.bf16.msra.mxu0 0
        %1084 = vmatprep.subr.bf16.mxu0 0
        %1085 = vmatpush2.bf16.msra.mxu0 0
        %1086 = vmatprep.subr.bf16.mxu0 0
        %1087 = vmatpush2.bf16.msra.mxu0 0
        %1088 = vmatprep.subr.bf16.mxu0 0
        %1089 = vmatpush2.bf16.msra.mxu0 0
        %1090 = vmatprep.subr.bf16.mxu0 0
        %1091 = vmatpush2.bf16.msra.mxu0 0
        %1092 = vmatprep.subr.bf16.mxu0 0
        %1093 = vmatpush2.bf16.msra.mxu0 0
        %1094 = vmatprep.subr.bf16.mxu0 0
        %1095 = vmatpush2.bf16.msra.mxu0 0
        %1096 = vmatprep.mubr.bf16.mxu0 0
        %1097 = vmatmul.mubr.bf16.gmra.mxu0 %v1019
        %v1098 = vpop.f32.mrf.mxu0
        %v1099 = vadd.f32 %v965, %v1098
        %v1100 = vpop.f32.mrf.mxu0
        %v1101 = vadd.f32 %v967, %v1100
        %v1102 = vpop.f32.mrf.mxu0
        %v1103 = vadd.f32 %v969, %v1102
        %v1104 = vpop.f32.mrf.mxu0
        %v1105 = vadd.f32 %v971, %v1104
        %1106 = vdwg.mxu0
        %v1107 = vld [vmem:[%s1] sm:$0x22]
        %v1108 = vld [vmem:[%s1 + $0x8] sm:$0x22]
        %v1111 = vunpack.c.l.b16 %v1107
        %v1112 = vunpack.c.h.b16 %v1107
        %v1113 = vunpack.c.l.b16 %v1108
        %v1114 = vunpack.c.h.b16 %v1108
        %v1115 = vpack.c.b16 %v1111, %v1111
        %v1116 = vpack.c.b16 %v1112, %v1112
        %v1117 = vpack.c.b16 %v1113, %v1113
        %v1118 = vpack.c.b16 %v1114, %v1114
        %v1120 = vpack.i.b16 %v1115, %v1115
        %v1122 = vlaneseq
        %v1123 = vshrl.u32 %v1122, 7
        %v1124 = vsub.s32 1, %v1123
        %v1125 = vrot.slane %v1120, %v1124
        %v1127 = vpack.i.b16 %v1116, %v1116
        %v1129 = vlaneseq
        %v1130 = vshrl.u32 %v1129, 7
        %v1131 = vsub.s32 1, %v1130
        %v1132 = vrot.slane %v1127, %v1131
        %v1134 = vpack.i.b16 %v1117, %v1117
        %v1136 = vlaneseq
        %v1137 = vshrl.u32 %v1136, 7
        %v1138 = vsub.s32 1, %v1137
        %v1139 = vrot.slane %v1134, %v1138
        %v1141 = vpack.i.b16 %v1118, %v1118
        %v1143 = vlaneseq
        %v1144 = vshrl.u32 %v1143, 7
        %v1145 = vsub.s32 1, %v1144
        %v1146 = vrot.slane %v1141, %v1145
        %v1151 = vunpack.c.l.b16 %v1125
        %v1152 = vunpack.c.l.b16 %v1132
        %v1153 = vunpack.c.l.b16 %v1139
        %v1154 = vunpack.c.l.b16 %v1146
        %v1155 = vpack.c.b16 %v1152, %v1151
        %v1156 = vpack.c.b16 %v1154, %v1153
        %1157 = vrot.lane.b32.xlu0 %v1155, 113
        %v1158 = vpop.permute.xlu0 %1157
        %1159 = vrot.lane.b32.xlu0 %v1156, 113
        %v1160 = vpop.permute.xlu0 %1159
        %v1161 = vrot.slane %v1158, 4
        %v1162 = vrot.slane %v1160, 4
        %vm1163 = vcmask 924672
        %v1164 = vsel %vm1163, %v1161, %v1158
        %v1165 = vsel %vm765, %v1161, %v1162
        %v1166 = vsel %vm1163, %v1165, %v1160
        %v1170 = vmul.bf16 %v701, %v1164
        %v1171 = vmul.bf16 %v702, %v1166
        %v1172 = vmul.bf16 %v703, %v1162
        %v1173 = vmul.bf16 %v704, %v1164
        %v1174 = vmul.bf16 %v705, %v1166
        %v1175 = vmul.bf16 %v706, %v1162
        %v1176 = vld [vmem:[%s249 + $0x10] sm:$0xf]
        %v1177 = vld [vmem:[%s249 + $0x14] sm:$0xf]
        %v1180 = vunpack.c.l.b16 %v1176
        %v1181 = vunpack.c.l.b16 %v1177
        %v1182 = vpack.c.b16 %v1181, %v1180
        %v1189 = vunpack.c.l.b16 %v1170
        %v1190 = vunpack.c.h.b16 %v1170
        %v1191 = vunpack.c.l.b16 %v1171
        %v1192 = vunpack.c.h.b16 %v1171
        %v1193 = vunpack.c.l.b16 %v1172
        %v1194 = vunpack.c.l.b16 %v1173
        %v1195 = vunpack.c.h.b16 %v1173
        %v1196 = vunpack.c.l.b16 %v1174
        %v1197 = vunpack.c.h.b16 %v1174
        %v1198 = vunpack.c.l.b16 %v1175
        %v1199 = vpack.c.b16 %v1194, %v1189
        %v1200 = vpack.c.b16 %v1195, %v1190
        %v1201 = vpack.c.b16 %v1196, %v1191
        %v1202 = vpack.c.b16 %v1197, %v1192
        %v1203 = vpack.c.b16 %v1198, %v1193
        %1204 = vrot.lane.b32.xlu0 %v1199, 15
        %v1205 = vpop.permute.xlu0 %1204
        %1206 = vrot.lane.b32.xlu0 %v1200, 15
        %v1207 = vpop.permute.xlu0 %1206
        %1208 = vrot.lane.b32.xlu0 %v1201, 15
        %v1209 = vpop.permute.xlu0 %1208
        %1210 = vrot.lane.b32.xlu0 %v1202, 15
        %v1211 = vpop.permute.xlu0 %1210
        %1212 = vrot.lane.b32.xlu0 %v1203, 15
        %v1213 = vpop.permute.xlu0 %1212
        %vm1214 = vcmask 121856
        %v1215 = vsel %vm1214, %v1205, %v1207
        %v1216 = vsel %vm1214, %v1207, %v1209
        %v1217 = vsel %vm1214, %v1209, %v1211
        %v1218 = vsel %vm1214, %v1211, %v1213
        %v1224 = vsel %vm883, %v1182, 0
        %1226 = vmatprep.subr.bf16.mxu0 0
        %1227 = vmatpush1.bf16.msra.mxu0 0
        %1228 = vmatprep.subr.bf16.mxu0 0
        %1229 = vmatpush1.bf16.msra.mxu0 0
        %1230 = vmatprep.subr.bf16.mxu0 0
        %1231 = vmatpush1.bf16.msra.mxu0 0
        %1232 = vmatprep.subr.bf16.mxu0 0
        %1233 = vmatpush1.bf16.msra.mxu0 0
        %1234 = vmatprep.subr.bf16.mxu0 0
        %1235 = vmatpush1.bf16.msra.mxu0 0
        %1236 = vmatprep.subr.bf16.mxu0 0
        %1237 = vmatpush1.bf16.msra.mxu0 0
        %1238 = vmatprep.subr.bf16.mxu0 0
        %1239 = vmatpush1.bf16.msra.mxu0 0
        %1240 = vmatprep.subr.bf16.mxu0 %v1216
        %1241 = vmatpush1.bf16.msra.mxu0 %v1215
        %1242 = vmatprep.subr.bf16.mxu0 0
        %1243 = vmatpush2.bf16.msra.mxu0 0
        %1244 = vmatprep.subr.bf16.mxu0 0
        %1245 = vmatpush2.bf16.msra.mxu0 0
        %1246 = vmatprep.subr.bf16.mxu0 0
        %1247 = vmatpush2.bf16.msra.mxu0 0
        %1248 = vmatprep.subr.bf16.mxu0 0
        %1249 = vmatpush2.bf16.msra.mxu0 0
        %1250 = vmatprep.subr.bf16.mxu0 0
        %1251 = vmatpush2.bf16.msra.mxu0 0
        %1252 = vmatprep.subr.bf16.mxu0 0
        %1253 = vmatpush2.bf16.msra.mxu0 0
        %1254 = vmatprep.subr.bf16.mxu0 0
        %1255 = vmatpush2.bf16.msra.mxu0 0
        %1256 = vmatprep.subr.bf16.mxu0 0
        %1257 = vmatpush2.bf16.msra.mxu0 0
        %1258 = vmatprep.mubr.bf16.mxu0 0
        %1259 = vmatmul.mubr.bf16.gmra.mxu0 %v1224
        %v1260 = vpop.f32.mrf.mxu0
        %v1261 = vadd.f32 0.0, %v1260
        %v1262 = vpop.f32.mrf.mxu0
        %v1263 = vadd.f32 0.0, %v1262
        %v1264 = vpop.f32.mrf.mxu0
        %v1265 = vadd.f32 0.0, %v1264
        %v1266 = vpop.f32.mrf.mxu0
        %v1267 = vadd.f32 0.0, %v1266
        %1268 = vdwg.mxu0
        %1269 = vmatprep.subr.bf16.mxu0 0
        %1270 = vmatpush1.bf16.msra.mxu0 0
        %1271 = vmatprep.subr.bf16.mxu0 0
        %1272 = vmatpush1.bf16.msra.mxu0 0
        %1273 = vmatprep.subr.bf16.mxu0 0
        %1274 = vmatpush1.bf16.msra.mxu0 0
        %1275 = vmatprep.subr.bf16.mxu0 0
        %1276 = vmatpush1.bf16.msra.mxu0 0
        %1277 = vmatprep.subr.bf16.mxu0 0
        %1278 = vmatpush1.bf16.msra.mxu0 0
        %1279 = vmatprep.subr.bf16.mxu0 0
        %1280 = vmatpush1.bf16.msra.mxu0 0
        %1281 = vmatprep.subr.bf16.mxu0 0
        %1282 = vmatpush1.bf16.msra.mxu0 0
        %1283 = vmatprep.subr.bf16.mxu0 %v1218
        %1284 = vmatpush1.bf16.msra.mxu0 %v1217
        %1285 = vmatprep.subr.bf16.mxu0 0
        %1286 = vmatpush2.bf16.msra.mxu0 0
        %1287 = vmatprep.subr.bf16.mxu0 0
        %1288 = vmatpush2.bf16.msra.mxu0 0
        %1289 = vmatprep.subr.bf16.mxu0 0
        %1290 = vmatpush2.bf16.msra.mxu0 0
        %1291 = vmatprep.subr.bf16.mxu0 0
        %1292 = vmatpush2.bf16.msra.mxu0 0
        %1293 = vmatprep.subr.bf16.mxu0 0
        %1294 = vmatpush2.bf16.msra.mxu0 0
        %1295 = vmatprep.subr.bf16.mxu0 0
        %1296 = vmatpush2.bf16.msra.mxu0 0
        %1297 = vmatprep.subr.bf16.mxu0 0
        %1298 = vmatpush2.bf16.msra.mxu0 0
        %1299 = vmatprep.subr.bf16.mxu0 0
        %1300 = vmatpush2.bf16.msra.mxu0 0
        %1301 = vmatprep.mubr.bf16.mxu0 0
        %1302 = vmatmul.mubr.bf16.gmra.mxu0 %v1224
        %v1303 = vpop.f32.mrf.mxu0
        %v1304 = vadd.f32 0.0, %v1303
        %v1305 = vpop.f32.mrf.mxu0
        %v1306 = vadd.f32 0.0, %v1305
        %v1307 = vpop.f32.mrf.mxu0
        %v1308 = vadd.f32 0.0, %v1307
        %v1309 = vpop.f32.mrf.mxu0
        %v1310 = vadd.f32 0.0, %v1309
        %1311 = vdwg.mxu0
        %v1312 = vadd.f32 %v1056, %v1261
        %v1313 = vadd.f32 %v1058, %v1263
        %v1314 = vadd.f32 %v1099, %v1304
        %v1315 = vadd.f32 %v1101, %v1306
        %v1316 = vadd.f32 %v1060, %v1265
        %v1317 = vadd.f32 %v1062, %v1267
        %v1318 = vadd.f32 %v1103, %v1308
        %v1319 = vadd.f32 %v1105, %v1310
        %v1320 = vshrl.u32 %v1115, 16
        %v1321 = vpack.i.b16 %v1320, %v1320
        %v1323 = vlaneseq
        %v1324 = vshrl.u32 %v1323, 7
        %v1325 = vsub.s32 1, %v1324
        %v1326 = vrot.slane %v1321, %v1325
        %v1327 = vshrl.u32 %v1116, 16
        %v1328 = vpack.i.b16 %v1327, %v1327
        %v1330 = vlaneseq
        %v1331 = vshrl.u32 %v1330, 7
        %v1332 = vsub.s32 1, %v1331
        %v1333 = vrot.slane %v1328, %v1332
        %v1334 = vshrl.u32 %v1117, 16
        %v1335 = vpack.i.b16 %v1334, %v1334
        %v1337 = vlaneseq
        %v1338 = vshrl.u32 %v1337, 7
        %v1339 = vsub.s32 1, %v1338
        %v1340 = vrot.slane %v1335, %v1339
        %v1341 = vshrl.u32 %v1118, 16
        %v1342 = vpack.i.b16 %v1341, %v1341
        %v1344 = vlaneseq
        %v1345 = vshrl.u32 %v1344, 7
        %v1346 = vsub.s32 1, %v1345
        %v1347 = vrot.slane %v1342, %v1346
        %v1352 = vunpack.c.l.b16 %v1326
        %v1353 = vunpack.c.l.b16 %v1333
        %v1354 = vunpack.c.l.b16 %v1340
        %v1355 = vunpack.c.l.b16 %v1347
        %v1356 = vpack.c.b16 %v1353, %v1352
        %v1357 = vpack.c.b16 %v1355, %v1354
        %1358 = vrot.lane.b32.xlu0 %v1356, 127
        %v1359 = vpop.permute.xlu0 %1358
        %1360 = vrot.lane.b32.xlu0 %v1357, 127
        %v1361 = vpop.permute.xlu0 %1360
        %v1362 = vrot.slane %v1359, 4
        %v1363 = vrot.slane %v1361, 4
        %vm1364 = vcmask 1039360
        %v1365 = vsel %vm1364, %v1362, %v1359
        %v1366 = vsel %vm765, %v1362, %v1363
        %v1367 = vsel %vm1364, %v1366, %v1361
        %v1371 = vmul.bf16 %v701, %v1365
        %v1372 = vmul.bf16 %v702, %v1367
        %v1373 = vmul.bf16 %v703, %v1363
        %v1374 = vmul.bf16 %v704, %v1365
        %v1375 = vmul.bf16 %v705, %v1367
        %v1376 = vmul.bf16 %v706, %v1363
        %v1377 = vld [vmem:[%s249 + $0x18] sm:$0xf]
        %v1378 = vld [vmem:[%s249 + $0x1c] sm:$0xf]
        %v1381 = vunpack.c.l.b16 %v1377
        %v1382 = vunpack.c.l.b16 %v1378
        %v1383 = vpack.c.b16 %v1382, %v1381
        %v1390 = vunpack.c.l.b16 %v1371
        %v1391 = vunpack.c.h.b16 %v1371
        %v1392 = vunpack.c.l.b16 %v1372
        %v1393 = vunpack.c.h.b16 %v1372
        %v1394 = vunpack.c.l.b16 %v1373
        %v1395 = vunpack.c.l.b16 %v1374
        %v1396 = vunpack.c.h.b16 %v1374
        %v1397 = vunpack.c.l.b16 %v1375
        %v1398 = vunpack.c.h.b16 %v1375
        %v1399 = vunpack.c.l.b16 %v1376
        %v1400 = vpack.c.b16 %v1395, %v1390
        %v1401 = vpack.c.b16 %v1396, %v1391
        %v1402 = vpack.c.b16 %v1397, %v1392
        %v1403 = vpack.c.b16 %v1398, %v1393
        %v1404 = vpack.c.b16 %v1399, %v1394
        %1405 = vrot.lane.b32.xlu0 %v1400, 1
        %v1406 = vpop.permute.xlu0 %1405
        %1407 = vrot.lane.b32.xlu0 %v1401, 1
        %v1408 = vpop.permute.xlu0 %1407
        %1409 = vrot.lane.b32.xlu0 %v1402, 1
        %v1410 = vpop.permute.xlu0 %1409
        %1411 = vrot.lane.b32.xlu0 %v1403, 1
        %v1412 = vpop.permute.xlu0 %1411
        %1413 = vrot.lane.b32.xlu0 %v1404, 1
        %v1414 = vpop.permute.xlu0 %1413
        %vm1415 = vcmask 7168
        %v1416 = vsel %vm1415, %v1406, %v1408
        %v1417 = vsel %vm1415, %v1408, %v1410
        %v1418 = vsel %vm1415, %v1410, %v1412
        %v1419 = vsel %vm1415, %v1412, %v1414
        %v1425 = vsel %vm883, %v1383, 0
        %1427 = vmatprep.subr.bf16.mxu0 0
        %1428 = vmatpush1.bf16.msra.mxu0 0
        %1429 = vmatprep.subr.bf16.mxu0 0
        %1430 = vmatpush1.bf16.msra.mxu0 0
        %1431 = vmatprep.subr.bf16.mxu0 0
        %1432 = vmatpush1.bf16.msra.mxu0 0
        %1433 = vmatprep.subr.bf16.mxu0 0
        %1434 = vmatpush1.bf16.msra.mxu0 0
        %1435 = vmatprep.subr.bf16.mxu0 0
        %1436 = vmatpush1.bf16.msra.mxu0 0
        %1437 = vmatprep.subr.bf16.mxu0 0
        %1438 = vmatpush1.bf16.msra.mxu0 0
        %1439 = vmatprep.subr.bf16.mxu0 0
        %1440 = vmatpush1.bf16.msra.mxu0 0
        %1441 = vmatprep.subr.bf16.mxu0 %v1417
        %1442 = vmatpush1.bf16.msra.mxu0 %v1416
        %1443 = vmatprep.subr.bf16.mxu0 0
        %1444 = vmatpush2.bf16.msra.mxu0 0
        %1445 = vmatprep.subr.bf16.mxu0 0
        %1446 = vmatpush2.bf16.msra.mxu0 0
        %1447 = vmatprep.subr.bf16.mxu0 0
        %1448 = vmatpush2.bf16.msra.mxu0 0
        %1449 = vmatprep.subr.bf16.mxu0 0
        %1450 = vmatpush2.bf16.msra.mxu0 0
        %1451 = vmatprep.subr.bf16.mxu0 0
        %1452 = vmatpush2.bf16.msra.mxu0 0
        %1453 = vmatprep.subr.bf16.mxu0 0
        %1454 = vmatpush2.bf16.msra.mxu0 0
        %1455 = vmatprep.subr.bf16.mxu0 0
        %1456 = vmatpush2.bf16.msra.mxu0 0
        %1457 = vmatprep.subr.bf16.mxu0 0
        %1458 = vmatpush2.bf16.msra.mxu0 0
        %1459 = vmatprep.mubr.bf16.mxu0 0
        %1460 = vmatmul.mubr.bf16.gmra.mxu0 %v1425
        %v1461 = vpop.f32.mrf.mxu0
        %v1462 = vadd.f32 0.0, %v1461
        %v1463 = vpop.f32.mrf.mxu0
        %v1464 = vadd.f32 0.0, %v1463
        %v1465 = vpop.f32.mrf.mxu0
        %v1466 = vadd.f32 0.0, %v1465
        %v1467 = vpop.f32.mrf.mxu0
        %v1468 = vadd.f32 0.0, %v1467
        %1469 = vdwg.mxu0
        %1470 = vmatprep.subr.bf16.mxu0 0
        %1471 = vmatpush1.bf16.msra.mxu0 0
        %1472 = vmatprep.subr.bf16.mxu0 0
        %1473 = vmatpush1.bf16.msra.mxu0 0
        %1474 = vmatprep.subr.bf16.mxu0 0
        %1475 = vmatpush1.bf16.msra.mxu0 0
        %1476 = vmatprep.subr.bf16.mxu0 0
        %1477 = vmatpush1.bf16.msra.mxu0 0
        %1478 = vmatprep.subr.bf16.mxu0 0
        %1479 = vmatpush1.bf16.msra.mxu0 0
        %1480 = vmatprep.subr.bf16.mxu0 0
        %1481 = vmatpush1.bf16.msra.mxu0 0
        %1482 = vmatprep.subr.bf16.mxu0 0
        %1483 = vmatpush1.bf16.msra.mxu0 0
        %1484 = vmatprep.subr.bf16.mxu0 %v1419
        %1485 = vmatpush1.bf16.msra.mxu0 %v1418
        %1486 = vmatprep.subr.bf16.mxu0 0
        %1487 = vmatpush2.bf16.msra.mxu0 0
        %1488 = vmatprep.subr.bf16.mxu0 0
        %1489 = vmatpush2.bf16.msra.mxu0 0
        %1490 = vmatprep.subr.bf16.mxu0 0
        %1491 = vmatpush2.bf16.msra.mxu0 0
        %1492 = vmatprep.subr.bf16.mxu0 0
        %1493 = vmatpush2.bf16.msra.mxu0 0
        %1494 = vmatprep.subr.bf16.mxu0 0
        %1495 = vmatpush2.bf16.msra.mxu0 0
        %1496 = vmatprep.subr.bf16.mxu0 0
        %1497 = vmatpush2.bf16.msra.mxu0 0
        %1498 = vmatprep.subr.bf16.mxu0 0
        %1499 = vmatpush2.bf16.msra.mxu0 0
        %1500 = vmatprep.subr.bf16.mxu0 0
        %1501 = vmatpush2.bf16.msra.mxu0 0
        %1502 = vmatprep.mubr.bf16.mxu0 0
        %1503 = vmatmul.mubr.bf16.gmra.mxu0 %v1425
        %v1504 = vpop.f32.mrf.mxu0
        %v1505 = vadd.f32 0.0, %v1504
        %v1506 = vpop.f32.mrf.mxu0
        %v1507 = vadd.f32 0.0, %v1506
        %v1508 = vpop.f32.mrf.mxu0
        %v1509 = vadd.f32 0.0, %v1508
        %v1510 = vpop.f32.mrf.mxu0
        %v1511 = vadd.f32 0.0, %v1510
        %1512 = vdwg.mxu0
        %v1513 = vadd.f32 %v1312, %v1462
        %v1514 = vadd.f32 %v1313, %v1464
        %v1515 = vadd.f32 %v1314, %v1505
        %v1516 = vadd.f32 %v1315, %v1507
        %v1517 = vadd.f32 %v1316, %v1466
        %v1518 = vadd.f32 %v1317, %v1468
        %v1519 = vadd.f32 %v1318, %v1509
        %v1520 = vadd.f32 %v1319, %v1511
        %v1521 = vld [vmem:[#allocation2 + $0x4] sm:$0xff]
        %v1522 = vld [vmem:[#allocation2 + $0xc] sm:$0xff]
        %v1523 = vld [vmem:[#allocation2 + $0x1c] sm:$0xff]
        %v1524 = vld [vmem:[#allocation2 + $0x24] sm:$0xff]
        %v1525 = vld [vmem:[%s249 + $0x20] sm:$0xf]
        %v1526 = vld [vmem:[%s249 + $0x24] sm:$0xf]
        %v1529 = vunpack.c.l.b16 %v1525
        %v1530 = vunpack.c.l.b16 %v1526
        %v1531 = vpack.c.b16 %v1530, %v1529
        %v1536 = vunpack.c.l.b16 %v1521
        %v1537 = vunpack.c.h.b16 %v1521
        %v1538 = vunpack.c.l.b16 %v1522
        %v1539 = vunpack.c.h.b16 %v1522
        %v1540 = vunpack.c.l.b16 %v1523
        %v1541 = vunpack.c.h.b16 %v1523
        %v1542 = vunpack.c.l.b16 %v1524
        %v1543 = vunpack.c.h.b16 %v1524
        %v1544 = vpack.c.b16 %v1540, %v1536
        %v1545 = vpack.c.b16 %v1541, %v1537
        %v1546 = vpack.c.b16 %v1542, %v1538
        %v1547 = vpack.c.b16 %v1543, %v1539
        %v1553 = vsel %vm883, %v1531, 0
        %1555 = vmatprep.subr.bf16.mxu0 0
        %1556 = vmatpush1.bf16.msra.mxu0 0
        %1557 = vmatprep.subr.bf16.mxu0 0
        %1558 = vmatpush1.bf16.msra.mxu0 0
        %1559 = vmatprep.subr.bf16.mxu0 0
        %1560 = vmatpush1.bf16.msra.mxu0 0
        %1561 = vmatprep.subr.bf16.mxu0 0
        %1562 = vmatpush1.bf16.msra.mxu0 0
        %1563 = vmatprep.subr.bf16.mxu0 0
        %1564 = vmatpush1.bf16.msra.mxu0 0
        %1565 = vmatprep.subr.bf16.mxu0 0
        %1566 = vmatpush1.bf16.msra.mxu0 0
        %1567 = vmatprep.subr.bf16.mxu0 0
        %1568 = vmatpush1.bf16.msra.mxu0 0
        %1569 = vmatprep.subr.bf16.mxu0 %v1545
        %1570 = vmatpush1.bf16.msra.mxu0 %v1544
        %1571 = vmatprep.subr.bf16.mxu0 0
        %1572 = vmatpush2.bf16.msra.mxu0 0
        %1573 = vmatprep.subr.bf16.mxu0 0
        %1574 = vmatpush2.bf16.msra.mxu0 0
        %1575 = vmatprep.subr.bf16.mxu0 0
        %1576 = vmatpush2.bf16.msra.mxu0 0
        %1577 = vmatprep.subr.bf16.mxu0 0
        %1578 = vmatpush2.bf16.msra.mxu0 0
        %1579 = vmatprep.subr.bf16.mxu0 0
        %1580 = vmatpush2.bf16.msra.mxu0 0
        %1581 = vmatprep.subr.bf16.mxu0 0
        %1582 = vmatpush2.bf16.msra.mxu0 0
        %1583 = vmatprep.subr.bf16.mxu0 0
        %1584 = vmatpush2.bf16.msra.mxu0 0
        %1585 = vmatprep.subr.bf16.mxu0 0
        %1586 = vmatpush2.bf16.msra.mxu0 0
        %1587 = vmatprep.mubr.bf16.mxu0 0
        %1588 = vmatmul.mubr.bf16.gmra.mxu0 %v1553
        %v1589 = vpop.f32.mrf.mxu0
        %v1590 = vadd.f32 0.0, %v1589
        %v1591 = vpop.f32.mrf.mxu0
        %v1592 = vadd.f32 0.0, %v1591
        %v1593 = vpop.f32.mrf.mxu0
        %v1594 = vadd.f32 0.0, %v1593
        %v1595 = vpop.f32.mrf.mxu0
        %v1596 = vadd.f32 0.0, %v1595
        %1597 = vdwg.mxu0
        %1598 = vmatprep.subr.bf16.mxu0 0
        %1599 = vmatpush1.bf16.msra.mxu0 0
        %1600 = vmatprep.subr.bf16.mxu0 0
        %1601 = vmatpush1.bf16.msra.mxu0 0
        %1602 = vmatprep.subr.bf16.mxu0 0
        %1603 = vmatpush1.bf16.msra.mxu0 0
        %1604 = vmatprep.subr.bf16.mxu0 0
        %1605 = vmatpush1.bf16.msra.mxu0 0
        %1606 = vmatprep.subr.bf16.mxu0 0
        %1607 = vmatpush1.bf16.msra.mxu0 0
        %1608 = vmatprep.subr.bf16.mxu0 0
        %1609 = vmatpush1.bf16.msra.mxu0 0
        %1610 = vmatprep.subr.bf16.mxu0 0
        %1611 = vmatpush1.bf16.msra.mxu0 0
        %1612 = vmatprep.subr.bf16.mxu0 %v1547
        %1613 = vmatpush1.bf16.msra.mxu0 %v1546
        %1614 = vmatprep.subr.bf16.mxu0 0
        %1615 = vmatpush2.bf16.msra.mxu0 0
        %1616 = vmatprep.subr.bf16.mxu0 0
        %1617 = vmatpush2.bf16.msra.mxu0 0
        %1618 = vmatprep.subr.bf16.mxu0 0
        %1619 = vmatpush2.bf16.msra.mxu0 0
        %1620 = vmatprep.subr.bf16.mxu0 0
        %1621 = vmatpush2.bf16.msra.mxu0 0
        %1622 = vmatprep.subr.bf16.mxu0 0
        %1623 = vmatpush2.bf16.msra.mxu0 0
        %1624 = vmatprep.subr.bf16.mxu0 0
        %1625 = vmatpush2.bf16.msra.mxu0 0
        %1626 = vmatprep.subr.bf16.mxu0 0
        %1627 = vmatpush2.bf16.msra.mxu0 0
        %1628 = vmatprep.subr.bf16.mxu0 0
        %1629 = vmatpush2.bf16.msra.mxu0 0
        %1630 = vmatprep.mubr.bf16.mxu0 0
        %1631 = vmatmul.mubr.bf16.gmra.mxu0 %v1553
        %v1632 = vpop.f32.mrf.mxu0
        %v1633 = vadd.f32 0.0, %v1632
        %v1634 = vpop.f32.mrf.mxu0
        %v1635 = vadd.f32 0.0, %v1634
        %v1636 = vpop.f32.mrf.mxu0
        %v1637 = vadd.f32 0.0, %v1636
        %v1638 = vpop.f32.mrf.mxu0
        %v1639 = vadd.f32 0.0, %v1638
        %1640 = vdwg.mxu0
        %v1641 = vadd.f32 %v1513, %v1590
        %v1642 = vadd.f32 %v1514, %v1592
        %v1643 = vadd.f32 %v1515, %v1633
        %v1644 = vadd.f32 %v1516, %v1635
        %v1645 = vadd.f32 %v1517, %v1594
        %v1646 = vadd.f32 %v1518, %v1596
        %v1647 = vadd.f32 %v1519, %v1637
        %v1648 = vadd.f32 %v1520, %v1639
        %v1649 = vld [vmem:[#allocation2 + $0x4] sm:$0xff]
        %v1650 = vld [vmem:[#allocation2 + $0xc] sm:$0xff]
        %v1651 = vld [vmem:[#allocation2 + $0x14] sm:$0xf]
        %v1652 = vld [vmem:[#allocation2 + $0x1c] sm:$0xff]
        %v1653 = vld [vmem:[#allocation2 + $0x24] sm:$0xff]
        %v1654 = vld [vmem:[#allocation2 + $0x2c] sm:$0xf]
        %v1655 = vld [vmem:[%s1] sm:$0x44]
        %v1656 = vld [vmem:[%s1 + $0x8] sm:$0x44]
        %v1659 = vunpack.c.l.b16 %v1655
        %v1660 = vunpack.c.h.b16 %v1655
        %v1661 = vunpack.c.l.b16 %v1656
        %v1662 = vunpack.c.h.b16 %v1656
        %v1663 = vpack.c.b16 %v1659, %v1659
        %v1664 = vpack.c.b16 %v1660, %v1660
        %v1665 = vpack.c.b16 %v1661, %v1661
        %v1666 = vpack.c.b16 %v1662, %v1662
        %v1668 = vshrl.u32 %v1663, 16
        %v1669 = vpack.i.b16 %v1668, %v1668
        %v1671 = vlaneseq
        %v1672 = vshrl.u32 %v1671, 7
        %v1673 = vsub.s32 2, %v1672
        %v1674 = vrot.slane %v1669, %v1673
        %v1676 = vshrl.u32 %v1664, 16
        %v1677 = vpack.i.b16 %v1676, %v1676
        %v1679 = vlaneseq
        %v1680 = vshrl.u32 %v1679, 7
        %v1681 = vsub.s32 2, %v1680
        %v1682 = vrot.slane %v1677, %v1681
        %v1684 = vshrl.u32 %v1665, 16
        %v1685 = vpack.i.b16 %v1684, %v1684
        %v1687 = vlaneseq
        %v1688 = vshrl.u32 %v1687, 7
        %v1689 = vsub.s32 2, %v1688
        %v1690 = vrot.slane %v1685, %v1689
        %v1692 = vshrl.u32 %v1666, 16
        %v1693 = vpack.i.b16 %v1692, %v1692
        %v1695 = vlaneseq
        %v1696 = vshrl.u32 %v1695, 7
        %v1697 = vsub.s32 2, %v1696
        %v1698 = vrot.slane %v1693, %v1697
        %v1703 = vunpack.c.l.b16 %v1674
        %v1704 = vunpack.c.l.b16 %v1682
        %v1705 = vunpack.c.l.b16 %v1690
        %v1706 = vunpack.c.l.b16 %v1698
        %v1707 = vpack.c.b16 %v1704, %v1703
        %v1708 = vpack.c.b16 %v1706, %v1705
        %1709 = vrot.lane.b32.xlu0 %v1707, 1
        %v1710 = vpop.permute.xlu0 %1709
        %1711 = vrot.lane.b32.xlu0 %v1708, 1
        %v1712 = vpop.permute.xlu0 %1711
        %v1713 = vrot.slane %v1710, 4
        %v1714 = vrot.slane %v1712, 4
        %v1715 = vsel %vm1415, %v1713, %v1710
        %v1716 = vsel %vm765, %v1713, %v1714
        %v1717 = vsel %vm1415, %v1716, %v1712
        %v1721 = vmul.bf16 %v1649, %v1715
        %v1722 = vmul.bf16 %v1650, %v1717
        %v1723 = vmul.bf16 %v1651, %v1714
        %v1724 = vmul.bf16 %v1652, %v1715
        %v1725 = vmul.bf16 %v1653, %v1717
        %v1726 = vmul.bf16 %v1654, %v1714
        %v1727 = vld [vmem:[%s249 + $0x28] sm:$0xf]
        %v1728 = vld [vmem:[%s249 + $0x2c] sm:$0xf]
        %v1731 = vunpack.c.l.b16 %v1727
        %v1732 = vunpack.c.l.b16 %v1728
        %v1733 = vpack.c.b16 %v1732, %v1731
        %v1740 = vunpack.c.l.b16 %v1721
        %v1741 = vunpack.c.h.b16 %v1721
        %v1742 = vunpack.c.l.b16 %v1722
        %v1743 = vunpack.c.h.b16 %v1722
        %v1744 = vunpack.c.l.b16 %v1723
        %v1745 = vunpack.c.l.b16 %v1724
        %v1746 = vunpack.c.h.b16 %v1724
        %v1747 = vunpack.c.l.b16 %v1725
        %v1748 = vunpack.c.h.b16 %v1725
        %v1749 = vunpack.c.l.b16 %v1726
        %v1750 = vpack.c.b16 %v1745, %v1740
        %v1751 = vpack.c.b16 %v1746, %v1741
        %v1752 = vpack.c.b16 %v1747, %v1742
        %v1753 = vpack.c.b16 %v1748, %v1743
        %v1754 = vpack.c.b16 %v1749, %v1744
        %1755 = vrot.lane.b32.xlu0 %v1750, 127
        %v1756 = vpop.permute.xlu0 %1755
        %1757 = vrot.lane.b32.xlu0 %v1751, 127
        %v1758 = vpop.permute.xlu0 %1757
        %1759 = vrot.lane.b32.xlu0 %v1752, 127
        %v1760 = vpop.permute.xlu0 %1759
        %1761 = vrot.lane.b32.xlu0 %v1753, 127
        %v1762 = vpop.permute.xlu0 %1761
        %1763 = vrot.lane.b32.xlu0 %v1754, 127
        %v1764 = vpop.permute.xlu0 %1763
        %v1765 = vsel %vm1364, %v1756, %v1758
        %v1766 = vsel %vm1364, %v1758, %v1760
        %v1767 = vsel %vm1364, %v1760, %v1762
        %v1768 = vsel %vm1364, %v1762, %v1764
        %v1774 = vsel %vm883, %v1733, 0
        %1776 = vmatprep.subr.bf16.mxu0 0
        %1777 = vmatpush1.bf16.msra.mxu0 0
        %1778 = vmatprep.subr.bf16.mxu0 0
        %1779 = vmatpush1.bf16.msra.mxu0 0
        %1780 = vmatprep.subr.bf16.mxu0 0
        %1781 = vmatpush1.bf16.msra.mxu0 0
        %1782 = vmatprep.subr.bf16.mxu0 0
        %1783 = vmatpush1.bf16.msra.mxu0 0
        %1784 = vmatprep.subr.bf16.mxu0 0
        %1785 = vmatpush1.bf16.msra.mxu0 0
        %1786 = vmatprep.subr.bf16.mxu0 0
        %1787 = vmatpush1.bf16.msra.mxu0 0
        %1788 = vmatprep.subr.bf16.mxu0 0
        %1789 = vmatpush1.bf16.msra.mxu0 0
        %1790 = vmatprep.subr.bf16.mxu0 %v1766
        %1791 = vmatpush1.bf16.msra.mxu0 %v1765
        %1792 = vmatprep.subr.bf16.mxu0 0
        %1793 = vmatpush2.bf16.msra.mxu0 0
        %1794 = vmatprep.subr.bf16.mxu0 0
        %1795 = vmatpush2.bf16.msra.mxu0 0
        %1796 = vmatprep.subr.bf16.mxu0 0
        %1797 = vmatpush2.bf16.msra.mxu0 0
        %1798 = vmatprep.subr.bf16.mxu0 0
        %1799 = vmatpush2.bf16.msra.mxu0 0
        %1800 = vmatprep.subr.bf16.mxu0 0
        %1801 = vmatpush2.bf16.msra.mxu0 0
        %1802 = vmatprep.subr.bf16.mxu0 0
        %1803 = vmatpush2.bf16.msra.mxu0 0
        %1804 = vmatprep.subr.bf16.mxu0 0
        %1805 = vmatpush2.bf16.msra.mxu0 0
        %1806 = vmatprep.subr.bf16.mxu0 0
        %1807 = vmatpush2.bf16.msra.mxu0 0
        %1808 = vmatprep.mubr.bf16.mxu0 0
        %1809 = vmatmul.mubr.bf16.gmra.mxu0 %v1774
        %v1810 = vpop.f32.mrf.mxu0
        %v1811 = vadd.f32 0.0, %v1810
        %v1812 = vpop.f32.mrf.mxu0
        %v1813 = vadd.f32 0.0, %v1812
        %v1814 = vpop.f32.mrf.mxu0
        %v1815 = vadd.f32 0.0, %v1814
        %v1816 = vpop.f32.mrf.mxu0
        %v1817 = vadd.f32 0.0, %v1816
        %1818 = vdwg.mxu0
        %1819 = vmatprep.subr.bf16.mxu0 0
        %1820 = vmatpush1.bf16.msra.mxu0 0
        %1821 = vmatprep.subr.bf16.mxu0 0
        %1822 = vmatpush1.bf16.msra.mxu0 0
        %1823 = vmatprep.subr.bf16.mxu0 0
        %1824 = vmatpush1.bf16.msra.mxu0 0
        %1825 = vmatprep.subr.bf16.mxu0 0
        %1826 = vmatpush1.bf16.msra.mxu0 0
        %1827 = vmatprep.subr.bf16.mxu0 0
        %1828 = vmatpush1.bf16.msra.mxu0 0
        %1829 = vmatprep.subr.bf16.mxu0 0
        %1830 = vmatpush1.bf16.msra.mxu0 0
        %1831 = vmatprep.subr.bf16.mxu0 0
        %1832 = vmatpush1.bf16.msra.mxu0 0
        %1833 = vmatprep.subr.bf16.mxu0 %v1768
        %1834 = vmatpush1.bf16.msra.mxu0 %v1767
        %1835 = vmatprep.subr.bf16.mxu0 0
        %1836 = vmatpush2.bf16.msra.mxu0 0
        %1837 = vmatprep.subr.bf16.mxu0 0
        %1838 = vmatpush2.bf16.msra.mxu0 0
        %1839 = vmatprep.subr.bf16.mxu0 0
        %1840 = vmatpush2.bf16.msra.mxu0 0
        %1841 = vmatprep.subr.bf16.mxu0 0
        %1842 = vmatpush2.bf16.msra.mxu0 0
        %1843 = vmatprep.subr.bf16.mxu0 0
        %1844 = vmatpush2.bf16.msra.mxu0 0
        %1845 = vmatprep.subr.bf16.mxu0 0
        %1846 = vmatpush2.bf16.msra.mxu0 0
        %1847 = vmatprep.subr.bf16.mxu0 0
        %1848 = vmatpush2.bf16.msra.mxu0 0
        %1849 = vmatprep.subr.bf16.mxu0 0
        %1850 = vmatpush2.bf16.msra.mxu0 0
        %1851 = vmatprep.mubr.bf16.mxu0 0
        %1852 = vmatmul.mubr.bf16.gmra.mxu0 %v1774
        %v1853 = vpop.f32.mrf.mxu0
        %v1854 = vadd.f32 0.0, %v1853
        %v1855 = vpop.f32.mrf.mxu0
        %v1856 = vadd.f32 0.0, %v1855
        %v1857 = vpop.f32.mrf.mxu0
        %v1858 = vadd.f32 0.0, %v1857
        %v1859 = vpop.f32.mrf.mxu0
        %v1860 = vadd.f32 0.0, %v1859
        %1861 = vdwg.mxu0
        %v1862 = vadd.f32 %v1641, %v1811
        %v1863 = vadd.f32 %v1642, %v1813
        %v1864 = vadd.f32 %v1643, %v1854
        %v1865 = vadd.f32 %v1644, %v1856
        %v1866 = vadd.f32 %v1645, %v1815
        %v1867 = vadd.f32 %v1646, %v1817
        %v1868 = vadd.f32 %v1647, %v1858
        %v1869 = vadd.f32 %v1648, %v1860
        %v1870 = vld [vmem:[%s1] sm:$0x88]
        %v1871 = vld [vmem:[%s1 + $0x8] sm:$0x88]
        %v1874 = vunpack.c.l.b16 %v1870
        %v1875 = vunpack.c.h.b16 %v1870
        %v1876 = vunpack.c.l.b16 %v1871
        %v1877 = vunpack.c.h.b16 %v1871
        %v1878 = vpack.c.b16 %v1874, %v1874
        %v1879 = vpack.c.b16 %v1875, %v1875
        %v1880 = vpack.c.b16 %v1876, %v1876
        %v1881 = vpack.c.b16 %v1877, %v1877
        %v1883 = vpack.i.b16 %v1878, %v1878
        %v1885 = vlaneseq
        %v1886 = vshrl.u32 %v1885, 7
        %v1887 = vsub.s32 3, %v1886
        %v1888 = vrot.slane %v1883, %v1887
        %v1890 = vpack.i.b16 %v1879, %v1879
        %v1892 = vlaneseq
        %v1893 = vshrl.u32 %v1892, 7
        %v1894 = vsub.s32 3, %v1893
        %v1895 = vrot.slane %v1890, %v1894
        %v1897 = vpack.i.b16 %v1880, %v1880
        %v1899 = vlaneseq
        %v1900 = vshrl.u32 %v1899, 7
        %v1901 = vsub.s32 3, %v1900
        %v1902 = vrot.slane %v1897, %v1901
        %v1904 = vpack.i.b16 %v1881, %v1881
        %v1906 = vlaneseq
        %v1907 = vshrl.u32 %v1906, 7
        %v1908 = vsub.s32 3, %v1907
        %v1909 = vrot.slane %v1904, %v1908
        %v1914 = vunpack.c.l.b16 %v1888
        %v1915 = vunpack.c.l.b16 %v1895
        %v1916 = vunpack.c.l.b16 %v1902
        %v1917 = vunpack.c.l.b16 %v1909
        %v1918 = vpack.c.b16 %v1915, %v1914
        %v1919 = vpack.c.b16 %v1917, %v1916
        %1920 = vrot.lane.b32.xlu0 %v1918, 15
        %v1921 = vpop.permute.xlu0 %1920
        %1922 = vrot.lane.b32.xlu0 %v1919, 15
        %v1923 = vpop.permute.xlu0 %1922
        %v1924 = vrot.slane %v1921, 4
        %v1925 = vrot.slane %v1923, 4
        %v1926 = vsel %vm1214, %v1924, %v1921
        %v1927 = vsel %vm765, %v1924, %v1925
        %v1928 = vsel %vm1214, %v1927, %v1923
        %v1932 = vmul.bf16 %v1649, %v1926
        %v1933 = vmul.bf16 %v1650, %v1928
        %v1934 = vmul.bf16 %v1651, %v1925
        %v1935 = vmul.bf16 %v1652, %v1926
        %v1936 = vmul.bf16 %v1653, %v1928
        %v1937 = vmul.bf16 %v1654, %v1925
        %v1938 = vld [vmem:[%s249 + $0x30] sm:$0xf]
        %v1939 = vld [vmem:[%s249 + $0x34] sm:$0xf]
        %v1942 = vunpack.c.l.b16 %v1938
        %v1943 = vunpack.c.l.b16 %v1939
        %v1944 = vpack.c.b16 %v1943, %v1942
        %v1951 = vunpack.c.l.b16 %v1932
        %v1952 = vunpack.c.h.b16 %v1932
        %v1953 = vunpack.c.l.b16 %v1933
        %v1954 = vunpack.c.h.b16 %v1933
        %v1955 = vunpack.c.l.b16 %v1934
        %v1956 = vunpack.c.l.b16 %v1935
        %v1957 = vunpack.c.h.b16 %v1935
        %v1958 = vunpack.c.l.b16 %v1936
        %v1959 = vunpack.c.h.b16 %v1936
        %v1960 = vunpack.c.l.b16 %v1937
        %v1961 = vpack.c.b16 %v1956, %v1951
        %v1962 = vpack.c.b16 %v1957, %v1952
        %v1963 = vpack.c.b16 %v1958, %v1953
        %v1964 = vpack.c.b16 %v1959, %v1954
        %v1965 = vpack.c.b16 %v1960, %v1955
        %1966 = vrot.lane.b32.xlu0 %v1961, 113
        %v1967 = vpop.permute.xlu0 %1966
        %1968 = vrot.lane.b32.xlu0 %v1962, 113
        %v1969 = vpop.permute.xlu0 %1968
        %1970 = vrot.lane.b32.xlu0 %v1963, 113
        %v1971 = vpop.permute.xlu0 %1970
        %1972 = vrot.lane.b32.xlu0 %v1964, 113
        %v1973 = vpop.permute.xlu0 %1972
        %1974 = vrot.lane.b32.xlu0 %v1965, 113
        %v1975 = vpop.permute.xlu0 %1974
        %v1976 = vsel %vm1163, %v1967, %v1969
        %v1977 = vsel %vm1163, %v1969, %v1971
        %v1978 = vsel %vm1163, %v1971, %v1973
        %v1979 = vsel %vm1163, %v1973, %v1975
        %v1985 = vsel %vm883, %v1944, 0
        %1987 = vmatprep.subr.bf16.mxu0 0
        %1988 = vmatpush1.bf16.msra.mxu0 0
        %1989 = vmatprep.subr.bf16.mxu0 0
        %1990 = vmatpush1.bf16.msra.mxu0 0
        %1991 = vmatprep.subr.bf16.mxu0 0
        %1992 = vmatpush1.bf16.msra.mxu0 0
        %1993 = vmatprep.subr.bf16.mxu0 0
        %1994 = vmatpush1.bf16.msra.mxu0 0
        %1995 = vmatprep.subr.bf16.mxu0 0
        %1996 = vmatpush1.bf16.msra.mxu0 0
        %1997 = vmatprep.subr.bf16.mxu0 0
        %1998 = vmatpush1.bf16.msra.mxu0 0
        %1999 = vmatprep.subr.bf16.mxu0 0
        %2000 = vmatpush1.bf16.msra.mxu0 0
        %2001 = vmatprep.subr.bf16.mxu0 %v1977
        %2002 = vmatpush1.bf16.msra.mxu0 %v1976
        %2003 = vmatprep.subr.bf16.mxu0 0
        %2004 = vmatpush2.bf16.msra.mxu0 0
        %2005 = vmatprep.subr.bf16.mxu0 0
        %2006 = vmatpush2.bf16.msra.mxu0 0
        %2007 = vmatprep.subr.bf16.mxu0 0
        %2008 = vmatpush2.bf16.msra.mxu0 0
        %2009 = vmatprep.subr.bf16.mxu0 0
        %2010 = vmatpush2.bf16.msra.mxu0 0
        %2011 = vmatprep.subr.bf16.mxu0 0
        %2012 = vmatpush2.bf16.msra.mxu0 0
        %2013 = vmatprep.subr.bf16.mxu0 0
        %2014 = vmatpush2.bf16.msra.mxu0 0
        %2015 = vmatprep.subr.bf16.mxu0 0
        %2016 = vmatpush2.bf16.msra.mxu0 0
        %2017 = vmatprep.subr.bf16.mxu0 0
        %2018 = vmatpush2.bf16.msra.mxu0 0
        %2019 = vmatprep.mubr.bf16.mxu0 0
        %2020 = vmatmul.mubr.bf16.gmra.mxu0 %v1985
        %v2021 = vpop.f32.mrf.mxu0
        %v2022 = vadd.f32 0.0, %v2021
        %v2023 = vpop.f32.mrf.mxu0
        %v2024 = vadd.f32 0.0, %v2023
        %v2025 = vpop.f32.mrf.mxu0
        %v2026 = vadd.f32 0.0, %v2025
        %v2027 = vpop.f32.mrf.mxu0
        %v2028 = vadd.f32 0.0, %v2027
        %2029 = vdwg.mxu0
        %2030 = vmatprep.subr.bf16.mxu0 0
        %2031 = vmatpush1.bf16.msra.mxu0 0
        %2032 = vmatprep.subr.bf16.mxu0 0
        %2033 = vmatpush1.bf16.msra.mxu0 0
        %2034 = vmatprep.subr.bf16.mxu0 0
        %2035 = vmatpush1.bf16.msra.mxu0 0
        %2036 = vmatprep.subr.bf16.mxu0 0
        %2037 = vmatpush1.bf16.msra.mxu0 0
        %2038 = vmatprep.subr.bf16.mxu0 0
        %2039 = vmatpush1.bf16.msra.mxu0 0
        %2040 = vmatprep.subr.bf16.mxu0 0
        %2041 = vmatpush1.bf16.msra.mxu0 0
        %2042 = vmatprep.subr.bf16.mxu0 0
        %2043 = vmatpush1.bf16.msra.mxu0 0
        %2044 = vmatprep.subr.bf16.mxu0 %v1979
        %2045 = vmatpush1.bf16.msra.mxu0 %v1978
        %2046 = vmatprep.subr.bf16.mxu0 0
        %2047 = vmatpush2.bf16.msra.mxu0 0
        %2048 = vmatprep.subr.bf16.mxu0 0
        %2049 = vmatpush2.bf16.msra.mxu0 0
        %2050 = vmatprep.subr.bf16.mxu0 0
        %2051 = vmatpush2.bf16.msra.mxu0 0
        %2052 = vmatprep.subr.bf16.mxu0 0
        %2053 = vmatpush2.bf16.msra.mxu0 0
        %2054 = vmatprep.subr.bf16.mxu0 0
        %2055 = vmatpush2.bf16.msra.mxu0 0
        %2056 = vmatprep.subr.bf16.mxu0 0
        %2057 = vmatpush2.bf16.msra.mxu0 0
        %2058 = vmatprep.subr.bf16.mxu0 0
        %2059 = vmatpush2.bf16.msra.mxu0 0
        %2060 = vmatprep.subr.bf16.mxu0 0
        %2061 = vmatpush2.bf16.msra.mxu0 0
        %2062 = vmatprep.mubr.bf16.mxu0 0
        %2063 = vmatmul.mubr.bf16.gmra.mxu0 %v1985
        %v2064 = vpop.f32.mrf.mxu0
        %v2065 = vadd.f32 0.0, %v2064
        %v2066 = vpop.f32.mrf.mxu0
        %v2067 = vadd.f32 0.0, %v2066
        %v2068 = vpop.f32.mrf.mxu0
        %v2069 = vadd.f32 0.0, %v2068
        %v2070 = vpop.f32.mrf.mxu0
        %v2071 = vadd.f32 0.0, %v2070
        %2072 = vdwg.mxu0
        %v2073 = vadd.f32 %v1862, %v2022
        %v2074 = vadd.f32 %v1863, %v2024
        %v2075 = vadd.f32 %v1864, %v2065
        %v2076 = vadd.f32 %v1865, %v2067
        %v2077 = vadd.f32 %v1866, %v2026
        %v2078 = vadd.f32 %v1867, %v2028
        %v2079 = vadd.f32 %v1868, %v2069
        %v2080 = vadd.f32 %v1869, %v2071
        %v2081 = vshrl.u32 %v1878, 16
        %v2082 = vpack.i.b16 %v2081, %v2081
        %v2084 = vlaneseq
        %v2085 = vshrl.u32 %v2084, 7
        %v2086 = vsub.s32 3, %v2085
        %v2087 = vrot.slane %v2082, %v2086
        %v2088 = vshrl.u32 %v1879, 16
        %v2089 = vpack.i.b16 %v2088, %v2088
        %v2091 = vlaneseq
        %v2092 = vshrl.u32 %v2091, 7
        %v2093 = vsub.s32 3, %v2092
        %v2094 = vrot.slane %v2089, %v2093
        %v2095 = vshrl.u32 %v1880, 16
        %v2096 = vpack.i.b16 %v2095, %v2095
        %v2098 = vlaneseq
        %v2099 = vshrl.u32 %v2098, 7
        %v2100 = vsub.s32 3, %v2099
        %v2101 = vrot.slane %v2096, %v2100
        %v2102 = vshrl.u32 %v1881, 16
        %v2103 = vpack.i.b16 %v2102, %v2102
        %v2105 = vlaneseq
        %v2106 = vshrl.u32 %v2105, 7
        %v2107 = vsub.s32 3, %v2106
        %v2108 = vrot.slane %v2103, %v2107
        %v2113 = vunpack.c.l.b16 %v2087
        %v2114 = vunpack.c.l.b16 %v2094
        %v2115 = vunpack.c.l.b16 %v2101
        %v2116 = vunpack.c.l.b16 %v2108
        %v2117 = vpack.c.b16 %v2114, %v2113
        %v2118 = vpack.c.b16 %v2116, %v2115
        %2119 = vrot.lane.b32.xlu0 %v2117, 16
        %v2120 = vpop.permute.xlu0 %2119
        %2121 = vrot.lane.b32.xlu0 %v2118, 16
        %v2122 = vpop.permute.xlu0 %2121
        %v2123 = vrot.slane %v2120, 4
        %v2124 = vrot.slane %v2122, 4
        %v2125 = vsel %vm874, %v2123, %v2120
        %v2126 = vsel %vm765, %v2123, %v2124
        %v2127 = vsel %vm874, %v2126, %v2122
        %v2131 = vmul.bf16 %v1649, %v2125
        %v2132 = vmul.bf16 %v1650, %v2127
        %v2133 = vmul.bf16 %v1651, %v2124
        %v2134 = vmul.bf16 %v1652, %v2125
        %v2135 = vmul.bf16 %v1653, %v2127
        %v2136 = vmul.bf16 %v1654, %v2124
        %v2137 = vld [vmem:[%s249 + $0x38] sm:$0xf]
        %v2138 = vld [vmem:[%s249 + $0x3c] sm:$0xf]
        %v2141 = vunpack.c.l.b16 %v2137
        %v2142 = vunpack.c.l.b16 %v2138
        %v2143 = vpack.c.b16 %v2142, %v2141
        %v2150 = vunpack.c.l.b16 %v2131
        %v2151 = vunpack.c.h.b16 %v2131
        %v2152 = vunpack.c.l.b16 %v2132
        %v2153 = vunpack.c.h.b16 %v2132
        %v2154 = vunpack.c.l.b16 %v2133
        %v2155 = vunpack.c.l.b16 %v2134
        %v2156 = vunpack.c.h.b16 %v2134
        %v2157 = vunpack.c.l.b16 %v2135
        %v2158 = vunpack.c.h.b16 %v2135
        %v2159 = vunpack.c.l.b16 %v2136
        %v2160 = vpack.c.b16 %v2155, %v2150
        %v2161 = vpack.c.b16 %v2156, %v2151
        %v2162 = vpack.c.b16 %v2157, %v2152
        %v2163 = vpack.c.b16 %v2158, %v2153
        %v2164 = vpack.c.b16 %v2159, %v2154
        %2165 = vrot.lane.b32.xlu0 %v2160, 112
        %v2166 = vpop.permute.xlu0 %2165
        %2167 = vrot.lane.b32.xlu0 %v2161, 112
        %v2168 = vpop.permute.xlu0 %2167
        %2169 = vrot.lane.b32.xlu0 %v2162, 112
        %v2170 = vpop.permute.xlu0 %2169
        %2171 = vrot.lane.b32.xlu0 %v2163, 112
        %v2172 = vpop.permute.xlu0 %2171
        %2173 = vrot.lane.b32.xlu0 %v2164, 112
        %v2174 = vpop.permute.xlu0 %2173
        %v2175 = vsel %vm823, %v2166, %v2168
        %v2176 = vsel %vm823, %v2168, %v2170
        %v2177 = vsel %vm823, %v2170, %v2172
        %v2178 = vsel %vm823, %v2172, %v2174
        %v2184 = vsel %vm883, %v2143, 0
        %2186 = vmatprep.subr.bf16.mxu0 0
        %2187 = vmatpush1.bf16.msra.mxu0 0
        %2188 = vmatprep.subr.bf16.mxu0 0
        %2189 = vmatpush1.bf16.msra.mxu0 0
        %2190 = vmatprep.subr.bf16.mxu0 0
        %2191 = vmatpush1.bf16.msra.mxu0 0
        %2192 = vmatprep.subr.bf16.mxu0 0
        %2193 = vmatpush1.bf16.msra.mxu0 0
        %2194 = vmatprep.subr.bf16.mxu0 0
        %2195 = vmatpush1.bf16.msra.mxu0 0
        %2196 = vmatprep.subr.bf16.mxu0 0
        %2197 = vmatpush1.bf16.msra.mxu0 0
        %2198 = vmatprep.subr.bf16.mxu0 0
        %2199 = vmatpush1.bf16.msra.mxu0 0
        %2200 = vmatprep.subr.bf16.mxu0 %v2176
        %2201 = vmatpush1.bf16.msra.mxu0 %v2175
        %2202 = vmatprep.subr.bf16.mxu0 0
        %2203 = vmatpush2.bf16.msra.mxu0 0
        %2204 = vmatprep.subr.bf16.mxu0 0
        %2205 = vmatpush2.bf16.msra.mxu0 0
        %2206 = vmatprep.subr.bf16.mxu0 0
        %2207 = vmatpush2.bf16.msra.mxu0 0
        %2208 = vmatprep.subr.bf16.mxu0 0
        %2209 = vmatpush2.bf16.msra.mxu0 0
        %2210 = vmatprep.subr.bf16.mxu0 0
        %2211 = vmatpush2.bf16.msra.mxu0 0
        %2212 = vmatprep.subr.bf16.mxu0 0
        %2213 = vmatpush2.bf16.msra.mxu0 0
        %2214 = vmatprep.subr.bf16.mxu0 0
        %2215 = vmatpush2.bf16.msra.mxu0 0
        %2216 = vmatprep.subr.bf16.mxu0 0
        %2217 = vmatpush2.bf16.msra.mxu0 0
        %2218 = vmatprep.mubr.bf16.mxu0 0
        %2219 = vmatmul.mubr.bf16.gmra.mxu0 %v2184
        %v2220 = vpop.f32.mrf.mxu0
        %v2221 = vadd.f32 0.0, %v2220
        %v2222 = vpop.f32.mrf.mxu0
        %v2223 = vadd.f32 0.0, %v2222
        %v2224 = vpop.f32.mrf.mxu0
        %v2225 = vadd.f32 0.0, %v2224
        %v2226 = vpop.f32.mrf.mxu0
        %v2227 = vadd.f32 0.0, %v2226
        %2228 = vdwg.mxu0
        %2229 = vmatprep.subr.bf16.mxu0 0
        %2230 = vmatpush1.bf16.msra.mxu0 0
        %2231 = vmatprep.subr.bf16.mxu0 0
        %2232 = vmatpush1.bf16.msra.mxu0 0
        %2233 = vmatprep.subr.bf16.mxu0 0
        %2234 = vmatpush1.bf16.msra.mxu0 0
        %2235 = vmatprep.subr.bf16.mxu0 0
        %2236 = vmatpush1.bf16.msra.mxu0 0
        %2237 = vmatprep.subr.bf16.mxu0 0
        %2238 = vmatpush1.bf16.msra.mxu0 0
        %2239 = vmatprep.subr.bf16.mxu0 0
        %2240 = vmatpush1.bf16.msra.mxu0 0
        %2241 = vmatprep.subr.bf16.mxu0 0
        %2242 = vmatpush1.bf16.msra.mxu0 0
        %2243 = vmatprep.subr.bf16.mxu0 %v2178
        %2244 = vmatpush1.bf16.msra.mxu0 %v2177
        %2245 = vmatprep.subr.bf16.mxu0 0
        %2246 = vmatpush2.bf16.msra.mxu0 0
        %2247 = vmatprep.subr.bf16.mxu0 0
        %2248 = vmatpush2.bf16.msra.mxu0 0
        %2249 = vmatprep.subr.bf16.mxu0 0
        %2250 = vmatpush2.bf16.msra.mxu0 0
        %2251 = vmatprep.subr.bf16.mxu0 0
        %2252 = vmatpush2.bf16.msra.mxu0 0
        %2253 = vmatprep.subr.bf16.mxu0 0
        %2254 = vmatpush2.bf16.msra.mxu0 0
        %2255 = vmatprep.subr.bf16.mxu0 0
        %2256 = vmatpush2.bf16.msra.mxu0 0
        %2257 = vmatprep.subr.bf16.mxu0 0
        %2258 = vmatpush2.bf16.msra.mxu0 0
        %2259 = vmatprep.subr.bf16.mxu0 0
        %2260 = vmatpush2.bf16.msra.mxu0 0
        %2261 = vmatprep.mubr.bf16.mxu0 0
        %2262 = vmatmul.mubr.bf16.gmra.mxu0 %v2184
        %v2263 = vpop.f32.mrf.mxu0
        %v2264 = vadd.f32 0.0, %v2263
        %v2265 = vpop.f32.mrf.mxu0
        %v2266 = vadd.f32 0.0, %v2265
        %v2267 = vpop.f32.mrf.mxu0
        %v2268 = vadd.f32 0.0, %v2267
        %v2269 = vpop.f32.mrf.mxu0
        %v2270 = vadd.f32 0.0, %v2269
        %2271 = vdwg.mxu0
        %v2272 = vadd.f32 %v2073, %v2221
        %v2273 = vadd.f32 %v2074, %v2223
        %v2274 = vadd.f32 %v2075, %v2264
        %v2275 = vadd.f32 %v2076, %v2266
        %v2276 = vadd.f32 %v2077, %v2225
        %v2277 = vadd.f32 %v2078, %v2227
        %v2278 = vadd.f32 %v2079, %v2268
        %v2279 = vadd.f32 %v2080, %v2270
        %v2280 = vld [vmem:[%s1 + $0x10] sm:$0x11]
        %v2281 = vld [vmem:[%s1 + $0x18] sm:$0x11]
        %v2284 = vunpack.c.l.b16 %v2280
        %v2285 = vunpack.c.h.b16 %v2280
        %v2286 = vunpack.c.l.b16 %v2281
        %v2287 = vunpack.c.h.b16 %v2281
        %v2288 = vpack.c.b16 %v2284, %v2284
        %v2289 = vpack.c.b16 %v2285, %v2285
        %v2290 = vpack.c.b16 %v2286, %v2286
        %v2291 = vpack.c.b16 %v2287, %v2287
        %v2293 = vpack.i.b16 %v2288, %v2288
        %v2295 = vlaneseq
        %v2296 = vshrl.u32 %v2295, 7
        %v2297 = vsub.s32 0, %v2296
        %v2298 = vrot.slane %v2293, %v2297
        %v2300 = vpack.i.b16 %v2289, %v2289
        %v2302 = vlaneseq
        %v2303 = vshrl.u32 %v2302, 7
        %v2304 = vsub.s32 0, %v2303
        %v2305 = vrot.slane %v2300, %v2304
        %v2307 = vpack.i.b16 %v2290, %v2290
        %v2309 = vlaneseq
        %v2310 = vshrl.u32 %v2309, 7
        %v2311 = vsub.s32 0, %v2310
        %v2312 = vrot.slane %v2307, %v2311
        %v2314 = vpack.i.b16 %v2291, %v2291
        %v2316 = vlaneseq
        %v2317 = vshrl.u32 %v2316, 7
        %v2318 = vsub.s32 0, %v2317
        %v2319 = vrot.slane %v2314, %v2318
        %v2324 = vunpack.c.l.b16 %v2298
        %v2325 = vunpack.c.l.b16 %v2305
        %v2326 = vunpack.c.l.b16 %v2312
        %v2327 = vunpack.c.l.b16 %v2319
        %v2328 = vpack.c.b16 %v2325, %v2324
        %v2329 = vpack.c.b16 %v2327, %v2326
        %2330 = vrot.lane.b32.xlu0 %v2328, 17
        %v2331 = vpop.permute.xlu0 %2330
        %2332 = vrot.lane.b32.xlu0 %v2329, 17
        %v2333 = vpop.permute.xlu0 %2332
        %v2334 = vrot.slane %v2331, 4
        %v2335 = vrot.slane %v2333, 4
        %v2336 = vsel %vm1009, %v2334, %v2331
        %v2337 = vsel %vm765, %v2334, %v2335
        %v2338 = vsel %vm1009, %v2337, %v2333
        %v2342 = vmul.bf16 %v1649, %v2336
        %v2343 = vmul.bf16 %v1650, %v2338
        %v2344 = vmul.bf16 %v1651, %v2335
        %v2345 = vmul.bf16 %v1652, %v2336
        %v2346 = vmul.bf16 %v1653, %v2338
        %v2347 = vmul.bf16 %v1654, %v2335
        %v2348 = vld [vmem:[%s249 + $0x40] sm:$0xf]
        %v2349 = vld [vmem:[%s249 + $0x44] sm:$0xf]
        %v2352 = vunpack.c.l.b16 %v2348
        %v2353 = vunpack.c.l.b16 %v2349
        %v2354 = vpack.c.b16 %v2353, %v2352
        %v2361 = vunpack.c.l.b16 %v2342
        %v2362 = vunpack.c.h.b16 %v2342
        %v2363 = vunpack.c.l.b16 %v2343
        %v2364 = vunpack.c.h.b16 %v2343
        %v2365 = vunpack.c.l.b16 %v2344
        %v2366 = vunpack.c.l.b16 %v2345
        %v2367 = vunpack.c.h.b16 %v2345
        %v2368 = vunpack.c.l.b16 %v2346
        %v2369 = vunpack.c.h.b16 %v2346
        %v2370 = vunpack.c.l.b16 %v2347
        %v2371 = vpack.c.b16 %v2366, %v2361
        %v2372 = vpack.c.b16 %v2367, %v2362
        %v2373 = vpack.c.b16 %v2368, %v2363
        %v2374 = vpack.c.b16 %v2369, %v2364
        %v2375 = vpack.c.b16 %v2370, %v2365
        %2376 = vrot.lane.b32.xlu0 %v2371, 111
        %v2377 = vpop.permute.xlu0 %2376
        %2378 = vrot.lane.b32.xlu0 %v2372, 111
        %v2379 = vpop.permute.xlu0 %2378
        %2380 = vrot.lane.b32.xlu0 %v2373, 111
        %v2381 = vpop.permute.xlu0 %2380
        %2382 = vrot.lane.b32.xlu0 %v2374, 111
        %v2383 = vpop.permute.xlu0 %2382
        %2384 = vrot.lane.b32.xlu0 %v2375, 111
        %v2385 = vpop.permute.xlu0 %2384
        %v2386 = vsel %vm763, %v2377, %v2379
        %v2387 = vsel %vm763, %v2379, %v2381
        %v2388 = vsel %vm763, %v2381, %v2383
        %v2389 = vsel %vm763, %v2383, %v2385
        %v2395 = vsel %vm883, %v2354, 0
        %2397 = vmatprep.subr.bf16.mxu0 0
        %2398 = vmatpush1.bf16.msra.mxu0 0
        %2399 = vmatprep.subr.bf16.mxu0 0
        %2400 = vmatpush1.bf16.msra.mxu0 0
        %2401 = vmatprep.subr.bf16.mxu0 0
        %2402 = vmatpush1.bf16.msra.mxu0 0
        %2403 = vmatprep.subr.bf16.mxu0 0
        %2404 = vmatpush1.bf16.msra.mxu0 0
        %2405 = vmatprep.subr.bf16.mxu0 0
        %2406 = vmatpush1.bf16.msra.mxu0 0
        %2407 = vmatprep.subr.bf16.mxu0 0
        %2408 = vmatpush1.bf16.msra.mxu0 0
        %2409 = vmatprep.subr.bf16.mxu0 0
        %2410 = vmatpush1.bf16.msra.mxu0 0
        %2411 = vmatprep.subr.bf16.mxu0 %v2387
        %2412 = vmatpush1.bf16.msra.mxu0 %v2386
        %2413 = vmatprep.subr.bf16.mxu0 0
        %2414 = vmatpush2.bf16.msra.mxu0 0
        %2415 = vmatprep.subr.bf16.mxu0 0
        %2416 = vmatpush2.bf16.msra.mxu0 0
        %2417 = vmatprep.subr.bf16.mxu0 0
        %2418 = vmatpush2.bf16.msra.mxu0 0
        %2419 = vmatprep.subr.bf16.mxu0 0
        %2420 = vmatpush2.bf16.msra.mxu0 0
        %2421 = vmatprep.subr.bf16.mxu0 0
        %2422 = vmatpush2.bf16.msra.mxu0 0
        %2423 = vmatprep.subr.bf16.mxu0 0
        %2424 = vmatpush2.bf16.msra.mxu0 0
        %2425 = vmatprep.subr.bf16.mxu0 0
        %2426 = vmatpush2.bf16.msra.mxu0 0
        %2427 = vmatprep.subr.bf16.mxu0 0
        %2428 = vmatpush2.bf16.msra.mxu0 0
        %2429 = vmatprep.mubr.bf16.mxu0 0
        %2430 = vmatmul.mubr.bf16.gmra.mxu0 %v2395
        %v2431 = vpop.f32.mrf.mxu0
        %v2432 = vadd.f32 0.0, %v2431
        %v2433 = vpop.f32.mrf.mxu0
        %v2434 = vadd.f32 0.0, %v2433
        %v2435 = vpop.f32.mrf.mxu0
        %v2436 = vadd.f32 0.0, %v2435
        %v2437 = vpop.f32.mrf.mxu0
        %v2438 = vadd.f32 0.0, %v2437
        %2439 = vdwg.mxu0
        %2440 = vmatprep.subr.bf16.mxu0 0
        %2441 = vmatpush1.bf16.msra.mxu0 0
        %2442 = vmatprep.subr.bf16.mxu0 0
        %2443 = vmatpush1.bf16.msra.mxu0 0
        %2444 = vmatprep.subr.bf16.mxu0 0
        %2445 = vmatpush1.bf16.msra.mxu0 0
        %2446 = vmatprep.subr.bf16.mxu0 0
        %2447 = vmatpush1.bf16.msra.mxu0 0
        %2448 = vmatprep.subr.bf16.mxu0 0
        %2449 = vmatpush1.bf16.msra.mxu0 0
        %2450 = vmatprep.subr.bf16.mxu0 0
        %2451 = vmatpush1.bf16.msra.mxu0 0
        %2452 = vmatprep.subr.bf16.mxu0 0
        %2453 = vmatpush1.bf16.msra.mxu0 0
        %2454 = vmatprep.subr.bf16.mxu0 %v2389
        %2455 = vmatpush1.bf16.msra.mxu0 %v2388
        %2456 = vmatprep.subr.bf16.mxu0 0
        %2457 = vmatpush2.bf16.msra.mxu0 0
        %2458 = vmatprep.subr.bf16.mxu0 0
        %2459 = vmatpush2.bf16.msra.mxu0 0
        %2460 = vmatprep.subr.bf16.mxu0 0
        %2461 = vmatpush2.bf16.msra.mxu0 0
        %2462 = vmatprep.subr.bf16.mxu0 0
        %2463 = vmatpush2.bf16.msra.mxu0 0
        %2464 = vmatprep.subr.bf16.mxu0 0
        %2465 = vmatpush2.bf16.msra.mxu0 0
        %2466 = vmatprep.subr.bf16.mxu0 0
        %2467 = vmatpush2.bf16.msra.mxu0 0
        %2468 = vmatprep.subr.bf16.mxu0 0
        %2469 = vmatpush2.bf16.msra.mxu0 0
        %2470 = vmatprep.subr.bf16.mxu0 0
        %2471 = vmatpush2.bf16.msra.mxu0 0
        %2472 = vmatprep.mubr.bf16.mxu0 0
        %2473 = vmatmul.mubr.bf16.gmra.mxu0 %v2395
        %v2474 = vpop.f32.mrf.mxu0
        %v2475 = vadd.f32 0.0, %v2474
        %v2476 = vpop.f32.mrf.mxu0
        %v2477 = vadd.f32 0.0, %v2476
        %v2478 = vpop.f32.mrf.mxu0
        %v2479 = vadd.f32 0.0, %v2478
        %v2480 = vpop.f32.mrf.mxu0
        %v2481 = vadd.f32 0.0, %v2480
        %2482 = vdwg.mxu0
        %v2483 = vadd.f32 %v2272, %v2432
        %v2484 = vadd.f32 %v2273, %v2434
        %v2485 = vadd.f32 %v2274, %v2475
        %v2486 = vadd.f32 %v2275, %v2477
        %v2487 = vadd.f32 %v2276, %v2436
        %v2488 = vadd.f32 %v2277, %v2438
        %v2489 = vadd.f32 %v2278, %v2479
        %v2490 = vadd.f32 %v2279, %v2481
        %2491 = vst [vmem:[%s5 + $0x20] sm:$0xff] %v2483
        %2492 = vst [vmem:[%s5 + $0x28] sm:$0xff] %v2484
        %2493 = vst [vmem:[%s5 + $0x30] sm:$0xff] %v2487
        %2494 = vst [vmem:[%s5 + $0x38] sm:$0xff] %v2488
        %2495 = vst [vmem:[%s280 + $0x20] sm:$0xff] %v2485
        %2496 = vst [vmem:[%s280 + $0x28] sm:$0xff] %v2486
        %2497 = vst [vmem:[%s280 + $0x30] sm:$0xff] %v2489
        %2498 = vst [vmem:[%s280 + $0x38] sm:$0xff] %v2490
      $region44: #{dense_block_forward.1} parent=39 // pred_fallthru
        _
      %p2499 = scmp.eq.s32.totalorder %s16, 1
      // Predicated region
      $region45: #{dense_block_forward.1} parent=39 // pred_check
        %p2500 = pneg %p2499
      $region46: #{dense_block_forward.1} parent=39 // pred_check_branch
        %2502 = sbr.rel (%p2500) target = $region48
      $region47: #{dense_block_forward.1} parent=39 // pred_region
        %v2503 = vld [vmem:[%s5] sm:$0xff]
        %v2504 = vld [vmem:[%s5 + $0x8] sm:$0xff]
        %v2505 = vld [vmem:[%s5 + $0x10] sm:$0xff]
        %v2506 = vld [vmem:[%s5 + $0x18] sm:$0xff]
        %v2507 = vld [vmem:[%s5 + $0x20] sm:$0xff]
        %v2508 = vld [vmem:[%s5 + $0x28] sm:$0xff]
        %v2509 = vld [vmem:[%s5 + $0x30] sm:$0xff]
        %v2510 = vld [vmem:[%s5 + $0x38] sm:$0xff]
        %v2511 = vmul.f32 %v2503, %v2503
        %v2512 = vmul.f32 %v2504, %v2504
        %v2513 = vmul.f32 %v2505, %v2505
        %v2514 = vmul.f32 %v2506, %v2506
        %v2515 = vmul.f32 %v2507, %v2507
        %v2516 = vmul.f32 %v2508, %v2508
        %v2517 = vmul.f32 %v2509, %v2509
        %v2518 = vmul.f32 %v2510, %v2510
        %s2519 = scalar_lea.vmem %s5, 128
        %v2520 = vld [vmem:[%s2519] sm:$0xff]
        %v2521 = vld [vmem:[%s2519 + $0x8] sm:$0xff]
        %v2522 = vld [vmem:[%s2519 + $0x10] sm:$0xff]
        %v2523 = vld [vmem:[%s2519 + $0x18] sm:$0xff]
        %v2524 = vld [vmem:[%s2519 + $0x20] sm:$0xff]
        %v2525 = vld [vmem:[%s2519 + $0x28] sm:$0xff]
        %v2526 = vld [vmem:[%s2519 + $0x30] sm:$0xff]
        %v2527 = vld [vmem:[%s2519 + $0x38] sm:$0xff]
        %2528 = vmatprep.subr.mxu0 0.0
        %2529 = vmatpush1.msra.mxu0 1.0
        %2530 = vmatprep.subr.mxu0 0.0
        %2531 = vmatpush1.msra.mxu0 1.0
        %2532 = vmatprep.subr.mxu0 0.0
        %2533 = vmatpush1.msra.mxu0 1.0
        %2534 = vmatprep.subr.mxu0 0.0
        %2535 = vmatpush1.msra.mxu0 1.0
        %2536 = vmatprep.subr.mxu0 0.0
        %2537 = vmatpush1.msra.mxu0 1.0
        %2538 = vmatprep.subr.mxu0 0.0
        %2539 = vmatpush1.msra.mxu0 1.0
        %2540 = vmatprep.subr.mxu0 0.0
        %2541 = vmatpush1.msra.mxu0 1.0
        %2542 = vmatprep.subr.mxu0 0.0
        %2543 = vmatpush1.msra.mxu0 1.0
        %2544 = vmatprep.subr.mxu0 0.0
        %2545 = vmatpush1.msra.mxu0 1.0
        %2546 = vmatprep.subr.mxu0 0.0
        %2547 = vmatpush1.msra.mxu0 1.0
        %2548 = vmatprep.subr.mxu0 0.0
        %2549 = vmatpush1.msra.mxu0 1.0
        %2550 = vmatprep.subr.mxu0 0.0
        %2551 = vmatpush1.msra.mxu0 1.0
        %2552 = vmatprep.subr.mxu0 0.0
        %2553 = vmatpush1.msra.mxu0 1.0
        %2554 = vmatprep.subr.mxu0 0.0
        %2555 = vmatpush1.msra.mxu0 1.0
        %2556 = vmatprep.subr.mxu0 0.0
        %2557 = vmatpush1.msra.mxu0 1.0
        %2558 = vmatprep.subr.mxu0 0.0
        %2559 = vmatpush1.msra.mxu0 1.0
        %2560 = vmatprep.subr.mxu0 0.0
        %2561 = vmatpush2.msra.mxu0 1.0
        %2562 = vmatprep.subr.mxu0 0.0
        %2563 = vmatpush2.msra.mxu0 1.0
        %2564 = vmatprep.subr.mxu0 0.0
        %2565 = vmatpush2.msra.mxu0 1.0
        %2566 = vmatprep.subr.mxu0 0.0
        %2567 = vmatpush2.msra.mxu0 1.0
        %2568 = vmatprep.subr.mxu0 0.0
        %2569 = vmatpush2.msra.mxu0 1.0
        %2570 = vmatprep.subr.mxu0 0.0
        %2571 = vmatpush2.msra.mxu0 1.0
        %2572 = vmatprep.subr.mxu0 0.0
        %2573 = vmatpush2.msra.mxu0 1.0
        %2574 = vmatprep.subr.mxu0 0.0
        %2575 = vmatpush2.msra.mxu0 1.0
        %2576 = vmatprep.subr.mxu0 0.0
        %2577 = vmatpush2.msra.mxu0 1.0
        %2578 = vmatprep.subr.mxu0 0.0
        %2579 = vmatpush2.msra.mxu0 1.0
        %2580 = vmatprep.subr.mxu0 0.0
        %2581 = vmatpush2.msra.mxu0 1.0
        %2582 = vmatprep.subr.mxu0 0.0
        %2583 = vmatpush2.msra.mxu0 1.0
        %2584 = vmatprep.subr.mxu0 0.0
        %2585 = vmatpush2.msra.mxu0 1.0
        %2586 = vmatprep.subr.mxu0 0.0
        %2587 = vmatpush2.msra.mxu0 1.0
        %2588 = vmatprep.subr.mxu0 0.0
        %2589 = vmatpush2.msra.mxu0 1.0
        %2590 = vmatprep.subr.mxu0 0.0
        %2591 = vmatpush2.msra.mxu0 1.0
        %2592 = vmatprep.mubr.f32.mxu0 %v2521
        %2593 = vmatmul.mubr.f32.gmra.mxu0 %v2520
        %v2594 = vpop.f32.mrf.mxu0
        %v2595 = vadd.f32 0.0, %v2594
        %v2596 = vpop.f32.mrf.mxu0
        %2597 = vmatprep.mubr.f32.mxu0 %v2523
        %2598 = vmatmul.mubr.f32.gmra.mxu0 %v2522
        %v2599 = vpop.f32.mrf.mxu0
        %v2600 = vadd.f32 0.0, %v2599
        %v2601 = vpop.f32.mrf.mxu0
        %2602 = vmatprep.mubr.f32.mxu0 %v2525
        %2603 = vmatmul.mubr.f32.gmra.mxu0 %v2524
        %v2604 = vpop.f32.mrf.mxu0
        %v2605 = vadd.f32 0.0, %v2604
        %v2606 = vpop.f32.mrf.mxu0
        %2607 = vmatprep.mubr.f32.mxu0 %v2527
        %2608 = vmatmul.mubr.f32.gmra.mxu0 %v2526
        %v2609 = vpop.f32.mrf.mxu0
        %v2610 = vadd.f32 0.0, %v2609
        %v2611 = vpop.f32.mrf.mxu0
        %2612 = vdwg.mxu0
        %2613 = vmatprep.subr.mxu0 0.0
        %2614 = vmatpush1.msra.mxu0 1.0
        %2615 = vmatprep.subr.mxu0 0.0
        %2616 = vmatpush1.msra.mxu0 1.0
        %2617 = vmatprep.subr.mxu0 0.0
        %2618 = vmatpush1.msra.mxu0 1.0
        %2619 = vmatprep.subr.mxu0 0.0
        %2620 = vmatpush1.msra.mxu0 1.0
        %2621 = vmatprep.subr.mxu0 0.0
        %2622 = vmatpush1.msra.mxu0 1.0
        %2623 = vmatprep.subr.mxu0 0.0
        %2624 = vmatpush1.msra.mxu0 1.0
        %2625 = vmatprep.subr.mxu0 0.0
        %2626 = vmatpush1.msra.mxu0 1.0
        %2627 = vmatprep.subr.mxu0 0.0
        %2628 = vmatpush1.msra.mxu0 1.0
        %2629 = vmatprep.subr.mxu0 0.0
        %2630 = vmatpush1.msra.mxu0 1.0
        %2631 = vmatprep.subr.mxu0 0.0
        %2632 = vmatpush1.msra.mxu0 1.0
        %2633 = vmatprep.subr.mxu0 0.0
        %2634 = vmatpush1.msra.mxu0 1.0
        %2635 = vmatprep.subr.mxu0 0.0
        %2636 = vmatpush1.msra.mxu0 1.0
        %2637 = vmatprep.subr.mxu0 0.0
        %2638 = vmatpush1.msra.mxu0 1.0
        %2639 = vmatprep.subr.mxu0 0.0
        %2640 = vmatpush1.msra.mxu0 1.0
        %2641 = vmatprep.subr.mxu0 0.0
        %2642 = vmatpush1.msra.mxu0 1.0
        %2643 = vmatprep.subr.mxu0 0.0
        %2644 = vmatpush1.msra.mxu0 1.0
        %2645 = vmatprep.subr.mxu0 0.0
        %2646 = vmatpush2.msra.mxu0 1.0
        %2647 = vmatprep.subr.mxu0 0.0
        %2648 = vmatpush2.msra.mxu0 1.0
        %2649 = vmatprep.subr.mxu0 0.0
        %2650 = vmatpush2.msra.mxu0 1.0
        %2651 = vmatprep.subr.mxu0 0.0
        %2652 = vmatpush2.msra.mxu0 1.0
        %2653 = vmatprep.subr.mxu0 0.0
        %2654 = vmatpush2.msra.mxu0 1.0
        %2655 = vmatprep.subr.mxu0 0.0
        %2656 = vmatpush2.msra.mxu0 1.0
        %2657 = vmatprep.subr.mxu0 0.0
        %2658 = vmatpush2.msra.mxu0 1.0
        %2659 = vmatprep.subr.mxu0 0.0
        %2660 = vmatpush2.msra.mxu0 1.0
        %2661 = vmatprep.subr.mxu0 0.0
        %2662 = vmatpush2.msra.mxu0 1.0
        %2663 = vmatprep.subr.mxu0 0.0
        %2664 = vmatpush2.msra.mxu0 1.0
        %2665 = vmatprep.subr.mxu0 0.0
        %2666 = vmatpush2.msra.mxu0 1.0
        %2667 = vmatprep.subr.mxu0 0.0
        %2668 = vmatpush2.msra.mxu0 1.0
        %2669 = vmatprep.subr.mxu0 0.0
        %2670 = vmatpush2.msra.mxu0 1.0
        %2671 = vmatprep.subr.mxu0 0.0
        %2672 = vmatpush2.msra.mxu0 1.0
        %2673 = vmatprep.subr.mxu0 0.0
        %2674 = vmatpush2.msra.mxu0 1.0
        %2675 = vmatprep.subr.mxu0 0.0
        %2676 = vmatpush2.msra.mxu0 1.0
        %2677 = vmatprep.mubr.f32.mxu0 %v2504
        %2678 = vmatmul.mubr.f32.gmra.mxu0 %v2503
        %v2679 = vpop.f32.mrf.mxu0
        %v2680 = vadd.f32 %v2595, %v2679
        %v2681 = vpop.f32.mrf.mxu0
        %2682 = vmatprep.mubr.f32.mxu0 %v2506
        %2683 = vmatmul.mubr.f32.gmra.mxu0 %v2505
        %v2684 = vpop.f32.mrf.mxu0
        %v2685 = vadd.f32 %v2600, %v2684
        %v2686 = vpop.f32.mrf.mxu0
        %2687 = vmatprep.mubr.f32.mxu0 %v2508
        %2688 = vmatmul.mubr.f32.gmra.mxu0 %v2507
        %v2689 = vpop.f32.mrf.mxu0
        %v2690 = vadd.f32 %v2605, %v2689
        %v2691 = vpop.f32.mrf.mxu0
        %2692 = vmatprep.mubr.f32.mxu0 %v2510
        %2693 = vmatmul.mubr.f32.gmra.mxu0 %v2509
        %v2694 = vpop.f32.mrf.mxu0
        %v2695 = vadd.f32 %v2610, %v2694
        %v2696 = vpop.f32.mrf.mxu0
        %2697 = vdwg.mxu0
        %v2698 = vmul.f32 %v2520, %v2520
        %v2699 = vmul.f32 %v2521, %v2521
        %v2700 = vmul.f32 %v2522, %v2522
        %v2701 = vmul.f32 %v2523, %v2523
        %v2702 = vmul.f32 %v2524, %v2524
        %v2703 = vmul.f32 %v2525, %v2525
        %v2704 = vmul.f32 %v2526, %v2526
        %v2705 = vmul.f32 %v2527, %v2527
        %2706 = vmatprep.subr.mxu0 0.0
        %2707 = vmatpush1.msra.mxu0 1.0
        %2708 = vmatprep.subr.mxu0 0.0
        %2709 = vmatpush1.msra.mxu0 1.0
        %2710 = vmatprep.subr.mxu0 0.0
        %2711 = vmatpush1.msra.mxu0 1.0
        %2712 = vmatprep.subr.mxu0 0.0
        %2713 = vmatpush1.msra.mxu0 1.0
        %2714 = vmatprep.subr.mxu0 0.0
        %2715 = vmatpush1.msra.mxu0 1.0
        %2716 = vmatprep.subr.mxu0 0.0
        %2717 = vmatpush1.msra.mxu0 1.0
        %2718 = vmatprep.subr.mxu0 0.0
        %2719 = vmatpush1.msra.mxu0 1.0
        %2720 = vmatprep.subr.mxu0 0.0
        %2721 = vmatpush1.msra.mxu0 1.0
        %2722 = vmatprep.subr.mxu0 0.0
        %2723 = vmatpush1.msra.mxu0 1.0
        %2724 = vmatprep.subr.mxu0 0.0
        %2725 = vmatpush1.msra.mxu0 1.0
        %2726 = vmatprep.subr.mxu0 0.0
        %2727 = vmatpush1.msra.mxu0 1.0
        %2728 = vmatprep.subr.mxu0 0.0
        %2729 = vmatpush1.msra.mxu0 1.0
        %2730 = vmatprep.subr.mxu0 0.0
        %2731 = vmatpush1.msra.mxu0 1.0
        %2732 = vmatprep.subr.mxu0 0.0
        %2733 = vmatpush1.msra.mxu0 1.0
        %2734 = vmatprep.subr.mxu0 0.0
        %2735 = vmatpush1.msra.mxu0 1.0
        %2736 = vmatprep.subr.mxu0 0.0
        %2737 = vmatpush1.msra.mxu0 1.0
        %2738 = vmatprep.subr.mxu0 0.0
        %2739 = vmatpush2.msra.mxu0 1.0
        %2740 = vmatprep.subr.mxu0 0.0
        %2741 = vmatpush2.msra.mxu0 1.0
        %2742 = vmatprep.subr.mxu0 0.0
        %2743 = vmatpush2.msra.mxu0 1.0
        %2744 = vmatprep.subr.mxu0 0.0
        %2745 = vmatpush2.msra.mxu0 1.0
        %2746 = vmatprep.subr.mxu0 0.0
        %2747 = vmatpush2.msra.mxu0 1.0
        %2748 = vmatprep.subr.mxu0 0.0
        %2749 = vmatpush2.msra.mxu0 1.0
        %2750 = vmatprep.subr.mxu0 0.0
        %2751 = vmatpush2.msra.mxu0 1.0
        %2752 = vmatprep.subr.mxu0 0.0
        %2753 = vmatpush2.msra.mxu0 1.0
        %2754 = vmatprep.subr.mxu0 0.0
        %2755 = vmatpush2.msra.mxu0 1.0
        %2756 = vmatprep.subr.mxu0 0.0
        %2757 = vmatpush2.msra.mxu0 1.0
        %2758 = vmatprep.subr.mxu0 0.0
        %2759 = vmatpush2.msra.mxu0 1.0
        %2760 = vmatprep.subr.mxu0 0.0
        %2761 = vmatpush2.msra.mxu0 1.0
        %2762 = vmatprep.subr.mxu0 0.0
        %2763 = vmatpush2.msra.mxu0 1.0
        %2764 = vmatprep.subr.mxu0 0.0
        %2765 = vmatpush2.msra.mxu0 1.0
        %2766 = vmatprep.subr.mxu0 0.0
        %2767 = vmatpush2.msra.mxu0 1.0
        %2768 = vmatprep.subr.mxu0 0.0
        %2769 = vmatpush2.msra.mxu0 1.0
        %2770 = vmatprep.mubr.f32.mxu0 %v2699
        %2771 = vmatmul.mubr.f32.gmra.mxu0 %v2698
        %v2772 = vpop.f32.mrf.mxu0
        %v2773 = vadd.f32 0.0, %v2772
        %v2774 = vpop.f32.mrf.mxu0
        %2775 = vmatprep.mubr.f32.mxu0 %v2701
        %2776 = vmatmul.mubr.f32.gmra.mxu0 %v2700
        %v2777 = vpop.f32.mrf.mxu0
        %v2778 = vadd.f32 0.0, %v2777
        %v2779 = vpop.f32.mrf.mxu0
        %2780 = vmatprep.mubr.f32.mxu0 %v2703
        %2781 = vmatmul.mubr.f32.gmra.mxu0 %v2702
        %v2782 = vpop.f32.mrf.mxu0
        %v2783 = vadd.f32 0.0, %v2782
        %v2784 = vpop.f32.mrf.mxu0
        %2785 = vmatprep.mubr.f32.mxu0 %v2705
        %2786 = vmatmul.mubr.f32.gmra.mxu0 %v2704
        %v2787 = vpop.f32.mrf.mxu0
        %v2788 = vadd.f32 0.0, %v2787
        %v2789 = vpop.f32.mrf.mxu0
        %2790 = vdwg.mxu0
        %2791 = vmatprep.subr.mxu0 0.0
        %2792 = vmatpush1.msra.mxu0 1.0
        %2793 = vmatprep.subr.mxu0 0.0
        %2794 = vmatpush1.msra.mxu0 1.0
        %2795 = vmatprep.subr.mxu0 0.0
        %2796 = vmatpush1.msra.mxu0 1.0
        %2797 = vmatprep.subr.mxu0 0.0
        %2798 = vmatpush1.msra.mxu0 1.0
        %2799 = vmatprep.subr.mxu0 0.0
        %2800 = vmatpush1.msra.mxu0 1.0
        %2801 = vmatprep.subr.mxu0 0.0
        %2802 = vmatpush1.msra.mxu0 1.0
        %2803 = vmatprep.subr.mxu0 0.0
        %2804 = vmatpush1.msra.mxu0 1.0
        %2805 = vmatprep.subr.mxu0 0.0
        %2806 = vmatpush1.msra.mxu0 1.0
        %2807 = vmatprep.subr.mxu0 0.0
        %2808 = vmatpush1.msra.mxu0 1.0
        %2809 = vmatprep.subr.mxu0 0.0
        %2810 = vmatpush1.msra.mxu0 1.0
        %2811 = vmatprep.subr.mxu0 0.0
        %2812 = vmatpush1.msra.mxu0 1.0
        %2813 = vmatprep.subr.mxu0 0.0
        %2814 = vmatpush1.msra.mxu0 1.0
        %2815 = vmatprep.subr.mxu0 0.0
        %2816 = vmatpush1.msra.mxu0 1.0
        %2817 = vmatprep.subr.mxu0 0.0
        %2818 = vmatpush1.msra.mxu0 1.0
        %2819 = vmatprep.subr.mxu0 0.0
        %2820 = vmatpush1.msra.mxu0 1.0
        %2821 = vmatprep.subr.mxu0 0.0
        %2822 = vmatpush1.msra.mxu0 1.0
        %2823 = vmatprep.subr.mxu0 0.0
        %2824 = vmatpush2.msra.mxu0 1.0
        %2825 = vmatprep.subr.mxu0 0.0
        %2826 = vmatpush2.msra.mxu0 1.0
        %2827 = vmatprep.subr.mxu0 0.0
        %2828 = vmatpush2.msra.mxu0 1.0
        %2829 = vmatprep.subr.mxu0 0.0
        %2830 = vmatpush2.msra.mxu0 1.0
        %2831 = vmatprep.subr.mxu0 0.0
        %2832 = vmatpush2.msra.mxu0 1.0
        %2833 = vmatprep.subr.mxu0 0.0
        %2834 = vmatpush2.msra.mxu0 1.0
        %2835 = vmatprep.subr.mxu0 0.0
        %2836 = vmatpush2.msra.mxu0 1.0
        %2837 = vmatprep.subr.mxu0 0.0
        %2838 = vmatpush2.msra.mxu0 1.0
        %2839 = vmatprep.subr.mxu0 0.0
        %2840 = vmatpush2.msra.mxu0 1.0
        %2841 = vmatprep.subr.mxu0 0.0
        %2842 = vmatpush2.msra.mxu0 1.0
        %2843 = vmatprep.subr.mxu0 0.0
        %2844 = vmatpush2.msra.mxu0 1.0
        %2845 = vmatprep.subr.mxu0 0.0
        %2846 = vmatpush2.msra.mxu0 1.0
        %2847 = vmatprep.subr.mxu0 0.0
        %2848 = vmatpush2.msra.mxu0 1.0
        %2849 = vmatprep.subr.mxu0 0.0
        %2850 = vmatpush2.msra.mxu0 1.0
        %2851 = vmatprep.subr.mxu0 0.0
        %2852 = vmatpush2.msra.mxu0 1.0
        %2853 = vmatprep.subr.mxu0 0.0
        %2854 = vmatpush2.msra.mxu0 1.0
        %2855 = vmatprep.mubr.f32.mxu0 %v2512
        %2856 = vmatmul.mubr.f32.gmra.mxu0 %v2511
        %v2857 = vpop.f32.mrf.mxu0
        %v2858 = vadd.f32 %v2773, %v2857
        %v2859 = vpop.f32.mrf.mxu0
        %2860 = vmatprep.mubr.f32.mxu0 %v2514
        %2861 = vmatmul.mubr.f32.gmra.mxu0 %v2513
        %v2862 = vpop.f32.mrf.mxu0
        %v2863 = vadd.f32 %v2778, %v2862
        %v2864 = vpop.f32.mrf.mxu0
        %2865 = vmatprep.mubr.f32.mxu0 %v2516
        %2866 = vmatmul.mubr.f32.gmra.mxu0 %v2515
        %v2867 = vpop.f32.mrf.mxu0
        %v2868 = vadd.f32 %v2783, %v2867
        %v2869 = vpop.f32.mrf.mxu0
        %2870 = vmatprep.mubr.f32.mxu0 %v2518
        %2871 = vmatmul.mubr.f32.gmra.mxu0 %v2517
        %v2872 = vpop.f32.mrf.mxu0
        %v2873 = vadd.f32 %v2788, %v2872
        %v2874 = vpop.f32.mrf.mxu0
        %2875 = vdwg.mxu0
        %v2876 = vmul.f32 %v2680, 0.001953125
        %v2877 = vmul.f32 %v2685, 0.001953125
        %v2878 = vmul.f32 %v2690, 0.001953125
        %v2879 = vmul.f32 %v2695, 0.001953125
        %v2880 = vmul.f32 %v2858, 0.001953125
        %v2881 = vmul.f32 %v2863, 0.001953125
        %v2882 = vmul.f32 %v2868, 0.001953125
        %v2883 = vmul.f32 %v2873, 0.001953125
        %v2884 = vmul.f32 %v2876, %v2876
        %v2885 = vmul.f32 %v2877, %v2877
        %v2886 = vmul.f32 %v2878, %v2878
        %v2887 = vmul.f32 %v2879, %v2879
        %v2888 = vsub.f32 %v2880, %v2884
        %v2889 = vsub.f32 %v2881, %v2885
        %v2890 = vsub.f32 %v2882, %v2886
        %v2891 = vsub.f32 %v2883, %v2887
        %v2892 = vmax.f32 %v2888, 0.0
        %v2893 = vmax.f32 %v2889, 0.0
        %v2894 = vmax.f32 %v2890, 0.0
        %v2895 = vmax.f32 %v2891, 0.0
        %v2896 = vld [vmem:[%s239] sm:$0xff]
        %v2897 = vld [vmem:[%s239 + $0x8] sm:$0xff]
        %v2898 = vld [vmem:[%s239 + $0x10] sm:$0xff]
        %v2899 = vld [vmem:[%s239 + $0x18] sm:$0xff]
        %v2900 = vadd.f32 %v2892, 1e-05
        %v2901 = vadd.f32 %v2893, 1e-05
        %v2902 = vadd.f32 %v2894, 1e-05
        %v2903 = vadd.f32 %v2895, 1e-05
        %v2904 = vrsqrt.pop %v2900
        %v2905 = vrsqrt.pop %v2901
        %v2906 = vrsqrt.pop %v2902
        %v2907 = vrsqrt.pop %v2903
        %v2908 = vmul.f32 %v2896, %v2904
        %v2909 = vmul.f32 %v2897, %v2905
        %v2910 = vmul.f32 %v2898, %v2906
        %v2911 = vmul.f32 %v2899, %v2907
        %v2912 = vld [vmem:[%s244] sm:$0xff]
        %v2913 = vld [vmem:[%s244 + $0x8] sm:$0xff]
        %v2914 = vld [vmem:[%s244 + $0x10] sm:$0xff]
        %v2915 = vld [vmem:[%s244 + $0x18] sm:$0xff]
        %v2916 = vmul.f32 %v2876, %v2908
        %v2917 = vmul.f32 %v2877, %v2909
        %v2918 = vmul.f32 %v2878, %v2910
        %v2919 = vmul.f32 %v2879, %v2911
        %v2920 = vsub.f32 %v2912, %v2916
        %v2921 = vsub.f32 %v2913, %v2917
        %v2922 = vsub.f32 %v2914, %v2918
        %v2923 = vsub.f32 %v2915, %v2919
        %2925 = vset.pattern.permute.xlu0 0
        %2926 = vperm.xlu0 %2925, %v2908
        %v2927 = vpop.permute.xlu0 %2926
        %2930 = vset.pattern.permute.xlu0 0
        %2931 = vperm.xlu0 %2930, %v2909
        %v2932 = vpop.permute.xlu0 %2931
        %2935 = vset.pattern.permute.xlu0 0
        %2936 = vperm.xlu0 %2935, %v2910
        %v2937 = vpop.permute.xlu0 %2936
        %2940 = vset.pattern.permute.xlu0 0
        %2941 = vperm.xlu0 %2940, %v2911
        %v2942 = vpop.permute.xlu0 %2941
        %v2944 = vmul.f32 %v2503, %v2927
        %v2945 = vmul.f32 %v2504, %v2927
        %v2946 = vmul.f32 %v2505, %v2932
        %v2947 = vmul.f32 %v2506, %v2932
        %v2948 = vmul.f32 %v2507, %v2937
        %v2949 = vmul.f32 %v2508, %v2937
        %v2950 = vmul.f32 %v2509, %v2942
        %v2951 = vmul.f32 %v2510, %v2942
        %2953 = vset.pattern.permute.xlu0 0
        %2954 = vperm.xlu0 %2953, %v2920
        %v2955 = vpop.permute.xlu0 %2954
        %2958 = vset.pattern.permute.xlu0 0
        %2959 = vperm.xlu0 %2958, %v2921
        %v2960 = vpop.permute.xlu0 %2959
        %2963 = vset.pattern.permute.xlu0 0
        %2964 = vperm.xlu0 %2963, %v2922
        %v2965 = vpop.permute.xlu0 %2964
        %2968 = vset.pattern.permute.xlu0 0
        %2969 = vperm.xlu0 %2968, %v2923
        %v2970 = vpop.permute.xlu0 %2969
        %v2972 = vadd.f32 %v2944, %v2955
        %v2973 = vadd.f32 %v2945, %v2955
        %v2974 = vadd.f32 %v2946, %v2960
        %v2975 = vadd.f32 %v2947, %v2960
        %v2976 = vadd.f32 %v2948, %v2965
        %v2977 = vadd.f32 %v2949, %v2965
        %v2978 = vadd.f32 %v2950, %v2970
        %v2979 = vadd.f32 %v2951, %v2970
        %v2980 = vmax.f32 %v2972, 0.0
        %v2981 = vmax.f32 %v2973, 0.0
        %v2982 = vmax.f32 %v2974, 0.0
        %v2983 = vmax.f32 %v2975, 0.0
        %v2984 = vmax.f32 %v2976, 0.0
        %v2985 = vmax.f32 %v2977, 0.0
        %v2986 = vmax.f32 %v2978, 0.0
        %v2987 = vmax.f32 %v2979, 0.0
        %v2988 = vpack.c.bf16 %v2982, %v2980
        %v2989 = vpack.c.bf16 %v2983, %v2981
        %v2990 = vpack.c.bf16 %v2986, %v2984
        %v2991 = vpack.c.bf16 %v2987, %v2985
        %v2996 = vunpack.c.l.b16 %v2988
        %v2997 = vunpack.c.l.b16 %v2989
        %v2998 = vunpack.c.h.b16 %v2988
        %v2999 = vunpack.c.h.b16 %v2989
        %v3000 = vunpack.c.l.b16 %v2990
        %v3001 = vunpack.c.l.b16 %v2991
        %v3002 = vunpack.c.h.b16 %v2990
        %v3003 = vunpack.c.h.b16 %v2991
        %v3004 = vpack.c.b16 %v2997, %v2996
        %v3005 = vpack.c.b16 %v2999, %v2998
        %v3006 = vpack.c.b16 %v3001, %v3000
        %v3007 = vpack.c.b16 %v3003, %v3002
        %3012 = vst [vmem:[#allocation2 + $0x4] sm:$0xff] %v3004
        %3013 = vst [vmem:[#allocation2 + $0x1c] sm:$0xff] %v3005
        %3014 = vst [vmem:[#allocation2 + $0x34] sm:$0xff] %v3006
        %3015 = vst [vmem:[#allocation2 + $0x4c] sm:$0xff] %v3007
        %v3016 = vld [vmem:[%s2519] sm:$0xff]
        %v3017 = vld [vmem:[%s2519 + $0x8] sm:$0xff]
        %v3018 = vld [vmem:[%s2519 + $0x10] sm:$0xff]
        %v3019 = vld [vmem:[%s2519 + $0x18] sm:$0xff]
        %v3020 = vld [vmem:[%s2519 + $0x20] sm:$0xff]
        %v3021 = vld [vmem:[%s2519 + $0x28] sm:$0xff]
        %v3022 = vld [vmem:[%s2519 + $0x30] sm:$0xff]
        %v3023 = vld [vmem:[%s2519 + $0x38] sm:$0xff]
        %v3024 = vmul.f32 %v3016, %v2927
        %v3025 = vmul.f32 %v3017, %v2927
        %v3026 = vmul.f32 %v3018, %v2932
        %v3027 = vmul.f32 %v3019, %v2932
        %v3028 = vmul.f32 %v3020, %v2937
        %v3029 = vmul.f32 %v3021, %v2937
        %v3030 = vmul.f32 %v3022, %v2942
        %v3031 = vmul.f32 %v3023, %v2942
        %v3032 = vadd.f32 %v3024, %v2955
        %v3033 = vadd.f32 %v3025, %v2955
        %v3034 = vadd.f32 %v3026, %v2960
        %v3035 = vadd.f32 %v3027, %v2960
        %v3036 = vadd.f32 %v3028, %v2965
        %v3037 = vadd.f32 %v3029, %v2965
        %v3038 = vadd.f32 %v3030, %v2970
        %v3039 = vadd.f32 %v3031, %v2970
        %v3040 = vmax.f32 %v3032, 0.0
        %v3041 = vmax.f32 %v3033, 0.0
        %v3042 = vmax.f32 %v3034, 0.0
        %v3043 = vmax.f32 %v3035, 0.0
        %v3044 = vmax.f32 %v3036, 0.0
        %v3045 = vmax.f32 %v3037, 0.0
        %v3046 = vmax.f32 %v3038, 0.0
        %v3047 = vmax.f32 %v3039, 0.0
        %v3048 = vpack.c.bf16 %v3042, %v3040
        %v3049 = vpack.c.bf16 %v3043, %v3041
        %v3050 = vpack.c.bf16 %v3046, %v3044
        %v3051 = vpack.c.bf16 %v3047, %v3045
        %v3056 = vunpack.c.l.b16 %v3048
        %v3057 = vunpack.c.l.b16 %v3049
        %v3058 = vunpack.c.h.b16 %v3048
        %v3059 = vunpack.c.h.b16 %v3049
        %v3060 = vunpack.c.l.b16 %v3050
        %v3061 = vunpack.c.l.b16 %v3051
        %v3062 = vunpack.c.h.b16 %v3050
        %v3063 = vunpack.c.h.b16 %v3051
        %v3064 = vpack.c.b16 %v3057, %v3056
        %v3065 = vpack.c.b16 %v3059, %v3058
        %v3066 = vpack.c.b16 %v3061, %v3060
        %v3067 = vpack.c.b16 %v3063, %v3062
        %3072 = vst [vmem:[#allocation2 + $0xc] sm:$0xff] %v3064
        %3073 = vst [vmem:[#allocation2 + $0x24] sm:$0xff] %v3065
        %3074 = vst [vmem:[#allocation2 + $0x3c] sm:$0xff] %v3066
        %3075 = vst [vmem:[#allocation2 + $0x54] sm:$0xff] %v3067
        %v3076 = vld [vmem:[#allocation2] sm:$0xff]
        %v3077 = vld [vmem:[#allocation2 + $0x8] sm:$0xff]
        %v3078 = vld [vmem:[#allocation2 + $0x10] sm:$0xf]
        %v3079 = vld [vmem:[#allocation2 + $0x18] sm:$0xff]
        %v3080 = vld [vmem:[#allocation2 + $0x20] sm:$0xff]
        %v3081 = vld [vmem:[#allocation2 + $0x28] sm:$0xf]
        %v3082 = vld [vmem:[#allocation2 + $0x30] sm:$0xff]
        %v3083 = vld [vmem:[#allocation2 + $0x38] sm:$0xff]
        %v3084 = vld [vmem:[#allocation2 + $0x40] sm:$0xf]
        %v3085 = vld [vmem:[#allocation2 + $0x48] sm:$0xff]
        %v3086 = vld [vmem:[#allocation2 + $0x50] sm:$0xff]
        %v3087 = vld [vmem:[#allocation2 + $0x58] sm:$0xf]
        %v3088 = vld [vmem:[%s1] sm:$0x11]
        %v3089 = vld [vmem:[%s1 + $0x8] sm:$0x11]
        %v3092 = vunpack.c.l.b16 %v3088
        %v3093 = vunpack.c.h.b16 %v3088
        %v3094 = vunpack.c.l.b16 %v3089
        %v3095 = vunpack.c.h.b16 %v3089
        %v3096 = vpack.c.b16 %v3092, %v3092
        %v3097 = vpack.c.b16 %v3093, %v3093
        %v3098 = vpack.c.b16 %v3094, %v3094
        %v3099 = vpack.c.b16 %v3095, %v3095
        %v3101 = vpack.i.b16 %v3096, %v3096
        %v3103 = vlaneseq
        %v3104 = vshrl.u32 %v3103, 7
        %v3105 = vsub.s32 0, %v3104
        %v3106 = vrot.slane %v3101, %v3105
        %v3108 = vpack.i.b16 %v3097, %v3097
        %v3110 = vlaneseq
        %v3111 = vshrl.u32 %v3110, 7
        %v3112 = vsub.s32 0, %v3111
        %v3113 = vrot.slane %v3108, %v3112
        %v3115 = vpack.i.b16 %v3098, %v3098
        %v3117 = vlaneseq
        %v3118 = vshrl.u32 %v3117, 7
        %v3119 = vsub.s32 0, %v3118
        %v3120 = vrot.slane %v3115, %v3119
        %v3122 = vpack.i.b16 %v3099, %v3099
        %v3124 = vlaneseq
        %v3125 = vshrl.u32 %v3124, 7
        %v3126 = vsub.s32 0, %v3125
        %v3127 = vrot.slane %v3122, %v3126
        %v3132 = vunpack.c.l.b16 %v3106
        %v3133 = vunpack.c.l.b16 %v3113
        %v3134 = vunpack.c.l.b16 %v3120
        %v3135 = vunpack.c.l.b16 %v3127
        %v3136 = vpack.c.b16 %v3133, %v3132
        %v3137 = vpack.c.b16 %v3135, %v3134
        %3138 = vrot.lane.b32.xlu0 %v3136, 111
        %v3139 = vpop.permute.xlu0 %3138
        %3140 = vrot.lane.b32.xlu0 %v3137, 111
        %v3141 = vpop.permute.xlu0 %3140
        %v3142 = vrot.slane %v3139, 4
        %v3143 = vrot.slane %v3141, 4
        %vm3144 = vcmask 908288
        %v3145 = vsel %vm3144, %v3142, %v3139
        %vm3146 = vcmask 1043456
        %v3147 = vsel %vm3146, %v3142, %v3143
        %v3148 = vsel %vm3144, %v3147, %v3141
        %v3152 = vmul.bf16 %v3076, %v3145
        %v3153 = vmul.bf16 %v3077, %v3148
        %v3154 = vmul.bf16 %v3078, %v3143
        %v3155 = vmul.bf16 %v3079, %v3145
        %v3156 = vmul.bf16 %v3080, %v3148
        %v3157 = vmul.bf16 %v3081, %v3143
        %v3158 = vmul.bf16 %v3082, %v3145
        %v3159 = vmul.bf16 %v3083, %v3148
        %v3160 = vmul.bf16 %v3084, %v3143
        %v3161 = vmul.bf16 %v3085, %v3145
        %v3162 = vmul.bf16 %v3086, %v3148
        %v3163 = vmul.bf16 %v3087, %v3143
        %v3164 = vld [vmem:[%s249] sm:$0xf]
        %v3165 = vld [vmem:[%s249 + $0x4] sm:$0xf]
        %v3166 = vshrl.u32 %v3096, 16
        %v3167 = vpack.i.b16 %v3166, %v3166
        %v3169 = vlaneseq
        %v3170 = vshrl.u32 %v3169, 7
        %v3171 = vsub.s32 0, %v3170
        %v3172 = vrot.slane %v3167, %v3171
        %v3173 = vshrl.u32 %v3097, 16
        %v3174 = vpack.i.b16 %v3173, %v3173
        %v3176 = vlaneseq
        %v3177 = vshrl.u32 %v3176, 7
        %v3178 = vsub.s32 0, %v3177
        %v3179 = vrot.slane %v3174, %v3178
        %v3180 = vshrl.u32 %v3098, 16
        %v3181 = vpack.i.b16 %v3180, %v3180
        %v3183 = vlaneseq
        %v3184 = vshrl.u32 %v3183, 7
        %v3185 = vsub.s32 0, %v3184
        %v3186 = vrot.slane %v3181, %v3185
        %v3187 = vshrl.u32 %v3099, 16
        %v3188 = vpack.i.b16 %v3187, %v3187
        %v3190 = vlaneseq
        %v3191 = vshrl.u32 %v3190, 7
        %v3192 = vsub.s32 0, %v3191
        %v3193 = vrot.slane %v3188, %v3192
        %v3198 = vunpack.c.l.b16 %v3172
        %v3199 = vunpack.c.l.b16 %v3179
        %v3200 = vunpack.c.l.b16 %v3186
        %v3201 = vunpack.c.l.b16 %v3193
        %v3202 = vpack.c.b16 %v3199, %v3198
        %v3203 = vpack.c.b16 %v3201, %v3200
        %3204 = vrot.lane.b32.xlu0 %v3202, 112
        %v3205 = vpop.permute.xlu0 %3204
        %3206 = vrot.lane.b32.xlu0 %v3203, 112
        %v3207 = vpop.permute.xlu0 %3206
        %v3208 = vrot.slane %v3205, 4
        %v3209 = vrot.slane %v3207, 4
        %vm3210 = vcmask 916480
        %v3211 = vsel %vm3210, %v3208, %v3205
        %v3212 = vsel %vm3146, %v3208, %v3209
        %v3213 = vsel %vm3210, %v3212, %v3207
        %v3217 = vmul.bf16 %v3076, %v3211
        %v3218 = vmul.bf16 %v3077, %v3213
        %v3219 = vmul.bf16 %v3078, %v3209
        %v3220 = vmul.bf16 %v3079, %v3211
        %v3221 = vmul.bf16 %v3080, %v3213
        %v3222 = vmul.bf16 %v3081, %v3209
        %v3223 = vmul.bf16 %v3082, %v3211
        %v3224 = vmul.bf16 %v3083, %v3213
        %v3225 = vmul.bf16 %v3084, %v3209
        %v3226 = vmul.bf16 %v3085, %v3211
        %v3227 = vmul.bf16 %v3086, %v3213
        %v3228 = vmul.bf16 %v3087, %v3209
        %v3229 = vld [vmem:[%s249 + $0x8] sm:$0xf]
        %v3230 = vld [vmem:[%s249 + $0xc] sm:$0xf]
        %v3233 = vunpack.c.l.b16 %v3229
        %v3234 = vunpack.c.l.b16 %v3230
        %v3235 = vpack.c.b16 %v3234, %v3233
        %v3248 = vunpack.c.l.b16 %v3217
        %v3249 = vunpack.c.h.b16 %v3217
        %v3250 = vunpack.c.l.b16 %v3218
        %v3251 = vunpack.c.h.b16 %v3218
        %v3252 = vunpack.c.l.b16 %v3219
        %v3253 = vunpack.c.l.b16 %v3220
        %v3254 = vunpack.c.h.b16 %v3220
        %v3255 = vunpack.c.l.b16 %v3221
        %v3256 = vunpack.c.h.b16 %v3221
        %v3257 = vunpack.c.l.b16 %v3222
        %v3258 = vunpack.c.l.b16 %v3223
        %v3259 = vunpack.c.h.b16 %v3223
        %v3260 = vunpack.c.l.b16 %v3224
        %v3261 = vunpack.c.h.b16 %v3224
        %v3262 = vunpack.c.l.b16 %v3225
        %v3263 = vunpack.c.l.b16 %v3226
        %v3264 = vunpack.c.h.b16 %v3226
        %v3265 = vunpack.c.l.b16 %v3227
        %v3266 = vunpack.c.h.b16 %v3227
        %v3267 = vunpack.c.l.b16 %v3228
        %v3268 = vpack.c.b16 %v3253, %v3248
        %v3269 = vpack.c.b16 %v3254, %v3249
        %v3270 = vpack.c.b16 %v3255, %v3250
        %v3271 = vpack.c.b16 %v3256, %v3251
        %v3272 = vpack.c.b16 %v3257, %v3252
        %v3273 = vpack.c.b16 %v3263, %v3258
        %v3274 = vpack.c.b16 %v3264, %v3259
        %v3275 = vpack.c.b16 %v3265, %v3260
        %v3276 = vpack.c.b16 %v3266, %v3261
        %v3277 = vpack.c.b16 %v3267, %v3262
        %3278 = vrot.lane.b32.xlu0 %v3268, 16
        %v3279 = vpop.permute.xlu0 %3278
        %3280 = vrot.lane.b32.xlu0 %v3269, 16
        %v3281 = vpop.permute.xlu0 %3280
        %3282 = vrot.lane.b32.xlu0 %v3270, 16
        %v3283 = vpop.permute.xlu0 %3282
        %3284 = vrot.lane.b32.xlu0 %v3271, 16
        %v3285 = vpop.permute.xlu0 %3284
        %3286 = vrot.lane.b32.xlu0 %v3272, 16
        %v3287 = vpop.permute.xlu0 %3286
        %3288 = vrot.lane.b32.xlu0 %v3273, 16
        %v3289 = vpop.permute.xlu0 %3288
        %3290 = vrot.lane.b32.xlu0 %v3274, 16
        %v3291 = vpop.permute.xlu0 %3290
        %3292 = vrot.lane.b32.xlu0 %v3275, 16
        %v3293 = vpop.permute.xlu0 %3292
        %3294 = vrot.lane.b32.xlu0 %v3276, 16
        %v3295 = vpop.permute.xlu0 %3294
        %3296 = vrot.lane.b32.xlu0 %v3277, 16
        %v3297 = vpop.permute.xlu0 %3296
        %vm3298 = vcmask 130048
        %v3299 = vsel %vm3298, %v3279, %v3281
        %v3300 = vsel %vm3298, %v3281, %v3283
        %v3301 = vsel %vm3298, %v3283, %v3285
        %v3302 = vsel %vm3298, %v3285, %v3287
        %v3303 = vsel %vm3298, %v3289, %v3291
        %v3304 = vsel %vm3298, %v3291, %v3293
        %v3305 = vsel %vm3298, %v3293, %v3295
        %v3306 = vsel %vm3298, %v3295, %v3297
        %vm3315 = vcmask 261120
        %v3317 = vsel %vm3315, %v3235, 0
        %3319 = vmatprep.subr.bf16.mxu0 0
        %3320 = vmatpush1.bf16.msra.mxu0 0
        %3321 = vmatprep.subr.bf16.mxu0 0
        %3322 = vmatpush1.bf16.msra.mxu0 0
        %3323 = vmatprep.subr.bf16.mxu0 0
        %3324 = vmatpush1.bf16.msra.mxu0 0
        %3325 = vmatprep.subr.bf16.mxu0 0
        %3326 = vmatpush1.bf16.msra.mxu0 0
        %3327 = vmatprep.subr.bf16.mxu0 0
        %3328 = vmatpush1.bf16.msra.mxu0 0
        %3329 = vmatprep.subr.bf16.mxu0 0
        %3330 = vmatpush1.bf16.msra.mxu0 0
        %3331 = vmatprep.subr.bf16.mxu0 %v3304
        %3332 = vmatpush1.bf16.msra.mxu0 %v3303
        %3333 = vmatprep.subr.bf16.mxu0 %v3300
        %3334 = vmatpush1.bf16.msra.mxu0 %v3299
        %3335 = vmatprep.subr.bf16.mxu0 0
        %3336 = vmatpush2.bf16.msra.mxu0 0
        %3337 = vmatprep.subr.bf16.mxu0 0
        %3338 = vmatpush2.bf16.msra.mxu0 0
        %3339 = vmatprep.subr.bf16.mxu0 0
        %3340 = vmatpush2.bf16.msra.mxu0 0
        %3341 = vmatprep.subr.bf16.mxu0 0
        %3342 = vmatpush2.bf16.msra.mxu0 0
        %3343 = vmatprep.subr.bf16.mxu0 0
        %3344 = vmatpush2.bf16.msra.mxu0 0
        %3345 = vmatprep.subr.bf16.mxu0 0
        %3346 = vmatpush2.bf16.msra.mxu0 0
        %3347 = vmatprep.subr.bf16.mxu0 0
        %3348 = vmatpush2.bf16.msra.mxu0 0
        %3349 = vmatprep.subr.bf16.mxu0 0
        %3350 = vmatpush2.bf16.msra.mxu0 0
        %3351 = vmatprep.mubr.bf16.mxu0 0
        %3352 = vmatmul.mubr.bf16.gmra.mxu0 %v3317
        %v3353 = vpop.f32.mrf.mxu0
        %v3354 = vadd.f32 0.0, %v3353
        %v3355 = vpop.f32.mrf.mxu0
        %v3356 = vadd.f32 0.0, %v3355
        %v3357 = vpop.f32.mrf.mxu0
        %v3358 = vadd.f32 0.0, %v3357
        %v3359 = vpop.f32.mrf.mxu0
        %v3360 = vadd.f32 0.0, %v3359
        %3361 = vdwg.mxu0
        %3362 = vmatprep.subr.bf16.mxu0 0
        %3363 = vmatpush1.bf16.msra.mxu0 0
        %3364 = vmatprep.subr.bf16.mxu0 0
        %3365 = vmatpush1.bf16.msra.mxu0 0
        %3366 = vmatprep.subr.bf16.mxu0 0
        %3367 = vmatpush1.bf16.msra.mxu0 0
        %3368 = vmatprep.subr.bf16.mxu0 0
        %3369 = vmatpush1.bf16.msra.mxu0 0
        %3370 = vmatprep.subr.bf16.mxu0 0
        %3371 = vmatpush1.bf16.msra.mxu0 0
        %3372 = vmatprep.subr.bf16.mxu0 0
        %3373 = vmatpush1.bf16.msra.mxu0 0
        %3374 = vmatprep.subr.bf16.mxu0 %v3306
        %3375 = vmatpush1.bf16.msra.mxu0 %v3305
        %3376 = vmatprep.subr.bf16.mxu0 %v3302
        %3377 = vmatpush1.bf16.msra.mxu0 %v3301
        %3378 = vmatprep.subr.bf16.mxu0 0
        %3379 = vmatpush2.bf16.msra.mxu0 0
        %3380 = vmatprep.subr.bf16.mxu0 0
        %3381 = vmatpush2.bf16.msra.mxu0 0
        %3382 = vmatprep.subr.bf16.mxu0 0
        %3383 = vmatpush2.bf16.msra.mxu0 0
        %3384 = vmatprep.subr.bf16.mxu0 0
        %3385 = vmatpush2.bf16.msra.mxu0 0
        %3386 = vmatprep.subr.bf16.mxu0 0
        %3387 = vmatpush2.bf16.msra.mxu0 0
        %3388 = vmatprep.subr.bf16.mxu0 0
        %3389 = vmatpush2.bf16.msra.mxu0 0
        %3390 = vmatprep.subr.bf16.mxu0 0
        %3391 = vmatpush2.bf16.msra.mxu0 0
        %3392 = vmatprep.subr.bf16.mxu0 0
        %3393 = vmatpush2.bf16.msra.mxu0 0
        %3394 = vmatprep.mubr.bf16.mxu0 0
        %3395 = vmatmul.mubr.bf16.gmra.mxu0 %v3317
        %v3396 = vpop.f32.mrf.mxu0
        %v3397 = vadd.f32 0.0, %v3396
        %v3398 = vpop.f32.mrf.mxu0
        %v3399 = vadd.f32 0.0, %v3398
        %v3400 = vpop.f32.mrf.mxu0
        %v3401 = vadd.f32 0.0, %v3400
        %v3402 = vpop.f32.mrf.mxu0
        %v3403 = vadd.f32 0.0, %v3402
        %3404 = vdwg.mxu0
        %v3407 = vunpack.c.l.b16 %v3164
        %v3408 = vunpack.c.l.b16 %v3165
        %v3409 = vpack.c.b16 %v3408, %v3407
        %v3422 = vunpack.c.l.b16 %v3152
        %v3423 = vunpack.c.h.b16 %v3152
        %v3424 = vunpack.c.l.b16 %v3153
        %v3425 = vunpack.c.h.b16 %v3153
        %v3426 = vunpack.c.l.b16 %v3154
        %v3427 = vunpack.c.l.b16 %v3155
        %v3428 = vunpack.c.h.b16 %v3155
        %v3429 = vunpack.c.l.b16 %v3156
        %v3430 = vunpack.c.h.b16 %v3156
        %v3431 = vunpack.c.l.b16 %v3157
        %v3432 = vunpack.c.l.b16 %v3158
        %v3433 = vunpack.c.h.b16 %v3158
        %v3434 = vunpack.c.l.b16 %v3159
        %v3435 = vunpack.c.h.b16 %v3159
        %v3436 = vunpack.c.l.b16 %v3160
        %v3437 = vunpack.c.l.b16 %v3161
        %v3438 = vunpack.c.h.b16 %v3161
        %v3439 = vunpack.c.l.b16 %v3162
        %v3440 = vunpack.c.h.b16 %v3162
        %v3441 = vunpack.c.l.b16 %v3163
        %v3442 = vpack.c.b16 %v3427, %v3422
        %v3443 = vpack.c.b16 %v3428, %v3423
        %v3444 = vpack.c.b16 %v3429, %v3424
        %v3445 = vpack.c.b16 %v3430, %v3425
        %v3446 = vpack.c.b16 %v3431, %v3426
        %v3447 = vpack.c.b16 %v3437, %v3432
        %v3448 = vpack.c.b16 %v3438, %v3433
        %v3449 = vpack.c.b16 %v3439, %v3434
        %v3450 = vpack.c.b16 %v3440, %v3435
        %v3451 = vpack.c.b16 %v3441, %v3436
        %3452 = vrot.lane.b32.xlu0 %v3442, 17
        %v3453 = vpop.permute.xlu0 %3452
        %3454 = vrot.lane.b32.xlu0 %v3443, 17
        %v3455 = vpop.permute.xlu0 %3454
        %3456 = vrot.lane.b32.xlu0 %v3444, 17
        %v3457 = vpop.permute.xlu0 %3456
        %3458 = vrot.lane.b32.xlu0 %v3445, 17
        %v3459 = vpop.permute.xlu0 %3458
        %3460 = vrot.lane.b32.xlu0 %v3446, 17
        %v3461 = vpop.permute.xlu0 %3460
        %3462 = vrot.lane.b32.xlu0 %v3447, 17
        %v3463 = vpop.permute.xlu0 %3462
        %3464 = vrot.lane.b32.xlu0 %v3448, 17
        %v3465 = vpop.permute.xlu0 %3464
        %3466 = vrot.lane.b32.xlu0 %v3449, 17
        %v3467 = vpop.permute.xlu0 %3466
        %3468 = vrot.lane.b32.xlu0 %v3450, 17
        %v3469 = vpop.permute.xlu0 %3468
        %3470 = vrot.lane.b32.xlu0 %v3451, 17
        %v3471 = vpop.permute.xlu0 %3470
        %vm3472 = vcmask 138240
        %v3473 = vsel %vm3472, %v3453, %v3455
        %v3474 = vsel %vm3472, %v3455, %v3457
        %v3475 = vsel %vm3472, %v3457, %v3459
        %v3476 = vsel %vm3472, %v3459, %v3461
        %v3477 = vsel %vm3472, %v3463, %v3465
        %v3478 = vsel %vm3472, %v3465, %v3467
        %v3479 = vsel %vm3472, %v3467, %v3469
        %v3480 = vsel %vm3472, %v3469, %v3471
        %v3490 = vsel %vm3315, %v3409, 0
        %3492 = vmatprep.subr.bf16.mxu0 0
        %3493 = vmatpush1.bf16.msra.mxu0 0
        %3494 = vmatprep.subr.bf16.mxu0 0
        %3495 = vmatpush1.bf16.msra.mxu0 0
        %3496 = vmatprep.subr.bf16.mxu0 0
        %3497 = vmatpush1.bf16.msra.mxu0 0
        %3498 = vmatprep.subr.bf16.mxu0 0
        %3499 = vmatpush1.bf16.msra.mxu0 0
        %3500 = vmatprep.subr.bf16.mxu0 0
        %3501 = vmatpush1.bf16.msra.mxu0 0
        %3502 = vmatprep.subr.bf16.mxu0 0
        %3503 = vmatpush1.bf16.msra.mxu0 0
        %3504 = vmatprep.subr.bf16.mxu0 %v3478
        %3505 = vmatpush1.bf16.msra.mxu0 %v3477
        %3506 = vmatprep.subr.bf16.mxu0 %v3474
        %3507 = vmatpush1.bf16.msra.mxu0 %v3473
        %3508 = vmatprep.subr.bf16.mxu0 0
        %3509 = vmatpush2.bf16.msra.mxu0 0
        %3510 = vmatprep.subr.bf16.mxu0 0
        %3511 = vmatpush2.bf16.msra.mxu0 0
        %3512 = vmatprep.subr.bf16.mxu0 0
        %3513 = vmatpush2.bf16.msra.mxu0 0
        %3514 = vmatprep.subr.bf16.mxu0 0
        %3515 = vmatpush2.bf16.msra.mxu0 0
        %3516 = vmatprep.subr.bf16.mxu0 0
        %3517 = vmatpush2.bf16.msra.mxu0 0
        %3518 = vmatprep.subr.bf16.mxu0 0
        %3519 = vmatpush2.bf16.msra.mxu0 0
        %3520 = vmatprep.subr.bf16.mxu0 0
        %3521 = vmatpush2.bf16.msra.mxu0 0
        %3522 = vmatprep.subr.bf16.mxu0 0
        %3523 = vmatpush2.bf16.msra.mxu0 0
        %3524 = vmatprep.mubr.bf16.mxu0 0
        %3525 = vmatmul.mubr.bf16.gmra.mxu0 %v3490
        %v3526 = vpop.f32.mrf.mxu0
        %v3527 = vadd.f32 %v3354, %v3526
        %v3528 = vpop.f32.mrf.mxu0
        %v3529 = vadd.f32 %v3356, %v3528
        %v3530 = vpop.f32.mrf.mxu0
        %v3531 = vadd.f32 %v3358, %v3530
        %v3532 = vpop.f32.mrf.mxu0
        %v3533 = vadd.f32 %v3360, %v3532
        %3534 = vdwg.mxu0
        %3535 = vmatprep.subr.bf16.mxu0 0
        %3536 = vmatpush1.bf16.msra.mxu0 0
        %3537 = vmatprep.subr.bf16.mxu0 0
        %3538 = vmatpush1.bf16.msra.mxu0 0
        %3539 = vmatprep.subr.bf16.mxu0 0
        %3540 = vmatpush1.bf16.msra.mxu0 0
        %3541 = vmatprep.subr.bf16.mxu0 0
        %3542 = vmatpush1.bf16.msra.mxu0 0
        %3543 = vmatprep.subr.bf16.mxu0 0
        %3544 = vmatpush1.bf16.msra.mxu0 0
        %3545 = vmatprep.subr.bf16.mxu0 0
        %3546 = vmatpush1.bf16.msra.mxu0 0
        %3547 = vmatprep.subr.bf16.mxu0 %v3480
        %3548 = vmatpush1.bf16.msra.mxu0 %v3479
        %3549 = vmatprep.subr.bf16.mxu0 %v3476
        %3550 = vmatpush1.bf16.msra.mxu0 %v3475
        %3551 = vmatprep.subr.bf16.mxu0 0
        %3552 = vmatpush2.bf16.msra.mxu0 0
        %3553 = vmatprep.subr.bf16.mxu0 0
        %3554 = vmatpush2.bf16.msra.mxu0 0
        %3555 = vmatprep.subr.bf16.mxu0 0
        %3556 = vmatpush2.bf16.msra.mxu0 0
        %3557 = vmatprep.subr.bf16.mxu0 0
        %3558 = vmatpush2.bf16.msra.mxu0 0
        %3559 = vmatprep.subr.bf16.mxu0 0
        %3560 = vmatpush2.bf16.msra.mxu0 0
        %3561 = vmatprep.subr.bf16.mxu0 0
        %3562 = vmatpush2.bf16.msra.mxu0 0
        %3563 = vmatprep.subr.bf16.mxu0 0
        %3564 = vmatpush2.bf16.msra.mxu0 0
        %3565 = vmatprep.subr.bf16.mxu0 0
        %3566 = vmatpush2.bf16.msra.mxu0 0
        %3567 = vmatprep.mubr.bf16.mxu0 0
        %3568 = vmatmul.mubr.bf16.gmra.mxu0 %v3490
        %v3569 = vpop.f32.mrf.mxu0
        %v3570 = vadd.f32 %v3397, %v3569
        %v3571 = vpop.f32.mrf.mxu0
        %v3572 = vadd.f32 %v3399, %v3571
        %v3573 = vpop.f32.mrf.mxu0
        %v3574 = vadd.f32 %v3401, %v3573
        %v3575 = vpop.f32.mrf.mxu0
        %v3576 = vadd.f32 %v3403, %v3575
        %3577 = vdwg.mxu0
        %v3578 = vld [vmem:[%s1] sm:$0x22]
        %v3579 = vld [vmem:[%s1 + $0x8] sm:$0x22]
        %v3582 = vunpack.c.l.b16 %v3578
        %v3583 = vunpack.c.h.b16 %v3578
        %v3584 = vunpack.c.l.b16 %v3579
        %v3585 = vunpack.c.h.b16 %v3579
        %v3586 = vpack.c.b16 %v3582, %v3582
        %v3587 = vpack.c.b16 %v3583, %v3583
        %v3588 = vpack.c.b16 %v3584, %v3584
        %v3589 = vpack.c.b16 %v3585, %v3585
        %v3591 = vpack.i.b16 %v3586, %v3586
        %v3593 = vlaneseq
        %v3594 = vshrl.u32 %v3593, 7
        %v3595 = vsub.s32 1, %v3594
        %v3596 = vrot.slane %v3591, %v3595
        %v3598 = vpack.i.b16 %v3587, %v3587
        %v3600 = vlaneseq
        %v3601 = vshrl.u32 %v3600, 7
        %v3602 = vsub.s32 1, %v3601
        %v3603 = vrot.slane %v3598, %v3602
        %v3605 = vpack.i.b16 %v3588, %v3588
        %v3607 = vlaneseq
        %v3608 = vshrl.u32 %v3607, 7
        %v3609 = vsub.s32 1, %v3608
        %v3610 = vrot.slane %v3605, %v3609
        %v3612 = vpack.i.b16 %v3589, %v3589
        %v3614 = vlaneseq
        %v3615 = vshrl.u32 %v3614, 7
        %v3616 = vsub.s32 1, %v3615
        %v3617 = vrot.slane %v3612, %v3616
        %v3622 = vunpack.c.l.b16 %v3596
        %v3623 = vunpack.c.l.b16 %v3603
        %v3624 = vunpack.c.l.b16 %v3610
        %v3625 = vunpack.c.l.b16 %v3617
        %v3626 = vpack.c.b16 %v3623, %v3622
        %v3627 = vpack.c.b16 %v3625, %v3624
        %3628 = vrot.lane.b32.xlu0 %v3626, 113
        %v3629 = vpop.permute.xlu0 %3628
        %3630 = vrot.lane.b32.xlu0 %v3627, 113
        %v3631 = vpop.permute.xlu0 %3630
        %v3632 = vrot.slane %v3629, 4
        %v3633 = vrot.slane %v3631, 4
        %vm3634 = vcmask 924672
        %v3635 = vsel %vm3634, %v3632, %v3629
        %v3636 = vsel %vm3146, %v3632, %v3633
        %v3637 = vsel %vm3634, %v3636, %v3631
        %v3641 = vmul.bf16 %v3076, %v3635
        %v3642 = vmul.bf16 %v3077, %v3637
        %v3643 = vmul.bf16 %v3078, %v3633
        %v3644 = vmul.bf16 %v3079, %v3635
        %v3645 = vmul.bf16 %v3080, %v3637
        %v3646 = vmul.bf16 %v3081, %v3633
        %v3647 = vmul.bf16 %v3082, %v3635
        %v3648 = vmul.bf16 %v3083, %v3637
        %v3649 = vmul.bf16 %v3084, %v3633
        %v3650 = vmul.bf16 %v3085, %v3635
        %v3651 = vmul.bf16 %v3086, %v3637
        %v3652 = vmul.bf16 %v3087, %v3633
        %v3653 = vld [vmem:[%s249 + $0x10] sm:$0xf]
        %v3654 = vld [vmem:[%s249 + $0x14] sm:$0xf]
        %v3657 = vunpack.c.l.b16 %v3653
        %v3658 = vunpack.c.l.b16 %v3654
        %v3659 = vpack.c.b16 %v3658, %v3657
        %v3672 = vunpack.c.l.b16 %v3641
        %v3673 = vunpack.c.h.b16 %v3641
        %v3674 = vunpack.c.l.b16 %v3642
        %v3675 = vunpack.c.h.b16 %v3642
        %v3676 = vunpack.c.l.b16 %v3643
        %v3677 = vunpack.c.l.b16 %v3644
        %v3678 = vunpack.c.h.b16 %v3644
        %v3679 = vunpack.c.l.b16 %v3645
        %v3680 = vunpack.c.h.b16 %v3645
        %v3681 = vunpack.c.l.b16 %v3646
        %v3682 = vunpack.c.l.b16 %v3647
        %v3683 = vunpack.c.h.b16 %v3647
        %v3684 = vunpack.c.l.b16 %v3648
        %v3685 = vunpack.c.h.b16 %v3648
        %v3686 = vunpack.c.l.b16 %v3649
        %v3687 = vunpack.c.l.b16 %v3650
        %v3688 = vunpack.c.h.b16 %v3650
        %v3689 = vunpack.c.l.b16 %v3651
        %v3690 = vunpack.c.h.b16 %v3651
        %v3691 = vunpack.c.l.b16 %v3652
        %v3692 = vpack.c.b16 %v3677, %v3672
        %v3693 = vpack.c.b16 %v3678, %v3673
        %v3694 = vpack.c.b16 %v3679, %v3674
        %v3695 = vpack.c.b16 %v3680, %v3675
        %v3696 = vpack.c.b16 %v3681, %v3676
        %v3697 = vpack.c.b16 %v3687, %v3682
        %v3698 = vpack.c.b16 %v3688, %v3683
        %v3699 = vpack.c.b16 %v3689, %v3684
        %v3700 = vpack.c.b16 %v3690, %v3685
        %v3701 = vpack.c.b16 %v3691, %v3686
        %3702 = vrot.lane.b32.xlu0 %v3692, 15
        %v3703 = vpop.permute.xlu0 %3702
        %3704 = vrot.lane.b32.xlu0 %v3693, 15
        %v3705 = vpop.permute.xlu0 %3704
        %3706 = vrot.lane.b32.xlu0 %v3694, 15
        %v3707 = vpop.permute.xlu0 %3706
        %3708 = vrot.lane.b32.xlu0 %v3695, 15
        %v3709 = vpop.permute.xlu0 %3708
        %3710 = vrot.lane.b32.xlu0 %v3696, 15
        %v3711 = vpop.permute.xlu0 %3710
        %3712 = vrot.lane.b32.xlu0 %v3697, 15
        %v3713 = vpop.permute.xlu0 %3712
        %3714 = vrot.lane.b32.xlu0 %v3698, 15
        %v3715 = vpop.permute.xlu0 %3714
        %3716 = vrot.lane.b32.xlu0 %v3699, 15
        %v3717 = vpop.permute.xlu0 %3716
        %3718 = vrot.lane.b32.xlu0 %v3700, 15
        %v3719 = vpop.permute.xlu0 %3718
        %3720 = vrot.lane.b32.xlu0 %v3701, 15
        %v3721 = vpop.permute.xlu0 %3720
        %vm3722 = vcmask 121856
        %v3723 = vsel %vm3722, %v3703, %v3705
        %v3724 = vsel %vm3722, %v3705, %v3707
        %v3725 = vsel %vm3722, %v3707, %v3709
        %v3726 = vsel %vm3722, %v3709, %v3711
        %v3727 = vsel %vm3722, %v3713, %v3715
        %v3728 = vsel %vm3722, %v3715, %v3717
        %v3729 = vsel %vm3722, %v3717, %v3719
        %v3730 = vsel %vm3722, %v3719, %v3721
        %v3740 = vsel %vm3315, %v3659, 0
        %3742 = vmatprep.subr.bf16.mxu0 0
        %3743 = vmatpush1.bf16.msra.mxu0 0
        %3744 = vmatprep.subr.bf16.mxu0 0
        %3745 = vmatpush1.bf16.msra.mxu0 0
        %3746 = vmatprep.subr.bf16.mxu0 0
        %3747 = vmatpush1.bf16.msra.mxu0 0
        %3748 = vmatprep.subr.bf16.mxu0 0
        %3749 = vmatpush1.bf16.msra.mxu0 0
        %3750 = vmatprep.subr.bf16.mxu0 0
        %3751 = vmatpush1.bf16.msra.mxu0 0
        %3752 = vmatprep.subr.bf16.mxu0 0
        %3753 = vmatpush1.bf16.msra.mxu0 0
        %3754 = vmatprep.subr.bf16.mxu0 %v3728
        %3755 = vmatpush1.bf16.msra.mxu0 %v3727
        %3756 = vmatprep.subr.bf16.mxu0 %v3724
        %3757 = vmatpush1.bf16.msra.mxu0 %v3723
        %3758 = vmatprep.subr.bf16.mxu0 0
        %3759 = vmatpush2.bf16.msra.mxu0 0
        %3760 = vmatprep.subr.bf16.mxu0 0
        %3761 = vmatpush2.bf16.msra.mxu0 0
        %3762 = vmatprep.subr.bf16.mxu0 0
        %3763 = vmatpush2.bf16.msra.mxu0 0
        %3764 = vmatprep.subr.bf16.mxu0 0
        %3765 = vmatpush2.bf16.msra.mxu0 0
        %3766 = vmatprep.subr.bf16.mxu0 0
        %3767 = vmatpush2.bf16.msra.mxu0 0
        %3768 = vmatprep.subr.bf16.mxu0 0
        %3769 = vmatpush2.bf16.msra.mxu0 0
        %3770 = vmatprep.subr.bf16.mxu0 0
        %3771 = vmatpush2.bf16.msra.mxu0 0
        %3772 = vmatprep.subr.bf16.mxu0 0
        %3773 = vmatpush2.bf16.msra.mxu0 0
        %3774 = vmatprep.mubr.bf16.mxu0 0
        %3775 = vmatmul.mubr.bf16.gmra.mxu0 %v3740
        %v3776 = vpop.f32.mrf.mxu0
        %v3777 = vadd.f32 0.0, %v3776
        %v3778 = vpop.f32.mrf.mxu0
        %v3779 = vadd.f32 0.0, %v3778
        %v3780 = vpop.f32.mrf.mxu0
        %v3781 = vadd.f32 0.0, %v3780
        %v3782 = vpop.f32.mrf.mxu0
        %v3783 = vadd.f32 0.0, %v3782
        %3784 = vdwg.mxu0
        %3785 = vmatprep.subr.bf16.mxu0 0
        %3786 = vmatpush1.bf16.msra.mxu0 0
        %3787 = vmatprep.subr.bf16.mxu0 0
        %3788 = vmatpush1.bf16.msra.mxu0 0
        %3789 = vmatprep.subr.bf16.mxu0 0
        %3790 = vmatpush1.bf16.msra.mxu0 0
        %3791 = vmatprep.subr.bf16.mxu0 0
        %3792 = vmatpush1.bf16.msra.mxu0 0
        %3793 = vmatprep.subr.bf16.mxu0 0
        %3794 = vmatpush1.bf16.msra.mxu0 0
        %3795 = vmatprep.subr.bf16.mxu0 0
        %3796 = vmatpush1.bf16.msra.mxu0 0
        %3797 = vmatprep.subr.bf16.mxu0 %v3730
        %3798 = vmatpush1.bf16.msra.mxu0 %v3729
        %3799 = vmatprep.subr.bf16.mxu0 %v3726
        %3800 = vmatpush1.bf16.msra.mxu0 %v3725
        %3801 = vmatprep.subr.bf16.mxu0 0
        %3802 = vmatpush2.bf16.msra.mxu0 0
        %3803 = vmatprep.subr.bf16.mxu0 0
        %3804 = vmatpush2.bf16.msra.mxu0 0
        %3805 = vmatprep.subr.bf16.mxu0 0
        %3806 = vmatpush2.bf16.msra.mxu0 0
        %3807 = vmatprep.subr.bf16.mxu0 0
        %3808 = vmatpush2.bf16.msra.mxu0 0
        %3809 = vmatprep.subr.bf16.mxu0 0
        %3810 = vmatpush2.bf16.msra.mxu0 0
        %3811 = vmatprep.subr.bf16.mxu0 0
        %3812 = vmatpush2.bf16.msra.mxu0 0
        %3813 = vmatprep.subr.bf16.mxu0 0
        %3814 = vmatpush2.bf16.msra.mxu0 0
        %3815 = vmatprep.subr.bf16.mxu0 0
        %3816 = vmatpush2.bf16.msra.mxu0 0
        %3817 = vmatprep.mubr.bf16.mxu0 0
        %3818 = vmatmul.mubr.bf16.gmra.mxu0 %v3740
        %v3819 = vpop.f32.mrf.mxu0
        %v3820 = vadd.f32 0.0, %v3819
        %v3821 = vpop.f32.mrf.mxu0
        %v3822 = vadd.f32 0.0, %v3821
        %v3823 = vpop.f32.mrf.mxu0
        %v3824 = vadd.f32 0.0, %v3823
        %v3825 = vpop.f32.mrf.mxu0
        %v3826 = vadd.f32 0.0, %v3825
        %3827 = vdwg.mxu0
        %v3828 = vadd.f32 %v3527, %v3777
        %v3829 = vadd.f32 %v3529, %v3779
        %v3830 = vadd.f32 %v3570, %v3820
        %v3831 = vadd.f32 %v3572, %v3822
        %v3832 = vadd.f32 %v3531, %v3781
        %v3833 = vadd.f32 %v3533, %v3783
        %v3834 = vadd.f32 %v3574, %v3824
        %v3835 = vadd.f32 %v3576, %v3826
        %v3836 = vshrl.u32 %v3586, 16
        %v3837 = vpack.i.b16 %v3836, %v3836
        %v3839 = vlaneseq
        %v3840 = vshrl.u32 %v3839, 7
        %v3841 = vsub.s32 1, %v3840
        %v3842 = vrot.slane %v3837, %v3841
        %v3843 = vshrl.u32 %v3587, 16
        %v3844 = vpack.i.b16 %v3843, %v3843
        %v3846 = vlaneseq
        %v3847 = vshrl.u32 %v3846, 7
        %v3848 = vsub.s32 1, %v3847
        %v3849 = vrot.slane %v3844, %v3848
        %v3850 = vshrl.u32 %v3588, 16
        %v3851 = vpack.i.b16 %v3850, %v3850
        %v3853 = vlaneseq
        %v3854 = vshrl.u32 %v3853, 7
        %v3855 = vsub.s32 1, %v3854
        %v3856 = vrot.slane %v3851, %v3855
        %v3857 = vshrl.u32 %v3589, 16
        %v3858 = vpack.i.b16 %v3857, %v3857
        %v3860 = vlaneseq
        %v3861 = vshrl.u32 %v3860, 7
        %v3862 = vsub.s32 1, %v3861
        %v3863 = vrot.slane %v3858, %v3862
        %v3868 = vunpack.c.l.b16 %v3842
        %v3869 = vunpack.c.l.b16 %v3849
        %v3870 = vunpack.c.l.b16 %v3856
        %v3871 = vunpack.c.l.b16 %v3863
        %v3872 = vpack.c.b16 %v3869, %v3868
        %v3873 = vpack.c.b16 %v3871, %v3870
        %3874 = vrot.lane.b32.xlu0 %v3872, 127
        %v3875 = vpop.permute.xlu0 %3874
        %3876 = vrot.lane.b32.xlu0 %v3873, 127
        %v3877 = vpop.permute.xlu0 %3876
        %v3878 = vrot.slane %v3875, 4
        %v3879 = vrot.slane %v3877, 4
        %vm3880 = vcmask 1039360
        %v3881 = vsel %vm3880, %v3878, %v3875
        %v3882 = vsel %vm3146, %v3878, %v3879
        %v3883 = vsel %vm3880, %v3882, %v3877
        %v3887 = vmul.bf16 %v3076, %v3881
        %v3888 = vmul.bf16 %v3077, %v3883
        %v3889 = vmul.bf16 %v3078, %v3879
        %v3890 = vmul.bf16 %v3079, %v3881
        %v3891 = vmul.bf16 %v3080, %v3883
        %v3892 = vmul.bf16 %v3081, %v3879
        %v3893 = vmul.bf16 %v3082, %v3881
        %v3894 = vmul.bf16 %v3083, %v3883
        %v3895 = vmul.bf16 %v3084, %v3879
        %v3896 = vmul.bf16 %v3085, %v3881
        %v3897 = vmul.bf16 %v3086, %v3883
        %v3898 = vmul.bf16 %v3087, %v3879
        %v3899 = vld [vmem:[%s249 + $0x18] sm:$0xf]
        %v3900 = vld [vmem:[%s249 + $0x1c] sm:$0xf]
        %v3903 = vunpack.c.l.b16 %v3899
        %v3904 = vunpack.c.l.b16 %v3900
        %v3905 = vpack.c.b16 %v3904, %v3903
        %v3918 = vunpack.c.l.b16 %v3887
        %v3919 = vunpack.c.h.b16 %v3887
        %v3920 = vunpack.c.l.b16 %v3888
        %v3921 = vunpack.c.h.b16 %v3888
        %v3922 = vunpack.c.l.b16 %v3889
        %v3923 = vunpack.c.l.b16 %v3890
        %v3924 = vunpack.c.h.b16 %v3890
        %v3925 = vunpack.c.l.b16 %v3891
        %v3926 = vunpack.c.h.b16 %v3891
        %v3927 = vunpack.c.l.b16 %v3892
        %v3928 = vunpack.c.l.b16 %v3893
        %v3929 = vunpack.c.h.b16 %v3893
        %v3930 = vunpack.c.l.b16 %v3894
        %v3931 = vunpack.c.h.b16 %v3894
        %v3932 = vunpack.c.l.b16 %v3895
        %v3933 = vunpack.c.l.b16 %v3896
        %v3934 = vunpack.c.h.b16 %v3896
        %v3935 = vunpack.c.l.b16 %v3897
        %v3936 = vunpack.c.h.b16 %v3897
        %v3937 = vunpack.c.l.b16 %v3898
        %v3938 = vpack.c.b16 %v3923, %v3918
        %v3939 = vpack.c.b16 %v3924, %v3919
        %v3940 = vpack.c.b16 %v3925, %v3920
        %v3941 = vpack.c.b16 %v3926, %v3921
        %v3942 = vpack.c.b16 %v3927, %v3922
        %v3943 = vpack.c.b16 %v3933, %v3928
        %v3944 = vpack.c.b16 %v3934, %v3929
        %v3945 = vpack.c.b16 %v3935, %v3930
        %v3946 = vpack.c.b16 %v3936, %v3931
        %v3947 = vpack.c.b16 %v3937, %v3932
        %3948 = vrot.lane.b32.xlu0 %v3938, 1
        %v3949 = vpop.permute.xlu0 %3948
        %3950 = vrot.lane.b32.xlu0 %v3939, 1
        %v3951 = vpop.permute.xlu0 %3950
        %3952 = vrot.lane.b32.xlu0 %v3940, 1
        %v3953 = vpop.permute.xlu0 %3952
        %3954 = vrot.lane.b32.xlu0 %v3941, 1
        %v3955 = vpop.permute.xlu0 %3954
        %3956 = vrot.lane.b32.xlu0 %v3942, 1
        %v3957 = vpop.permute.xlu0 %3956
        %3958 = vrot.lane.b32.xlu0 %v3943, 1
        %v3959 = vpop.permute.xlu0 %3958
        %3960 = vrot.lane.b32.xlu0 %v3944, 1
        %v3961 = vpop.permute.xlu0 %3960
        %3962 = vrot.lane.b32.xlu0 %v3945, 1
        %v3963 = vpop.permute.xlu0 %3962
        %3964 = vrot.lane.b32.xlu0 %v3946, 1
        %v3965 = vpop.permute.xlu0 %3964
        %3966 = vrot.lane.b32.xlu0 %v3947, 1
        %v3967 = vpop.permute.xlu0 %3966
        %vm3968 = vcmask 7168
        %v3969 = vsel %vm3968, %v3949, %v3951
        %v3970 = vsel %vm3968, %v3951, %v3953
        %v3971 = vsel %vm3968, %v3953, %v3955
        %v3972 = vsel %vm3968, %v3955, %v3957
        %v3973 = vsel %vm3968, %v3959, %v3961
        %v3974 = vsel %vm3968, %v3961, %v3963
        %v3975 = vsel %vm3968, %v3963, %v3965
        %v3976 = vsel %vm3968, %v3965, %v3967
        %v3986 = vsel %vm3315, %v3905, 0
        %3988 = vmatprep.subr.bf16.mxu0 0
        %3989 = vmatpush1.bf16.msra.mxu0 0
        %3990 = vmatprep.subr.bf16.mxu0 0
        %3991 = vmatpush1.bf16.msra.mxu0 0
        %3992 = vmatprep.subr.bf16.mxu0 0
        %3993 = vmatpush1.bf16.msra.mxu0 0
        %3994 = vmatprep.subr.bf16.mxu0 0
        %3995 = vmatpush1.bf16.msra.mxu0 0
        %3996 = vmatprep.subr.bf16.mxu0 0
        %3997 = vmatpush1.bf16.msra.mxu0 0
        %3998 = vmatprep.subr.bf16.mxu0 0
        %3999 = vmatpush1.bf16.msra.mxu0 0
        %4000 = vmatprep.subr.bf16.mxu0 %v3974
        %4001 = vmatpush1.bf16.msra.mxu0 %v3973
        %4002 = vmatprep.subr.bf16.mxu0 %v3970
        %4003 = vmatpush1.bf16.msra.mxu0 %v3969
        %4004 = vmatprep.subr.bf16.mxu0 0
        %4005 = vmatpush2.bf16.msra.mxu0 0
        %4006 = vmatprep.subr.bf16.mxu0 0
        %4007 = vmatpush2.bf16.msra.mxu0 0
        %4008 = vmatprep.subr.bf16.mxu0 0
        %4009 = vmatpush2.bf16.msra.mxu0 0
        %4010 = vmatprep.subr.bf16.mxu0 0
        %4011 = vmatpush2.bf16.msra.mxu0 0
        %4012 = vmatprep.subr.bf16.mxu0 0
        %4013 = vmatpush2.bf16.msra.mxu0 0
        %4014 = vmatprep.subr.bf16.mxu0 0
        %4015 = vmatpush2.bf16.msra.mxu0 0
        %4016 = vmatprep.subr.bf16.mxu0 0
        %4017 = vmatpush2.bf16.msra.mxu0 0
        %4018 = vmatprep.subr.bf16.mxu0 0
        %4019 = vmatpush2.bf16.msra.mxu0 0
        %4020 = vmatprep.mubr.bf16.mxu0 0
        %4021 = vmatmul.mubr.bf16.gmra.mxu0 %v3986
        %v4022 = vpop.f32.mrf.mxu0
        %v4023 = vadd.f32 0.0, %v4022
        %v4024 = vpop.f32.mrf.mxu0
        %v4025 = vadd.f32 0.0, %v4024
        %v4026 = vpop.f32.mrf.mxu0
        %v4027 = vadd.f32 0.0, %v4026
        %v4028 = vpop.f32.mrf.mxu0
        %v4029 = vadd.f32 0.0, %v4028
        %4030 = vdwg.mxu0
        %4031 = vmatprep.subr.bf16.mxu0 0
        %4032 = vmatpush1.bf16.msra.mxu0 0
        %4033 = vmatprep.subr.bf16.mxu0 0
        %4034 = vmatpush1.bf16.msra.mxu0 0
        %4035 = vmatprep.subr.bf16.mxu0 0
        %4036 = vmatpush1.bf16.msra.mxu0 0
        %4037 = vmatprep.subr.bf16.mxu0 0
        %4038 = vmatpush1.bf16.msra.mxu0 0
        %4039 = vmatprep.subr.bf16.mxu0 0
        %4040 = vmatpush1.bf16.msra.mxu0 0
        %4041 = vmatprep.subr.bf16.mxu0 0
        %4042 = vmatpush1.bf16.msra.mxu0 0
        %4043 = vmatprep.subr.bf16.mxu0 %v3976
        %4044 = vmatpush1.bf16.msra.mxu0 %v3975
        %4045 = vmatprep.subr.bf16.mxu0 %v3972
        %4046 = vmatpush1.bf16.msra.mxu0 %v3971
        %4047 = vmatprep.subr.bf16.mxu0 0
        %4048 = vmatpush2.bf16.msra.mxu0 0
        %4049 = vmatprep.subr.bf16.mxu0 0
        %4050 = vmatpush2.bf16.msra.mxu0 0
        %4051 = vmatprep.subr.bf16.mxu0 0
        %4052 = vmatpush2.bf16.msra.mxu0 0
        %4053 = vmatprep.subr.bf16.mxu0 0
        %4054 = vmatpush2.bf16.msra.mxu0 0
        %4055 = vmatprep.subr.bf16.mxu0 0
        %4056 = vmatpush2.bf16.msra.mxu0 0
        %4057 = vmatprep.subr.bf16.mxu0 0
        %4058 = vmatpush2.bf16.msra.mxu0 0
        %4059 = vmatprep.subr.bf16.mxu0 0
        %4060 = vmatpush2.bf16.msra.mxu0 0
        %4061 = vmatprep.subr.bf16.mxu0 0
        %4062 = vmatpush2.bf16.msra.mxu0 0
        %4063 = vmatprep.mubr.bf16.mxu0 0
        %4064 = vmatmul.mubr.bf16.gmra.mxu0 %v3986
        %v4065 = vpop.f32.mrf.mxu0
        %v4066 = vadd.f32 0.0, %v4065
        %v4067 = vpop.f32.mrf.mxu0
        %v4068 = vadd.f32 0.0, %v4067
        %v4069 = vpop.f32.mrf.mxu0
        %v4070 = vadd.f32 0.0, %v4069
        %v4071 = vpop.f32.mrf.mxu0
        %v4072 = vadd.f32 0.0, %v4071
        %4073 = vdwg.mxu0
        %v4074 = vadd.f32 %v3828, %v4023
        %v4075 = vadd.f32 %v3829, %v4025
        %v4076 = vadd.f32 %v3830, %v4066
        %v4077 = vadd.f32 %v3831, %v4068
        %v4078 = vadd.f32 %v3832, %v4027
        %v4079 = vadd.f32 %v3833, %v4029
        %v4080 = vadd.f32 %v3834, %v4070
        %v4081 = vadd.f32 %v3835, %v4072
        %v4082 = vld [vmem:[#allocation2 + $0x4] sm:$0xff]
        %v4083 = vld [vmem:[#allocation2 + $0xc] sm:$0xff]
        %v4084 = vld [vmem:[#allocation2 + $0x1c] sm:$0xff]
        %v4085 = vld [vmem:[#allocation2 + $0x24] sm:$0xff]
        %v4086 = vld [vmem:[#allocation2 + $0x34] sm:$0xff]
        %v4087 = vld [vmem:[#allocation2 + $0x3c] sm:$0xff]
        %v4088 = vld [vmem:[#allocation2 + $0x4c] sm:$0xff]
        %v4089 = vld [vmem:[#allocation2 + $0x54] sm:$0xff]
        %v4090 = vld [vmem:[%s249 + $0x20] sm:$0xf]
        %v4091 = vld [vmem:[%s249 + $0x24] sm:$0xf]
        %v4094 = vunpack.c.l.b16 %v4090
        %v4095 = vunpack.c.l.b16 %v4091
        %v4096 = vpack.c.b16 %v4095, %v4094
        %v4105 = vunpack.c.l.b16 %v4082
        %v4106 = vunpack.c.h.b16 %v4082
        %v4107 = vunpack.c.l.b16 %v4083
        %v4108 = vunpack.c.h.b16 %v4083
        %v4109 = vunpack.c.l.b16 %v4084
        %v4110 = vunpack.c.h.b16 %v4084
        %v4111 = vunpack.c.l.b16 %v4085
        %v4112 = vunpack.c.h.b16 %v4085
        %v4113 = vunpack.c.l.b16 %v4086
        %v4114 = vunpack.c.h.b16 %v4086
        %v4115 = vunpack.c.l.b16 %v4087
        %v4116 = vunpack.c.h.b16 %v4087
        %v4117 = vunpack.c.l.b16 %v4088
        %v4118 = vunpack.c.h.b16 %v4088
        %v4119 = vunpack.c.l.b16 %v4089
        %v4120 = vunpack.c.h.b16 %v4089
        %v4121 = vpack.c.b16 %v4109, %v4105
        %v4122 = vpack.c.b16 %v4110, %v4106
        %v4123 = vpack.c.b16 %v4111, %v4107
        %v4124 = vpack.c.b16 %v4112, %v4108
        %v4125 = vpack.c.b16 %v4117, %v4113
        %v4126 = vpack.c.b16 %v4118, %v4114
        %v4127 = vpack.c.b16 %v4119, %v4115
        %v4128 = vpack.c.b16 %v4120, %v4116
        %v4138 = vsel %vm3315, %v4096, 0
        %4140 = vmatprep.subr.bf16.mxu0 0
        %4141 = vmatpush1.bf16.msra.mxu0 0
        %4142 = vmatprep.subr.bf16.mxu0 0
        %4143 = vmatpush1.bf16.msra.mxu0 0
        %4144 = vmatprep.subr.bf16.mxu0 0
        %4145 = vmatpush1.bf16.msra.mxu0 0
        %4146 = vmatprep.subr.bf16.mxu0 0
        %4147 = vmatpush1.bf16.msra.mxu0 0
        %4148 = vmatprep.subr.bf16.mxu0 0
        %4149 = vmatpush1.bf16.msra.mxu0 0
        %4150 = vmatprep.subr.bf16.mxu0 0
        %4151 = vmatpush1.bf16.msra.mxu0 0
        %4152 = vmatprep.subr.bf16.mxu0 %v4126
        %4153 = vmatpush1.bf16.msra.mxu0 %v4125
        %4154 = vmatprep.subr.bf16.mxu0 %v4122
        %4155 = vmatpush1.bf16.msra.mxu0 %v4121
        %4156 = vmatprep.subr.bf16.mxu0 0
        %4157 = vmatpush2.bf16.msra.mxu0 0
        %4158 = vmatprep.subr.bf16.mxu0 0
        %4159 = vmatpush2.bf16.msra.mxu0 0
        %4160 = vmatprep.subr.bf16.mxu0 0
        %4161 = vmatpush2.bf16.msra.mxu0 0
        %4162 = vmatprep.subr.bf16.mxu0 0
        %4163 = vmatpush2.bf16.msra.mxu0 0
        %4164 = vmatprep.subr.bf16.mxu0 0
        %4165 = vmatpush2.bf16.msra.mxu0 0
        %4166 = vmatprep.subr.bf16.mxu0 0
        %4167 = vmatpush2.bf16.msra.mxu0 0
        %4168 = vmatprep.subr.bf16.mxu0 0
        %4169 = vmatpush2.bf16.msra.mxu0 0
        %4170 = vmatprep.subr.bf16.mxu0 0
        %4171 = vmatpush2.bf16.msra.mxu0 0
        %4172 = vmatprep.mubr.bf16.mxu0 0
        %4173 = vmatmul.mubr.bf16.gmra.mxu0 %v4138
        %v4174 = vpop.f32.mrf.mxu0
        %v4175 = vadd.f32 0.0, %v4174
        %v4176 = vpop.f32.mrf.mxu0
        %v4177 = vadd.f32 0.0, %v4176
        %v4178 = vpop.f32.mrf.mxu0
        %v4179 = vadd.f32 0.0, %v4178
        %v4180 = vpop.f32.mrf.mxu0
        %v4181 = vadd.f32 0.0, %v4180
        %4182 = vdwg.mxu0
        %4183 = vmatprep.subr.bf16.mxu0 0
        %4184 = vmatpush1.bf16.msra.mxu0 0
        %4185 = vmatprep.subr.bf16.mxu0 0
        %4186 = vmatpush1.bf16.msra.mxu0 0
        %4187 = vmatprep.subr.bf16.mxu0 0
        %4188 = vmatpush1.bf16.msra.mxu0 0
        %4189 = vmatprep.subr.bf16.mxu0 0
        %4190 = vmatpush1.bf16.msra.mxu0 0
        %4191 = vmatprep.subr.bf16.mxu0 0
        %4192 = vmatpush1.bf16.msra.mxu0 0
        %4193 = vmatprep.subr.bf16.mxu0 0
        %4194 = vmatpush1.bf16.msra.mxu0 0
        %4195 = vmatprep.subr.bf16.mxu0 %v4128
        %4196 = vmatpush1.bf16.msra.mxu0 %v4127
        %4197 = vmatprep.subr.bf16.mxu0 %v4124
        %4198 = vmatpush1.bf16.msra.mxu0 %v4123
        %4199 = vmatprep.subr.bf16.mxu0 0
        %4200 = vmatpush2.bf16.msra.mxu0 0
        %4201 = vmatprep.subr.bf16.mxu0 0
        %4202 = vmatpush2.bf16.msra.mxu0 0
        %4203 = vmatprep.subr.bf16.mxu0 0
        %4204 = vmatpush2.bf16.msra.mxu0 0
        %4205 = vmatprep.subr.bf16.mxu0 0
        %4206 = vmatpush2.bf16.msra.mxu0 0
        %4207 = vmatprep.subr.bf16.mxu0 0
        %4208 = vmatpush2.bf16.msra.mxu0 0
        %4209 = vmatprep.subr.bf16.mxu0 0
        %4210 = vmatpush2.bf16.msra.mxu0 0
        %4211 = vmatprep.subr.bf16.mxu0 0
        %4212 = vmatpush2.bf16.msra.mxu0 0
        %4213 = vmatprep.subr.bf16.mxu0 0
        %4214 = vmatpush2.bf16.msra.mxu0 0
        %4215 = vmatprep.mubr.bf16.mxu0 0
        %4216 = vmatmul.mubr.bf16.gmra.mxu0 %v4138
        %v4217 = vpop.f32.mrf.mxu0
        %v4218 = vadd.f32 0.0, %v4217
        %v4219 = vpop.f32.mrf.mxu0
        %v4220 = vadd.f32 0.0, %v4219
        %v4221 = vpop.f32.mrf.mxu0
        %v4222 = vadd.f32 0.0, %v4221
        %v4223 = vpop.f32.mrf.mxu0
        %v4224 = vadd.f32 0.0, %v4223
        %4225 = vdwg.mxu0
        %v4226 = vadd.f32 %v4074, %v4175
        %v4227 = vadd.f32 %v4075, %v4177
        %v4228 = vadd.f32 %v4076, %v4218
        %v4229 = vadd.f32 %v4077, %v4220
        %v4230 = vadd.f32 %v4078, %v4179
        %v4231 = vadd.f32 %v4079, %v4181
        %v4232 = vadd.f32 %v4080, %v4222
        %v4233 = vadd.f32 %v4081, %v4224
        %v4234 = vld [vmem:[#allocation2 + $0x4] sm:$0xff]
        %v4235 = vld [vmem:[#allocation2 + $0xc] sm:$0xff]
        %v4236 = vld [vmem:[#allocation2 + $0x14] sm:$0xf]
        %v4237 = vld [vmem:[#allocation2 + $0x1c] sm:$0xff]
        %v4238 = vld [vmem:[#allocation2 + $0x24] sm:$0xff]
        %v4239 = vld [vmem:[#allocation2 + $0x2c] sm:$0xf]
        %v4240 = vld [vmem:[#allocation2 + $0x34] sm:$0xff]
        %v4241 = vld [vmem:[#allocation2 + $0x3c] sm:$0xff]
        %v4242 = vld [vmem:[#allocation2 + $0x44] sm:$0xf]
        %v4243 = vld [vmem:[#allocation2 + $0x4c] sm:$0xff]
        %v4244 = vld [vmem:[#allocation2 + $0x54] sm:$0xff]
        %v4245 = vld [vmem:[#allocation2 + $0x5c] sm:$0xf]
        %v4246 = vld [vmem:[%s1] sm:$0x44]
        %v4247 = vld [vmem:[%s1 + $0x8] sm:$0x44]
        %v4250 = vunpack.c.l.b16 %v4246
        %v4251 = vunpack.c.h.b16 %v4246
        %v4252 = vunpack.c.l.b16 %v4247
        %v4253 = vunpack.c.h.b16 %v4247
        %v4254 = vpack.c.b16 %v4250, %v4250
        %v4255 = vpack.c.b16 %v4251, %v4251
        %v4256 = vpack.c.b16 %v4252, %v4252
        %v4257 = vpack.c.b16 %v4253, %v4253
        %v4259 = vshrl.u32 %v4254, 16
        %v4260 = vpack.i.b16 %v4259, %v4259
        %v4262 = vlaneseq
        %v4263 = vshrl.u32 %v4262, 7
        %v4264 = vsub.s32 2, %v4263
        %v4265 = vrot.slane %v4260, %v4264
        %v4267 = vshrl.u32 %v4255, 16
        %v4268 = vpack.i.b16 %v4267, %v4267
        %v4270 = vlaneseq
        %v4271 = vshrl.u32 %v4270, 7
        %v4272 = vsub.s32 2, %v4271
        %v4273 = vrot.slane %v4268, %v4272
        %v4275 = vshrl.u32 %v4256, 16
        %v4276 = vpack.i.b16 %v4275, %v4275
        %v4278 = vlaneseq
        %v4279 = vshrl.u32 %v4278, 7
        %v4280 = vsub.s32 2, %v4279
        %v4281 = vrot.slane %v4276, %v4280
        %v4283 = vshrl.u32 %v4257, 16
        %v4284 = vpack.i.b16 %v4283, %v4283
        %v4286 = vlaneseq
        %v4287 = vshrl.u32 %v4286, 7
        %v4288 = vsub.s32 2, %v4287
        %v4289 = vrot.slane %v4284, %v4288
        %v4294 = vunpack.c.l.b16 %v4265
        %v4295 = vunpack.c.l.b16 %v4273
        %v4296 = vunpack.c.l.b16 %v4281
        %v4297 = vunpack.c.l.b16 %v4289
        %v4298 = vpack.c.b16 %v4295, %v4294
        %v4299 = vpack.c.b16 %v4297, %v4296
        %4300 = vrot.lane.b32.xlu0 %v4298, 1
        %v4301 = vpop.permute.xlu0 %4300
        %4302 = vrot.lane.b32.xlu0 %v4299, 1
        %v4303 = vpop.permute.xlu0 %4302
        %v4304 = vrot.slane %v4301, 4
        %v4305 = vrot.slane %v4303, 4
        %v4306 = vsel %vm3968, %v4304, %v4301
        %v4307 = vsel %vm3146, %v4304, %v4305
        %v4308 = vsel %vm3968, %v4307, %v4303
        %v4312 = vmul.bf16 %v4234, %v4306
        %v4313 = vmul.bf16 %v4235, %v4308
        %v4314 = vmul.bf16 %v4236, %v4305
        %v4315 = vmul.bf16 %v4237, %v4306
        %v4316 = vmul.bf16 %v4238, %v4308
        %v4317 = vmul.bf16 %v4239, %v4305
        %v4318 = vmul.bf16 %v4240, %v4306
        %v4319 = vmul.bf16 %v4241, %v4308
        %v4320 = vmul.bf16 %v4242, %v4305
        %v4321 = vmul.bf16 %v4243, %v4306
        %v4322 = vmul.bf16 %v4244, %v4308
        %v4323 = vmul.bf16 %v4245, %v4305
        %v4324 = vld [vmem:[%s249 + $0x28] sm:$0xf]
        %v4325 = vld [vmem:[%s249 + $0x2c] sm:$0xf]
        %v4328 = vunpack.c.l.b16 %v4324
        %v4329 = vunpack.c.l.b16 %v4325
        %v4330 = vpack.c.b16 %v4329, %v4328
        %v4343 = vunpack.c.l.b16 %v4312
        %v4344 = vunpack.c.h.b16 %v4312
        %v4345 = vunpack.c.l.b16 %v4313
        %v4346 = vunpack.c.h.b16 %v4313
        %v4347 = vunpack.c.l.b16 %v4314
        %v4348 = vunpack.c.l.b16 %v4315
        %v4349 = vunpack.c.h.b16 %v4315
        %v4350 = vunpack.c.l.b16 %v4316
        %v4351 = vunpack.c.h.b16 %v4316
        %v4352 = vunpack.c.l.b16 %v4317
        %v4353 = vunpack.c.l.b16 %v4318
        %v4354 = vunpack.c.h.b16 %v4318
        %v4355 = vunpack.c.l.b16 %v4319
        %v4356 = vunpack.c.h.b16 %v4319
        %v4357 = vunpack.c.l.b16 %v4320
        %v4358 = vunpack.c.l.b16 %v4321
        %v4359 = vunpack.c.h.b16 %v4321
        %v4360 = vunpack.c.l.b16 %v4322
        %v4361 = vunpack.c.h.b16 %v4322
        %v4362 = vunpack.c.l.b16 %v4323
        %v4363 = vpack.c.b16 %v4348, %v4343
        %v4364 = vpack.c.b16 %v4349, %v4344
        %v4365 = vpack.c.b16 %v4350, %v4345
        %v4366 = vpack.c.b16 %v4351, %v4346
        %v4367 = vpack.c.b16 %v4352, %v4347
        %v4368 = vpack.c.b16 %v4358, %v4353
        %v4369 = vpack.c.b16 %v4359, %v4354
        %v4370 = vpack.c.b16 %v4360, %v4355
        %v4371 = vpack.c.b16 %v4361, %v4356
        %v4372 = vpack.c.b16 %v4362, %v4357
        %4373 = vrot.lane.b32.xlu0 %v4363, 127
        %v4374 = vpop.permute.xlu0 %4373
        %4375 = vrot.lane.b32.xlu0 %v4364, 127
        %v4376 = vpop.permute.xlu0 %4375
        %4377 = vrot.lane.b32.xlu0 %v4365, 127
        %v4378 = vpop.permute.xlu0 %4377
        %4379 = vrot.lane.b32.xlu0 %v4366, 127
        %v4380 = vpop.permute.xlu0 %4379
        %4381 = vrot.lane.b32.xlu0 %v4367, 127
        %v4382 = vpop.permute.xlu0 %4381
        %4383 = vrot.lane.b32.xlu0 %v4368, 127
        %v4384 = vpop.permute.xlu0 %4383
        %4385 = vrot.lane.b32.xlu0 %v4369, 127
        %v4386 = vpop.permute.xlu0 %4385
        %4387 = vrot.lane.b32.xlu0 %v4370, 127
        %v4388 = vpop.permute.xlu0 %4387
        %4389 = vrot.lane.b32.xlu0 %v4371, 127
        %v4390 = vpop.permute.xlu0 %4389
        %4391 = vrot.lane.b32.xlu0 %v4372, 127
        %v4392 = vpop.permute.xlu0 %4391
        %v4393 = vsel %vm3880, %v4374, %v4376
        %v4394 = vsel %vm3880, %v4376, %v4378
        %v4395 = vsel %vm3880, %v4378, %v4380
        %v4396 = vsel %vm3880, %v4380, %v4382
        %v4397 = vsel %vm3880, %v4384, %v4386
        %v4398 = vsel %vm3880, %v4386, %v4388
        %v4399 = vsel %vm3880, %v4388, %v4390
        %v4400 = vsel %vm3880, %v4390, %v4392
        %v4410 = vsel %vm3315, %v4330, 0
        %4412 = vmatprep.subr.bf16.mxu0 0
        %4413 = vmatpush1.bf16.msra.mxu0 0
        %4414 = vmatprep.subr.bf16.mxu0 0
        %4415 = vmatpush1.bf16.msra.mxu0 0
        %4416 = vmatprep.subr.bf16.mxu0 0
        %4417 = vmatpush1.bf16.msra.mxu0 0
        %4418 = vmatprep.subr.bf16.mxu0 0
        %4419 = vmatpush1.bf16.msra.mxu0 0
        %4420 = vmatprep.subr.bf16.mxu0 0
        %4421 = vmatpush1.bf16.msra.mxu0 0
        %4422 = vmatprep.subr.bf16.mxu0 0
        %4423 = vmatpush1.bf16.msra.mxu0 0
        %4424 = vmatprep.subr.bf16.mxu0 %v4398
        %4425 = vmatpush1.bf16.msra.mxu0 %v4397
        %4426 = vmatprep.subr.bf16.mxu0 %v4394
        %4427 = vmatpush1.bf16.msra.mxu0 %v4393
        %4428 = vmatprep.subr.bf16.mxu0 0
        %4429 = vmatpush2.bf16.msra.mxu0 0
        %4430 = vmatprep.subr.bf16.mxu0 0
        %4431 = vmatpush2.bf16.msra.mxu0 0
        %4432 = vmatprep.subr.bf16.mxu0 0
        %4433 = vmatpush2.bf16.msra.mxu0 0
        %4434 = vmatprep.subr.bf16.mxu0 0
        %4435 = vmatpush2.bf16.msra.mxu0 0
        %4436 = vmatprep.subr.bf16.mxu0 0
        %4437 = vmatpush2.bf16.msra.mxu0 0
        %4438 = vmatprep.subr.bf16.mxu0 0
        %4439 = vmatpush2.bf16.msra.mxu0 0
        %4440 = vmatprep.subr.bf16.mxu0 0
        %4441 = vmatpush2.bf16.msra.mxu0 0
        %4442 = vmatprep.subr.bf16.mxu0 0
        %4443 = vmatpush2.bf16.msra.mxu0 0
        %4444 = vmatprep.mubr.bf16.mxu0 0
        %4445 = vmatmul.mubr.bf16.gmra.mxu0 %v4410
        %v4446 = vpop.f32.mrf.mxu0
        %v4447 = vadd.f32 0.0, %v4446
        %v4448 = vpop.f32.mrf.mxu0
        %v4449 = vadd.f32 0.0, %v4448
        %v4450 = vpop.f32.mrf.mxu0
        %v4451 = vadd.f32 0.0, %v4450
        %v4452 = vpop.f32.mrf.mxu0
        %v4453 = vadd.f32 0.0, %v4452
        %4454 = vdwg.mxu0
        %4455 = vmatprep.subr.bf16.mxu0 0
        %4456 = vmatpush1.bf16.msra.mxu0 0
        %4457 = vmatprep.subr.bf16.mxu0 0
        %4458 = vmatpush1.bf16.msra.mxu0 0
        %4459 = vmatprep.subr.bf16.mxu0 0
        %4460 = vmatpush1.bf16.msra.mxu0 0
        %4461 = vmatprep.subr.bf16.mxu0 0
        %4462 = vmatpush1.bf16.msra.mxu0 0
        %4463 = vmatprep.subr.bf16.mxu0 0
        %4464 = vmatpush1.bf16.msra.mxu0 0
        %4465 = vmatprep.subr.bf16.mxu0 0
        %4466 = vmatpush1.bf16.msra.mxu0 0
        %4467 = vmatprep.subr.bf16.mxu0 %v4400
        %4468 = vmatpush1.bf16.msra.mxu0 %v4399
        %4469 = vmatprep.subr.bf16.mxu0 %v4396
        %4470 = vmatpush1.bf16.msra.mxu0 %v4395
        %4471 = vmatprep.subr.bf16.mxu0 0
        %4472 = vmatpush2.bf16.msra.mxu0 0
        %4473 = vmatprep.subr.bf16.mxu0 0
        %4474 = vmatpush2.bf16.msra.mxu0 0
        %4475 = vmatprep.subr.bf16.mxu0 0
        %4476 = vmatpush2.bf16.msra.mxu0 0
        %4477 = vmatprep.subr.bf16.mxu0 0
        %4478 = vmatpush2.bf16.msra.mxu0 0
        %4479 = vmatprep.subr.bf16.mxu0 0
        %4480 = vmatpush2.bf16.msra.mxu0 0
        %4481 = vmatprep.subr.bf16.mxu0 0
        %4482 = vmatpush2.bf16.msra.mxu0 0
        %4483 = vmatprep.subr.bf16.mxu0 0
        %4484 = vmatpush2.bf16.msra.mxu0 0
        %4485 = vmatprep.subr.bf16.mxu0 0
        %4486 = vmatpush2.bf16.msra.mxu0 0
        %4487 = vmatprep.mubr.bf16.mxu0 0
        %4488 = vmatmul.mubr.bf16.gmra.mxu0 %v4410
        %v4489 = vpop.f32.mrf.mxu0
        %v4490 = vadd.f32 0.0, %v4489
        %v4491 = vpop.f32.mrf.mxu0
        %v4492 = vadd.f32 0.0, %v4491
        %v4493 = vpop.f32.mrf.mxu0
        %v4494 = vadd.f32 0.0, %v4493
        %v4495 = vpop.f32.mrf.mxu0
        %v4496 = vadd.f32 0.0, %v4495
        %4497 = vdwg.mxu0
        %v4498 = vadd.f32 %v4226, %v4447
        %v4499 = vadd.f32 %v4227, %v4449
        %v4500 = vadd.f32 %v4228, %v4490
        %v4501 = vadd.f32 %v4229, %v4492
        %v4502 = vadd.f32 %v4230, %v4451
        %v4503 = vadd.f32 %v4231, %v4453
        %v4504 = vadd.f32 %v4232, %v4494
        %v4505 = vadd.f32 %v4233, %v4496
        %v4506 = vld [vmem:[%s1] sm:$0x88]
        %v4507 = vld [vmem:[%s1 + $0x8] sm:$0x88]
        %v4510 = vunpack.c.l.b16 %v4506
        %v4511 = vunpack.c.h.b16 %v4506
        %v4512 = vunpack.c.l.b16 %v4507
        %v4513 = vunpack.c.h.b16 %v4507
        %v4514 = vpack.c.b16 %v4510, %v4510
        %v4515 = vpack.c.b16 %v4511, %v4511
        %v4516 = vpack.c.b16 %v4512, %v4512
        %v4517 = vpack.c.b16 %v4513, %v4513
        %v4519 = vpack.i.b16 %v4514, %v4514
        %v4521 = vlaneseq
        %v4522 = vshrl.u32 %v4521, 7
        %v4523 = vsub.s32 3, %v4522
        %v4524 = vrot.slane %v4519, %v4523
        %v4526 = vpack.i.b16 %v4515, %v4515
        %v4528 = vlaneseq
        %v4529 = vshrl.u32 %v4528, 7
        %v4530 = vsub.s32 3, %v4529
        %v4531 = vrot.slane %v4526, %v4530
        %v4533 = vpack.i.b16 %v4516, %v4516
        %v4535 = vlaneseq
        %v4536 = vshrl.u32 %v4535, 7
        %v4537 = vsub.s32 3, %v4536
        %v4538 = vrot.slane %v4533, %v4537
        %v4540 = vpack.i.b16 %v4517, %v4517
        %v4542 = vlaneseq
        %v4543 = vshrl.u32 %v4542, 7
        %v4544 = vsub.s32 3, %v4543
        %v4545 = vrot.slane %v4540, %v4544
        %v4550 = vunpack.c.l.b16 %v4524
        %v4551 = vunpack.c.l.b16 %v4531
        %v4552 = vunpack.c.l.b16 %v4538
        %v4553 = vunpack.c.l.b16 %v4545
        %v4554 = vpack.c.b16 %v4551, %v4550
        %v4555 = vpack.c.b16 %v4553, %v4552
        %4556 = vrot.lane.b32.xlu0 %v4554, 15
        %v4557 = vpop.permute.xlu0 %4556
        %4558 = vrot.lane.b32.xlu0 %v4555, 15
        %v4559 = vpop.permute.xlu0 %4558
        %v4560 = vrot.slane %v4557, 4
        %v4561 = vrot.slane %v4559, 4
        %v4562 = vsel %vm3722, %v4560, %v4557
        %v4563 = vsel %vm3146, %v4560, %v4561
        %v4564 = vsel %vm3722, %v4563, %v4559
        %v4568 = vmul.bf16 %v4234, %v4562
        %v4569 = vmul.bf16 %v4235, %v4564
        %v4570 = vmul.bf16 %v4236, %v4561
        %v4571 = vmul.bf16 %v4237, %v4562
        %v4572 = vmul.bf16 %v4238, %v4564
        %v4573 = vmul.bf16 %v4239, %v4561
        %v4574 = vmul.bf16 %v4240, %v4562
        %v4575 = vmul.bf16 %v4241, %v4564
        %v4576 = vmul.bf16 %v4242, %v4561
        %v4577 = vmul.bf16 %v4243, %v4562
        %v4578 = vmul.bf16 %v4244, %v4564
        %v4579 = vmul.bf16 %v4245, %v4561
        %v4580 = vld [vmem:[%s249 + $0x30] sm:$0xf]
        %v4581 = vld [vmem:[%s249 + $0x34] sm:$0xf]
        %v4584 = vunpack.c.l.b16 %v4580
        %v4585 = vunpack.c.l.b16 %v4581
        %v4586 = vpack.c.b16 %v4585, %v4584
        %v4599 = vunpack.c.l.b16 %v4568
        %v4600 = vunpack.c.h.b16 %v4568
        %v4601 = vunpack.c.l.b16 %v4569
        %v4602 = vunpack.c.h.b16 %v4569
        %v4603 = vunpack.c.l.b16 %v4570
        %v4604 = vunpack.c.l.b16 %v4571
        %v4605 = vunpack.c.h.b16 %v4571
        %v4606 = vunpack.c.l.b16 %v4572
        %v4607 = vunpack.c.h.b16 %v4572
        %v4608 = vunpack.c.l.b16 %v4573
        %v4609 = vunpack.c.l.b16 %v4574
        %v4610 = vunpack.c.h.b16 %v4574
        %v4611 = vunpack.c.l.b16 %v4575
        %v4612 = vunpack.c.h.b16 %v4575
        %v4613 = vunpack.c.l.b16 %v4576
        %v4614 = vunpack.c.l.b16 %v4577
        %v4615 = vunpack.c.h.b16 %v4577
        %v4616 = vunpack.c.l.b16 %v4578
        %v4617 = vunpack.c.h.b16 %v4578
        %v4618 = vunpack.c.l.b16 %v4579
        %v4619 = vpack.c.b16 %v4604, %v4599
        %v4620 = vpack.c.b16 %v4605, %v4600
        %v4621 = vpack.c.b16 %v4606, %v4601
        %v4622 = vpack.c.b16 %v4607, %v4602
        %v4623 = vpack.c.b16 %v4608, %v4603
        %v4624 = vpack.c.b16 %v4614, %v4609
        %v4625 = vpack.c.b16 %v4615, %v4610
        %v4626 = vpack.c.b16 %v4616, %v4611
        %v4627 = vpack.c.b16 %v4617, %v4612
        %v4628 = vpack.c.b16 %v4618, %v4613
        %4629 = vrot.lane.b32.xlu0 %v4619, 113
        %v4630 = vpop.permute.xlu0 %4629
        %4631 = vrot.lane.b32.xlu0 %v4620, 113
        %v4632 = vpop.permute.xlu0 %4631
        %4633 = vrot.lane.b32.xlu0 %v4621, 113
        %v4634 = vpop.permute.xlu0 %4633
        %4635 = vrot.lane.b32.xlu0 %v4622, 113
        %v4636 = vpop.permute.xlu0 %4635
        %4637 = vrot.lane.b32.xlu0 %v4623, 113
        %v4638 = vpop.permute.xlu0 %4637
        %4639 = vrot.lane.b32.xlu0 %v4624, 113
        %v4640 = vpop.permute.xlu0 %4639
        %4641 = vrot.lane.b32.xlu0 %v4625, 113
        %v4642 = vpop.permute.xlu0 %4641
        %4643 = vrot.lane.b32.xlu0 %v4626, 113
        %v4644 = vpop.permute.xlu0 %4643
        %4645 = vrot.lane.b32.xlu0 %v4627, 113
        %v4646 = vpop.permute.xlu0 %4645
        %4647 = vrot.lane.b32.xlu0 %v4628, 113
        %v4648 = vpop.permute.xlu0 %4647
        %v4649 = vsel %vm3634, %v4630, %v4632
        %v4650 = vsel %vm3634, %v4632, %v4634
        %v4651 = vsel %vm3634, %v4634, %v4636
        %v4652 = vsel %vm3634, %v4636, %v4638
        %v4653 = vsel %vm3634, %v4640, %v4642
        %v4654 = vsel %vm3634, %v4642, %v4644
        %v4655 = vsel %vm3634, %v4644, %v4646
        %v4656 = vsel %vm3634, %v4646, %v4648
        %v4666 = vsel %vm3315, %v4586, 0
        %4668 = vmatprep.subr.bf16.mxu0 0
        %4669 = vmatpush1.bf16.msra.mxu0 0
        %4670 = vmatprep.subr.bf16.mxu0 0
        %4671 = vmatpush1.bf16.msra.mxu0 0
        %4672 = vmatprep.subr.bf16.mxu0 0
        %4673 = vmatpush1.bf16.msra.mxu0 0
        %4674 = vmatprep.subr.bf16.mxu0 0
        %4675 = vmatpush1.bf16.msra.mxu0 0
        %4676 = vmatprep.subr.bf16.mxu0 0
        %4677 = vmatpush1.bf16.msra.mxu0 0
        %4678 = vmatprep.subr.bf16.mxu0 0
        %4679 = vmatpush1.bf16.msra.mxu0 0
        %4680 = vmatprep.subr.bf16.mxu0 %v4654
        %4681 = vmatpush1.bf16.msra.mxu0 %v4653
        %4682 = vmatprep.subr.bf16.mxu0 %v4650
        %4683 = vmatpush1.bf16.msra.mxu0 %v4649
        %4684 = vmatprep.subr.bf16.mxu0 0
        %4685 = vmatpush2.bf16.msra.mxu0 0
        %4686 = vmatprep.subr.bf16.mxu0 0
        %4687 = vmatpush2.bf16.msra.mxu0 0
        %4688 = vmatprep.subr.bf16.mxu0 0
        %4689 = vmatpush2.bf16.msra.mxu0 0
        %4690 = vmatprep.subr.bf16.mxu0 0
        %4691 = vmatpush2.bf16.msra.mxu0 0
        %4692 = vmatprep.subr.bf16.mxu0 0
        %4693 = vmatpush2.bf16.msra.mxu0 0
        %4694 = vmatprep.subr.bf16.mxu0 0
        %4695 = vmatpush2.bf16.msra.mxu0 0
        %4696 = vmatprep.subr.bf16.mxu0 0
        %4697 = vmatpush2.bf16.msra.mxu0 0
        %4698 = vmatprep.subr.bf16.mxu0 0
        %4699 = vmatpush2.bf16.msra.mxu0 0
        %4700 = vmatprep.mubr.bf16.mxu0 0
        %4701 = vmatmul.mubr.bf16.gmra.mxu0 %v4666
        %v4702 = vpop.f32.mrf.mxu0
        %v4703 = vadd.f32 0.0, %v4702
        %v4704 = vpop.f32.mrf.mxu0
        %v4705 = vadd.f32 0.0, %v4704
        %v4706 = vpop.f32.mrf.mxu0
        %v4707 = vadd.f32 0.0, %v4706
        %v4708 = vpop.f32.mrf.mxu0
        %v4709 = vadd.f32 0.0, %v4708
        %4710 = vdwg.mxu0
        %4711 = vmatprep.subr.bf16.mxu0 0
        %4712 = vmatpush1.bf16.msra.mxu0 0
        %4713 = vmatprep.subr.bf16.mxu0 0
        %4714 = vmatpush1.bf16.msra.mxu0 0
        %4715 = vmatprep.subr.bf16.mxu0 0
        %4716 = vmatpush1.bf16.msra.mxu0 0
        %4717 = vmatprep.subr.bf16.mxu0 0
        %4718 = vmatpush1.bf16.msra.mxu0 0
        %4719 = vmatprep.subr.bf16.mxu0 0
        %4720 = vmatpush1.bf16.msra.mxu0 0
        %4721 = vmatprep.subr.bf16.mxu0 0
        %4722 = vmatpush1.bf16.msra.mxu0 0
        %4723 = vmatprep.subr.bf16.mxu0 %v4656
        %4724 = vmatpush1.bf16.msra.mxu0 %v4655
        %4725 = vmatprep.subr.bf16.mxu0 %v4652
        %4726 = vmatpush1.bf16.msra.mxu0 %v4651
        %4727 = vmatprep.subr.bf16.mxu0 0
        %4728 = vmatpush2.bf16.msra.mxu0 0
        %4729 = vmatprep.subr.bf16.mxu0 0
        %4730 = vmatpush2.bf16.msra.mxu0 0
        %4731 = vmatprep.subr.bf16.mxu0 0
        %4732 = vmatpush2.bf16.msra.mxu0 0
        %4733 = vmatprep.subr.bf16.mxu0 0
        %4734 = vmatpush2.bf16.msra.mxu0 0
        %4735 = vmatprep.subr.bf16.mxu0 0
        %4736 = vmatpush2.bf16.msra.mxu0 0
        %4737 = vmatprep.subr.bf16.mxu0 0
        %4738 = vmatpush2.bf16.msra.mxu0 0
        %4739 = vmatprep.subr.bf16.mxu0 0
        %4740 = vmatpush2.bf16.msra.mxu0 0
        %4741 = vmatprep.subr.bf16.mxu0 0
        %4742 = vmatpush2.bf16.msra.mxu0 0
        %4743 = vmatprep.mubr.bf16.mxu0 0
        %4744 = vmatmul.mubr.bf16.gmra.mxu0 %v4666
        %v4745 = vpop.f32.mrf.mxu0
        %v4746 = vadd.f32 0.0, %v4745
        %v4747 = vpop.f32.mrf.mxu0
        %v4748 = vadd.f32 0.0, %v4747
        %v4749 = vpop.f32.mrf.mxu0
        %v4750 = vadd.f32 0.0, %v4749
        %v4751 = vpop.f32.mrf.mxu0
        %v4752 = vadd.f32 0.0, %v4751
        %4753 = vdwg.mxu0
        %v4754 = vadd.f32 %v4498, %v4703
        %v4755 = vadd.f32 %v4499, %v4705
        %v4756 = vadd.f32 %v4500, %v4746
        %v4757 = vadd.f32 %v4501, %v4748
        %v4758 = vadd.f32 %v4502, %v4707
        %v4759 = vadd.f32 %v4503, %v4709
        %v4760 = vadd.f32 %v4504, %v4750
        %v4761 = vadd.f32 %v4505, %v4752
        %v4762 = vshrl.u32 %v4514, 16
        %v4763 = vpack.i.b16 %v4762, %v4762
        %v4765 = vlaneseq
        %v4766 = vshrl.u32 %v4765, 7
        %v4767 = vsub.s32 3, %v4766
        %v4768 = vrot.slane %v4763, %v4767
        %v4769 = vshrl.u32 %v4515, 16
        %v4770 = vpack.i.b16 %v4769, %v4769
        %v4772 = vlaneseq
        %v4773 = vshrl.u32 %v4772, 7
        %v4774 = vsub.s32 3, %v4773
        %v4775 = vrot.slane %v4770, %v4774
        %v4776 = vshrl.u32 %v4516, 16
        %v4777 = vpack.i.b16 %v4776, %v4776
        %v4779 = vlaneseq
        %v4780 = vshrl.u32 %v4779, 7
        %v4781 = vsub.s32 3, %v4780
        %v4782 = vrot.slane %v4777, %v4781
        %v4783 = vshrl.u32 %v4517, 16
        %v4784 = vpack.i.b16 %v4783, %v4783
        %v4786 = vlaneseq
        %v4787 = vshrl.u32 %v4786, 7
        %v4788 = vsub.s32 3, %v4787
        %v4789 = vrot.slane %v4784, %v4788
        %v4794 = vunpack.c.l.b16 %v4768
        %v4795 = vunpack.c.l.b16 %v4775
        %v4796 = vunpack.c.l.b16 %v4782
        %v4797 = vunpack.c.l.b16 %v4789
        %v4798 = vpack.c.b16 %v4795, %v4794
        %v4799 = vpack.c.b16 %v4797, %v4796
        %4800 = vrot.lane.b32.xlu0 %v4798, 16
        %v4801 = vpop.permute.xlu0 %4800
        %4802 = vrot.lane.b32.xlu0 %v4799, 16
        %v4803 = vpop.permute.xlu0 %4802
        %v4804 = vrot.slane %v4801, 4
        %v4805 = vrot.slane %v4803, 4
        %v4806 = vsel %vm3298, %v4804, %v4801
        %v4807 = vsel %vm3146, %v4804, %v4805
        %v4808 = vsel %vm3298, %v4807, %v4803
        %v4812 = vmul.bf16 %v4234, %v4806
        %v4813 = vmul.bf16 %v4235, %v4808
        %v4814 = vmul.bf16 %v4236, %v4805
        %v4815 = vmul.bf16 %v4237, %v4806
        %v4816 = vmul.bf16 %v4238, %v4808
        %v4817 = vmul.bf16 %v4239, %v4805
        %v4818 = vmul.bf16 %v4240, %v4806
        %v4819 = vmul.bf16 %v4241, %v4808
        %v4820 = vmul.bf16 %v4242, %v4805
        %v4821 = vmul.bf16 %v4243, %v4806
        %v4822 = vmul.bf16 %v4244, %v4808
        %v4823 = vmul.bf16 %v4245, %v4805
        %v4824 = vld [vmem:[%s249 + $0x38] sm:$0xf]
        %v4825 = vld [vmem:[%s249 + $0x3c] sm:$0xf]
        %v4828 = vunpack.c.l.b16 %v4824
        %v4829 = vunpack.c.l.b16 %v4825
        %v4830 = vpack.c.b16 %v4829, %v4828
        %v4843 = vunpack.c.l.b16 %v4812
        %v4844 = vunpack.c.h.b16 %v4812
        %v4845 = vunpack.c.l.b16 %v4813
        %v4846 = vunpack.c.h.b16 %v4813
        %v4847 = vunpack.c.l.b16 %v4814
        %v4848 = vunpack.c.l.b16 %v4815
        %v4849 = vunpack.c.h.b16 %v4815
        %v4850 = vunpack.c.l.b16 %v4816
        %v4851 = vunpack.c.h.b16 %v4816
        %v4852 = vunpack.c.l.b16 %v4817
        %v4853 = vunpack.c.l.b16 %v4818
        %v4854 = vunpack.c.h.b16 %v4818
        %v4855 = vunpack.c.l.b16 %v4819
        %v4856 = vunpack.c.h.b16 %v4819
        %v4857 = vunpack.c.l.b16 %v4820
        %v4858 = vunpack.c.l.b16 %v4821
        %v4859 = vunpack.c.h.b16 %v4821
        %v4860 = vunpack.c.l.b16 %v4822
        %v4861 = vunpack.c.h.b16 %v4822
        %v4862 = vunpack.c.l.b16 %v4823
        %v4863 = vpack.c.b16 %v4848, %v4843
        %v4864 = vpack.c.b16 %v4849, %v4844
        %v4865 = vpack.c.b16 %v4850, %v4845
        %v4866 = vpack.c.b16 %v4851, %v4846
        %v4867 = vpack.c.b16 %v4852, %v4847
        %v4868 = vpack.c.b16 %v4858, %v4853
        %v4869 = vpack.c.b16 %v4859, %v4854
        %v4870 = vpack.c.b16 %v4860, %v4855
        %v4871 = vpack.c.b16 %v4861, %v4856
        %v4872 = vpack.c.b16 %v4862, %v4857
        %4873 = vrot.lane.b32.xlu0 %v4863, 112
        %v4874 = vpop.permute.xlu0 %4873
        %4875 = vrot.lane.b32.xlu0 %v4864, 112
        %v4876 = vpop.permute.xlu0 %4875
        %4877 = vrot.lane.b32.xlu0 %v4865, 112
        %v4878 = vpop.permute.xlu0 %4877
        %4879 = vrot.lane.b32.xlu0 %v4866, 112
        %v4880 = vpop.permute.xlu0 %4879
        %4881 = vrot.lane.b32.xlu0 %v4867, 112
        %v4882 = vpop.permute.xlu0 %4881
        %4883 = vrot.lane.b32.xlu0 %v4868, 112
        %v4884 = vpop.permute.xlu0 %4883
        %4885 = vrot.lane.b32.xlu0 %v4869, 112
        %v4886 = vpop.permute.xlu0 %4885
        %4887 = vrot.lane.b32.xlu0 %v4870, 112
        %v4888 = vpop.permute.xlu0 %4887
        %4889 = vrot.lane.b32.xlu0 %v4871, 112
        %v4890 = vpop.permute.xlu0 %4889
        %4891 = vrot.lane.b32.xlu0 %v4872, 112
        %v4892 = vpop.permute.xlu0 %4891
        %v4893 = vsel %vm3210, %v4874, %v4876
        %v4894 = vsel %vm3210, %v4876, %v4878
        %v4895 = vsel %vm3210, %v4878, %v4880
        %v4896 = vsel %vm3210, %v4880, %v4882
        %v4897 = vsel %vm3210, %v4884, %v4886
        %v4898 = vsel %vm3210, %v4886, %v4888
        %v4899 = vsel %vm3210, %v4888, %v4890
        %v4900 = vsel %vm3210, %v4890, %v4892
        %v4910 = vsel %vm3315, %v4830, 0
        %4912 = vmatprep.subr.bf16.mxu0 0
        %4913 = vmatpush1.bf16.msra.mxu0 0
        %4914 = vmatprep.subr.bf16.mxu0 0
        %4915 = vmatpush1.bf16.msra.mxu0 0
        %4916 = vmatprep.subr.bf16.mxu0 0
        %4917 = vmatpush1.bf16.msra.mxu0 0
        %4918 = vmatprep.subr.bf16.mxu0 0
        %4919 = vmatpush1.bf16.msra.mxu0 0
        %4920 = vmatprep.subr.bf16.mxu0 0
        %4921 = vmatpush1.bf16.msra.mxu0 0
        %4922 = vmatprep.subr.bf16.mxu0 0
        %4923 = vmatpush1.bf16.msra.mxu0 0
        %4924 = vmatprep.subr.bf16.mxu0 %v4898
        %4925 = vmatpush1.bf16.msra.mxu0 %v4897
        %4926 = vmatprep.subr.bf16.mxu0 %v4894
        %4927 = vmatpush1.bf16.msra.mxu0 %v4893
        %4928 = vmatprep.subr.bf16.mxu0 0
        %4929 = vmatpush2.bf16.msra.mxu0 0
        %4930 = vmatprep.subr.bf16.mxu0 0
        %4931 = vmatpush2.bf16.msra.mxu0 0
        %4932 = vmatprep.subr.bf16.mxu0 0
        %4933 = vmatpush2.bf16.msra.mxu0 0
        %4934 = vmatprep.subr.bf16.mxu0 0
        %4935 = vmatpush2.bf16.msra.mxu0 0
        %4936 = vmatprep.subr.bf16.mxu0 0
        %4937 = vmatpush2.bf16.msra.mxu0 0
        %4938 = vmatprep.subr.bf16.mxu0 0
        %4939 = vmatpush2.bf16.msra.mxu0 0
        %4940 = vmatprep.subr.bf16.mxu0 0
        %4941 = vmatpush2.bf16.msra.mxu0 0
        %4942 = vmatprep.subr.bf16.mxu0 0
        %4943 = vmatpush2.bf16.msra.mxu0 0
        %4944 = vmatprep.mubr.bf16.mxu0 0
        %4945 = vmatmul.mubr.bf16.gmra.mxu0 %v4910
        %v4946 = vpop.f32.mrf.mxu0
        %v4947 = vadd.f32 0.0, %v4946
        %v4948 = vpop.f32.mrf.mxu0
        %v4949 = vadd.f32 0.0, %v4948
        %v4950 = vpop.f32.mrf.mxu0
        %v4951 = vadd.f32 0.0, %v4950
        %v4952 = vpop.f32.mrf.mxu0
        %v4953 = vadd.f32 0.0, %v4952
        %4954 = vdwg.mxu0
        %4955 = vmatprep.subr.bf16.mxu0 0
        %4956 = vmatpush1.bf16.msra.mxu0 0
        %4957 = vmatprep.subr.bf16.mxu0 0
        %4958 = vmatpush1.bf16.msra.mxu0 0
        %4959 = vmatprep.subr.bf16.mxu0 0
        %4960 = vmatpush1.bf16.msra.mxu0 0
        %4961 = vmatprep.subr.bf16.mxu0 0
        %4962 = vmatpush1.bf16.msra.mxu0 0
        %4963 = vmatprep.subr.bf16.mxu0 0
        %4964 = vmatpush1.bf16.msra.mxu0 0
        %4965 = vmatprep.subr.bf16.mxu0 0
        %4966 = vmatpush1.bf16.msra.mxu0 0
        %4967 = vmatprep.subr.bf16.mxu0 %v4900
        %4968 = vmatpush1.bf16.msra.mxu0 %v4899
        %4969 = vmatprep.subr.bf16.mxu0 %v4896
        %4970 = vmatpush1.bf16.msra.mxu0 %v4895
        %4971 = vmatprep.subr.bf16.mxu0 0
        %4972 = vmatpush2.bf16.msra.mxu0 0
        %4973 = vmatprep.subr.bf16.mxu0 0
        %4974 = vmatpush2.bf16.msra.mxu0 0
        %4975 = vmatprep.subr.bf16.mxu0 0
        %4976 = vmatpush2.bf16.msra.mxu0 0
        %4977 = vmatprep.subr.bf16.mxu0 0
        %4978 = vmatpush2.bf16.msra.mxu0 0
        %4979 = vmatprep.subr.bf16.mxu0 0
        %4980 = vmatpush2.bf16.msra.mxu0 0
        %4981 = vmatprep.subr.bf16.mxu0 0
        %4982 = vmatpush2.bf16.msra.mxu0 0
        %4983 = vmatprep.subr.bf16.mxu0 0
        %4984 = vmatpush2.bf16.msra.mxu0 0
        %4985 = vmatprep.subr.bf16.mxu0 0
        %4986 = vmatpush2.bf16.msra.mxu0 0
        %4987 = vmatprep.mubr.bf16.mxu0 0
        %4988 = vmatmul.mubr.bf16.gmra.mxu0 %v4910
        %v4989 = vpop.f32.mrf.mxu0
        %v4990 = vadd.f32 0.0, %v4989
        %v4991 = vpop.f32.mrf.mxu0
        %v4992 = vadd.f32 0.0, %v4991
        %v4993 = vpop.f32.mrf.mxu0
        %v4994 = vadd.f32 0.0, %v4993
        %v4995 = vpop.f32.mrf.mxu0
        %v4996 = vadd.f32 0.0, %v4995
        %4997 = vdwg.mxu0
        %v4998 = vadd.f32 %v4754, %v4947
        %v4999 = vadd.f32 %v4755, %v4949
        %v5000 = vadd.f32 %v4756, %v4990
        %v5001 = vadd.f32 %v4757, %v4992
        %v5002 = vadd.f32 %v4758, %v4951
        %v5003 = vadd.f32 %v4759, %v4953
        %v5004 = vadd.f32 %v4760, %v4994
        %v5005 = vadd.f32 %v4761, %v4996
        %v5006 = vld [vmem:[%s1 + $0x10] sm:$0x11]
        %v5007 = vld [vmem:[%s1 + $0x18] sm:$0x11]
        %v5010 = vunpack.c.l.b16 %v5006
        %v5011 = vunpack.c.h.b16 %v5006
        %v5012 = vunpack.c.l.b16 %v5007
        %v5013 = vunpack.c.h.b16 %v5007
        %v5014 = vpack.c.b16 %v5010, %v5010
        %v5015 = vpack.c.b16 %v5011, %v5011
        %v5016 = vpack.c.b16 %v5012, %v5012
        %v5017 = vpack.c.b16 %v5013, %v5013
        %v5019 = vpack.i.b16 %v5014, %v5014
        %v5021 = vlaneseq
        %v5022 = vshrl.u32 %v5021, 7
        %v5023 = vsub.s32 0, %v5022
        %v5024 = vrot.slane %v5019, %v5023
        %v5026 = vpack.i.b16 %v5015, %v5015
        %v5028 = vlaneseq
        %v5029 = vshrl.u32 %v5028, 7
        %v5030 = vsub.s32 0, %v5029
        %v5031 = vrot.slane %v5026, %v5030
        %v5033 = vpack.i.b16 %v5016, %v5016
        %v5035 = vlaneseq
        %v5036 = vshrl.u32 %v5035, 7
        %v5037 = vsub.s32 0, %v5036
        %v5038 = vrot.slane %v5033, %v5037
        %v5040 = vpack.i.b16 %v5017, %v5017
        %v5042 = vlaneseq
        %v5043 = vshrl.u32 %v5042, 7
        %v5044 = vsub.s32 0, %v5043
        %v5045 = vrot.slane %v5040, %v5044
        %v5050 = vunpack.c.l.b16 %v5024
        %v5051 = vunpack.c.l.b16 %v5031
        %v5052 = vunpack.c.l.b16 %v5038
        %v5053 = vunpack.c.l.b16 %v5045
        %v5054 = vpack.c.b16 %v5051, %v5050
        %v5055 = vpack.c.b16 %v5053, %v5052
        %5056 = vrot.lane.b32.xlu0 %v5054, 17
        %v5057 = vpop.permute.xlu0 %5056
        %5058 = vrot.lane.b32.xlu0 %v5055, 17
        %v5059 = vpop.permute.xlu0 %5058
        %v5060 = vrot.slane %v5057, 4
        %v5061 = vrot.slane %v5059, 4
        %v5062 = vsel %vm3472, %v5060, %v5057
        %v5063 = vsel %vm3146, %v5060, %v5061
        %v5064 = vsel %vm3472, %v5063, %v5059
        %v5068 = vmul.bf16 %v4234, %v5062
        %v5069 = vmul.bf16 %v4235, %v5064
        %v5070 = vmul.bf16 %v4236, %v5061
        %v5071 = vmul.bf16 %v4237, %v5062
        %v5072 = vmul.bf16 %v4238, %v5064
        %v5073 = vmul.bf16 %v4239, %v5061
        %v5074 = vmul.bf16 %v4240, %v5062
        %v5075 = vmul.bf16 %v4241, %v5064
        %v5076 = vmul.bf16 %v4242, %v5061
        %v5077 = vmul.bf16 %v4243, %v5062
        %v5078 = vmul.bf16 %v4244, %v5064
        %v5079 = vmul.bf16 %v4245, %v5061
        %v5080 = vld [vmem:[%s249 + $0x40] sm:$0xf]
        %v5081 = vld [vmem:[%s249 + $0x44] sm:$0xf]
        %v5084 = vunpack.c.l.b16 %v5080
        %v5085 = vunpack.c.l.b16 %v5081
        %v5086 = vpack.c.b16 %v5085, %v5084
        %v5099 = vunpack.c.l.b16 %v5068
        %v5100 = vunpack.c.h.b16 %v5068
        %v5101 = vunpack.c.l.b16 %v5069
        %v5102 = vunpack.c.h.b16 %v5069
        %v5103 = vunpack.c.l.b16 %v5070
        %v5104 = vunpack.c.l.b16 %v5071
        %v5105 = vunpack.c.h.b16 %v5071
        %v5106 = vunpack.c.l.b16 %v5072
        %v5107 = vunpack.c.h.b16 %v5072
        %v5108 = vunpack.c.l.b16 %v5073
        %v5109 = vunpack.c.l.b16 %v5074
        %v5110 = vunpack.c.h.b16 %v5074
        %v5111 = vunpack.c.l.b16 %v5075
        %v5112 = vunpack.c.h.b16 %v5075
        %v5113 = vunpack.c.l.b16 %v5076
        %v5114 = vunpack.c.l.b16 %v5077
        %v5115 = vunpack.c.h.b16 %v5077
        %v5116 = vunpack.c.l.b16 %v5078
        %v5117 = vunpack.c.h.b16 %v5078
        %v5118 = vunpack.c.l.b16 %v5079
        %v5119 = vpack.c.b16 %v5104, %v5099
        %v5120 = vpack.c.b16 %v5105, %v5100
        %v5121 = vpack.c.b16 %v5106, %v5101
        %v5122 = vpack.c.b16 %v5107, %v5102
        %v5123 = vpack.c.b16 %v5108, %v5103
        %v5124 = vpack.c.b16 %v5114, %v5109
        %v5125 = vpack.c.b16 %v5115, %v5110
        %v5126 = vpack.c.b16 %v5116, %v5111
        %v5127 = vpack.c.b16 %v5117, %v5112
        %v5128 = vpack.c.b16 %v5118, %v5113
        %5129 = vrot.lane.b32.xlu0 %v5119, 111
        %v5130 = vpop.permute.xlu0 %5129
        %5131 = vrot.lane.b32.xlu0 %v5120, 111
        %v5132 = vpop.permute.xlu0 %5131
        %5133 = vrot.lane.b32.xlu0 %v5121, 111
        %v5134 = vpop.permute.xlu0 %5133
        %5135 = vrot.lane.b32.xlu0 %v5122, 111
        %v5136 = vpop.permute.xlu0 %5135
        %5137 = vrot.lane.b32.xlu0 %v5123, 111
        %v5138 = vpop.permute.xlu0 %5137
        %5139 = vrot.lane.b32.xlu0 %v5124, 111
        %v5140 = vpop.permute.xlu0 %5139
        %5141 = vrot.lane.b32.xlu0 %v5125, 111
        %v5142 = vpop.permute.xlu0 %5141
        %5143 = vrot.lane.b32.xlu0 %v5126, 111
        %v5144 = vpop.permute.xlu0 %5143
        %5145 = vrot.lane.b32.xlu0 %v5127, 111
        %v5146 = vpop.permute.xlu0 %5145
        %5147 = vrot.lane.b32.xlu0 %v5128, 111
        %v5148 = vpop.permute.xlu0 %5147
        %v5149 = vsel %vm3144, %v5130, %v5132
        %v5150 = vsel %vm3144, %v5132, %v5134
        %v5151 = vsel %vm3144, %v5134, %v5136
        %v5152 = vsel %vm3144, %v5136, %v5138
        %v5153 = vsel %vm3144, %v5140, %v5142
        %v5154 = vsel %vm3144, %v5142, %v5144
        %v5155 = vsel %vm3144, %v5144, %v5146
        %v5156 = vsel %vm3144, %v5146, %v5148
        %v5166 = vsel %vm3315, %v5086, 0
        %5168 = vmatprep.subr.bf16.mxu0 0
        %5169 = vmatpush1.bf16.msra.mxu0 0
        %5170 = vmatprep.subr.bf16.mxu0 0
        %5171 = vmatpush1.bf16.msra.mxu0 0
        %5172 = vmatprep.subr.bf16.mxu0 0
        %5173 = vmatpush1.bf16.msra.mxu0 0
        %5174 = vmatprep.subr.bf16.mxu0 0
        %5175 = vmatpush1.bf16.msra.mxu0 0
        %5176 = vmatprep.subr.bf16.mxu0 0
        %5177 = vmatpush1.bf16.msra.mxu0 0
        %5178 = vmatprep.subr.bf16.mxu0 0
        %5179 = vmatpush1.bf16.msra.mxu0 0
        %5180 = vmatprep.subr.bf16.mxu0 %v5154
        %5181 = vmatpush1.bf16.msra.mxu0 %v5153
        %5182 = vmatprep.subr.bf16.mxu0 %v5150
        %5183 = vmatpush1.bf16.msra.mxu0 %v5149
        %5184 = vmatprep.subr.bf16.mxu0 0
        %5185 = vmatpush2.bf16.msra.mxu0 0
        %5186 = vmatprep.subr.bf16.mxu0 0
        %5187 = vmatpush2.bf16.msra.mxu0 0
        %5188 = vmatprep.subr.bf16.mxu0 0
        %5189 = vmatpush2.bf16.msra.mxu0 0
        %5190 = vmatprep.subr.bf16.mxu0 0
        %5191 = vmatpush2.bf16.msra.mxu0 0
        %5192 = vmatprep.subr.bf16.mxu0 0
        %5193 = vmatpush2.bf16.msra.mxu0 0
        %5194 = vmatprep.subr.bf16.mxu0 0
        %5195 = vmatpush2.bf16.msra.mxu0 0
        %5196 = vmatprep.subr.bf16.mxu0 0
        %5197 = vmatpush2.bf16.msra.mxu0 0
        %5198 = vmatprep.subr.bf16.mxu0 0
        %5199 = vmatpush2.bf16.msra.mxu0 0
        %5200 = vmatprep.mubr.bf16.mxu0 0
        %5201 = vmatmul.mubr.bf16.gmra.mxu0 %v5166
        %v5202 = vpop.f32.mrf.mxu0
        %v5203 = vadd.f32 0.0, %v5202
        %v5204 = vpop.f32.mrf.mxu0
        %v5205 = vadd.f32 0.0, %v5204
        %v5206 = vpop.f32.mrf.mxu0
        %v5207 = vadd.f32 0.0, %v5206
        %v5208 = vpop.f32.mrf.mxu0
        %v5209 = vadd.f32 0.0, %v5208
        %5210 = vdwg.mxu0
        %5211 = vmatprep.subr.bf16.mxu0 0
        %5212 = vmatpush1.bf16.msra.mxu0 0
        %5213 = vmatprep.subr.bf16.mxu0 0
        %5214 = vmatpush1.bf16.msra.mxu0 0
        %5215 = vmatprep.subr.bf16.mxu0 0
        %5216 = vmatpush1.bf16.msra.mxu0 0
        %5217 = vmatprep.subr.bf16.mxu0 0
        %5218 = vmatpush1.bf16.msra.mxu0 0
        %5219 = vmatprep.subr.bf16.mxu0 0
        %5220 = vmatpush1.bf16.msra.mxu0 0
        %5221 = vmatprep.subr.bf16.mxu0 0
        %5222 = vmatpush1.bf16.msra.mxu0 0
        %5223 = vmatprep.subr.bf16.mxu0 %v5156
        %5224 = vmatpush1.bf16.msra.mxu0 %v5155
        %5225 = vmatprep.subr.bf16.mxu0 %v5152
        %5226 = vmatpush1.bf16.msra.mxu0 %v5151
        %5227 = vmatprep.subr.bf16.mxu0 0
        %5228 = vmatpush2.bf16.msra.mxu0 0
        %5229 = vmatprep.subr.bf16.mxu0 0
        %5230 = vmatpush2.bf16.msra.mxu0 0
        %5231 = vmatprep.subr.bf16.mxu0 0
        %5232 = vmatpush2.bf16.msra.mxu0 0
        %5233 = vmatprep.subr.bf16.mxu0 0
        %5234 = vmatpush2.bf16.msra.mxu0 0
        %5235 = vmatprep.subr.bf16.mxu0 0
        %5236 = vmatpush2.bf16.msra.mxu0 0
        %5237 = vmatprep.subr.bf16.mxu0 0
        %5238 = vmatpush2.bf16.msra.mxu0 0
        %5239 = vmatprep.subr.bf16.mxu0 0
        %5240 = vmatpush2.bf16.msra.mxu0 0
        %5241 = vmatprep.subr.bf16.mxu0 0
        %5242 = vmatpush2.bf16.msra.mxu0 0
        %5243 = vmatprep.mubr.bf16.mxu0 0
        %5244 = vmatmul.mubr.bf16.gmra.mxu0 %v5166
        %v5245 = vpop.f32.mrf.mxu0
        %v5246 = vadd.f32 0.0, %v5245
        %v5247 = vpop.f32.mrf.mxu0
        %v5248 = vadd.f32 0.0, %v5247
        %v5249 = vpop.f32.mrf.mxu0
        %v5250 = vadd.f32 0.0, %v5249
        %v5251 = vpop.f32.mrf.mxu0
        %v5252 = vadd.f32 0.0, %v5251
        %5253 = vdwg.mxu0
        %v5254 = vadd.f32 %v4998, %v5203
        %v5255 = vadd.f32 %v4999, %v5205
        %v5256 = vadd.f32 %v5000, %v5246
        %v5257 = vadd.f32 %v5001, %v5248
        %v5258 = vadd.f32 %v5002, %v5207
        %v5259 = vadd.f32 %v5003, %v5209
        %v5260 = vadd.f32 %v5004, %v5250
        %v5261 = vadd.f32 %v5005, %v5252
        %5262 = vst [vmem:[%s5 + $0x40] sm:$0xff] %v5254
        %5263 = vst [vmem:[%s5 + $0x48] sm:$0xff] %v5255
        %5264 = vst [vmem:[%s5 + $0x50] sm:$0xff] %v5258
        %5265 = vst [vmem:[%s5 + $0x58] sm:$0xff] %v5259
        %5266 = vst [vmem:[%s2519 + $0x40] sm:$0xff] %v5256
        %5267 = vst [vmem:[%s2519 + $0x48] sm:$0xff] %v5257
        %5268 = vst [vmem:[%s2519 + $0x50] sm:$0xff] %v5260
        %5269 = vst [vmem:[%s2519 + $0x58] sm:$0xff] %v5261
      $region48: #{dense_block_forward.1} parent=39 // pred_fallthru
        _
      %p5270 = scmp.eq.s32.totalorder %s16, 2
      // Predicated region
      $region49: #{dense_block_forward.1} parent=39 // pred_check
        %p5271 = pneg %p5270
      $region50: #{dense_block_forward.1} parent=39 // pred_check_branch
        %5273 = sbr.rel (%p5271) target = $region52
      $region51: #{dense_block_forward.1} parent=39 // pred_region
        %v5274 = vld [vmem:[%s5] sm:$0xff]
        %v5275 = vld [vmem:[%s5 + $0x8] sm:$0xff]
        %v5276 = vld [vmem:[%s5 + $0x10] sm:$0xff]
        %v5277 = vld [vmem:[%s5 + $0x18] sm:$0xff]
        %v5278 = vld [vmem:[%s5 + $0x20] sm:$0xff]
        %v5279 = vld [vmem:[%s5 + $0x28] sm:$0xff]
        %v5280 = vld [vmem:[%s5 + $0x30] sm:$0xff]
        %v5281 = vld [vmem:[%s5 + $0x38] sm:$0xff]
        %v5282 = vld [vmem:[%s5 + $0x40] sm:$0xff]
        %v5283 = vld [vmem:[%s5 + $0x48] sm:$0xff]
        %v5284 = vld [vmem:[%s5 + $0x50] sm:$0xff]
        %v5285 = vld [vmem:[%s5 + $0x58] sm:$0xff]
        %v5286 = vmul.f32 %v5274, %v5274
        %v5287 = vmul.f32 %v5275, %v5275
        %v5288 = vmul.f32 %v5276, %v5276
        %v5289 = vmul.f32 %v5277, %v5277
        %v5290 = vmul.f32 %v5278, %v5278
        %v5291 = vmul.f32 %v5279, %v5279
        %v5292 = vmul.f32 %v5280, %v5280
        %v5293 = vmul.f32 %v5281, %v5281
        %v5294 = vmul.f32 %v5282, %v5282
        %v5295 = vmul.f32 %v5283, %v5283
        %v5296 = vmul.f32 %v5284, %v5284
        %v5297 = vmul.f32 %v5285, %v5285
        %s5298 = scalar_lea.vmem %s5, 128
        %v5299 = vld [vmem:[%s5298] sm:$0xff]
        %v5300 = vld [vmem:[%s5298 + $0x8] sm:$0xff]
        %v5301 = vld [vmem:[%s5298 + $0x10] sm:$0xff]
        %v5302 = vld [vmem:[%s5298 + $0x18] sm:$0xff]
        %v5303 = vld [vmem:[%s5298 + $0x20] sm:$0xff]
        %v5304 = vld [vmem:[%s5298 + $0x28] sm:$0xff]
        %v5305 = vld [vmem:[%s5298 + $0x30] sm:$0xff]
        %v5306 = vld [vmem:[%s5298 + $0x38] sm:$0xff]
        %v5307 = vld [vmem:[%s5298 + $0x40] sm:$0xff]
        %v5308 = vld [vmem:[%s5298 + $0x48] sm:$0xff]
        %v5309 = vld [vmem:[%s5298 + $0x50] sm:$0xff]
        %v5310 = vld [vmem:[%s5298 + $0x58] sm:$0xff]
        %5311 = vmatprep.subr.mxu0 0.0
        %5312 = vmatpush1.msra.mxu0 1.0
        %5313 = vmatprep.subr.mxu0 0.0
        %5314 = vmatpush1.msra.mxu0 1.0
        %5315 = vmatprep.subr.mxu0 0.0
        %5316 = vmatpush1.msra.mxu0 1.0
        %5317 = vmatprep.subr.mxu0 0.0
        %5318 = vmatpush1.msra.mxu0 1.0
        %5319 = vmatprep.subr.mxu0 0.0
        %5320 = vmatpush1.msra.mxu0 1.0
        %5321 = vmatprep.subr.mxu0 0.0
        %5322 = vmatpush1.msra.mxu0 1.0
        %5323 = vmatprep.subr.mxu0 0.0
        %5324 = vmatpush1.msra.mxu0 1.0
        %5325 = vmatprep.subr.mxu0 0.0
        %5326 = vmatpush1.msra.mxu0 1.0
        %5327 = vmatprep.subr.mxu0 0.0
        %5328 = vmatpush1.msra.mxu0 1.0
        %5329 = vmatprep.subr.mxu0 0.0
        %5330 = vmatpush1.msra.mxu0 1.0
        %5331 = vmatprep.subr.mxu0 0.0
        %5332 = vmatpush1.msra.mxu0 1.0
        %5333 = vmatprep.subr.mxu0 0.0
        %5334 = vmatpush1.msra.mxu0 1.0
        %5335 = vmatprep.subr.mxu0 0.0
        %5336 = vmatpush1.msra.mxu0 1.0
        %5337 = vmatprep.subr.mxu0 0.0
        %5338 = vmatpush1.msra.mxu0 1.0
        %5339 = vmatprep.subr.mxu0 0.0
        %5340 = vmatpush1.msra.mxu0 1.0
        %5341 = vmatprep.subr.mxu0 0.0
        %5342 = vmatpush1.msra.mxu0 1.0
        %5343 = vmatprep.subr.mxu0 0.0
        %5344 = vmatpush2.msra.mxu0 1.0
        %5345 = vmatprep.subr.mxu0 0.0
        %5346 = vmatpush2.msra.mxu0 1.0
        %5347 = vmatprep.subr.mxu0 0.0
        %5348 = vmatpush2.msra.mxu0 1.0
        %5349 = vmatprep.subr.mxu0 0.0
        %5350 = vmatpush2.msra.mxu0 1.0
        %5351 = vmatprep.subr.mxu0 0.0
        %5352 = vmatpush2.msra.mxu0 1.0
        %5353 = vmatprep.subr.mxu0 0.0
        %5354 = vmatpush2.msra.mxu0 1.0
        %5355 = vmatprep.subr.mxu0 0.0
        %5356 = vmatpush2.msra.mxu0 1.0
        %5357 = vmatprep.subr.mxu0 0.0
        %5358 = vmatpush2.msra.mxu0 1.0
        %5359 = vmatprep.subr.mxu0 0.0
        %5360 = vmatpush2.msra.mxu0 1.0
        %5361 = vmatprep.subr.mxu0 0.0
        %5362 = vmatpush2.msra.mxu0 1.0
        %5363 = vmatprep.subr.mxu0 0.0
        %5364 = vmatpush2.msra.mxu0 1.0
        %5365 = vmatprep.subr.mxu0 0.0
        %5366 = vmatpush2.msra.mxu0 1.0
        %5367 = vmatprep.subr.mxu0 0.0
        %5368 = vmatpush2.msra.mxu0 1.0
        %5369 = vmatprep.subr.mxu0 0.0
        %5370 = vmatpush2.msra.mxu0 1.0
        %5371 = vmatprep.subr.mxu0 0.0
        %5372 = vmatpush2.msra.mxu0 1.0
        %5373 = vmatprep.subr.mxu0 0.0
        %5374 = vmatpush2.msra.mxu0 1.0
        %5375 = vmatprep.mubr.f32.mxu0 %v5300
        %5376 = vmatmul.mubr.f32.gmra.mxu0 %v5299
        %v5377 = vpop.f32.mrf.mxu0
        %v5378 = vadd.f32 0.0, %v5377
        %v5379 = vpop.f32.mrf.mxu0
        %5380 = vmatprep.mubr.f32.mxu0 %v5302
        %5381 = vmatmul.mubr.f32.gmra.mxu0 %v5301
        %v5382 = vpop.f32.mrf.mxu0
        %v5383 = vadd.f32 0.0, %v5382
        %v5384 = vpop.f32.mrf.mxu0
        %5385 = vmatprep.mubr.f32.mxu0 %v5304
        %5386 = vmatmul.mubr.f32.gmra.mxu0 %v5303
        %v5387 = vpop.f32.mrf.mxu0
        %v5388 = vadd.f32 0.0, %v5387
        %v5389 = vpop.f32.mrf.mxu0
        %5390 = vmatprep.mubr.f32.mxu0 %v5306
        %5391 = vmatmul.mubr.f32.gmra.mxu0 %v5305
        %v5392 = vpop.f32.mrf.mxu0
        %v5393 = vadd.f32 0.0, %v5392
        %v5394 = vpop.f32.mrf.mxu0
        %5395 = vmatprep.mubr.f32.mxu0 %v5308
        %5396 = vmatmul.mubr.f32.gmra.mxu0 %v5307
        %v5397 = vpop.f32.mrf.mxu0
        %v5398 = vadd.f32 0.0, %v5397
        %v5399 = vpop.f32.mrf.mxu0
        %5400 = vmatprep.mubr.f32.mxu0 %v5310
        %5401 = vmatmul.mubr.f32.gmra.mxu0 %v5309
        %v5402 = vpop.f32.mrf.mxu0
        %v5403 = vadd.f32 0.0, %v5402
        %v5404 = vpop.f32.mrf.mxu0
        %5405 = vdwg.mxu0
        %5406 = vmatprep.subr.mxu0 0.0
        %5407 = vmatpush1.msra.mxu0 1.0
        %5408 = vmatprep.subr.mxu0 0.0
        %5409 = vmatpush1.msra.mxu0 1.0
        %5410 = vmatprep.subr.mxu0 0.0
        %5411 = vmatpush1.msra.mxu0 1.0
        %5412 = vmatprep.subr.mxu0 0.0
        %5413 = vmatpush1.msra.mxu0 1.0
        %5414 = vmatprep.subr.mxu0 0.0
        %5415 = vmatpush1.msra.mxu0 1.0
        %5416 = vmatprep.subr.mxu0 0.0
        %5417 = vmatpush1.msra.mxu0 1.0
        %5418 = vmatprep.subr.mxu0 0.0
        %5419 = vmatpush1.msra.mxu0 1.0
        %5420 = vmatprep.subr.mxu0 0.0
        %5421 = vmatpush1.msra.mxu0 1.0
        %5422 = vmatprep.subr.mxu0 0.0
        %5423 = vmatpush1.msra.mxu0 1.0
        %5424 = vmatprep.subr.mxu0 0.0
        %5425 = vmatpush1.msra.mxu0 1.0
        %5426 = vmatprep.subr.mxu0 0.0
        %5427 = vmatpush1.msra.mxu0 1.0
        %5428 = vmatprep.subr.mxu0 0.0
        %5429 = vmatpush1.msra.mxu0 1.0
        %5430 = vmatprep.subr.mxu0 0.0
        %5431 = vmatpush1.msra.mxu0 1.0
        %5432 = vmatprep.subr.mxu0 0.0
        %5433 = vmatpush1.msra.mxu0 1.0
        %5434 = vmatprep.subr.mxu0 0.0
        %5435 = vmatpush1.msra.mxu0 1.0
        %5436 = vmatprep.subr.mxu0 0.0
        %5437 = vmatpush1.msra.mxu0 1.0
        %5438 = vmatprep.subr.mxu0 0.0
        %5439 = vmatpush2.msra.mxu0 1.0
        %5440 = vmatprep.subr.mxu0 0.0
        %5441 = vmatpush2.msra.mxu0 1.0
        %5442 = vmatprep.subr.mxu0 0.0
        %5443 = vmatpush2.msra.mxu0 1.0
        %5444 = vmatprep.subr.mxu0 0.0
        %5445 = vmatpush2.msra.mxu0 1.0
        %5446 = vmatprep.subr.mxu0 0.0
        %5447 = vmatpush2.msra.mxu0 1.0
        %5448 = vmatprep.subr.mxu0 0.0
        %5449 = vmatpush2.msra.mxu0 1.0
        %5450 = vmatprep.subr.mxu0 0.0
        %5451 = vmatpush2.msra.mxu0 1.0
        %5452 = vmatprep.subr.mxu0 0.0
        %5453 = vmatpush2.msra.mxu0 1.0
        %5454 = vmatprep.subr.mxu0 0.0
        %5455 = vmatpush2.msra.mxu0 1.0
        %5456 = vmatprep.subr.mxu0 0.0
        %5457 = vmatpush2.msra.mxu0 1.0
        %5458 = vmatprep.subr.mxu0 0.0
        %5459 = vmatpush2.msra.mxu0 1.0
        %5460 = vmatprep.subr.mxu0 0.0
        %5461 = vmatpush2.msra.mxu0 1.0
        %5462 = vmatprep.subr.mxu0 0.0
        %5463 = vmatpush2.msra.mxu0 1.0
        %5464 = vmatprep.subr.mxu0 0.0
        %5465 = vmatpush2.msra.mxu0 1.0
        %5466 = vmatprep.subr.mxu0 0.0
        %5467 = vmatpush2.msra.mxu0 1.0
        %5468 = vmatprep.subr.mxu0 0.0
        %5469 = vmatpush2.msra.mxu0 1.0
        %5470 = vmatprep.mubr.f32.mxu0 %v5275
        %5471 = vmatmul.mubr.f32.gmra.mxu0 %v5274
        %v5472 = vpop.f32.mrf.mxu0
        %v5473 = vadd.f32 %v5378, %v5472
        %v5474 = vpop.f32.mrf.mxu0
        %5475 = vmatprep.mubr.f32.mxu0 %v5277
        %5476 = vmatmul.mubr.f32.gmra.mxu0 %v5276
        %v5477 = vpop.f32.mrf.mxu0
        %v5478 = vadd.f32 %v5383, %v5477
        %v5479 = vpop.f32.mrf.mxu0
        %5480 = vmatprep.mubr.f32.mxu0 %v5279
        %5481 = vmatmul.mubr.f32.gmra.mxu0 %v5278
        %v5482 = vpop.f32.mrf.mxu0
        %v5483 = vadd.f32 %v5388, %v5482
        %v5484 = vpop.f32.mrf.mxu0
        %5485 = vmatprep.mubr.f32.mxu0 %v5281
        %5486 = vmatmul.mubr.f32.gmra.mxu0 %v5280
        %v5487 = vpop.f32.mrf.mxu0
        %v5488 = vadd.f32 %v5393, %v5487
        %v5489 = vpop.f32.mrf.mxu0
        %5490 = vmatprep.mubr.f32.mxu0 %v5283
        %5491 = vmatmul.mubr.f32.gmra.mxu0 %v5282
        %v5492 = vpop.f32.mrf.mxu0
        %v5493 = vadd.f32 %v5398, %v5492
        %v5494 = vpop.f32.mrf.mxu0
        %5495 = vmatprep.mubr.f32.mxu0 %v5285
        %5496 = vmatmul.mubr.f32.gmra.mxu0 %v5284
        %v5497 = vpop.f32.mrf.mxu0
        %v5498 = vadd.f32 %v5403, %v5497
        %v5499 = vpop.f32.mrf.mxu0
        %5500 = vdwg.mxu0
        %v5501 = vmul.f32 %v5299, %v5299
        %v5502 = vmul.f32 %v5300, %v5300
        %v5503 = vmul.f32 %v5301, %v5301
        %v5504 = vmul.f32 %v5302, %v5302
        %v5505 = vmul.f32 %v5303, %v5303
        %v5506 = vmul.f32 %v5304, %v5304
        %v5507 = vmul.f32 %v5305, %v5305
        %v5508 = vmul.f32 %v5306, %v5306
        %v5509 = vmul.f32 %v5307, %v5307
        %v5510 = vmul.f32 %v5308, %v5308
        %v5511 = vmul.f32 %v5309, %v5309
        %v5512 = vmul.f32 %v5310, %v5310
        %5513 = vmatprep.subr.mxu0 0.0
        %5514 = vmatpush1.msra.mxu0 1.0
        %5515 = vmatprep.subr.mxu0 0.0
        %5516 = vmatpush1.msra.mxu0 1.0
        %5517 = vmatprep.subr.mxu0 0.0
        %5518 = vmatpush1.msra.mxu0 1.0
        %5519 = vmatprep.subr.mxu0 0.0
        %5520 = vmatpush1.msra.mxu0 1.0
        %5521 = vmatprep.subr.mxu0 0.0
        %5522 = vmatpush1.msra.mxu0 1.0
        %5523 = vmatprep.subr.mxu0 0.0
        %5524 = vmatpush1.msra.mxu0 1.0
        %5525 = vmatprep.subr.mxu0 0.0
        %5526 = vmatpush1.msra.mxu0 1.0
        %5527 = vmatprep.subr.mxu0 0.0
        %5528 = vmatpush1.msra.mxu0 1.0
        %5529 = vmatprep.subr.mxu0 0.0
        %5530 = vmatpush1.msra.mxu0 1.0
        %5531 = vmatprep.subr.mxu0 0.0
        %5532 = vmatpush1.msra.mxu0 1.0
        %5533 = vmatprep.subr.mxu0 0.0
        %5534 = vmatpush1.msra.mxu0 1.0
        %5535 = vmatprep.subr.mxu0 0.0
        %5536 = vmatpush1.msra.mxu0 1.0
        %5537 = vmatprep.subr.mxu0 0.0
        %5538 = vmatpush1.msra.mxu0 1.0
        %5539 = vmatprep.subr.mxu0 0.0
        %5540 = vmatpush1.msra.mxu0 1.0
        %5541 = vmatprep.subr.mxu0 0.0
        %5542 = vmatpush1.msra.mxu0 1.0
        %5543 = vmatprep.subr.mxu0 0.0
        %5544 = vmatpush1.msra.mxu0 1.0
        %5545 = vmatprep.subr.mxu0 0.0
        %5546 = vmatpush2.msra.mxu0 1.0
        %5547 = vmatprep.subr.mxu0 0.0
        %5548 = vmatpush2.msra.mxu0 1.0
        %5549 = vmatprep.subr.mxu0 0.0
        %5550 = vmatpush2.msra.mxu0 1.0
        %5551 = vmatprep.subr.mxu0 0.0
        %5552 = vmatpush2.msra.mxu0 1.0
        %5553 = vmatprep.subr.mxu0 0.0
        %5554 = vmatpush2.msra.mxu0 1.0
        %5555 = vmatprep.subr.mxu0 0.0
        %5556 = vmatpush2.msra.mxu0 1.0
        %5557 = vmatprep.subr.mxu0 0.0
        %5558 = vmatpush2.msra.mxu0 1.0
        %5559 = vmatprep.subr.mxu0 0.0
        %5560 = vmatpush2.msra.mxu0 1.0
        %5561 = vmatprep.subr.mxu0 0.0
        %5562 = vmatpush2.msra.mxu0 1.0
        %5563 = vmatprep.subr.mxu0 0.0
        %5564 = vmatpush2.msra.mxu0 1.0
        %5565 = vmatprep.subr.mxu0 0.0
        %5566 = vmatpush2.msra.mxu0 1.0
        %5567 = vmatprep.subr.mxu0 0.0
        %5568 = vmatpush2.msra.mxu0 1.0
        %5569 = vmatprep.subr.mxu0 0.0
        %5570 = vmatpush2.msra.mxu0 1.0
        %5571 = vmatprep.subr.mxu0 0.0
        %5572 = vmatpush2.msra.mxu0 1.0
        %5573 = vmatprep.subr.mxu0 0.0
        %5574 = vmatpush2.msra.mxu0 1.0
        %5575 = vmatprep.subr.mxu0 0.0
        %5576 = vmatpush2.msra.mxu0 1.0
        %5577 = vmatprep.mubr.f32.mxu0 %v5502
        %5578 = vmatmul.mubr.f32.gmra.mxu0 %v5501
        %v5579 = vpop.f32.mrf.mxu0
        %v5580 = vadd.f32 0.0, %v5579
        %v5581 = vpop.f32.mrf.mxu0
        %5582 = vmatprep.mubr.f32.mxu0 %v5504
        %5583 = vmatmul.mubr.f32.gmra.mxu0 %v5503
        %v5584 = vpop.f32.mrf.mxu0
        %v5585 = vadd.f32 0.0, %v5584
        %v5586 = vpop.f32.mrf.mxu0
        %5587 = vmatprep.mubr.f32.mxu0 %v5506
        %5588 = vmatmul.mubr.f32.gmra.mxu0 %v5505
        %v5589 = vpop.f32.mrf.mxu0
        %v5590 = vadd.f32 0.0, %v5589
        %v5591 = vpop.f32.mrf.mxu0
        %5592 = vmatprep.mubr.f32.mxu0 %v5508
        %5593 = vmatmul.mubr.f32.gmra.mxu0 %v5507
        %v5594 = vpop.f32.mrf.mxu0
        %v5595 = vadd.f32 0.0, %v5594
        %v5596 = vpop.f32.mrf.mxu0
        %5597 = vmatprep.mubr.f32.mxu0 %v5510
        %5598 = vmatmul.mubr.f32.gmra.mxu0 %v5509
        %v5599 = vpop.f32.mrf.mxu0
        %v5600 = vadd.f32 0.0, %v5599
        %v5601 = vpop.f32.mrf.mxu0
        %5602 = vmatprep.mubr.f32.mxu0 %v5512
        %5603 = vmatmul.mubr.f32.gmra.mxu0 %v5511
        %v5604 = vpop.f32.mrf.mxu0
        %v5605 = vadd.f32 0.0, %v5604
        %v5606 = vpop.f32.mrf.mxu0
        %5607 = vdwg.mxu0
        %5608 = vmatprep.subr.mxu0 0.0
        %5609 = vmatpush1.msra.mxu0 1.0
        %5610 = vmatprep.subr.mxu0 0.0
        %5611 = vmatpush1.msra.mxu0 1.0
        %5612 = vmatprep.subr.mxu0 0.0
        %5613 = vmatpush1.msra.mxu0 1.0
        %5614 = vmatprep.subr.mxu0 0.0
        %5615 = vmatpush1.msra.mxu0 1.0
        %5616 = vmatprep.subr.mxu0 0.0
        %5617 = vmatpush1.msra.mxu0 1.0
        %5618 = vmatprep.subr.mxu0 0.0
        %5619 = vmatpush1.msra.mxu0 1.0
        %5620 = vmatprep.subr.mxu0 0.0
        %5621 = vmatpush1.msra.mxu0 1.0
        %5622 = vmatprep.subr.mxu0 0.0
        %5623 = vmatpush1.msra.mxu0 1.0
        %5624 = vmatprep.subr.mxu0 0.0
        %5625 = vmatpush1.msra.mxu0 1.0
        %5626 = vmatprep.subr.mxu0 0.0
        %5627 = vmatpush1.msra.mxu0 1.0
        %5628 = vmatprep.subr.mxu0 0.0
        %5629 = vmatpush1.msra.mxu0 1.0
        %5630 = vmatprep.subr.mxu0 0.0
        %5631 = vmatpush1.msra.mxu0 1.0
        %5632 = vmatprep.subr.mxu0 0.0
        %5633 = vmatpush1.msra.mxu0 1.0
        %5634 = vmatprep.subr.mxu0 0.0
        %5635 = vmatpush1.msra.mxu0 1.0
        %5636 = vmatprep.subr.mxu0 0.0
        %5637 = vmatpush1.msra.mxu0 1.0
        %5638 = vmatprep.subr.mxu0 0.0
        %5639 = vmatpush1.msra.mxu0 1.0
        %5640 = vmatprep.subr.mxu0 0.0
        %5641 = vmatpush2.msra.mxu0 1.0
        %5642 = vmatprep.subr.mxu0 0.0
        %5643 = vmatpush2.msra.mxu0 1.0
        %5644 = vmatprep.subr.mxu0 0.0
        %5645 = vmatpush2.msra.mxu0 1.0
        %5646 = vmatprep.subr.mxu0 0.0
        %5647 = vmatpush2.msra.mxu0 1.0
        %5648 = vmatprep.subr.mxu0 0.0
        %5649 = vmatpush2.msra.mxu0 1.0
        %5650 = vmatprep.subr.mxu0 0.0
        %5651 = vmatpush2.msra.mxu0 1.0
        %5652 = vmatprep.subr.mxu0 0.0
        %5653 = vmatpush2.msra.mxu0 1.0
        %5654 = vmatprep.subr.mxu0 0.0
        %5655 = vmatpush2.msra.mxu0 1.0
        %5656 = vmatprep.subr.mxu0 0.0
        %5657 = vmatpush2.msra.mxu0 1.0
        %5658 = vmatprep.subr.mxu0 0.0
        %5659 = vmatpush2.msra.mxu0 1.0
        %5660 = vmatprep.subr.mxu0 0.0
        %5661 = vmatpush2.msra.mxu0 1.0
        %5662 = vmatprep.subr.mxu0 0.0
        %5663 = vmatpush2.msra.mxu0 1.0
        %5664 = vmatprep.subr.mxu0 0.0
        %5665 = vmatpush2.msra.mxu0 1.0
        %5666 = vmatprep.subr.mxu0 0.0
        %5667 = vmatpush2.msra.mxu0 1.0
        %5668 = vmatprep.subr.mxu0 0.0
        %5669 = vmatpush2.msra.mxu0 1.0
        %5670 = vmatprep.subr.mxu0 0.0
        %5671 = vmatpush2.msra.mxu0 1.0
        %5672 = vmatprep.mubr.f32.mxu0 %v5287
        %5673 = vmatmul.mubr.f32.gmra.mxu0 %v5286
        %v5674 = vpop.f32.mrf.mxu0
        %v5675 = vadd.f32 %v5580, %v5674
        %v5676 = vpop.f32.mrf.mxu0
        %5677 = vmatprep.mubr.f32.mxu0 %v5289
        %5678 = vmatmul.mubr.f32.gmra.mxu0 %v5288
        %v5679 = vpop.f32.mrf.mxu0
        %v5680 = vadd.f32 %v5585, %v5679
        %v5681 = vpop.f32.mrf.mxu0
        %5682 = vmatprep.mubr.f32.mxu0 %v5291
        %5683 = vmatmul.mubr.f32.gmra.mxu0 %v5290
        %v5684 = vpop.f32.mrf.mxu0
        %v5685 = vadd.f32 %v5590, %v5684
        %v5686 = vpop.f32.mrf.mxu0
        %5687 = vmatprep.mubr.f32.mxu0 %v5293
        %5688 = vmatmul.mubr.f32.gmra.mxu0 %v5292
        %v5689 = vpop.f32.mrf.mxu0
        %v5690 = vadd.f32 %v5595, %v5689
        %v5691 = vpop.f32.mrf.mxu0
        %5692 = vmatprep.mubr.f32.mxu0 %v5295
        %5693 = vmatmul.mubr.f32.gmra.mxu0 %v5294
        %v5694 = vpop.f32.mrf.mxu0
        %v5695 = vadd.f32 %v5600, %v5694
        %v5696 = vpop.f32.mrf.mxu0
        %5697 = vmatprep.mubr.f32.mxu0 %v5297
        %5698 = vmatmul.mubr.f32.gmra.mxu0 %v5296
        %v5699 = vpop.f32.mrf.mxu0
        %v5700 = vadd.f32 %v5605, %v5699
        %v5701 = vpop.f32.mrf.mxu0
        %5702 = vdwg.mxu0
        %v5703 = vmul.f32 %v5473, 0.001953125
        %v5704 = vmul.f32 %v5478, 0.001953125
        %v5705 = vmul.f32 %v5483, 0.001953125
        %v5706 = vmul.f32 %v5488, 0.001953125
        %v5707 = vmul.f32 %v5493, 0.001953125
        %v5708 = vmul.f32 %v5498, 0.001953125
        %v5709 = vmul.f32 %v5675, 0.001953125
        %v5710 = vmul.f32 %v5680, 0.001953125
        %v5711 = vmul.f32 %v5685, 0.001953125
        %v5712 = vmul.f32 %v5690, 0.001953125
        %v5713 = vmul.f32 %v5695, 0.001953125
        %v5714 = vmul.f32 %v5700, 0.001953125
        %v5715 = vmul.f32 %v5703, %v5703
        %v5716 = vmul.f32 %v5704, %v5704
        %v5717 = vmul.f32 %v5705, %v5705
        %v5718 = vmul.f32 %v5706, %v5706
        %v5719 = vmul.f32 %v5707, %v5707
        %v5720 = vmul.f32 %v5708, %v5708
        %v5721 = vsub.f32 %v5709, %v5715
        %v5722 = vsub.f32 %v5710, %v5716
        %v5723 = vsub.f32 %v5711, %v5717
        %v5724 = vsub.f32 %v5712, %v5718
        %v5725 = vsub.f32 %v5713, %v5719
        %v5726 = vsub.f32 %v5714, %v5720
        %v5727 = vmax.f32 %v5721, 0.0
        %v5728 = vmax.f32 %v5722, 0.0
        %v5729 = vmax.f32 %v5723, 0.0
        %v5730 = vmax.f32 %v5724, 0.0
        %v5731 = vmax.f32 %v5725, 0.0
        %v5732 = vmax.f32 %v5726, 0.0
        %v5733 = vld [vmem:[%s239] sm:$0xff]
        %v5734 = vld [vmem:[%s239 + $0x8] sm:$0xff]
        %v5735 = vld [vmem:[%s239 + $0x10] sm:$0xff]
        %v5736 = vld [vmem:[%s239 + $0x18] sm:$0xff]
        %v5737 = vld [vmem:[%s239 + $0x20] sm:$0xff]
        %v5738 = vld [vmem:[%s239 + $0x28] sm:$0xff]
        %v5739 = vadd.f32 %v5727, 1e-05
        %v5740 = vadd.f32 %v5728, 1e-05
        %v5741 = vadd.f32 %v5729, 1e-05
        %v5742 = vadd.f32 %v5730, 1e-05
        %v5743 = vadd.f32 %v5731, 1e-05
        %v5744 = vadd.f32 %v5732, 1e-05
        %v5745 = vrsqrt.pop %v5739
        %v5746 = vrsqrt.pop %v5740
        %v5747 = vrsqrt.pop %v5741
        %v5748 = vrsqrt.pop %v5742
        %v5749 = vrsqrt.pop %v5743
        %v5750 = vrsqrt.pop %v5744
        %v5751 = vmul.f32 %v5733, %v5745
        %v5752 = vmul.f32 %v5734, %v5746
        %v5753 = vmul.f32 %v5735, %v5747
        %v5754 = vmul.f32 %v5736, %v5748
        %v5755 = vmul.f32 %v5737, %v5749
        %v5756 = vmul.f32 %v5738, %v5750
        %v5757 = vld [vmem:[%s244] sm:$0xff]
        %v5758 = vld [vmem:[%s244 + $0x8] sm:$0xff]
        %v5759 = vld [vmem:[%s244 + $0x10] sm:$0xff]
        %v5760 = vld [vmem:[%s244 + $0x18] sm:$0xff]
        %v5761 = vld [vmem:[%s244 + $0x20] sm:$0xff]
        %v5762 = vld [vmem:[%s244 + $0x28] sm:$0xff]
        %v5763 = vmul.f32 %v5703, %v5751
        %v5764 = vmul.f32 %v5704, %v5752
        %v5765 = vmul.f32 %v5705, %v5753
        %v5766 = vmul.f32 %v5706, %v5754
        %v5767 = vmul.f32 %v5707, %v5755
        %v5768 = vmul.f32 %v5708, %v5756
        %v5769 = vsub.f32 %v5757, %v5763
        %v5770 = vsub.f32 %v5758, %v5764
        %v5771 = vsub.f32 %v5759, %v5765
        %v5772 = vsub.f32 %v5760, %v5766
        %v5773 = vsub.f32 %v5761, %v5767
        %v5774 = vsub.f32 %v5762, %v5768
        %5776 = vset.pattern.permute.xlu0 0
        %5777 = vperm.xlu0 %5776, %v5751
        %v5778 = vpop.permute.xlu0 %5777
        %5781 = vset.pattern.permute.xlu0 0
        %5782 = vperm.xlu0 %5781, %v5752
        %v5783 = vpop.permute.xlu0 %5782
        %5786 = vset.pattern.permute.xlu0 0
        %5787 = vperm.xlu0 %5786, %v5753
        %v5788 = vpop.permute.xlu0 %5787
        %5791 = vset.pattern.permute.xlu0 0
        %5792 = vperm.xlu0 %5791, %v5754
        %v5793 = vpop.permute.xlu0 %5792
        %5796 = vset.pattern.permute.xlu0 0
        %5797 = vperm.xlu0 %5796, %v5755
        %v5798 = vpop.permute.xlu0 %5797
        %5801 = vset.pattern.permute.xlu0 0
        %5802 = vperm.xlu0 %5801, %v5756
        %v5803 = vpop.permute.xlu0 %5802
        %v5805 = vmul.f32 %v5274, %v5778
        %v5806 = vmul.f32 %v5275, %v5778
        %v5807 = vmul.f32 %v5276, %v5783
        %v5808 = vmul.f32 %v5277, %v5783
        %v5809 = vmul.f32 %v5278, %v5788
        %v5810 = vmul.f32 %v5279, %v5788
        %v5811 = vmul.f32 %v5280, %v5793
        %v5812 = vmul.f32 %v5281, %v5793
        %v5813 = vmul.f32 %v5282, %v5798
        %v5814 = vmul.f32 %v5283, %v5798
        %v5815 = vmul.f32 %v5284, %v5803
        %v5816 = vmul.f32 %v5285, %v5803
        %5818 = vset.pattern.permute.xlu0 0
        %5819 = vperm.xlu0 %5818, %v5769
        %v5820 = vpop.permute.xlu0 %5819
        %5823 = vset.pattern.permute.xlu0 0
        %5824 = vperm.xlu0 %5823, %v5770
        %v5825 = vpop.permute.xlu0 %5824
        %5828 = vset.pattern.permute.xlu0 0
        %5829 = vperm.xlu0 %5828, %v5771
        %v5830 = vpop.permute.xlu0 %5829
        %5833 = vset.pattern.permute.xlu0 0
        %5834 = vperm.xlu0 %5833, %v5772
        %v5835 = vpop.permute.xlu0 %5834
        %5838 = vset.pattern.permute.xlu0 0
        %5839 = vperm.xlu0 %5838, %v5773
        %v5840 = vpop.permute.xlu0 %5839
        %5843 = vset.pattern.permute.xlu0 0
        %5844 = vperm.xlu0 %5843, %v5774
        %v5845 = vpop.permute.xlu0 %5844
        %v5847 = vadd.f32 %v5805, %v5820
        %v5848 = vadd.f32 %v5806, %v5820
        %v5849 = vadd.f32 %v5807, %v5825
        %v5850 = vadd.f32 %v5808, %v5825
        %v5851 = vadd.f32 %v5809, %v5830
        %v5852 = vadd.f32 %v5810, %v5830
        %v5853 = vadd.f32 %v5811, %v5835
        %v5854 = vadd.f32 %v5812, %v5835
        %v5855 = vadd.f32 %v5813, %v5840
        %v5856 = vadd.f32 %v5814, %v5840
        %v5857 = vadd.f32 %v5815, %v5845
        %v5858 = vadd.f32 %v5816, %v5845
        %v5859 = vmax.f32 %v5847, 0.0
        %v5860 = vmax.f32 %v5848, 0.0
        %v5861 = vmax.f32 %v5849, 0.0
        %v5862 = vmax.f32 %v5850, 0.0
        %v5863 = vmax.f32 %v5851, 0.0
        %v5864 = vmax.f32 %v5852, 0.0
        %v5865 = vmax.f32 %v5853, 0.0
        %v5866 = vmax.f32 %v5854, 0.0
        %v5867 = vmax.f32 %v5855, 0.0
        %v5868 = vmax.f32 %v5856, 0.0
        %v5869 = vmax.f32 %v5857, 0.0
        %v5870 = vmax.f32 %v5858, 0.0
        %v5871 = vpack.c.bf16 %v5861, %v5859
        %v5872 = vpack.c.bf16 %v5862, %v5860
        %v5873 = vpack.c.bf16 %v5865, %v5863
        %v5874 = vpack.c.bf16 %v5866, %v5864
        %v5875 = vpack.c.bf16 %v5869, %v5867
        %v5876 = vpack.c.bf16 %v5870, %v5868
        %v5883 = vunpack.c.l.b16 %v5871
        %v5884 = vunpack.c.l.b16 %v5872
        %v5885 = vunpack.c.h.b16 %v5871
        %v5886 = vunpack.c.h.b16 %v5872
        %v5887 = vunpack.c.l.b16 %v5873
        %v5888 = vunpack.c.l.b16 %v5874
        %v5889 = vunpack.c.h.b16 %v5873
        %v5890 = vunpack.c.h.b16 %v5874
        %v5891 = vunpack.c.l.b16 %v5875
        %v5892 = vunpack.c.l.b16 %v5876
        %v5893 = vunpack.c.h.b16 %v5875
        %v5894 = vunpack.c.h.b16 %v5876
        %v5895 = vpack.c.b16 %v5884, %v5883
        %v5896 = vpack.c.b16 %v5886, %v5885
        %v5897 = vpack.c.b16 %v5888, %v5887
        %v5898 = vpack.c.b16 %v5890, %v5889
        %v5899 = vpack.c.b16 %v5892, %v5891
        %v5900 = vpack.c.b16 %v5894, %v5893
        %5907 = vst [vmem:[#allocation2 + $0x4] sm:$0xff] %v5895
        %5908 = vst [vmem:[#allocation2 + $0x1c] sm:$0xff] %v5896
        %5909 = vst [vmem:[#allocation2 + $0x34] sm:$0xff] %v5897
        %5910 = vst [vmem:[#allocation2 + $0x4c] sm:$0xff] %v5898
        %5911 = vst [vmem:[#allocation2 + $0x64] sm:$0xff] %v5899
        %5912 = vst [vmem:[#allocation2 + $0x7c] sm:$0xff] %v5900
        %v5913 = vld [vmem:[%s5298] sm:$0xff]
        %v5914 = vld [vmem:[%s5298 + $0x8] sm:$0xff]
        %v5915 = vld [vmem:[%s5298 + $0x10] sm:$0xff]
        %v5916 = vld [vmem:[%s5298 + $0x18] sm:$0xff]
        %v5917 = vld [vmem:[%s5298 + $0x20] sm:$0xff]
        %v5918 = vld [vmem:[%s5298 + $0x28] sm:$0xff]
        %v5919 = vld [vmem:[%s5298 + $0x30] sm:$0xff]
        %v5920 = vld [vmem:[%s5298 + $0x38] sm:$0xff]
        %v5921 = vld [vmem:[%s5298 + $0x40] sm:$0xff]
        %v5922 = vld [vmem:[%s5298 + $0x48] sm:$0xff]
        %v5923 = vld [vmem:[%s5298 + $0x50] sm:$0xff]
        %v5924 = vld [vmem:[%s5298 + $0x58] sm:$0xff]
        %v5925 = vmul.f32 %v5913, %v5778
        %v5926 = vmul.f32 %v5914, %v5778
        %v5927 = vmul.f32 %v5915, %v5783
        %v5928 = vmul.f32 %v5916, %v5783
        %v5929 = vmul.f32 %v5917, %v5788
        %v5930 = vmul.f32 %v5918, %v5788
        %v5931 = vmul.f32 %v5919, %v5793
        %v5932 = vmul.f32 %v5920, %v5793
        %v5933 = vmul.f32 %v5921, %v5798
        %v5934 = vmul.f32 %v5922, %v5798
        %v5935 = vmul.f32 %v5923, %v5803
        %v5936 = vmul.f32 %v5924, %v5803
        %v5937 = vadd.f32 %v5925, %v5820
        %v5938 = vadd.f32 %v5926, %v5820
        %v5939 = vadd.f32 %v5927, %v5825
        %v5940 = vadd.f32 %v5928, %v5825
        %v5941 = vadd.f32 %v5929, %v5830
        %v5942 = vadd.f32 %v5930, %v5830
        %v5943 = vadd.f32 %v5931, %v5835
        %v5944 = vadd.f32 %v5932, %v5835
        %v5945 = vadd.f32 %v5933, %v5840
        %v5946 = vadd.f32 %v5934, %v5840
        %v5947 = vadd.f32 %v5935, %v5845
        %v5948 = vadd.f32 %v5936, %v5845
        %v5949 = vmax.f32 %v5937, 0.0
        %v5950 = vmax.f32 %v5938, 0.0
        %v5951 = vmax.f32 %v5939, 0.0
        %v5952 = vmax.f32 %v5940, 0.0
        %v5953 = vmax.f32 %v5941, 0.0
        %v5954 = vmax.f32 %v5942, 0.0
        %v5955 = vmax.f32 %v5943, 0.0
        %v5956 = vmax.f32 %v5944, 0.0
        %v5957 = vmax.f32 %v5945, 0.0
        %v5958 = vmax.f32 %v5946, 0.0
        %v5959 = vmax.f32 %v5947, 0.0
        %v5960 = vmax.f32 %v5948, 0.0
        %v5961 = vpack.c.bf16 %v5951, %v5949
        %v5962 = vpack.c.bf16 %v5952, %v5950
        %v5963 = vpack.c.bf16 %v5955, %v5953
        %v5964 = vpack.c.bf16 %v5956, %v5954
        %v5965 = vpack.c.bf16 %v5959, %v5957
        %v5966 = vpack.c.bf16 %v5960, %v5958
        %v5973 = vunpack.c.l.b16 %v5961
        %v5974 = vunpack.c.l.b16 %v5962
        %v5975 = vunpack.c.h.b16 %v5961
        %v5976 = vunpack.c.h.b16 %v5962
        %v5977 = vunpack.c.l.b16 %v5963
        %v5978 = vunpack.c.l.b16 %v5964
        %v5979 = vunpack.c.h.b16 %v5963
        %v5980 = vunpack.c.h.b16 %v5964
        %v5981 = vunpack.c.l.b16 %v5965
        %v5982 = vunpack.c.l.b16 %v5966
        %v5983 = vunpack.c.h.b16 %v5965
        %v5984 = vunpack.c.h.b16 %v5966
        %v5985 = vpack.c.b16 %v5974, %v5973
        %v5986 = vpack.c.b16 %v5976, %v5975
        %v5987 = vpack.c.b16 %v5978, %v5977
        %v5988 = vpack.c.b16 %v5980, %v5979
        %v5989 = vpack.c.b16 %v5982, %v5981
        %v5990 = vpack.c.b16 %v5984, %v5983
        %5997 = vst [vmem:[#allocation2 + $0xc] sm:$0xff] %v5985
        %5998 = vst [vmem:[#allocation2 + $0x24] sm:$0xff] %v5986
        %5999 = vst [vmem:[#allocation2 + $0x3c] sm:$0xff] %v5987
        %6000 = vst [vmem:[#allocation2 + $0x54] sm:$0xff] %v5988
        %6001 = vst [vmem:[#allocation2 + $0x6c] sm:$0xff] %v5989
        %6002 = vst [vmem:[#allocation2 + $0x84] sm:$0xff] %v5990
        %v6003 = vld [vmem:[#allocation2] sm:$0xff]
        %v6004 = vld [vmem:[#allocation2 + $0x8] sm:$0xff]
        %v6005 = vld [vmem:[#allocation2 + $0x10] sm:$0xf]
        %v6006 = vld [vmem:[#allocation2 + $0x18] sm:$0xff]
        %v6007 = vld [vmem:[#allocation2 + $0x20] sm:$0xff]
        %v6008 = vld [vmem:[#allocation2 + $0x28] sm:$0xf]
        %v6009 = vld [vmem:[#allocation2 + $0x30] sm:$0xff]
        %v6010 = vld [vmem:[#allocation2 + $0x38] sm:$0xff]
        %v6011 = vld [vmem:[#allocation2 + $0x40] sm:$0xf]
        %v6012 = vld [vmem:[#allocation2 + $0x48] sm:$0xff]
        %v6013 = vld [vmem:[#allocation2 + $0x50] sm:$0xff]
        %v6014 = vld [vmem:[#allocation2 + $0x58] sm:$0xf]
        %v6015 = vld [vmem:[#allocation2 + $0x60] sm:$0xff]
        %v6016 = vld [vmem:[#allocation2 + $0x68] sm:$0xff]
        %v6017 = vld [vmem:[#allocation2 + $0x70] sm:$0xf]
        %v6018 = vld [vmem:[#allocation2 + $0x78] sm:$0xff]
        %v6019 = vld [vmem:[#allocation2 + $0x80] sm:$0xff]
        %v6020 = vld [vmem:[#allocation2 + $0x88] sm:$0xf]
        %v6021 = vld [vmem:[%s1] sm:$0x11]
        %v6022 = vld [vmem:[%s1 + $0x8] sm:$0x11]
        %v6025 = vunpack.c.l.b16 %v6021
        %v6026 = vunpack.c.h.b16 %v6021
        %v6027 = vunpack.c.l.b16 %v6022
        %v6028 = vunpack.c.h.b16 %v6022
        %v6029 = vpack.c.b16 %v6025, %v6025
        %v6030 = vpack.c.b16 %v6026, %v6026
        %v6031 = vpack.c.b16 %v6027, %v6027
        %v6032 = vpack.c.b16 %v6028, %v6028
        %v6034 = vpack.i.b16 %v6029, %v6029
        %v6036 = vlaneseq
        %v6037 = vshrl.u32 %v6036, 7
        %v6038 = vsub.s32 0, %v6037
        %v6039 = vrot.slane %v6034, %v6038
        %v6041 = vpack.i.b16 %v6030, %v6030
        %v6043 = vlaneseq
        %v6044 = vshrl.u32 %v6043, 7
        %v6045 = vsub.s32 0, %v6044
        %v6046 = vrot.slane %v6041, %v6045
        %v6048 = vpack.i.b16 %v6031, %v6031
        %v6050 = vlaneseq
        %v6051 = vshrl.u32 %v6050, 7
        %v6052 = vsub.s32 0, %v6051
        %v6053 = vrot.slane %v6048, %v6052
        %v6055 = vpack.i.b16 %v6032, %v6032
        %v6057 = vlaneseq
        %v6058 = vshrl.u32 %v6057, 7
        %v6059 = vsub.s32 0, %v6058
        %v6060 = vrot.slane %v6055, %v6059
        %v6065 = vunpack.c.l.b16 %v6039
        %v6066 = vunpack.c.l.b16 %v6046
        %v6067 = vunpack.c.l.b16 %v6053
        %v6068 = vunpack.c.l.b16 %v6060
        %v6069 = vpack.c.b16 %v6066, %v6065
        %v6070 = vpack.c.b16 %v6068, %v6067
        %6071 = vrot.lane.b32.xlu0 %v6069, 111
        %v6072 = vpop.permute.xlu0 %6071
        %6073 = vrot.lane.b32.xlu0 %v6070, 111
        %v6074 = vpop.permute.xlu0 %6073
        %v6075 = vrot.slane %v6072, 4
        %v6076 = vrot.slane %v6074, 4
        %vm6077 = vcmask 908288
        %v6078 = vsel %vm6077, %v6075, %v6072
        %vm6079 = vcmask 1043456
        %v6080 = vsel %vm6079, %v6075, %v6076
        %v6081 = vsel %vm6077, %v6080, %v6074
        %v6085 = vmul.bf16 %v6003, %v6078
        %v6086 = vmul.bf16 %v6004, %v6081
        %v6087 = vmul.bf16 %v6005, %v6076
        %v6088 = vmul.bf16 %v6006, %v6078
        %v6089 = vmul.bf16 %v6007, %v6081
        %v6090 = vmul.bf16 %v6008, %v6076
        %v6091 = vmul.bf16 %v6009, %v6078
        %v6092 = vmul.bf16 %v6010, %v6081
        %v6093 = vmul.bf16 %v6011, %v6076
        %v6094 = vmul.bf16 %v6012, %v6078
        %v6095 = vmul.bf16 %v6013, %v6081
        %v6096 = vmul.bf16 %v6014, %v6076
        %v6097 = vmul.bf16 %v6015, %v6078
        %v6098 = vmul.bf16 %v6016, %v6081
        %v6099 = vmul.bf16 %v6017, %v6076
        %v6100 = vmul.bf16 %v6018, %v6078
        %v6101 = vmul.bf16 %v6019, %v6081
        %v6102 = vmul.bf16 %v6020, %v6076
        %v6103 = vld [vmem:[%s249] sm:$0xf]
        %v6104 = vld [vmem:[%s249 + $0x4] sm:$0xf]
        %v6105 = vshrl.u32 %v6029, 16
        %v6106 = vpack.i.b16 %v6105, %v6105
        %v6108 = vlaneseq
        %v6109 = vshrl.u32 %v6108, 7
        %v6110 = vsub.s32 0, %v6109
        %v6111 = vrot.slane %v6106, %v6110
        %v6112 = vshrl.u32 %v6030, 16
        %v6113 = vpack.i.b16 %v6112, %v6112
        %v6115 = vlaneseq
        %v6116 = vshrl.u32 %v6115, 7
        %v6117 = vsub.s32 0, %v6116
        %v6118 = vrot.slane %v6113, %v6117
        %v6119 = vshrl.u32 %v6031, 16
        %v6120 = vpack.i.b16 %v6119, %v6119
        %v6122 = vlaneseq
        %v6123 = vshrl.u32 %v6122, 7
        %v6124 = vsub.s32 0, %v6123
        %v6125 = vrot.slane %v6120, %v6124
        %v6126 = vshrl.u32 %v6032, 16
        %v6127 = vpack.i.b16 %v6126, %v6126
        %v6129 = vlaneseq
        %v6130 = vshrl.u32 %v6129, 7
        %v6131 = vsub.s32 0, %v6130
        %v6132 = vrot.slane %v6127, %v6131
        %v6137 = vunpack.c.l.b16 %v6111
        %v6138 = vunpack.c.l.b16 %v6118
        %v6139 = vunpack.c.l.b16 %v6125
        %v6140 = vunpack.c.l.b16 %v6132
        %v6141 = vpack.c.b16 %v6138, %v6137
        %v6142 = vpack.c.b16 %v6140, %v6139
        %6143 = vrot.lane.b32.xlu0 %v6141, 112
        %v6144 = vpop.permute.xlu0 %6143
        %6145 = vrot.lane.b32.xlu0 %v6142, 112
        %v6146 = vpop.permute.xlu0 %6145
        %v6147 = vrot.slane %v6144, 4
        %v6148 = vrot.slane %v6146, 4
        %vm6149 = vcmask 916480
        %v6150 = vsel %vm6149, %v6147, %v6144
        %v6151 = vsel %vm6079, %v6147, %v6148
        %v6152 = vsel %vm6149, %v6151, %v6146
        %v6156 = vmul.bf16 %v6003, %v6150
        %v6157 = vmul.bf16 %v6004, %v6152
        %v6158 = vmul.bf16 %v6005, %v6148
        %v6159 = vmul.bf16 %v6006, %v6150
        %v6160 = vmul.bf16 %v6007, %v6152
        %v6161 = vmul.bf16 %v6008, %v6148
        %v6162 = vmul.bf16 %v6009, %v6150
        %v6163 = vmul.bf16 %v6010, %v6152
        %v6164 = vmul.bf16 %v6011, %v6148
        %v6165 = vmul.bf16 %v6012, %v6150
        %v6166 = vmul.bf16 %v6013, %v6152
        %v6167 = vmul.bf16 %v6014, %v6148
        %v6168 = vmul.bf16 %v6015, %v6150
        %v6169 = vmul.bf16 %v6016, %v6152
        %v6170 = vmul.bf16 %v6017, %v6148
        %v6171 = vmul.bf16 %v6018, %v6150
        %v6172 = vmul.bf16 %v6019, %v6152
        %v6173 = vmul.bf16 %v6020, %v6148
        %v6174 = vld [vmem:[%s249 + $0x8] sm:$0xf]
        %v6175 = vld [vmem:[%s249 + $0xc] sm:$0xf]
        %v6178 = vunpack.c.l.b16 %v6174
        %v6179 = vunpack.c.l.b16 %v6175
        %v6180 = vpack.c.b16 %v6179, %v6178
        %v6199 = vunpack.c.l.b16 %v6156
        %v6200 = vunpack.c.h.b16 %v6156
        %v6201 = vunpack.c.l.b16 %v6157
        %v6202 = vunpack.c.h.b16 %v6157
        %v6203 = vunpack.c.l.b16 %v6158
        %v6204 = vunpack.c.l.b16 %v6159
        %v6205 = vunpack.c.h.b16 %v6159
        %v6206 = vunpack.c.l.b16 %v6160
        %v6207 = vunpack.c.h.b16 %v6160
        %v6208 = vunpack.c.l.b16 %v6161
        %v6209 = vunpack.c.l.b16 %v6162
        %v6210 = vunpack.c.h.b16 %v6162
        %v6211 = vunpack.c.l.b16 %v6163
        %v6212 = vunpack.c.h.b16 %v6163
        %v6213 = vunpack.c.l.b16 %v6164
        %v6214 = vunpack.c.l.b16 %v6165
        %v6215 = vunpack.c.h.b16 %v6165
        %v6216 = vunpack.c.l.b16 %v6166
        %v6217 = vunpack.c.h.b16 %v6166
        %v6218 = vunpack.c.l.b16 %v6167
        %v6219 = vunpack.c.l.b16 %v6168
        %v6220 = vunpack.c.h.b16 %v6168
        %v6221 = vunpack.c.l.b16 %v6169
        %v6222 = vunpack.c.h.b16 %v6169
        %v6223 = vunpack.c.l.b16 %v6170
        %v6224 = vunpack.c.l.b16 %v6171
        %v6225 = vunpack.c.h.b16 %v6171
        %v6226 = vunpack.c.l.b16 %v6172
        %v6227 = vunpack.c.h.b16 %v6172
        %v6228 = vunpack.c.l.b16 %v6173
        %v6229 = vpack.c.b16 %v6204, %v6199
        %v6230 = vpack.c.b16 %v6205, %v6200
        %v6231 = vpack.c.b16 %v6206, %v6201
        %v6232 = vpack.c.b16 %v6207, %v6202
        %v6233 = vpack.c.b16 %v6208, %v6203
        %v6234 = vpack.c.b16 %v6214, %v6209
        %v6235 = vpack.c.b16 %v6215, %v6210
        %v6236 = vpack.c.b16 %v6216, %v6211
        %v6237 = vpack.c.b16 %v6217, %v6212
        %v6238 = vpack.c.b16 %v6218, %v6213
        %v6239 = vpack.c.b16 %v6224, %v6219
        %v6240 = vpack.c.b16 %v6225, %v6220
        %v6241 = vpack.c.b16 %v6226, %v6221
        %v6242 = vpack.c.b16 %v6227, %v6222
        %v6243 = vpack.c.b16 %v6228, %v6223
        %6244 = vrot.lane.b32.xlu0 %v6229, 16
        %v6245 = vpop.permute.xlu0 %6244
        %6246 = vrot.lane.b32.xlu0 %v6230, 16
        %v6247 = vpop.permute.xlu0 %6246
        %6248 = vrot.lane.b32.xlu0 %v6231, 16
        %v6249 = vpop.permute.xlu0 %6248
        %6250 = vrot.lane.b32.xlu0 %v6232, 16
        %v6251 = vpop.permute.xlu0 %6250
        %6252 = vrot.lane.b32.xlu0 %v6233, 16
        %v6253 = vpop.permute.xlu0 %6252
        %6254 = vrot.lane.b32.xlu0 %v6234, 16
        %v6255 = vpop.permute.xlu0 %6254
        %6256 = vrot.lane.b32.xlu0 %v6235, 16
        %v6257 = vpop.permute.xlu0 %6256
        %6258 = vrot.lane.b32.xlu0 %v6236, 16
        %v6259 = vpop.permute.xlu0 %6258
        %6260 = vrot.lane.b32.xlu0 %v6237, 16
        %v6261 = vpop.permute.xlu0 %6260
        %6262 = vrot.lane.b32.xlu0 %v6238, 16
        %v6263 = vpop.permute.xlu0 %6262
        %6264 = vrot.lane.b32.xlu0 %v6239, 16
        %v6265 = vpop.permute.xlu0 %6264
        %6266 = vrot.lane.b32.xlu0 %v6240, 16
        %v6267 = vpop.permute.xlu0 %6266
        %6268 = vrot.lane.b32.xlu0 %v6241, 16
        %v6269 = vpop.permute.xlu0 %6268
        %6270 = vrot.lane.b32.xlu0 %v6242, 16
        %v6271 = vpop.permute.xlu0 %6270
        %6272 = vrot.lane.b32.xlu0 %v6243, 16
        %v6273 = vpop.permute.xlu0 %6272
        %vm6274 = vcmask 130048
        %v6275 = vsel %vm6274, %v6245, %v6247
        %v6276 = vsel %vm6274, %v6247, %v6249
        %v6277 = vsel %vm6274, %v6249, %v6251
        %v6278 = vsel %vm6274, %v6251, %v6253
        %v6279 = vsel %vm6274, %v6255, %v6257
        %v6280 = vsel %vm6274, %v6257, %v6259
        %v6281 = vsel %vm6274, %v6259, %v6261
        %v6282 = vsel %vm6274, %v6261, %v6263
        %v6283 = vsel %vm6274, %v6265, %v6267
        %v6284 = vsel %vm6274, %v6267, %v6269
        %v6285 = vsel %vm6274, %v6269, %v6271
        %v6286 = vsel %vm6274, %v6271, %v6273
        %vm6299 = vcmask 392192
        %v6301 = vsel %vm6299, %v6180, 0
        %6303 = vmatprep.subr.bf16.mxu0 0
        %6304 = vmatpush1.bf16.msra.mxu0 0
        %6305 = vmatprep.subr.bf16.mxu0 0
        %6306 = vmatpush1.bf16.msra.mxu0 0
        %6307 = vmatprep.subr.bf16.mxu0 0
        %6308 = vmatpush1.bf16.msra.mxu0 0
        %6309 = vmatprep.subr.bf16.mxu0 0
        %6310 = vmatpush1.bf16.msra.mxu0 0
        %6311 = vmatprep.subr.bf16.mxu0 0
        %6312 = vmatpush1.bf16.msra.mxu0 0
        %6313 = vmatprep.subr.bf16.mxu0 %v6284
        %6314 = vmatpush1.bf16.msra.mxu0 %v6283
        %6315 = vmatprep.subr.bf16.mxu0 %v6280
        %6316 = vmatpush1.bf16.msra.mxu0 %v6279
        %6317 = vmatprep.subr.bf16.mxu0 %v6276
        %6318 = vmatpush1.bf16.msra.mxu0 %v6275
        %6319 = vmatprep.subr.bf16.mxu0 0
        %6320 = vmatpush2.bf16.msra.mxu0 0
        %6321 = vmatprep.subr.bf16.mxu0 0
        %6322 = vmatpush2.bf16.msra.mxu0 0
        %6323 = vmatprep.subr.bf16.mxu0 0
        %6324 = vmatpush2.bf16.msra.mxu0 0
        %6325 = vmatprep.subr.bf16.mxu0 0
        %6326 = vmatpush2.bf16.msra.mxu0 0
        %6327 = vmatprep.subr.bf16.mxu0 0
        %6328 = vmatpush2.bf16.msra.mxu0 0
        %6329 = vmatprep.subr.bf16.mxu0 0
        %6330 = vmatpush2.bf16.msra.mxu0 0
        %6331 = vmatprep.subr.bf16.mxu0 0
        %6332 = vmatpush2.bf16.msra.mxu0 0
        %6333 = vmatprep.subr.bf16.mxu0 0
        %6334 = vmatpush2.bf16.msra.mxu0 0
        %6335 = vmatprep.mubr.bf16.mxu0 0
        %6336 = vmatmul.mubr.bf16.gmra.mxu0 %v6301
        %v6337 = vpop.f32.mrf.mxu0
        %v6338 = vadd.f32 0.0, %v6337
        %v6339 = vpop.f32.mrf.mxu0
        %v6340 = vadd.f32 0.0, %v6339
        %v6341 = vpop.f32.mrf.mxu0
        %v6342 = vadd.f32 0.0, %v6341
        %v6343 = vpop.f32.mrf.mxu0
        %v6344 = vadd.f32 0.0, %v6343
        %6345 = vdwg.mxu0
        %6346 = vmatprep.subr.bf16.mxu0 0
        %6347 = vmatpush1.bf16.msra.mxu0 0
        %6348 = vmatprep.subr.bf16.mxu0 0
        %6349 = vmatpush1.bf16.msra.mxu0 0
        %6350 = vmatprep.subr.bf16.mxu0 0
        %6351 = vmatpush1.bf16.msra.mxu0 0
        %6352 = vmatprep.subr.bf16.mxu0 0
        %6353 = vmatpush1.bf16.msra.mxu0 0
        %6354 = vmatprep.subr.bf16.mxu0 0
        %6355 = vmatpush1.bf16.msra.mxu0 0
        %6356 = vmatprep.subr.bf16.mxu0 %v6286
        %6357 = vmatpush1.bf16.msra.mxu0 %v6285
        %6358 = vmatprep.subr.bf16.mxu0 %v6282
        %6359 = vmatpush1.bf16.msra.mxu0 %v6281
        %6360 = vmatprep.subr.bf16.mxu0 %v6278
        %6361 = vmatpush1.bf16.msra.mxu0 %v6277
        %6362 = vmatprep.subr.bf16.mxu0 0
        %6363 = vmatpush2.bf16.msra.mxu0 0
        %6364 = vmatprep.subr.bf16.mxu0 0
        %6365 = vmatpush2.bf16.msra.mxu0 0
        %6366 = vmatprep.subr.bf16.mxu0 0
        %6367 = vmatpush2.bf16.msra.mxu0 0
        %6368 = vmatprep.subr.bf16.mxu0 0
        %6369 = vmatpush2.bf16.msra.mxu0 0
        %6370 = vmatprep.subr.bf16.mxu0 0
        %6371 = vmatpush2.bf16.msra.mxu0 0
        %6372 = vmatprep.subr.bf16.mxu0 0
        %6373 = vmatpush2.bf16.msra.mxu0 0
        %6374 = vmatprep.subr.bf16.mxu0 0
        %6375 = vmatpush2.bf16.msra.mxu0 0
        %6376 = vmatprep.subr.bf16.mxu0 0
        %6377 = vmatpush2.bf16.msra.mxu0 0
        %6378 = vmatprep.mubr.bf16.mxu0 0
        %6379 = vmatmul.mubr.bf16.gmra.mxu0 %v6301
        %v6380 = vpop.f32.mrf.mxu0
        %v6381 = vadd.f32 0.0, %v6380
        %v6382 = vpop.f32.mrf.mxu0
        %v6383 = vadd.f32 0.0, %v6382
        %v6384 = vpop.f32.mrf.mxu0
        %v6385 = vadd.f32 0.0, %v6384
        %v6386 = vpop.f32.mrf.mxu0
        %v6387 = vadd.f32 0.0, %v6386
        %6388 = vdwg.mxu0
        %v6391 = vunpack.c.l.b16 %v6103
        %v6392 = vunpack.c.l.b16 %v6104
        %v6393 = vpack.c.b16 %v6392, %v6391
        %v6412 = vunpack.c.l.b16 %v6085
        %v6413 = vunpack.c.h.b16 %v6085
        %v6414 = vunpack.c.l.b16 %v6086
        %v6415 = vunpack.c.h.b16 %v6086
        %v6416 = vunpack.c.l.b16 %v6087
        %v6417 = vunpack.c.l.b16 %v6088
        %v6418 = vunpack.c.h.b16 %v6088
        %v6419 = vunpack.c.l.b16 %v6089
        %v6420 = vunpack.c.h.b16 %v6089
        %v6421 = vunpack.c.l.b16 %v6090
        %v6422 = vunpack.c.l.b16 %v6091
        %v6423 = vunpack.c.h.b16 %v6091
        %v6424 = vunpack.c.l.b16 %v6092
        %v6425 = vunpack.c.h.b16 %v6092
        %v6426 = vunpack.c.l.b16 %v6093
        %v6427 = vunpack.c.l.b16 %v6094
        %v6428 = vunpack.c.h.b16 %v6094
        %v6429 = vunpack.c.l.b16 %v6095
        %v6430 = vunpack.c.h.b16 %v6095
        %v6431 = vunpack.c.l.b16 %v6096
        %v6432 = vunpack.c.l.b16 %v6097
        %v6433 = vunpack.c.h.b16 %v6097
        %v6434 = vunpack.c.l.b16 %v6098
        %v6435 = vunpack.c.h.b16 %v6098
        %v6436 = vunpack.c.l.b16 %v6099
        %v6437 = vunpack.c.l.b16 %v6100
        %v6438 = vunpack.c.h.b16 %v6100
        %v6439 = vunpack.c.l.b16 %v6101
        %v6440 = vunpack.c.h.b16 %v6101
        %v6441 = vunpack.c.l.b16 %v6102
        %v6442 = vpack.c.b16 %v6417, %v6412
        %v6443 = vpack.c.b16 %v6418, %v6413
        %v6444 = vpack.c.b16 %v6419, %v6414
        %v6445 = vpack.c.b16 %v6420, %v6415
        %v6446 = vpack.c.b16 %v6421, %v6416
        %v6447 = vpack.c.b16 %v6427, %v6422
        %v6448 = vpack.c.b16 %v6428, %v6423
        %v6449 = vpack.c.b16 %v6429, %v6424
        %v6450 = vpack.c.b16 %v6430, %v6425
        %v6451 = vpack.c.b16 %v6431, %v6426
        %v6452 = vpack.c.b16 %v6437, %v6432
        %v6453 = vpack.c.b16 %v6438, %v6433
        %v6454 = vpack.c.b16 %v6439, %v6434
        %v6455 = vpack.c.b16 %v6440, %v6435
        %v6456 = vpack.c.b16 %v6441, %v6436
        %6457 = vrot.lane.b32.xlu0 %v6442, 17
        %v6458 = vpop.permute.xlu0 %6457
        %6459 = vrot.lane.b32.xlu0 %v6443, 17
        %v6460 = vpop.permute.xlu0 %6459
        %6461 = vrot.lane.b32.xlu0 %v6444, 17
        %v6462 = vpop.permute.xlu0 %6461
        %6463 = vrot.lane.b32.xlu0 %v6445, 17
        %v6464 = vpop.permute.xlu0 %6463
        %6465 = vrot.lane.b32.xlu0 %v6446, 17
        %v6466 = vpop.permute.xlu0 %6465
        %6467 = vrot.lane.b32.xlu0 %v6447, 17
        %v6468 = vpop.permute.xlu0 %6467
        %6469 = vrot.lane.b32.xlu0 %v6448, 17
        %v6470 = vpop.permute.xlu0 %6469
        %6471 = vrot.lane.b32.xlu0 %v6449, 17
        %v6472 = vpop.permute.xlu0 %6471
        %6473 = vrot.lane.b32.xlu0 %v6450, 17
        %v6474 = vpop.permute.xlu0 %6473
        %6475 = vrot.lane.b32.xlu0 %v6451, 17
        %v6476 = vpop.permute.xlu0 %6475
        %6477 = vrot.lane.b32.xlu0 %v6452, 17
        %v6478 = vpop.permute.xlu0 %6477
        %6479 = vrot.lane.b32.xlu0 %v6453, 17
        %v6480 = vpop.permute.xlu0 %6479
        %6481 = vrot.lane.b32.xlu0 %v6454, 17
        %v6482 = vpop.permute.xlu0 %6481
        %6483 = vrot.lane.b32.xlu0 %v6455, 17
        %v6484 = vpop.permute.xlu0 %6483
        %6485 = vrot.lane.b32.xlu0 %v6456, 17
        %v6486 = vpop.permute.xlu0 %6485
        %vm6487 = vcmask 138240
        %v6488 = vsel %vm6487, %v6458, %v6460
        %v6489 = vsel %vm6487, %v6460, %v6462
        %v6490 = vsel %vm6487, %v6462, %v6464
        %v6491 = vsel %vm6487, %v6464, %v6466
        %v6492 = vsel %vm6487, %v6468, %v6470
        %v6493 = vsel %vm6487, %v6470, %v6472
        %v6494 = vsel %vm6487, %v6472, %v6474
        %v6495 = vsel %vm6487, %v6474, %v6476
        %v6496 = vsel %vm6487, %v6478, %v6480
        %v6497 = vsel %vm6487, %v6480, %v6482
        %v6498 = vsel %vm6487, %v6482, %v6484
        %v6499 = vsel %vm6487, %v6484, %v6486
        %v6513 = vsel %vm6299, %v6393, 0
        %6515 = vmatprep.subr.bf16.mxu0 0
        %6516 = vmatpush1.bf16.msra.mxu0 0
        %6517 = vmatprep.subr.bf16.mxu0 0
        %6518 = vmatpush1.bf16.msra.mxu0 0
        %6519 = vmatprep.subr.bf16.mxu0 0
        %6520 = vmatpush1.bf16.msra.mxu0 0
        %6521 = vmatprep.subr.bf16.mxu0 0
        %6522 = vmatpush1.bf16.msra.mxu0 0
        %6523 = vmatprep.subr.bf16.mxu0 0
        %6524 = vmatpush1.bf16.msra.mxu0 0
        %6525 = vmatprep.subr.bf16.mxu0 %v6497
        %6526 = vmatpush1.bf16.msra.mxu0 %v6496
        %6527 = vmatprep.subr.bf16.mxu0 %v6493
        %6528 = vmatpush1.bf16.msra.mxu0 %v6492
        %6529 = vmatprep.subr.bf16.mxu0 %v6489
        %6530 = vmatpush1.bf16.msra.mxu0 %v6488
        %6531 = vmatprep.subr.bf16.mxu0 0
        %6532 = vmatpush2.bf16.msra.mxu0 0
        %6533 = vmatprep.subr.bf16.mxu0 0
        %6534 = vmatpush2.bf16.msra.mxu0 0
        %6535 = vmatprep.subr.bf16.mxu0 0
        %6536 = vmatpush2.bf16.msra.mxu0 0
        %6537 = vmatprep.subr.bf16.mxu0 0
        %6538 = vmatpush2.bf16.msra.mxu0 0
        %6539 = vmatprep.subr.bf16.mxu0 0
        %6540 = vmatpush2.bf16.msra.mxu0 0
        %6541 = vmatprep.subr.bf16.mxu0 0
        %6542 = vmatpush2.bf16.msra.mxu0 0
        %6543 = vmatprep.subr.bf16.mxu0 0
        %6544 = vmatpush2.bf16.msra.mxu0 0
        %6545 = vmatprep.subr.bf16.mxu0 0
        %6546 = vmatpush2.bf16.msra.mxu0 0
        %6547 = vmatprep.mubr.bf16.mxu0 0
        %6548 = vmatmul.mubr.bf16.gmra.mxu0 %v6513
        %v6549 = vpop.f32.mrf.mxu0
        %v6550 = vadd.f32 %v6338, %v6549
        %v6551 = vpop.f32.mrf.mxu0
        %v6552 = vadd.f32 %v6340, %v6551
        %v6553 = vpop.f32.mrf.mxu0
        %v6554 = vadd.f32 %v6342, %v6553
        %v6555 = vpop.f32.mrf.mxu0
        %v6556 = vadd.f32 %v6344, %v6555
        %6557 = vdwg.mxu0
        %6558 = vmatprep.subr.bf16.mxu0 0
        %6559 = vmatpush1.bf16.msra.mxu0 0
        %6560 = vmatprep.subr.bf16.mxu0 0
        %6561 = vmatpush1.bf16.msra.mxu0 0
        %6562 = vmatprep.subr.bf16.mxu0 0
        %6563 = vmatpush1.bf16.msra.mxu0 0
        %6564 = vmatprep.subr.bf16.mxu0 0
        %6565 = vmatpush1.bf16.msra.mxu0 0
        %6566 = vmatprep.subr.bf16.mxu0 0
        %6567 = vmatpush1.bf16.msra.mxu0 0
        %6568 = vmatprep.subr.bf16.mxu0 %v6499
        %6569 = vmatpush1.bf16.msra.mxu0 %v6498
        %6570 = vmatprep.subr.bf16.mxu0 %v6495
        %6571 = vmatpush1.bf16.msra.mxu0 %v6494
        %6572 = vmatprep.subr.bf16.mxu0 %v6491
        %6573 = vmatpush1.bf16.msra.mxu0 %v6490
        %6574 = vmatprep.subr.bf16.mxu0 0
        %6575 = vmatpush2.bf16.msra.mxu0 0
        %6576 = vmatprep.subr.bf16.mxu0 0
        %6577 = vmatpush2.bf16.msra.mxu0 0
        %6578 = vmatprep.subr.bf16.mxu0 0
        %6579 = vmatpush2.bf16.msra.mxu0 0
        %6580 = vmatprep.subr.bf16.mxu0 0
        %6581 = vmatpush2.bf16.msra.mxu0 0
        %6582 = vmatprep.subr.bf16.mxu0 0
        %6583 = vmatpush2.bf16.msra.mxu0 0
        %6584 = vmatprep.subr.bf16.mxu0 0
        %6585 = vmatpush2.bf16.msra.mxu0 0
        %6586 = vmatprep.subr.bf16.mxu0 0
        %6587 = vmatpush2.bf16.msra.mxu0 0
        %6588 = vmatprep.subr.bf16.mxu0 0
        %6589 = vmatpush2.bf16.msra.mxu0 0
        %6590 = vmatprep.mubr.bf16.mxu0 0
        %6591 = vmatmul.mubr.bf16.gmra.mxu0 %v6513
        %v6592 = vpop.f32.mrf.mxu0
        %v6593 = vadd.f32 %v6381, %v6592
        %v6594 = vpop.f32.mrf.mxu0
        %v6595 = vadd.f32 %v6383, %v6594
        %v6596 = vpop.f32.mrf.mxu0
        %v6597 = vadd.f32 %v6385, %v6596
        %v6598 = vpop.f32.mrf.mxu0
        %v6599 = vadd.f32 %v6387, %v6598
        %6600 = vdwg.mxu0
        %v6601 = vld [vmem:[%s1] sm:$0x22]
        %v6602 = vld [vmem:[%s1 + $0x8] sm:$0x22]
        %v6605 = vunpack.c.l.b16 %v6601
        %v6606 = vunpack.c.h.b16 %v6601
        %v6607 = vunpack.c.l.b16 %v6602
        %v6608 = vunpack.c.h.b16 %v6602
        %v6609 = vpack.c.b16 %v6605, %v6605
        %v6610 = vpack.c.b16 %v6606, %v6606
        %v6611 = vpack.c.b16 %v6607, %v6607
        %v6612 = vpack.c.b16 %v6608, %v6608
        %v6614 = vpack.i.b16 %v6609, %v6609
        %v6616 = vlaneseq
        %v6617 = vshrl.u32 %v6616, 7
        %v6618 = vsub.s32 1, %v6617
        %v6619 = vrot.slane %v6614, %v6618
        %v6621 = vpack.i.b16 %v6610, %v6610
        %v6623 = vlaneseq
        %v6624 = vshrl.u32 %v6623, 7
        %v6625 = vsub.s32 1, %v6624
        %v6626 = vrot.slane %v6621, %v6625
        %v6628 = vpack.i.b16 %v6611, %v6611
        %v6630 = vlaneseq
        %v6631 = vshrl.u32 %v6630, 7
        %v6632 = vsub.s32 1, %v6631
        %v6633 = vrot.slane %v6628, %v6632
        %v6635 = vpack.i.b16 %v6612, %v6612
        %v6637 = vlaneseq
        %v6638 = vshrl.u32 %v6637, 7
        %v6639 = vsub.s32 1, %v6638
        %v6640 = vrot.slane %v6635, %v6639
        %v6645 = vunpack.c.l.b16 %v6619
        %v6646 = vunpack.c.l.b16 %v6626
        %v6647 = vunpack.c.l.b16 %v6633
        %v6648 = vunpack.c.l.b16 %v6640
        %v6649 = vpack.c.b16 %v6646, %v6645
        %v6650 = vpack.c.b16 %v6648, %v6647
        %6651 = vrot.lane.b32.xlu0 %v6649, 113
        %v6652 = vpop.permute.xlu0 %6651
        %6653 = vrot.lane.b32.xlu0 %v6650, 113
        %v6654 = vpop.permute.xlu0 %6653
        %v6655 = vrot.slane %v6652, 4
        %v6656 = vrot.slane %v6654, 4
        %vm6657 = vcmask 924672
        %v6658 = vsel %vm6657, %v6655, %v6652
        %v6659 = vsel %vm6079, %v6655, %v6656
        %v6660 = vsel %vm6657, %v6659, %v6654
        %v6664 = vmul.bf16 %v6003, %v6658
        %v6665 = vmul.bf16 %v6004, %v6660
        %v6666 = vmul.bf16 %v6005, %v6656
        %v6667 = vmul.bf16 %v6006, %v6658
        %v6668 = vmul.bf16 %v6007, %v6660
        %v6669 = vmul.bf16 %v6008, %v6656
        %v6670 = vmul.bf16 %v6009, %v6658
        %v6671 = vmul.bf16 %v6010, %v6660
        %v6672 = vmul.bf16 %v6011, %v6656
        %v6673 = vmul.bf16 %v6012, %v6658
        %v6674 = vmul.bf16 %v6013, %v6660
        %v6675 = vmul.bf16 %v6014, %v6656
        %v6676 = vmul.bf16 %v6015, %v6658
        %v6677 = vmul.bf16 %v6016, %v6660
        %v6678 = vmul.bf16 %v6017, %v6656
        %v6679 = vmul.bf16 %v6018, %v6658
        %v6680 = vmul.bf16 %v6019, %v6660
        %v6681 = vmul.bf16 %v6020, %v6656
        %v6682 = vld [vmem:[%s249 + $0x10] sm:$0xf]
        %v6683 = vld [vmem:[%s249 + $0x14] sm:$0xf]
        %v6686 = vunpack.c.l.b16 %v6682
        %v6687 = vunpack.c.l.b16 %v6683
        %v6688 = vpack.c.b16 %v6687, %v6686
        %v6707 = vunpack.c.l.b16 %v6664
        %v6708 = vunpack.c.h.b16 %v6664
        %v6709 = vunpack.c.l.b16 %v6665
        %v6710 = vunpack.c.h.b16 %v6665
        %v6711 = vunpack.c.l.b16 %v6666
        %v6712 = vunpack.c.l.b16 %v6667
        %v6713 = vunpack.c.h.b16 %v6667
        %v6714 = vunpack.c.l.b16 %v6668
        %v6715 = vunpack.c.h.b16 %v6668
        %v6716 = vunpack.c.l.b16 %v6669
        %v6717 = vunpack.c.l.b16 %v6670
        %v6718 = vunpack.c.h.b16 %v6670
        %v6719 = vunpack.c.l.b16 %v6671
        %v6720 = vunpack.c.h.b16 %v6671
        %v6721 = vunpack.c.l.b16 %v6672
        %v6722 = vunpack.c.l.b16 %v6673
        %v6723 = vunpack.c.h.b16 %v6673
        %v6724 = vunpack.c.l.b16 %v6674
        %v6725 = vunpack.c.h.b16 %v6674
        %v6726 = vunpack.c.l.b16 %v6675
        %v6727 = vunpack.c.l.b16 %v6676
        %v6728 = vunpack.c.h.b16 %v6676
        %v6729 = vunpack.c.l.b16 %v6677
        %v6730 = vunpack.c.h.b16 %v6677
        %v6731 = vunpack.c.l.b16 %v6678
        %v6732 = vunpack.c.l.b16 %v6679
        %v6733 = vunpack.c.h.b16 %v6679
        %v6734 = vunpack.c.l.b16 %v6680
        %v6735 = vunpack.c.h.b16 %v6680
        %v6736 = vunpack.c.l.b16 %v6681
        %v6737 = vpack.c.b16 %v6712, %v6707
        %v6738 = vpack.c.b16 %v6713, %v6708
        %v6739 = vpack.c.b16 %v6714, %v6709
        %v6740 = vpack.c.b16 %v6715, %v6710
        %v6741 = vpack.c.b16 %v6716, %v6711
        %v6742 = vpack.c.b16 %v6722, %v6717
        %v6743 = vpack.c.b16 %v6723, %v6718
        %v6744 = vpack.c.b16 %v6724, %v6719
        %v6745 = vpack.c.b16 %v6725, %v6720
        %v6746 = vpack.c.b16 %v6726, %v6721
        %v6747 = vpack.c.b16 %v6732, %v6727
        %v6748 = vpack.c.b16 %v6733, %v6728
        %v6749 = vpack.c.b16 %v6734, %v6729
        %v6750 = vpack.c.b16 %v6735, %v6730
        %v6751 = vpack.c.b16 %v6736, %v6731
        %6752 = vrot.lane.b32.xlu0 %v6737, 15
        %v6753 = vpop.permute.xlu0 %6752
        %6754 = vrot.lane.b32.xlu0 %v6738, 15
        %v6755 = vpop.permute.xlu0 %6754
        %6756 = vrot.lane.b32.xlu0 %v6739, 15
        %v6757 = vpop.permute.xlu0 %6756
        %6758 = vrot.lane.b32.xlu0 %v6740, 15
        %v6759 = vpop.permute.xlu0 %6758
        %6760 = vrot.lane.b32.xlu0 %v6741, 15
        %v6761 = vpop.permute.xlu0 %6760
        %6762 = vrot.lane.b32.xlu0 %v6742, 15
        %v6763 = vpop.permute.xlu0 %6762
        %6764 = vrot.lane.b32.xlu0 %v6743, 15
        %v6765 = vpop.permute.xlu0 %6764
        %6766 = vrot.lane.b32.xlu0 %v6744, 15
        %v6767 = vpop.permute.xlu0 %6766
        %6768 = vrot.lane.b32.xlu0 %v6745, 15
        %v6769 = vpop.permute.xlu0 %6768
        %6770 = vrot.lane.b32.xlu0 %v6746, 15
        %v6771 = vpop.permute.xlu0 %6770
        %6772 = vrot.lane.b32.xlu0 %v6747, 15
        %v6773 = vpop.permute.xlu0 %6772
        %6774 = vrot.lane.b32.xlu0 %v6748, 15
        %v6775 = vpop.permute.xlu0 %6774
        %6776 = vrot.lane.b32.xlu0 %v6749, 15
        %v6777 = vpop.permute.xlu0 %6776
        %6778 = vrot.lane.b32.xlu0 %v6750, 15
        %v6779 = vpop.permute.xlu0 %6778
        %6780 = vrot.lane.b32.xlu0 %v6751, 15
        %v6781 = vpop.permute.xlu0 %6780
        %vm6782 = vcmask 121856
        %v6783 = vsel %vm6782, %v6753, %v6755
        %v6784 = vsel %vm6782, %v6755, %v6757
        %v6785 = vsel %vm6782, %v6757, %v6759
        %v6786 = vsel %vm6782, %v6759, %v6761
        %v6787 = vsel %vm6782, %v6763, %v6765
        %v6788 = vsel %vm6782, %v6765, %v6767
        %v6789 = vsel %vm6782, %v6767, %v6769
        %v6790 = vsel %vm6782, %v6769, %v6771
        %v6791 = vsel %vm6782, %v6773, %v6775
        %v6792 = vsel %vm6782, %v6775, %v6777
        %v6793 = vsel %vm6782, %v6777, %v6779
        %v6794 = vsel %vm6782, %v6779, %v6781
        %v6808 = vsel %vm6299, %v6688, 0
        %6810 = vmatprep.subr.bf16.mxu0 0
        %6811 = vmatpush1.bf16.msra.mxu0 0
        %6812 = vmatprep.subr.bf16.mxu0 0
        %6813 = vmatpush1.bf16.msra.mxu0 0
        %6814 = vmatprep.subr.bf16.mxu0 0
        %6815 = vmatpush1.bf16.msra.mxu0 0
        %6816 = vmatprep.subr.bf16.mxu0 0
        %6817 = vmatpush1.bf16.msra.mxu0 0
        %6818 = vmatprep.subr.bf16.mxu0 0
        %6819 = vmatpush1.bf16.msra.mxu0 0
        %6820 = vmatprep.subr.bf16.mxu0 %v6792
        %6821 = vmatpush1.bf16.msra.mxu0 %v6791
        %6822 = vmatprep.subr.bf16.mxu0 %v6788
        %6823 = vmatpush1.bf16.msra.mxu0 %v6787
        %6824 = vmatprep.subr.bf16.mxu0 %v6784
        %6825 = vmatpush1.bf16.msra.mxu0 %v6783
        %6826 = vmatprep.subr.bf16.mxu0 0
        %6827 = vmatpush2.bf16.msra.mxu0 0
        %6828 = vmatprep.subr.bf16.mxu0 0
        %6829 = vmatpush2.bf16.msra.mxu0 0
        %6830 = vmatprep.subr.bf16.mxu0 0
        %6831 = vmatpush2.bf16.msra.mxu0 0
        %6832 = vmatprep.subr.bf16.mxu0 0
        %6833 = vmatpush2.bf16.msra.mxu0 0
        %6834 = vmatprep.subr.bf16.mxu0 0
        %6835 = vmatpush2.bf16.msra.mxu0 0
        %6836 = vmatprep.subr.bf16.mxu0 0
        %6837 = vmatpush2.bf16.msra.mxu0 0
        %6838 = vmatprep.subr.bf16.mxu0 0
        %6839 = vmatpush2.bf16.msra.mxu0 0
        %6840 = vmatprep.subr.bf16.mxu0 0
        %6841 = vmatpush2.bf16.msra.mxu0 0
        %6842 = vmatprep.mubr.bf16.mxu0 0
        %6843 = vmatmul.mubr.bf16.gmra.mxu0 %v6808
        %v6844 = vpop.f32.mrf.mxu0
        %v6845 = vadd.f32 0.0, %v6844
        %v6846 = vpop.f32.mrf.mxu0
        %v6847 = vadd.f32 0.0, %v6846
        %v6848 = vpop.f32.mrf.mxu0
        %v6849 = vadd.f32 0.0, %v6848
        %v6850 = vpop.f32.mrf.mxu0
        %v6851 = vadd.f32 0.0, %v6850
        %6852 = vdwg.mxu0
        %6853 = vmatprep.subr.bf16.mxu0 0
        %6854 = vmatpush1.bf16.msra.mxu0 0
        %6855 = vmatprep.subr.bf16.mxu0 0
        %6856 = vmatpush1.bf16.msra.mxu0 0
        %6857 = vmatprep.subr.bf16.mxu0 0
        %6858 = vmatpush1.bf16.msra.mxu0 0
        %6859 = vmatprep.subr.bf16.mxu0 0
        %6860 = vmatpush1.bf16.msra.mxu0 0
        %6861 = vmatprep.subr.bf16.mxu0 0
        %6862 = vmatpush1.bf16.msra.mxu0 0
        %6863 = vmatprep.subr.bf16.mxu0 %v6794
        %6864 = vmatpush1.bf16.msra.mxu0 %v6793
        %6865 = vmatprep.subr.bf16.mxu0 %v6790
        %6866 = vmatpush1.bf16.msra.mxu0 %v6789
        %6867 = vmatprep.subr.bf16.mxu0 %v6786
        %6868 = vmatpush1.bf16.msra.mxu0 %v6785
        %6869 = vmatprep.subr.bf16.mxu0 0
        %6870 = vmatpush2.bf16.msra.mxu0 0
        %6871 = vmatprep.subr.bf16.mxu0 0
        %6872 = vmatpush2.bf16.msra.mxu0 0
        %6873 = vmatprep.subr.bf16.mxu0 0
        %6874 = vmatpush2.bf16.msra.mxu0 0
        %6875 = vmatprep.subr.bf16.mxu0 0
        %6876 = vmatpush2.bf16.msra.mxu0 0
        %6877 = vmatprep.subr.bf16.mxu0 0
        %6878 = vmatpush2.bf16.msra.mxu0 0
        %6879 = vmatprep.subr.bf16.mxu0 0
        %6880 = vmatpush2.bf16.msra.mxu0 0
        %6881 = vmatprep.subr.bf16.mxu0 0
        %6882 = vmatpush2.bf16.msra.mxu0 0
        %6883 = vmatprep.subr.bf16.mxu0 0
        %6884 = vmatpush2.bf16.msra.mxu0 0
        %6885 = vmatprep.mubr.bf16.mxu0 0
        %6886 = vmatmul.mubr.bf16.gmra.mxu0 %v6808
        %v6887 = vpop.f32.mrf.mxu0
        %v6888 = vadd.f32 0.0, %v6887
        %v6889 = vpop.f32.mrf.mxu0
        %v6890 = vadd.f32 0.0, %v6889
        %v6891 = vpop.f32.mrf.mxu0
        %v6892 = vadd.f32 0.0, %v6891
        %v6893 = vpop.f32.mrf.mxu0
        %v6894 = vadd.f32 0.0, %v6893
        %6895 = vdwg.mxu0
        %v6896 = vadd.f32 %v6550, %v6845
        %v6897 = vadd.f32 %v6552, %v6847
        %v6898 = vadd.f32 %v6593, %v6888
        %v6899 = vadd.f32 %v6595, %v6890
        %v6900 = vadd.f32 %v6554, %v6849
        %v6901 = vadd.f32 %v6556, %v6851
        %v6902 = vadd.f32 %v6597, %v6892
        %v6903 = vadd.f32 %v6599, %v6894
        %v6904 = vshrl.u32 %v6609, 16
        %v6905 = vpack.i.b16 %v6904, %v6904
        %v6907 = vlaneseq
        %v6908 = vshrl.u32 %v6907, 7
        %v6909 = vsub.s32 1, %v6908
        %v6910 = vrot.slane %v6905, %v6909
        %v6911 = vshrl.u32 %v6610, 16
        %v6912 = vpack.i.b16 %v6911, %v6911
        %v6914 = vlaneseq
        %v6915 = vshrl.u32 %v6914, 7
        %v6916 = vsub.s32 1, %v6915
        %v6917 = vrot.slane %v6912, %v6916
        %v6918 = vshrl.u32 %v6611, 16
        %v6919 = vpack.i.b16 %v6918, %v6918
        %v6921 = vlaneseq
        %v6922 = vshrl.u32 %v6921, 7
        %v6923 = vsub.s32 1, %v6922
        %v6924 = vrot.slane %v6919, %v6923
        %v6925 = vshrl.u32 %v6612, 16
        %v6926 = vpack.i.b16 %v6925, %v6925
        %v6928 = vlaneseq
        %v6929 = vshrl.u32 %v6928, 7
        %v6930 = vsub.s32 1, %v6929
        %v6931 = vrot.slane %v6926, %v6930
        %v6936 = vunpack.c.l.b16 %v6910
        %v6937 = vunpack.c.l.b16 %v6917
        %v6938 = vunpack.c.l.b16 %v6924
        %v6939 = vunpack.c.l.b16 %v6931
        %v6940 = vpack.c.b16 %v6937, %v6936
        %v6941 = vpack.c.b16 %v6939, %v6938
        %6942 = vrot.lane.b32.xlu0 %v6940, 127
        %v6943 = vpop.permute.xlu0 %6942
        %6944 = vrot.lane.b32.xlu0 %v6941, 127
        %v6945 = vpop.permute.xlu0 %6944
        %v6946 = vrot.slane %v6943, 4
        %v6947 = vrot.slane %v6945, 4
        %vm6948 = vcmask 1039360
        %v6949 = vsel %vm6948, %v6946, %v6943
        %v6950 = vsel %vm6079, %v6946, %v6947
        %v6951 = vsel %vm6948, %v6950, %v6945
        %v6955 = vmul.bf16 %v6003, %v6949
        %v6956 = vmul.bf16 %v6004, %v6951
        %v6957 = vmul.bf16 %v6005, %v6947
        %v6958 = vmul.bf16 %v6006, %v6949
        %v6959 = vmul.bf16 %v6007, %v6951
        %v6960 = vmul.bf16 %v6008, %v6947
        %v6961 = vmul.bf16 %v6009, %v6949
        %v6962 = vmul.bf16 %v6010, %v6951
        %v6963 = vmul.bf16 %v6011, %v6947
        %v6964 = vmul.bf16 %v6012, %v6949
        %v6965 = vmul.bf16 %v6013, %v6951
        %v6966 = vmul.bf16 %v6014, %v6947
        %v6967 = vmul.bf16 %v6015, %v6949
        %v6968 = vmul.bf16 %v6016, %v6951
        %v6969 = vmul.bf16 %v6017, %v6947
        %v6970 = vmul.bf16 %v6018, %v6949
        %v6971 = vmul.bf16 %v6019, %v6951
        %v6972 = vmul.bf16 %v6020, %v6947
        %v6973 = vld [vmem:[%s249 + $0x18] sm:$0xf]
        %v6974 = vld [vmem:[%s249 + $0x1c] sm:$0xf]
        %v6977 = vunpack.c.l.b16 %v6973
        %v6978 = vunpack.c.l.b16 %v6974
        %v6979 = vpack.c.b16 %v6978, %v6977
        %v6998 = vunpack.c.l.b16 %v6955
        %v6999 = vunpack.c.h.b16 %v6955
        %v7000 = vunpack.c.l.b16 %v6956
        %v7001 = vunpack.c.h.b16 %v6956
        %v7002 = vunpack.c.l.b16 %v6957
        %v7003 = vunpack.c.l.b16 %v6958
        %v7004 = vunpack.c.h.b16 %v6958
        %v7005 = vunpack.c.l.b16 %v6959
        %v7006 = vunpack.c.h.b16 %v6959
        %v7007 = vunpack.c.l.b16 %v6960
        %v7008 = vunpack.c.l.b16 %v6961
        %v7009 = vunpack.c.h.b16 %v6961
        %v7010 = vunpack.c.l.b16 %v6962
        %v7011 = vunpack.c.h.b16 %v6962
        %v7012 = vunpack.c.l.b16 %v6963
        %v7013 = vunpack.c.l.b16 %v6964
        %v7014 = vunpack.c.h.b16 %v6964
        %v7015 = vunpack.c.l.b16 %v6965
        %v7016 = vunpack.c.h.b16 %v6965
        %v7017 = vunpack.c.l.b16 %v6966
        %v7018 = vunpack.c.l.b16 %v6967
        %v7019 = vunpack.c.h.b16 %v6967
        %v7020 = vunpack.c.l.b16 %v6968
        %v7021 = vunpack.c.h.b16 %v6968
        %v7022 = vunpack.c.l.b16 %v6969
        %v7023 = vunpack.c.l.b16 %v6970
        %v7024 = vunpack.c.h.b16 %v6970
        %v7025 = vunpack.c.l.b16 %v6971
        %v7026 = vunpack.c.h.b16 %v6971
        %v7027 = vunpack.c.l.b16 %v6972
        %v7028 = vpack.c.b16 %v7003, %v6998
        %v7029 = vpack.c.b16 %v7004, %v6999
        %v7030 = vpack.c.b16 %v7005, %v7000
        %v7031 = vpack.c.b16 %v7006, %v7001
        %v7032 = vpack.c.b16 %v7007, %v7002
        %v7033 = vpack.c.b16 %v7013, %v7008
        %v7034 = vpack.c.b16 %v7014, %v7009
        %v7035 = vpack.c.b16 %v7015, %v7010
        %v7036 = vpack.c.b16 %v7016, %v7011
        %v7037 = vpack.c.b16 %v7017, %v7012
        %v7038 = vpack.c.b16 %v7023, %v7018
        %v7039 = vpack.c.b16 %v7024, %v7019
        %v7040 = vpack.c.b16 %v7025, %v7020
        %v7041 = vpack.c.b16 %v7026, %v7021
        %v7042 = vpack.c.b16 %v7027, %v7022
        %7043 = vrot.lane.b32.xlu0 %v7028, 1
        %v7044 = vpop.permute.xlu0 %7043
        %7045 = vrot.lane.b32.xlu0 %v7029, 1
        %v7046 = vpop.permute.xlu0 %7045
        %7047 = vrot.lane.b32.xlu0 %v7030, 1
        %v7048 = vpop.permute.xlu0 %7047
        %7049 = vrot.lane.b32.xlu0 %v7031, 1
        %v7050 = vpop.permute.xlu0 %7049
        %7051 = vrot.lane.b32.xlu0 %v7032, 1
        %v7052 = vpop.permute.xlu0 %7051
        %7053 = vrot.lane.b32.xlu0 %v7033, 1
        %v7054 = vpop.permute.xlu0 %7053
        %7055 = vrot.lane.b32.xlu0 %v7034, 1
        %v7056 = vpop.permute.xlu0 %7055
        %7057 = vrot.lane.b32.xlu0 %v7035, 1
        %v7058 = vpop.permute.xlu0 %7057
        %7059 = vrot.lane.b32.xlu0 %v7036, 1
        %v7060 = vpop.permute.xlu0 %7059
        %7061 = vrot.lane.b32.xlu0 %v7037, 1
        %v7062 = vpop.permute.xlu0 %7061
        %7063 = vrot.lane.b32.xlu0 %v7038, 1
        %v7064 = vpop.permute.xlu0 %7063
        %7065 = vrot.lane.b32.xlu0 %v7039, 1
        %v7066 = vpop.permute.xlu0 %7065
        %7067 = vrot.lane.b32.xlu0 %v7040, 1
        %v7068 = vpop.permute.xlu0 %7067
        %7069 = vrot.lane.b32.xlu0 %v7041, 1
        %v7070 = vpop.permute.xlu0 %7069
        %7071 = vrot.lane.b32.xlu0 %v7042, 1
        %v7072 = vpop.permute.xlu0 %7071
        %vm7073 = vcmask 7168
        %v7074 = vsel %vm7073, %v7044, %v7046
        %v7075 = vsel %vm7073, %v7046, %v7048
        %v7076 = vsel %vm7073, %v7048, %v7050
        %v7077 = vsel %vm7073, %v7050, %v7052
        %v7078 = vsel %vm7073, %v7054, %v7056
        %v7079 = vsel %vm7073, %v7056, %v7058
        %v7080 = vsel %vm7073, %v7058, %v7060
        %v7081 = vsel %vm7073, %v7060, %v7062
        %v7082 = vsel %vm7073, %v7064, %v7066
        %v7083 = vsel %vm7073, %v7066, %v7068
        %v7084 = vsel %vm7073, %v7068, %v7070
        %v7085 = vsel %vm7073, %v7070, %v7072
        %v7099 = vsel %vm6299, %v6979, 0
        %7101 = vmatprep.subr.bf16.mxu0 0
        %7102 = vmatpush1.bf16.msra.mxu0 0
        %7103 = vmatprep.subr.bf16.mxu0 0
        %7104 = vmatpush1.bf16.msra.mxu0 0
        %7105 = vmatprep.subr.bf16.mxu0 0
        %7106 = vmatpush1.bf16.msra.mxu0 0
        %7107 = vmatprep.subr.bf16.mxu0 0
        %7108 = vmatpush1.bf16.msra.mxu0 0
        %7109 = vmatprep.subr.bf16.mxu0 0
        %7110 = vmatpush1.bf16.msra.mxu0 0
        %7111 = vmatprep.subr.bf16.mxu0 %v7083
        %7112 = vmatpush1.bf16.msra.mxu0 %v7082
        %7113 = vmatprep.subr.bf16.mxu0 %v7079
        %7114 = vmatpush1.bf16.msra.mxu0 %v7078
        %7115 = vmatprep.subr.bf16.mxu0 %v7075
        %7116 = vmatpush1.bf16.msra.mxu0 %v7074
        %7117 = vmatprep.subr.bf16.mxu0 0
        %7118 = vmatpush2.bf16.msra.mxu0 0
        %7119 = vmatprep.subr.bf16.mxu0 0
        %7120 = vmatpush2.bf16.msra.mxu0 0
        %7121 = vmatprep.subr.bf16.mxu0 0
        %7122 = vmatpush2.bf16.msra.mxu0 0
        %7123 = vmatprep.subr.bf16.mxu0 0
        %7124 = vmatpush2.bf16.msra.mxu0 0
        %7125 = vmatprep.subr.bf16.mxu0 0
        %7126 = vmatpush2.bf16.msra.mxu0 0
        %7127 = vmatprep.subr.bf16.mxu0 0
        %7128 = vmatpush2.bf16.msra.mxu0 0
        %7129 = vmatprep.subr.bf16.mxu0 0
        %7130 = vmatpush2.bf16.msra.mxu0 0
        %7131 = vmatprep.subr.bf16.mxu0 0
        %7132 = vmatpush2.bf16.msra.mxu0 0
        %7133 = vmatprep.mubr.bf16.mxu0 0
        %7134 = vmatmul.mubr.bf16.gmra.mxu0 %v7099
        %v7135 = vpop.f32.mrf.mxu0
        %v7136 = vadd.f32 0.0, %v7135
        %v7137 = vpop.f32.mrf.mxu0
        %v7138 = vadd.f32 0.0, %v7137
        %v7139 = vpop.f32.mrf.mxu0
        %v7140 = vadd.f32 0.0, %v7139
        %v7141 = vpop.f32.mrf.mxu0
        %v7142 = vadd.f32 0.0, %v7141
        %7143 = vdwg.mxu0
        %7144 = vmatprep.subr.bf16.mxu0 0
        %7145 = vmatpush1.bf16.msra.mxu0 0
        %7146 = vmatprep.subr.bf16.mxu0 0
        %7147 = vmatpush1.bf16.msra.mxu0 0
        %7148 = vmatprep.subr.bf16.mxu0 0
        %7149 = vmatpush1.bf16.msra.mxu0 0
        %7150 = vmatprep.subr.bf16.mxu0 0
        %7151 = vmatpush1.bf16.msra.mxu0 0
        %7152 = vmatprep.subr.bf16.mxu0 0
        %7153 = vmatpush1.bf16.msra.mxu0 0
        %7154 = vmatprep.subr.bf16.mxu0 %v7085
        %7155 = vmatpush1.bf16.msra.mxu0 %v7084
        %7156 = vmatprep.subr.bf16.mxu0 %v7081
        %7157 = vmatpush1.bf16.msra.mxu0 %v7080
        %7158 = vmatprep.subr.bf16.mxu0 %v7077
        %7159 = vmatpush1.bf16.msra.mxu0 %v7076
        %7160 = vmatprep.subr.bf16.mxu0 0
        %7161 = vmatpush2.bf16.msra.mxu0 0
        %7162 = vmatprep.subr.bf16.mxu0 0
        %7163 = vmatpush2.bf16.msra.mxu0 0
        %7164 = vmatprep.subr.bf16.mxu0 0
        %7165 = vmatpush2.bf16.msra.mxu0 0
        %7166 = vmatprep.subr.bf16.mxu0 0
        %7167 = vmatpush2.bf16.msra.mxu0 0
        %7168 = vmatprep.subr.bf16.mxu0 0
        %7169 = vmatpush2.bf16.msra.mxu0 0
        %7170 = vmatprep.subr.bf16.mxu0 0
        %7171 = vmatpush2.bf16.msra.mxu0 0
        %7172 = vmatprep.subr.bf16.mxu0 0
        %7173 = vmatpush2.bf16.msra.mxu0 0
        %7174 = vmatprep.subr.bf16.mxu0 0
        %7175 = vmatpush2.bf16.msra.mxu0 0
        %7176 = vmatprep.mubr.bf16.mxu0 0
        %7177 = vmatmul.mubr.bf16.gmra.mxu0 %v7099
        %v7178 = vpop.f32.mrf.mxu0
        %v7179 = vadd.f32 0.0, %v7178
        %v7180 = vpop.f32.mrf.mxu0
        %v7181 = vadd.f32 0.0, %v7180
        %v7182 = vpop.f32.mrf.mxu0
        %v7183 = vadd.f32 0.0, %v7182
        %v7184 = vpop.f32.mrf.mxu0
        %v7185 = vadd.f32 0.0, %v7184
        %7186 = vdwg.mxu0
        %v7187 = vadd.f32 %v6896, %v7136
        %v7188 = vadd.f32 %v6897, %v7138
        %v7189 = vadd.f32 %v6898, %v7179
        %v7190 = vadd.f32 %v6899, %v7181
        %v7191 = vadd.f32 %v6900, %v7140
        %v7192 = vadd.f32 %v6901, %v7142
        %v7193 = vadd.f32 %v6902, %v7183
        %v7194 = vadd.f32 %v6903, %v7185
        %v7195 = vld [vmem:[#allocation2 + $0x4] sm:$0xff]
        %v7196 = vld [vmem:[#allocation2 + $0xc] sm:$0xff]
        %v7197 = vld [vmem:[#allocation2 + $0x1c] sm:$0xff]
        %v7198 = vld [vmem:[#allocation2 + $0x24] sm:$0xff]
        %v7199 = vld [vmem:[#allocation2 + $0x34] sm:$0xff]
        %v7200 = vld [vmem:[#allocation2 + $0x3c] sm:$0xff]
        %v7201 = vld [vmem:[#allocation2 + $0x4c] sm:$0xff]
        %v7202 = vld [vmem:[#allocation2 + $0x54] sm:$0xff]
        %v7203 = vld [vmem:[#allocation2 + $0x64] sm:$0xff]
        %v7204 = vld [vmem:[#allocation2 + $0x6c] sm:$0xff]
        %v7205 = vld [vmem:[#allocation2 + $0x7c] sm:$0xff]
        %v7206 = vld [vmem:[#allocation2 + $0x84] sm:$0xff]
        %v7207 = vld [vmem:[%s249 + $0x20] sm:$0xf]
        %v7208 = vld [vmem:[%s249 + $0x24] sm:$0xf]
        %v7211 = vunpack.c.l.b16 %v7207
        %v7212 = vunpack.c.l.b16 %v7208
        %v7213 = vpack.c.b16 %v7212, %v7211
        %v7226 = vunpack.c.l.b16 %v7195
        %v7227 = vunpack.c.h.b16 %v7195
        %v7228 = vunpack.c.l.b16 %v7196
        %v7229 = vunpack.c.h.b16 %v7196
        %v7230 = vunpack.c.l.b16 %v7197
        %v7231 = vunpack.c.h.b16 %v7197
        %v7232 = vunpack.c.l.b16 %v7198
        %v7233 = vunpack.c.h.b16 %v7198
        %v7234 = vunpack.c.l.b16 %v7199
        %v7235 = vunpack.c.h.b16 %v7199
        %v7236 = vunpack.c.l.b16 %v7200
        %v7237 = vunpack.c.h.b16 %v7200
        %v7238 = vunpack.c.l.b16 %v7201
        %v7239 = vunpack.c.h.b16 %v7201
        %v7240 = vunpack.c.l.b16 %v7202
        %v7241 = vunpack.c.h.b16 %v7202
        %v7242 = vunpack.c.l.b16 %v7203
        %v7243 = vunpack.c.h.b16 %v7203
        %v7244 = vunpack.c.l.b16 %v7204
        %v7245 = vunpack.c.h.b16 %v7204
        %v7246 = vunpack.c.l.b16 %v7205
        %v7247 = vunpack.c.h.b16 %v7205
        %v7248 = vunpack.c.l.b16 %v7206
        %v7249 = vunpack.c.h.b16 %v7206
        %v7250 = vpack.c.b16 %v7230, %v7226
        %v7251 = vpack.c.b16 %v7231, %v7227
        %v7252 = vpack.c.b16 %v7232, %v7228
        %v7253 = vpack.c.b16 %v7233, %v7229
        %v7254 = vpack.c.b16 %v7238, %v7234
        %v7255 = vpack.c.b16 %v7239, %v7235
        %v7256 = vpack.c.b16 %v7240, %v7236
        %v7257 = vpack.c.b16 %v7241, %v7237
        %v7258 = vpack.c.b16 %v7246, %v7242
        %v7259 = vpack.c.b16 %v7247, %v7243
        %v7260 = vpack.c.b16 %v7248, %v7244
        %v7261 = vpack.c.b16 %v7249, %v7245
        %v7275 = vsel %vm6299, %v7213, 0
        %7277 = vmatprep.subr.bf16.mxu0 0
        %7278 = vmatpush1.bf16.msra.mxu0 0
        %7279 = vmatprep.subr.bf16.mxu0 0
        %7280 = vmatpush1.bf16.msra.mxu0 0
        %7281 = vmatprep.subr.bf16.mxu0 0
        %7282 = vmatpush1.bf16.msra.mxu0 0
        %7283 = vmatprep.subr.bf16.mxu0 0
        %7284 = vmatpush1.bf16.msra.mxu0 0
        %7285 = vmatprep.subr.bf16.mxu0 0
        %7286 = vmatpush1.bf16.msra.mxu0 0
        %7287 = vmatprep.subr.bf16.mxu0 %v7259
        %7288 = vmatpush1.bf16.msra.mxu0 %v7258
        %7289 = vmatprep.subr.bf16.mxu0 %v7255
        %7290 = vmatpush1.bf16.msra.mxu0 %v7254
        %7291 = vmatprep.subr.bf16.mxu0 %v7251
        %7292 = vmatpush1.bf16.msra.mxu0 %v7250
        %7293 = vmatprep.subr.bf16.mxu0 0
        %7294 = vmatpush2.bf16.msra.mxu0 0
        %7295 = vmatprep.subr.bf16.mxu0 0
        %7296 = vmatpush2.bf16.msra.mxu0 0
        %7297 = vmatprep.subr.bf16.mxu0 0
        %7298 = vmatpush2.bf16.msra.mxu0 0
        %7299 = vmatprep.subr.bf16.mxu0 0
        %7300 = vmatpush2.bf16.msra.mxu0 0
        %7301 = vmatprep.subr.bf16.mxu0 0
        %7302 = vmatpush2.bf16.msra.mxu0 0
        %7303 = vmatprep.subr.bf16.mxu0 0
        %7304 = vmatpush2.bf16.msra.mxu0 0
        %7305 = vmatprep.subr.bf16.mxu0 0
        %7306 = vmatpush2.bf16.msra.mxu0 0
        %7307 = vmatprep.subr.bf16.mxu0 0
        %7308 = vmatpush2.bf16.msra.mxu0 0
        %7309 = vmatprep.mubr.bf16.mxu0 0
        %7310 = vmatmul.mubr.bf16.gmra.mxu0 %v7275
        %v7311 = vpop.f32.mrf.mxu0
        %v7312 = vadd.f32 0.0, %v7311
        %v7313 = vpop.f32.mrf.mxu0
        %v7314 = vadd.f32 0.0, %v7313
        %v7315 = vpop.f32.mrf.mxu0
        %v7316 = vadd.f32 0.0, %v7315
        %v7317 = vpop.f32.mrf.mxu0
        %v7318 = vadd.f32 0.0, %v7317
        %7319 = vdwg.mxu0
        %7320 = vmatprep.subr.bf16.mxu0 0
        %7321 = vmatpush1.bf16.msra.mxu0 0
        %7322 = vmatprep.subr.bf16.mxu0 0
        %7323 = vmatpush1.bf16.msra.mxu0 0
        %7324 = vmatprep.subr.bf16.mxu0 0
        %7325 = vmatpush1.bf16.msra.mxu0 0
        %7326 = vmatprep.subr.bf16.mxu0 0
        %7327 = vmatpush1.bf16.msra.mxu0 0
        %7328 = vmatprep.subr.bf16.mxu0 0
        %7329 = vmatpush1.bf16.msra.mxu0 0
        %7330 = vmatprep.subr.bf16.mxu0 %v7261
        %7331 = vmatpush1.bf16.msra.mxu0 %v7260
        %7332 = vmatprep.subr.bf16.mxu0 %v7257
        %7333 = vmatpush1.bf16.msra.mxu0 %v7256
        %7334 = vmatprep.subr.bf16.mxu0 %v7253
        %7335 = vmatpush1.bf16.msra.mxu0 %v7252
        %7336 = vmatprep.subr.bf16.mxu0 0
        %7337 = vmatpush2.bf16.msra.mxu0 0
        %7338 = vmatprep.subr.bf16.mxu0 0
        %7339 = vmatpush2.bf16.msra.mxu0 0
        %7340 = vmatprep.subr.bf16.mxu0 0
        %7341 = vmatpush2.bf16.msra.mxu0 0
        %7342 = vmatprep.subr.bf16.mxu0 0
        %7343 = vmatpush2.bf16.msra.mxu0 0
        %7344 = vmatprep.subr.bf16.mxu0 0
        %7345 = vmatpush2.bf16.msra.mxu0 0
        %7346 = vmatprep.subr.bf16.mxu0 0
        %7347 = vmatpush2.bf16.msra.mxu0 0
        %7348 = vmatprep.subr.bf16.mxu0 0
        %7349 = vmatpush2.bf16.msra.mxu0 0
        %7350 = vmatprep.subr.bf16.mxu0 0
        %7351 = vmatpush2.bf16.msra.mxu0 0
        %7352 = vmatprep.mubr.bf16.mxu0 0
        %7353 = vmatmul.mubr.bf16.gmra.mxu0 %v7275
        %v7354 = vpop.f32.mrf.mxu0
        %v7355 = vadd.f32 0.0, %v7354
        %v7356 = vpop.f32.mrf.mxu0
        %v7357 = vadd.f32 0.0, %v7356
        %v7358 = vpop.f32.mrf.mxu0
        %v7359 = vadd.f32 0.0, %v7358
        %v7360 = vpop.f32.mrf.mxu0
        %v7361 = vadd.f32 0.0, %v7360
        %7362 = vdwg.mxu0
        %v7363 = vadd.f32 %v7187, %v7312
        %v7364 = vadd.f32 %v7188, %v7314
        %v7365 = vadd.f32 %v7189, %v7355
        %v7366 = vadd.f32 %v7190, %v7357
        %v7367 = vadd.f32 %v7191, %v7316
        %v7368 = vadd.f32 %v7192, %v7318
        %v7369 = vadd.f32 %v7193, %v7359
        %v7370 = vadd.f32 %v7194, %v7361
        %v7371 = vld [vmem:[#allocation2 + $0x4] sm:$0xff]
        %v7372 = vld [vmem:[#allocation2 + $0xc] sm:$0xff]
        %v7373 = vld [vmem:[#allocation2 + $0x14] sm:$0xf]
        %v7374 = vld [vmem:[#allocation2 + $0x1c] sm:$0xff]
        %v7375 = vld [vmem:[#allocation2 + $0x24] sm:$0xff]
        %v7376 = vld [vmem:[#allocation2 + $0x2c] sm:$0xf]
        %v7377 = vld [vmem:[#allocation2 + $0x34] sm:$0xff]
        %v7378 = vld [vmem:[#allocation2 + $0x3c] sm:$0xff]
        %v7379 = vld [vmem:[#allocation2 + $0x44] sm:$0xf]
        %v7380 = vld [vmem:[#allocation2 + $0x4c] sm:$0xff]
        %v7381 = vld [vmem:[#allocation2 + $0x54] sm:$0xff]
        %v7382 = vld [vmem:[#allocation2 + $0x5c] sm:$0xf]
        %v7383 = vld [vmem:[#allocation2 + $0x64] sm:$0xff]
        %v7384 = vld [vmem:[#allocation2 + $0x6c] sm:$0xff]
        %v7385 = vld [vmem:[#allocation2 + $0x74] sm:$0xf]
        %v7386 = vld [vmem:[#allocation2 + $0x7c] sm:$0xff]
        %v7387 = vld [vmem:[#allocation2 + $0x84] sm:$0xff]
        %v7388 = vld [vmem:[#allocation2 + $0x8c] sm:$0xf]
        %v7389 = vld [vmem:[%s1] sm:$0x44]
        %v7390 = vld [vmem:[%s1 + $0x8] sm:$0x44]
        %v7393 = vunpack.c.l.b16 %v7389
        %v7394 = vunpack.c.h.b16 %v7389
        %v7395 = vunpack.c.l.b16 %v7390
        %v7396 = vunpack.c.h.b16 %v7390
        %v7397 = vpack.c.b16 %v7393, %v7393
        %v7398 = vpack.c.b16 %v7394, %v7394
        %v7399 = vpack.c.b16 %v7395, %v7395
        %v7400 = vpack.c.b16 %v7396, %v7396
        %v7402 = vshrl.u32 %v7397, 16
        %v7403 = vpack.i.b16 %v7402, %v7402
        %v7405 = vlaneseq
        %v7406 = vshrl.u32 %v7405, 7
        %v7407 = vsub.s32 2, %v7406
        %v7408 = vrot.slane %v7403, %v7407
        %v7410 = vshrl.u32 %v7398, 16
        %v7411 = vpack.i.b16 %v7410, %v7410
        %v7413 = vlaneseq
        %v7414 = vshrl.u32 %v7413, 7
        %v7415 = vsub.s32 2, %v7414
        %v7416 = vrot.slane %v7411, %v7415
        %v7418 = vshrl.u32 %v7399, 16
        %v7419 = vpack.i.b16 %v7418, %v7418
        %v7421 = vlaneseq
        %v7422 = vshrl.u32 %v7421, 7
        %v7423 = vsub.s32 2, %v7422
        %v7424 = vrot.slane %v7419, %v7423
        %v7426 = vshrl.u32 %v7400, 16
        %v7427 = vpack.i.b16 %v7426, %v7426
        %v7429 = vlaneseq
        %v7430 = vshrl.u32 %v7429, 7
        %v7431 = vsub.s32 2, %v7430
        %v7432 = vrot.slane %v7427, %v7431
        %v7437 = vunpack.c.l.b16 %v7408
        %v7438 = vunpack.c.l.b16 %v7416
        %v7439 = vunpack.c.l.b16 %v7424
        %v7440 = vunpack.c.l.b16 %v7432
        %v7441 = vpack.c.b16 %v7438, %v7437
        %v7442 = vpack.c.b16 %v7440, %v7439
        %7443 = vrot.lane.b32.xlu0 %v7441, 1
        %v7444 = vpop.permute.xlu0 %7443
        %7445 = vrot.lane.b32.xlu0 %v7442, 1
        %v7446 = vpop.permute.xlu0 %7445
        %v7447 = vrot.slane %v7444, 4
        %v7448 = vrot.slane %v7446, 4
        %v7449 = vsel %vm7073, %v7447, %v7444
        %v7450 = vsel %vm6079, %v7447, %v7448
        %v7451 = vsel %vm7073, %v7450, %v7446
        %v7455 = vmul.bf16 %v7371, %v7449
        %v7456 = vmul.bf16 %v7372, %v7451
        %v7457 = vmul.bf16 %v7373, %v7448
        %v7458 = vmul.bf16 %v7374, %v7449
        %v7459 = vmul.bf16 %v7375, %v7451
        %v7460 = vmul.bf16 %v7376, %v7448
        %v7461 = vmul.bf16 %v7377, %v7449
        %v7462 = vmul.bf16 %v7378, %v7451
        %v7463 = vmul.bf16 %v7379, %v7448
        %v7464 = vmul.bf16 %v7380, %v7449
        %v7465 = vmul.bf16 %v7381, %v7451
        %v7466 = vmul.bf16 %v7382, %v7448
        %v7467 = vmul.bf16 %v7383, %v7449
        %v7468 = vmul.bf16 %v7384, %v7451
        %v7469 = vmul.bf16 %v7385, %v7448
        %v7470 = vmul.bf16 %v7386, %v7449
        %v7471 = vmul.bf16 %v7387, %v7451
        %v7472 = vmul.bf16 %v7388, %v7448
        %v7473 = vld [vmem:[%s249 + $0x28] sm:$0xf]
        %v7474 = vld [vmem:[%s249 + $0x2c] sm:$0xf]
        %v7477 = vunpack.c.l.b16 %v7473
        %v7478 = vunpack.c.l.b16 %v7474
        %v7479 = vpack.c.b16 %v7478, %v7477
        %v7498 = vunpack.c.l.b16 %v7455
        %v7499 = vunpack.c.h.b16 %v7455
        %v7500 = vunpack.c.l.b16 %v7456
        %v7501 = vunpack.c.h.b16 %v7456
        %v7502 = vunpack.c.l.b16 %v7457
        %v7503 = vunpack.c.l.b16 %v7458
        %v7504 = vunpack.c.h.b16 %v7458
        %v7505 = vunpack.c.l.b16 %v7459
        %v7506 = vunpack.c.h.b16 %v7459
        %v7507 = vunpack.c.l.b16 %v7460
        %v7508 = vunpack.c.l.b16 %v7461
        %v7509 = vunpack.c.h.b16 %v7461
        %v7510 = vunpack.c.l.b16 %v7462
        %v7511 = vunpack.c.h.b16 %v7462
        %v7512 = vunpack.c.l.b16 %v7463
        %v7513 = vunpack.c.l.b16 %v7464
        %v7514 = vunpack.c.h.b16 %v7464
        %v7515 = vunpack.c.l.b16 %v7465
        %v7516 = vunpack.c.h.b16 %v7465
        %v7517 = vunpack.c.l.b16 %v7466
        %v7518 = vunpack.c.l.b16 %v7467
        %v7519 = vunpack.c.h.b16 %v7467
        %v7520 = vunpack.c.l.b16 %v7468
        %v7521 = vunpack.c.h.b16 %v7468
        %v7522 = vunpack.c.l.b16 %v7469
        %v7523 = vunpack.c.l.b16 %v7470
        %v7524 = vunpack.c.h.b16 %v7470
        %v7525 = vunpack.c.l.b16 %v7471
        %v7526 = vunpack.c.h.b16 %v7471
        %v7527 = vunpack.c.l.b16 %v7472
        %v7528 = vpack.c.b16 %v7503, %v7498
        %v7529 = vpack.c.b16 %v7504, %v7499
        %v7530 = vpack.c.b16 %v7505, %v7500
        %v7531 = vpack.c.b16 %v7506, %v7501
        %v7532 = vpack.c.b16 %v7507, %v7502
        %v7533 = vpack.c.b16 %v7513, %v7508
        %v7534 = vpack.c.b16 %v7514, %v7509
        %v7535 = vpack.c.b16 %v7515, %v7510
        %v7536 = vpack.c.b16 %v7516, %v7511
        %v7537 = vpack.c.b16 %v7517, %v7512
        %v7538 = vpack.c.b16 %v7523, %v7518
        %v7539 = vpack.c.b16 %v7524, %v7519
        %v7540 = vpack.c.b16 %v7525, %v7520
        %v7541 = vpack.c.b16 %v7526, %v7521
        %v7542 = vpack.c.b16 %v7527, %v7522
        %7543 = vrot.lane.b32.xlu0 %v7528, 127
        %v7544 = vpop.permute.xlu0 %7543
        %7545 = vrot.lane.b32.xlu0 %v7529, 127
        %v7546 = vpop.permute.xlu0 %7545
        %7547 = vrot.lane.b32.xlu0 %v7530, 127
        %v7548 = vpop.permute.xlu0 %7547
        %7549 = vrot.lane.b32.xlu0 %v7531, 127
        %v7550 = vpop.permute.xlu0 %7549
        %7551 = vrot.lane.b32.xlu0 %v7532, 127
        %v7552 = vpop.permute.xlu0 %7551
        %7553 = vrot.lane.b32.xlu0 %v7533, 127
        %v7554 = vpop.permute.xlu0 %7553
        %7555 = vrot.lane.b32.xlu0 %v7534, 127
        %v7556 = vpop.permute.xlu0 %7555
        %7557 = vrot.lane.b32.xlu0 %v7535, 127
        %v7558 = vpop.permute.xlu0 %7557
        %7559 = vrot.lane.b32.xlu0 %v7536, 127
        %v7560 = vpop.permute.xlu0 %7559
        %7561 = vrot.lane.b32.xlu0 %v7537, 127
        %v7562 = vpop.permute.xlu0 %7561
        %7563 = vrot.lane.b32.xlu0 %v7538, 127
        %v7564 = vpop.permute.xlu0 %7563
        %7565 = vrot.lane.b32.xlu0 %v7539, 127
        %v7566 = vpop.permute.xlu0 %7565
        %7567 = vrot.lane.b32.xlu0 %v7540, 127
        %v7568 = vpop.permute.xlu0 %7567
        %7569 = vrot.lane.b32.xlu0 %v7541, 127
        %v7570 = vpop.permute.xlu0 %7569
        %7571 = vrot.lane.b32.xlu0 %v7542, 127
        %v7572 = vpop.permute.xlu0 %7571
        %v7573 = vsel %vm6948, %v7544, %v7546
        %v7574 = vsel %vm6948, %v7546, %v7548
        %v7575 = vsel %vm6948, %v7548, %v7550
        %v7576 = vsel %vm6948, %v7550, %v7552
        %v7577 = vsel %vm6948, %v7554, %v7556
        %v7578 = vsel %vm6948, %v7556, %v7558
        %v7579 = vsel %vm6948, %v7558, %v7560
        %v7580 = vsel %vm6948, %v7560, %v7562
        %v7581 = vsel %vm6948, %v7564, %v7566
        %v7582 = vsel %vm6948, %v7566, %v7568
        %v7583 = vsel %vm6948, %v7568, %v7570
        %v7584 = vsel %vm6948, %v7570, %v7572
        %v7598 = vsel %vm6299, %v7479, 0
        %7600 = vmatprep.subr.bf16.mxu0 0
        %7601 = vmatpush1.bf16.msra.mxu0 0
        %7602 = vmatprep.subr.bf16.mxu0 0
        %7603 = vmatpush1.bf16.msra.mxu0 0
        %7604 = vmatprep.subr.bf16.mxu0 0
        %7605 = vmatpush1.bf16.msra.mxu0 0
        %7606 = vmatprep.subr.bf16.mxu0 0
        %7607 = vmatpush1.bf16.msra.mxu0 0
        %7608 = vmatprep.subr.bf16.mxu0 0
        %7609 = vmatpush1.bf16.msra.mxu0 0
        %7610 = vmatprep.subr.bf16.mxu0 %v7582
        %7611 = vmatpush1.bf16.msra.mxu0 %v7581
        %7612 = vmatprep.subr.bf16.mxu0 %v7578
        %7613 = vmatpush1.bf16.msra.mxu0 %v7577
        %7614 = vmatprep.subr.bf16.mxu0 %v7574
        %7615 = vmatpush1.bf16.msra.mxu0 %v7573
        %7616 = vmatprep.subr.bf16.mxu0 0
        %7617 = vmatpush2.bf16.msra.mxu0 0
        %7618 = vmatprep.subr.bf16.mxu0 0
        %7619 = vmatpush2.bf16.msra.mxu0 0
        %7620 = vmatprep.subr.bf16.mxu0 0
        %7621 = vmatpush2.bf16.msra.mxu0 0
        %7622 = vmatprep.subr.bf16.mxu0 0
        %7623 = vmatpush2.bf16.msra.mxu0 0
        %7624 = vmatprep.subr.bf16.mxu0 0
        %7625 = vmatpush2.bf16.msra.mxu0 0
        %7626 = vmatprep.subr.bf16.mxu0 0
        %7627 = vmatpush2.bf16.msra.mxu0 0
        %7628 = vmatprep.subr.bf16.mxu0 0
        %7629 = vmatpush2.bf16.msra.mxu0 0
        %7630 = vmatprep.subr.bf16.mxu0 0
        %7631 = vmatpush2.bf16.msra.mxu0 0
        %7632 = vmatprep.mubr.bf16.mxu0 0
        %7633 = vmatmul.mubr.bf16.gmra.mxu0 %v7598
        %v7634 = vpop.f32.mrf.mxu0
        %v7635 = vadd.f32 0.0, %v7634
        %v7636 = vpop.f32.mrf.mxu0
        %v7637 = vadd.f32 0.0, %v7636
        %v7638 = vpop.f32.mrf.mxu0
        %v7639 = vadd.f32 0.0, %v7638
        %v7640 = vpop.f32.mrf.mxu0
        %v7641 = vadd.f32 0.0, %v7640
        %7642 = vdwg.mxu0
        %7643 = vmatprep.subr.bf16.mxu0 0
        %7644 = vmatpush1.bf16.msra.mxu0 0
        %7645 = vmatprep.subr.bf16.mxu0 0
        %7646 = vmatpush1.bf16.msra.mxu0 0
        %7647 = vmatprep.subr.bf16.mxu0 0
        %7648 = vmatpush1.bf16.msra.mxu0 0
        %7649 = vmatprep.subr.bf16.mxu0 0
        %7650 = vmatpush1.bf16.msra.mxu0 0
        %7651 = vmatprep.subr.bf16.mxu0 0
        %7652 = vmatpush1.bf16.msra.mxu0 0
        %7653 = vmatprep.subr.bf16.mxu0 %v7584
        %7654 = vmatpush1.bf16.msra.mxu0 %v7583
        %7655 = vmatprep.subr.bf16.mxu0 %v7580
        %7656 = vmatpush1.bf16.msra.mxu0 %v7579
        %7657 = vmatprep.subr.bf16.mxu0 %v7576
        %7658 = vmatpush1.bf16.msra.mxu0 %v7575
        %7659 = vmatprep.subr.bf16.mxu0 0
        %7660 = vmatpush2.bf16.msra.mxu0 0
        %7661 = vmatprep.subr.bf16.mxu0 0
        %7662 = vmatpush2.bf16.msra.mxu0 0
        %7663 = vmatprep.subr.bf16.mxu0 0
        %7664 = vmatpush2.bf16.msra.mxu0 0
        %7665 = vmatprep.subr.bf16.mxu0 0
        %7666 = vmatpush2.bf16.msra.mxu0 0
        %7667 = vmatprep.subr.bf16.mxu0 0
        %7668 = vmatpush2.bf16.msra.mxu0 0
        %7669 = vmatprep.subr.bf16.mxu0 0
        %7670 = vmatpush2.bf16.msra.mxu0 0
        %7671 = vmatprep.subr.bf16.mxu0 0
        %7672 = vmatpush2.bf16.msra.mxu0 0
        %7673 = vmatprep.subr.bf16.mxu0 0
        %7674 = vmatpush2.bf16.msra.mxu0 0
        %7675 = vmatprep.mubr.bf16.mxu0 0
        %7676 = vmatmul.mubr.bf16.gmra.mxu0 %v7598
        %v7677 = vpop.f32.mrf.mxu0
        %v7678 = vadd.f32 0.0, %v7677
        %v7679 = vpop.f32.mrf.mxu0
        %v7680 = vadd.f32 0.0, %v7679
        %v7681 = vpop.f32.mrf.mxu0
        %v7682 = vadd.f32 0.0, %v7681
        %v7683 = vpop.f32.mrf.mxu0
        %v7684 = vadd.f32 0.0, %v7683
        %7685 = vdwg.mxu0
        %v7686 = vadd.f32 %v7363, %v7635
        %v7687 = vadd.f32 %v7364, %v7637
        %v7688 = vadd.f32 %v7365, %v7678
        %v7689 = vadd.f32 %v7366, %v7680
        %v7690 = vadd.f32 %v7367, %v7639
        %v7691 = vadd.f32 %v7368, %v7641
        %v7692 = vadd.f32 %v7369, %v7682
        %v7693 = vadd.f32 %v7370, %v7684
        %v7694 = vld [vmem:[%s1] sm:$0x88]
        %v7695 = vld [vmem:[%s1 + $0x8] sm:$0x88]
        %v7698 = vunpack.c.l.b16 %v7694
        %v7699 = vunpack.c.h.b16 %v7694
        %v7700 = vunpack.c.l.b16 %v7695
        %v7701 = vunpack.c.h.b16 %v7695
        %v7702 = vpack.c.b16 %v7698, %v7698
        %v7703 = vpack.c.b16 %v7699, %v7699
        %v7704 = vpack.c.b16 %v7700, %v7700
        %v7705 = vpack.c.b16 %v7701, %v7701
        %v7707 = vpack.i.b16 %v7702, %v7702
        %v7709 = vlaneseq
        %v7710 = vshrl.u32 %v7709, 7
        %v7711 = vsub.s32 3, %v7710
        %v7712 = vrot.slane %v7707, %v7711
        %v7714 = vpack.i.b16 %v7703, %v7703
        %v7716 = vlaneseq
        %v7717 = vshrl.u32 %v7716, 7
        %v7718 = vsub.s32 3, %v7717
        %v7719 = vrot.slane %v7714, %v7718
        %v7721 = vpack.i.b16 %v7704, %v7704
        %v7723 = vlaneseq
        %v7724 = vshrl.u32 %v7723, 7
        %v7725 = vsub.s32 3, %v7724
        %v7726 = vrot.slane %v7721, %v7725
        %v7728 = vpack.i.b16 %v7705, %v7705
        %v7730 = vlaneseq
        %v7731 = vshrl.u32 %v7730, 7
        %v7732 = vsub.s32 3, %v7731
        %v7733 = vrot.slane %v7728, %v7732
        %v7738 = vunpack.c.l.b16 %v7712
        %v7739 = vunpack.c.l.b16 %v7719
        %v7740 = vunpack.c.l.b16 %v7726
        %v7741 = vunpack.c.l.b16 %v7733
        %v7742 = vpack.c.b16 %v7739, %v7738
        %v7743 = vpack.c.b16 %v7741, %v7740
        %7744 = vrot.lane.b32.xlu0 %v7742, 15
        %v7745 = vpop.permute.xlu0 %7744
        %7746 = vrot.lane.b32.xlu0 %v7743, 15
        %v7747 = vpop.permute.xlu0 %7746
        %v7748 = vrot.slane %v7745, 4
        %v7749 = vrot.slane %v7747, 4
        %v7750 = vsel %vm6782, %v7748, %v7745
        %v7751 = vsel %vm6079, %v7748, %v7749
        %v7752 = vsel %vm6782, %v7751, %v7747
        %v7756 = vmul.bf16 %v7371, %v7750
        %v7757 = vmul.bf16 %v7372, %v7752
        %v7758 = vmul.bf16 %v7373, %v7749
        %v7759 = vmul.bf16 %v7374, %v7750
        %v7760 = vmul.bf16 %v7375, %v7752
        %v7761 = vmul.bf16 %v7376, %v7749
        %v7762 = vmul.bf16 %v7377, %v7750
        %v7763 = vmul.bf16 %v7378, %v7752
        %v7764 = vmul.bf16 %v7379, %v7749
        %v7765 = vmul.bf16 %v7380, %v7750
        %v7766 = vmul.bf16 %v7381, %v7752
        %v7767 = vmul.bf16 %v7382, %v7749
        %v7768 = vmul.bf16 %v7383, %v7750
        %v7769 = vmul.bf16 %v7384, %v7752
        %v7770 = vmul.bf16 %v7385, %v7749
        %v7771 = vmul.bf16 %v7386, %v7750
        %v7772 = vmul.bf16 %v7387, %v7752
        %v7773 = vmul.bf16 %v7388, %v7749
        %v7774 = vld [vmem:[%s249 + $0x30] sm:$0xf]
        %v7775 = vld [vmem:[%s249 + $0x34] sm:$0xf]
        %v7778 = vunpack.c.l.b16 %v7774
        %v7779 = vunpack.c.l.b16 %v7775
        %v7780 = vpack.c.b16 %v7779, %v7778
        %v7799 = vunpack.c.l.b16 %v7756
        %v7800 = vunpack.c.h.b16 %v7756
        %v7801 = vunpack.c.l.b16 %v7757
        %v7802 = vunpack.c.h.b16 %v7757
        %v7803 = vunpack.c.l.b16 %v7758
        %v7804 = vunpack.c.l.b16 %v7759
        %v7805 = vunpack.c.h.b16 %v7759
        %v7806 = vunpack.c.l.b16 %v7760
        %v7807 = vunpack.c.h.b16 %v7760
        %v7808 = vunpack.c.l.b16 %v7761
        %v7809 = vunpack.c.l.b16 %v7762
        %v7810 = vunpack.c.h.b16 %v7762
        %v7811 = vunpack.c.l.b16 %v7763
        %v7812 = vunpack.c.h.b16 %v7763
        %v7813 = vunpack.c.l.b16 %v7764
        %v7814 = vunpack.c.l.b16 %v7765
        %v7815 = vunpack.c.h.b16 %v7765
        %v7816 = vunpack.c.l.b16 %v7766
        %v7817 = vunpack.c.h.b16 %v7766
        %v7818 = vunpack.c.l.b16 %v7767
        %v7819 = vunpack.c.l.b16 %v7768
        %v7820 = vunpack.c.h.b16 %v7768
        %v7821 = vunpack.c.l.b16 %v7769
        %v7822 = vunpack.c.h.b16 %v7769
        %v7823 = vunpack.c.l.b16 %v7770
        %v7824 = vunpack.c.l.b16 %v7771
        %v7825 = vunpack.c.h.b16 %v7771
        %v7826 = vunpack.c.l.b16 %v7772
        %v7827 = vunpack.c.h.b16 %v7772
        %v7828 = vunpack.c.l.b16 %v7773
        %v7829 = vpack.c.b16 %v7804, %v7799
        %v7830 = vpack.c.b16 %v7805, %v7800
        %v7831 = vpack.c.b16 %v7806, %v7801
        %v7832 = vpack.c.b16 %v7807, %v7802
        %v7833 = vpack.c.b16 %v7808, %v7803
        %v7834 = vpack.c.b16 %v7814, %v7809
        %v7835 = vpack.c.b16 %v7815, %v7810
        %v7836 = vpack.c.b16 %v7816, %v7811
        %v7837 = vpack.c.b16 %v7817, %v7812
        %v7838 = vpack.c.b16 %v7818, %v7813
        %v7839 = vpack.c.b16 %v7824, %v7819
        %v7840 = vpack.c.b16 %v7825, %v7820
        %v7841 = vpack.c.b16 %v7826, %v7821
        %v7842 = vpack.c.b16 %v7827, %v7822
        %v7843 = vpack.c.b16 %v7828, %v7823
        %7844 = vrot.lane.b32.xlu0 %v7829, 113
        %v7845 = vpop.permute.xlu0 %7844
        %7846 = vrot.lane.b32.xlu0 %v7830, 113
        %v7847 = vpop.permute.xlu0 %7846
        %7848 = vrot.lane.b32.xlu0 %v7831, 113
        %v7849 = vpop.permute.xlu0 %7848
        %7850 = vrot.lane.b32.xlu0 %v7832, 113
        %v7851 = vpop.permute.xlu0 %7850
        %7852 = vrot.lane.b32.xlu0 %v7833, 113
        %v7853 = vpop.permute.xlu0 %7852
        %7854 = vrot.lane.b32.xlu0 %v7834, 113
        %v7855 = vpop.permute.xlu0 %7854
        %7856 = vrot.lane.b32.xlu0 %v7835, 113
        %v7857 = vpop.permute.xlu0 %7856
        %7858 = vrot.lane.b32.xlu0 %v7836, 113
        %v7859 = vpop.permute.xlu0 %7858
        %7860 = vrot.lane.b32.xlu0 %v7837, 113
        %v7861 = vpop.permute.xlu0 %7860
        %7862 = vrot.lane.b32.xlu0 %v7838, 113
        %v7863 = vpop.permute.xlu0 %7862
        %7864 = vrot.lane.b32.xlu0 %v7839, 113
        %v7865 = vpop.permute.xlu0 %7864
        %7866 = vrot.lane.b32.xlu0 %v7840, 113
        %v7867 = vpop.permute.xlu0 %7866
        %7868 = vrot.lane.b32.xlu0 %v7841, 113
        %v7869 = vpop.permute.xlu0 %7868
        %7870 = vrot.lane.b32.xlu0 %v7842, 113
        %v7871 = vpop.permute.xlu0 %7870
        %7872 = vrot.lane.b32.xlu0 %v7843, 113
        %v7873 = vpop.permute.xlu0 %7872
        %v7874 = vsel %vm6657, %v7845, %v7847
        %v7875 = vsel %vm6657, %v7847, %v7849
        %v7876 = vsel %vm6657, %v7849, %v7851
        %v7877 = vsel %vm6657, %v7851, %v7853
        %v7878 = vsel %vm6657, %v7855, %v7857
        %v7879 = vsel %vm6657, %v7857, %v7859
        %v7880 = vsel %vm6657, %v7859, %v7861
        %v7881 = vsel %vm6657, %v7861, %v7863
        %v7882 = vsel %vm6657, %v7865, %v7867
        %v7883 = vsel %vm6657, %v7867, %v7869
        %v7884 = vsel %vm6657, %v7869, %v7871
        %v7885 = vsel %vm6657, %v7871, %v7873
        %v7899 = vsel %vm6299, %v7780, 0
        %7901 = vmatprep.subr.bf16.mxu0 0
        %7902 = vmatpush1.bf16.msra.mxu0 0
        %7903 = vmatprep.subr.bf16.mxu0 0
        %7904 = vmatpush1.bf16.msra.mxu0 0
        %7905 = vmatprep.subr.bf16.mxu0 0
        %7906 = vmatpush1.bf16.msra.mxu0 0
        %7907 = vmatprep.subr.bf16.mxu0 0
        %7908 = vmatpush1.bf16.msra.mxu0 0
        %7909 = vmatprep.subr.bf16.mxu0 0
        %7910 = vmatpush1.bf16.msra.mxu0 0
        %7911 = vmatprep.subr.bf16.mxu0 %v7883
        %7912 = vmatpush1.bf16.msra.mxu0 %v7882
        %7913 = vmatprep.subr.bf16.mxu0 %v7879
        %7914 = vmatpush1.bf16.msra.mxu0 %v7878
        %7915 = vmatprep.subr.bf16.mxu0 %v7875
        %7916 = vmatpush1.bf16.msra.mxu0 %v7874
        %7917 = vmatprep.subr.bf16.mxu0 0
        %7918 = vmatpush2.bf16.msra.mxu0 0
        %7919 = vmatprep.subr.bf16.mxu0 0
        %7920 = vmatpush2.bf16.msra.mxu0 0
        %7921 = vmatprep.subr.bf16.mxu0 0
        %7922 = vmatpush2.bf16.msra.mxu0 0
        %7923 = vmatprep.subr.bf16.mxu0 0
        %7924 = vmatpush2.bf16.msra.mxu0 0
        %7925 = vmatprep.subr.bf16.mxu0 0
        %7926 = vmatpush2.bf16.msra.mxu0 0
        %7927 = vmatprep.subr.bf16.mxu0 0
        %7928 = vmatpush2.bf16.msra.mxu0 0
        %7929 = vmatprep.subr.bf16.mxu0 0
        %7930 = vmatpush2.bf16.msra.mxu0 0
        %7931 = vmatprep.subr.bf16.mxu0 0
        %7932 = vmatpush2.bf16.msra.mxu0 0
        %7933 = vmatprep.mubr.bf16.mxu0 0
        %7934 = vmatmul.mubr.bf16.gmra.mxu0 %v7899
        %v7935 = vpop.f32.mrf.mxu0
        %v7936 = vadd.f32 0.0, %v7935
        %v7937 = vpop.f32.mrf.mxu0
        %v7938 = vadd.f32 0.0, %v7937
        %v7939 = vpop.f32.mrf.mxu0
        %v7940 = vadd.f32 0.0, %v7939
        %v7941 = vpop.f32.mrf.mxu0
        %v7942 = vadd.f32 0.0, %v7941
        %7943 = vdwg.mxu0
        %7944 = vmatprep.subr.bf16.mxu0 0
        %7945 = vmatpush1.bf16.msra.mxu0 0
        %7946 = vmatprep.subr.bf16.mxu0 0
        %7947 = vmatpush1.bf16.msra.mxu0 0
        %7948 = vmatprep.subr.bf16.mxu0 0
        %7949 = vmatpush1.bf16.msra.mxu0 0
        %7950 = vmatprep.subr.bf16.mxu0 0
        %7951 = vmatpush1.bf16.msra.mxu0 0
        %7952 = vmatprep.subr.bf16.mxu0 0
        %7953 = vmatpush1.bf16.msra.mxu0 0
        %7954 = vmatprep.subr.bf16.mxu0 %v7885
        %7955 = vmatpush1.bf16.msra.mxu0 %v7884
        %7956 = vmatprep.subr.bf16.mxu0 %v7881
        %7957 = vmatpush1.bf16.msra.mxu0 %v7880
        %7958 = vmatprep.subr.bf16.mxu0 %v7877
        %7959 = vmatpush1.bf16.msra.mxu0 %v7876
        %7960 = vmatprep.subr.bf16.mxu0 0
        %7961 = vmatpush2.bf16.msra.mxu0 0
        %7962 = vmatprep.subr.bf16.mxu0 0
        %7963 = vmatpush2.bf16.msra.mxu0 0
        %7964 = vmatprep.subr.bf16.mxu0 0
        %7965 = vmatpush2.bf16.msra.mxu0 0
        %7966 = vmatprep.subr.bf16.mxu0 0
        %7967 = vmatpush2.bf16.msra.mxu0 0
        %7968 = vmatprep.subr.bf16.mxu0 0
        %7969 = vmatpush2.bf16.msra.mxu0 0
        %7970 = vmatprep.subr.bf16.mxu0 0
        %7971 = vmatpush2.bf16.msra.mxu0 0
        %7972 = vmatprep.subr.bf16.mxu0 0
        %7973 = vmatpush2.bf16.msra.mxu0 0
        %7974 = vmatprep.subr.bf16.mxu0 0
        %7975 = vmatpush2.bf16.msra.mxu0 0
        %7976 = vmatprep.mubr.bf16.mxu0 0
        %7977 = vmatmul.mubr.bf16.gmra.mxu0 %v7899
        %v7978 = vpop.f32.mrf.mxu0
        %v7979 = vadd.f32 0.0, %v7978
        %v7980 = vpop.f32.mrf.mxu0
        %v7981 = vadd.f32 0.0, %v7980
        %v7982 = vpop.f32.mrf.mxu0
        %v7983 = vadd.f32 0.0, %v7982
        %v7984 = vpop.f32.mrf.mxu0
        %v7985 = vadd.f32 0.0, %v7984
        %7986 = vdwg.mxu0
        %v7987 = vadd.f32 %v7686, %v7936
        %v7988 = vadd.f32 %v7687, %v7938
        %v7989 = vadd.f32 %v7688, %v7979
        %v7990 = vadd.f32 %v7689, %v7981
        %v7991 = vadd.f32 %v7690, %v7940
        %v7992 = vadd.f32 %v7691, %v7942
        %v7993 = vadd.f32 %v7692, %v7983
        %v7994 = vadd.f32 %v7693, %v7985
        %v7995 = vshrl.u32 %v7702, 16
        %v7996 = vpack.i.b16 %v7995, %v7995
        %v7998 = vlaneseq
        %v7999 = vshrl.u32 %v7998, 7
        %v8000 = vsub.s32 3, %v7999
        %v8001 = vrot.slane %v7996, %v8000
        %v8002 = vshrl.u32 %v7703, 16
        %v8003 = vpack.i.b16 %v8002, %v8002
        %v8005 = vlaneseq
        %v8006 = vshrl.u32 %v8005, 7
        %v8007 = vsub.s32 3, %v8006
        %v8008 = vrot.slane %v8003, %v8007
        %v8009 = vshrl.u32 %v7704, 16
        %v8010 = vpack.i.b16 %v8009, %v8009
        %v8012 = vlaneseq
        %v8013 = vshrl.u32 %v8012, 7
        %v8014 = vsub.s32 3, %v8013
        %v8015 = vrot.slane %v8010, %v8014
        %v8016 = vshrl.u32 %v7705, 16
        %v8017 = vpack.i.b16 %v8016, %v8016
        %v8019 = vlaneseq
        %v8020 = vshrl.u32 %v8019, 7
        %v8021 = vsub.s32 3, %v8020
        %v8022 = vrot.slane %v8017, %v8021
        %v8027 = vunpack.c.l.b16 %v8001
        %v8028 = vunpack.c.l.b16 %v8008
        %v8029 = vunpack.c.l.b16 %v8015
        %v8030 = vunpack.c.l.b16 %v8022
        %v8031 = vpack.c.b16 %v8028, %v8027
        %v8032 = vpack.c.b16 %v8030, %v8029
        %8033 = vrot.lane.b32.xlu0 %v8031, 16
        %v8034 = vpop.permute.xlu0 %8033
        %8035 = vrot.lane.b32.xlu0 %v8032, 16
        %v8036 = vpop.permute.xlu0 %8035
        %v8037 = vrot.slane %v8034, 4
        %v8038 = vrot.slane %v8036, 4
        %v8039 = vsel %vm6274, %v8037, %v8034
        %v8040 = vsel %vm6079, %v8037, %v8038
        %v8041 = vsel %vm6274, %v8040, %v8036
        %v8045 = vmul.bf16 %v7371, %v8039
        %v8046 = vmul.bf16 %v7372, %v8041
        %v8047 = vmul.bf16 %v7373, %v8038
        %v8048 = vmul.bf16 %v7374, %v8039
        %v8049 = vmul.bf16 %v7375, %v8041
        %v8050 = vmul.bf16 %v7376, %v8038
        %v8051 = vmul.bf16 %v7377, %v8039
        %v8052 = vmul.bf16 %v7378, %v8041
        %v8053 = vmul.bf16 %v7379, %v8038
        %v8054 = vmul.bf16 %v7380, %v8039
        %v8055 = vmul.bf16 %v7381, %v8041
        %v8056 = vmul.bf16 %v7382, %v8038
        %v8057 = vmul.bf16 %v7383, %v8039
        %v8058 = vmul.bf16 %v7384, %v8041
        %v8059 = vmul.bf16 %v7385, %v8038
        %v8060 = vmul.bf16 %v7386, %v8039
        %v8061 = vmul.bf16 %v7387, %v8041
        %v8062 = vmul.bf16 %v7388, %v8038
        %v8063 = vld [vmem:[%s249 + $0x38] sm:$0xf]
        %v8064 = vld [vmem:[%s249 + $0x3c] sm:$0xf]
        %v8067 = vunpack.c.l.b16 %v8063
        %v8068 = vunpack.c.l.b16 %v8064
        %v8069 = vpack.c.b16 %v8068, %v8067
        %v8088 = vunpack.c.l.b16 %v8045
        %v8089 = vunpack.c.h.b16 %v8045
        %v8090 = vunpack.c.l.b16 %v8046
        %v8091 = vunpack.c.h.b16 %v8046
        %v8092 = vunpack.c.l.b16 %v8047
        %v8093 = vunpack.c.l.b16 %v8048
        %v8094 = vunpack.c.h.b16 %v8048
        %v8095 = vunpack.c.l.b16 %v8049
        %v8096 = vunpack.c.h.b16 %v8049
        %v8097 = vunpack.c.l.b16 %v8050
        %v8098 = vunpack.c.l.b16 %v8051
        %v8099 = vunpack.c.h.b16 %v8051
        %v8100 = vunpack.c.l.b16 %v8052
        %v8101 = vunpack.c.h.b16 %v8052
        %v8102 = vunpack.c.l.b16 %v8053
        %v8103 = vunpack.c.l.b16 %v8054
        %v8104 = vunpack.c.h.b16 %v8054
        %v8105 = vunpack.c.l.b16 %v8055
        %v8106 = vunpack.c.h.b16 %v8055
        %v8107 = vunpack.c.l.b16 %v8056
        %v8108 = vunpack.c.l.b16 %v8057
        %v8109 = vunpack.c.h.b16 %v8057
        %v8110 = vunpack.c.l.b16 %v8058
        %v8111 = vunpack.c.h.b16 %v8058
        %v8112 = vunpack.c.l.b16 %v8059
        %v8113 = vunpack.c.l.b16 %v8060
        %v8114 = vunpack.c.h.b16 %v8060
        %v8115 = vunpack.c.l.b16 %v8061
        %v8116 = vunpack.c.h.b16 %v8061
        %v8117 = vunpack.c.l.b16 %v8062
        %v8118 = vpack.c.b16 %v8093, %v8088
        %v8119 = vpack.c.b16 %v8094, %v8089
        %v8120 = vpack.c.b16 %v8095, %v8090
        %v8121 = vpack.c.b16 %v8096, %v8091
        %v8122 = vpack.c.b16 %v8097, %v8092
        %v8123 = vpack.c.b16 %v8103, %v8098
        %v8124 = vpack.c.b16 %v8104, %v8099
        %v8125 = vpack.c.b16 %v8105, %v8100
        %v8126 = vpack.c.b16 %v8106, %v8101
        %v8127 = vpack.c.b16 %v8107, %v8102
        %v8128 = vpack.c.b16 %v8113, %v8108
        %v8129 = vpack.c.b16 %v8114, %v8109
        %v8130 = vpack.c.b16 %v8115, %v8110
        %v8131 = vpack.c.b16 %v8116, %v8111
        %v8132 = vpack.c.b16 %v8117, %v8112
        %8133 = vrot.lane.b32.xlu0 %v8118, 112
        %v8134 = vpop.permute.xlu0 %8133
        %8135 = vrot.lane.b32.xlu0 %v8119, 112
        %v8136 = vpop.permute.xlu0 %8135
        %8137 = vrot.lane.b32.xlu0 %v8120, 112
        %v8138 = vpop.permute.xlu0 %8137
        %8139 = vrot.lane.b32.xlu0 %v8121, 112
        %v8140 = vpop.permute.xlu0 %8139
        %8141 = vrot.lane.b32.xlu0 %v8122, 112
        %v8142 = vpop.permute.xlu0 %8141
        %8143 = vrot.lane.b32.xlu0 %v8123, 112
        %v8144 = vpop.permute.xlu0 %8143
        %8145 = vrot.lane.b32.xlu0 %v8124, 112
        %v8146 = vpop.permute.xlu0 %8145
        %8147 = vrot.lane.b32.xlu0 %v8125, 112
        %v8148 = vpop.permute.xlu0 %8147
        %8149 = vrot.lane.b32.xlu0 %v8126, 112
        %v8150 = vpop.permute.xlu0 %8149
        %8151 = vrot.lane.b32.xlu0 %v8127, 112
        %v8152 = vpop.permute.xlu0 %8151
        %8153 = vrot.lane.b32.xlu0 %v8128, 112
        %v8154 = vpop.permute.xlu0 %8153
        %8155 = vrot.lane.b32.xlu0 %v8129, 112
        %v8156 = vpop.permute.xlu0 %8155
        %8157 = vrot.lane.b32.xlu0 %v8130, 112
        %v8158 = vpop.permute.xlu0 %8157
        %8159 = vrot.lane.b32.xlu0 %v8131, 112
        %v8160 = vpop.permute.xlu0 %8159
        %8161 = vrot.lane.b32.xlu0 %v8132, 112
        %v8162 = vpop.permute.xlu0 %8161
        %v8163 = vsel %vm6149, %v8134, %v8136
        %v8164 = vsel %vm6149, %v8136, %v8138
        %v8165 = vsel %vm6149, %v8138, %v8140
        %v8166 = vsel %vm6149, %v8140, %v8142
        %v8167 = vsel %vm6149, %v8144, %v8146
        %v8168 = vsel %vm6149, %v8146, %v8148
        %v8169 = vsel %vm6149, %v8148, %v8150
        %v8170 = vsel %vm6149, %v8150, %v8152
        %v8171 = vsel %vm6149, %v8154, %v8156
        %v8172 = vsel %vm6149, %v8156, %v8158
        %v8173 = vsel %vm6149, %v8158, %v8160
        %v8174 = vsel %vm6149, %v8160, %v8162
        %v8188 = vsel %vm6299, %v8069, 0
        %8190 = vmatprep.subr.bf16.mxu0 0
        %8191 = vmatpush1.bf16.msra.mxu0 0
        %8192 = vmatprep.subr.bf16.mxu0 0
        %8193 = vmatpush1.bf16.msra.mxu0 0
        %8194 = vmatprep.subr.bf16.mxu0 0
        %8195 = vmatpush1.bf16.msra.mxu0 0
        %8196 = vmatprep.subr.bf16.mxu0 0
        %8197 = vmatpush1.bf16.msra.mxu0 0
        %8198 = vmatprep.subr.bf16.mxu0 0
        %8199 = vmatpush1.bf16.msra.mxu0 0
        %8200 = vmatprep.subr.bf16.mxu0 %v8172
        %8201 = vmatpush1.bf16.msra.mxu0 %v8171
        %8202 = vmatprep.subr.bf16.mxu0 %v8168
        %8203 = vmatpush1.bf16.msra.mxu0 %v8167
        %8204 = vmatprep.subr.bf16.mxu0 %v8164
        %8205 = vmatpush1.bf16.msra.mxu0 %v8163
        %8206 = vmatprep.subr.bf16.mxu0 0
        %8207 = vmatpush2.bf16.msra.mxu0 0
        %8208 = vmatprep.subr.bf16.mxu0 0
        %8209 = vmatpush2.bf16.msra.mxu0 0
        %8210 = vmatprep.subr.bf16.mxu0 0
        %8211 = vmatpush2.bf16.msra.mxu0 0
        %8212 = vmatprep.subr.bf16.mxu0 0
        %8213 = vmatpush2.bf16.msra.mxu0 0
        %8214 = vmatprep.subr.bf16.mxu0 0
        %8215 = vmatpush2.bf16.msra.mxu0 0
        %8216 = vmatprep.subr.bf16.mxu0 0
        %8217 = vmatpush2.bf16.msra.mxu0 0
        %8218 = vmatprep.subr.bf16.mxu0 0
        %8219 = vmatpush2.bf16.msra.mxu0 0
        %8220 = vmatprep.subr.bf16.mxu0 0
        %8221 = vmatpush2.bf16.msra.mxu0 0
        %8222 = vmatprep.mubr.bf16.mxu0 0
        %8223 = vmatmul.mubr.bf16.gmra.mxu0 %v8188
        %v8224 = vpop.f32.mrf.mxu0
        %v8225 = vadd.f32 0.0, %v8224
        %v8226 = vpop.f32.mrf.mxu0
        %v8227 = vadd.f32 0.0, %v8226
        %v8228 = vpop.f32.mrf.mxu0
        %v8229 = vadd.f32 0.0, %v8228
        %v8230 = vpop.f32.mrf.mxu0
        %v8231 = vadd.f32 0.0, %v8230
        %8232 = vdwg.mxu0
        %8233 = vmatprep.subr.bf16.mxu0 0
        %8234 = vmatpush1.bf16.msra.mxu0 0
        %8235 = vmatprep.subr.bf16.mxu0 0
        %8236 = vmatpush1.bf16.msra.mxu0 0
        %8237 = vmatprep.subr.bf16.mxu0 0
        %8238 = vmatpush1.bf16.msra.mxu0 0
        %8239 = vmatprep.subr.bf16.mxu0 0
        %8240 = vmatpush1.bf16.msra.mxu0 0
        %8241 = vmatprep.subr.bf16.mxu0 0
        %8242 = vmatpush1.bf16.msra.mxu0 0
        %8243 = vmatprep.subr.bf16.mxu0 %v8174
        %8244 = vmatpush1.bf16.msra.mxu0 %v8173
        %8245 = vmatprep.subr.bf16.mxu0 %v8170
        %8246 = vmatpush1.bf16.msra.mxu0 %v8169
        %8247 = vmatprep.subr.bf16.mxu0 %v8166
        %8248 = vmatpush1.bf16.msra.mxu0 %v8165
        %8249 = vmatprep.subr.bf16.mxu0 0
        %8250 = vmatpush2.bf16.msra.mxu0 0
        %8251 = vmatprep.subr.bf16.mxu0 0
        %8252 = vmatpush2.bf16.msra.mxu0 0
        %8253 = vmatprep.subr.bf16.mxu0 0
        %8254 = vmatpush2.bf16.msra.mxu0 0
        %8255 = vmatprep.subr.bf16.mxu0 0
        %8256 = vmatpush2.bf16.msra.mxu0 0
        %8257 = vmatprep.subr.bf16.mxu0 0
        %8258 = vmatpush2.bf16.msra.mxu0 0
        %8259 = vmatprep.subr.bf16.mxu0 0
        %8260 = vmatpush2.bf16.msra.mxu0 0
        %8261 = vmatprep.subr.bf16.mxu0 0
        %8262 = vmatpush2.bf16.msra.mxu0 0
        %8263 = vmatprep.subr.bf16.mxu0 0
        %8264 = vmatpush2.bf16.msra.mxu0 0
        %8265 = vmatprep.mubr.bf16.mxu0 0
        %8266 = vmatmul.mubr.bf16.gmra.mxu0 %v8188
        %v8267 = vpop.f32.mrf.mxu0
        %v8268 = vadd.f32 0.0, %v8267
        %v8269 = vpop.f32.mrf.mxu0
        %v8270 = vadd.f32 0.0, %v8269
        %v8271 = vpop.f32.mrf.mxu0
        %v8272 = vadd.f32 0.0, %v8271
        %v8273 = vpop.f32.mrf.mxu0
        %v8274 = vadd.f32 0.0, %v8273
        %8275 = vdwg.mxu0
        %v8276 = vadd.f32 %v7987, %v8225
        %v8277 = vadd.f32 %v7988, %v8227
        %v8278 = vadd.f32 %v7989, %v8268
        %v8279 = vadd.f32 %v7990, %v8270
        %v8280 = vadd.f32 %v7991, %v8229
        %v8281 = vadd.f32 %v7992, %v8231
        %v8282 = vadd.f32 %v7993, %v8272
        %v8283 = vadd.f32 %v7994, %v8274
        %v8284 = vld [vmem:[%s1 + $0x10] sm:$0x11]
        %v8285 = vld [vmem:[%s1 + $0x18] sm:$0x11]
        %v8288 = vunpack.c.l.b16 %v8284
        %v8289 = vunpack.c.h.b16 %v8284
        %v8290 = vunpack.c.l.b16 %v8285
        %v8291 = vunpack.c.h.b16 %v8285
        %v8292 = vpack.c.b16 %v8288, %v8288
        %v8293 = vpack.c.b16 %v8289, %v8289
        %v8294 = vpack.c.b16 %v8290, %v8290
        %v8295 = vpack.c.b16 %v8291, %v8291
        %v8297 = vpack.i.b16 %v8292, %v8292
        %v8299 = vlaneseq
        %v8300 = vshrl.u32 %v8299, 7
        %v8301 = vsub.s32 0, %v8300
        %v8302 = vrot.slane %v8297, %v8301
        %v8304 = vpack.i.b16 %v8293, %v8293
        %v8306 = vlaneseq
        %v8307 = vshrl.u32 %v8306, 7
        %v8308 = vsub.s32 0, %v8307
        %v8309 = vrot.slane %v8304, %v8308
        %v8311 = vpack.i.b16 %v8294, %v8294
        %v8313 = vlaneseq
        %v8314 = vshrl.u32 %v8313, 7
        %v8315 = vsub.s32 0, %v8314
        %v8316 = vrot.slane %v8311, %v8315
        %v8318 = vpack.i.b16 %v8295, %v8295
        %v8320 = vlaneseq
        %v8321 = vshrl.u32 %v8320, 7
        %v8322 = vsub.s32 0, %v8321
        %v8323 = vrot.slane %v8318, %v8322
        %v8328 = vunpack.c.l.b16 %v8302
        %v8329 = vunpack.c.l.b16 %v8309
        %v8330 = vunpack.c.l.b16 %v8316
        %v8331 = vunpack.c.l.b16 %v8323
        %v8332 = vpack.c.b16 %v8329, %v8328
        %v8333 = vpack.c.b16 %v8331, %v8330
        %8334 = vrot.lane.b32.xlu0 %v8332, 17
        %v8335 = vpop.permute.xlu0 %8334
        %8336 = vrot.lane.b32.xlu0 %v8333, 17
        %v8337 = vpop.permute.xlu0 %8336
        %v8338 = vrot.slane %v8335, 4
        %v8339 = vrot.slane %v8337, 4
        %v8340 = vsel %vm6487, %v8338, %v8335
        %v8341 = vsel %vm6079, %v8338, %v8339
        %v8342 = vsel %vm6487, %v8341, %v8337
        %v8346 = vmul.bf16 %v7371, %v8340
        %v8347 = vmul.bf16 %v7372, %v8342
        %v8348 = vmul.bf16 %v7373, %v8339
        %v8349 = vmul.bf16 %v7374, %v8340
        %v8350 = vmul.bf16 %v7375, %v8342
        %v8351 = vmul.bf16 %v7376, %v8339
        %v8352 = vmul.bf16 %v7377, %v8340
        %v8353 = vmul.bf16 %v7378, %v8342
        %v8354 = vmul.bf16 %v7379, %v8339
        %v8355 = vmul.bf16 %v7380, %v8340
        %v8356 = vmul.bf16 %v7381, %v8342
        %v8357 = vmul.bf16 %v7382, %v8339
        %v8358 = vmul.bf16 %v7383, %v8340
        %v8359 = vmul.bf16 %v7384, %v8342
        %v8360 = vmul.bf16 %v7385, %v8339
        %v8361 = vmul.bf16 %v7386, %v8340
        %v8362 = vmul.bf16 %v7387, %v8342
        %v8363 = vmul.bf16 %v7388, %v8339
        %v8364 = vld [vmem:[%s249 + $0x40] sm:$0xf]
        %v8365 = vld [vmem:[%s249 + $0x44] sm:$0xf]
        %v8368 = vunpack.c.l.b16 %v8364
        %v8369 = vunpack.c.l.b16 %v8365
        %v8370 = vpack.c.b16 %v8369, %v8368
        %v8389 = vunpack.c.l.b16 %v8346
        %v8390 = vunpack.c.h.b16 %v8346
        %v8391 = vunpack.c.l.b16 %v8347
        %v8392 = vunpack.c.h.b16 %v8347
        %v8393 = vunpack.c.l.b16 %v8348
        %v8394 = vunpack.c.l.b16 %v8349
        %v8395 = vunpack.c.h.b16 %v8349
        %v8396 = vunpack.c.l.b16 %v8350
        %v8397 = vunpack.c.h.b16 %v8350
        %v8398 = vunpack.c.l.b16 %v8351
        %v8399 = vunpack.c.l.b16 %v8352
        %v8400 = vunpack.c.h.b16 %v8352
        %v8401 = vunpack.c.l.b16 %v8353
        %v8402 = vunpack.c.h.b16 %v8353
        %v8403 = vunpack.c.l.b16 %v8354
        %v8404 = vunpack.c.l.b16 %v8355
        %v8405 = vunpack.c.h.b16 %v8355
        %v8406 = vunpack.c.l.b16 %v8356
        %v8407 = vunpack.c.h.b16 %v8356
        %v8408 = vunpack.c.l.b16 %v8357
        %v8409 = vunpack.c.l.b16 %v8358
        %v8410 = vunpack.c.h.b16 %v8358
        %v8411 = vunpack.c.l.b16 %v8359
        %v8412 = vunpack.c.h.b16 %v8359
        %v8413 = vunpack.c.l.b16 %v8360
        %v8414 = vunpack.c.l.b16 %v8361
        %v8415 = vunpack.c.h.b16 %v8361
        %v8416 = vunpack.c.l.b16 %v8362
        %v8417 = vunpack.c.h.b16 %v8362
        %v8418 = vunpack.c.l.b16 %v8363
        %v8419 = vpack.c.b16 %v8394, %v8389
        %v8420 = vpack.c.b16 %v8395, %v8390
        %v8421 = vpack.c.b16 %v8396, %v8391
        %v8422 = vpack.c.b16 %v8397, %v8392
        %v8423 = vpack.c.b16 %v8398, %v8393
        %v8424 = vpack.c.b16 %v8404, %v8399
        %v8425 = vpack.c.b16 %v8405, %v8400
        %v8426 = vpack.c.b16 %v8406, %v8401
        %v8427 = vpack.c.b16 %v8407, %v8402
        %v8428 = vpack.c.b16 %v8408, %v8403
        %v8429 = vpack.c.b16 %v8414, %v8409
        %v8430 = vpack.c.b16 %v8415, %v8410
        %v8431 = vpack.c.b16 %v8416, %v8411
        %v8432 = vpack.c.b16 %v8417, %v8412
        %v8433 = vpack.c.b16 %v8418, %v8413
        %8434 = vrot.lane.b32.xlu0 %v8419, 111
        %v8435 = vpop.permute.xlu0 %8434
        %8436 = vrot.lane.b32.xlu0 %v8420, 111
        %v8437 = vpop.permute.xlu0 %8436
        %8438 = vrot.lane.b32.xlu0 %v8421, 111
        %v8439 = vpop.permute.xlu0 %8438
        %8440 = vrot.lane.b32.xlu0 %v8422, 111
        %v8441 = vpop.permute.xlu0 %8440
        %8442 = vrot.lane.b32.xlu0 %v8423, 111
        %v8443 = vpop.permute.xlu0 %8442
        %8444 = vrot.lane.b32.xlu0 %v8424, 111
        %v8445 = vpop.permute.xlu0 %8444
        %8446 = vrot.lane.b32.xlu0 %v8425, 111
        %v8447 = vpop.permute.xlu0 %8446
        %8448 = vrot.lane.b32.xlu0 %v8426, 111
        %v8449 = vpop.permute.xlu0 %8448
        %8450 = vrot.lane.b32.xlu0 %v8427, 111
        %v8451 = vpop.permute.xlu0 %8450
        %8452 = vrot.lane.b32.xlu0 %v8428, 111
        %v8453 = vpop.permute.xlu0 %8452
        %8454 = vrot.lane.b32.xlu0 %v8429, 111
        %v8455 = vpop.permute.xlu0 %8454
        %8456 = vrot.lane.b32.xlu0 %v8430, 111
        %v8457 = vpop.permute.xlu0 %8456
        %8458 = vrot.lane.b32.xlu0 %v8431, 111
        %v8459 = vpop.permute.xlu0 %8458
        %8460 = vrot.lane.b32.xlu0 %v8432, 111
        %v8461 = vpop.permute.xlu0 %8460
        %8462 = vrot.lane.b32.xlu0 %v8433, 111
        %v8463 = vpop.permute.xlu0 %8462
        %v8464 = vsel %vm6077, %v8435, %v8437
        %v8465 = vsel %vm6077, %v8437, %v8439
        %v8466 = vsel %vm6077, %v8439, %v8441
        %v8467 = vsel %vm6077, %v8441, %v8443
        %v8468 = vsel %vm6077, %v8445, %v8447
        %v8469 = vsel %vm6077, %v8447, %v8449
        %v8470 = vsel %vm6077, %v8449, %v8451
        %v8471 = vsel %vm6077, %v8451, %v8453
        %v8472 = vsel %vm6077, %v8455, %v8457
        %v8473 = vsel %vm6077, %v8457, %v8459
        %v8474 = vsel %vm6077, %v8459, %v8461
        %v8475 = vsel %vm6077, %v8461, %v8463
        %v8489 = vsel %vm6299, %v8370, 0
        %8491 = vmatprep.subr.bf16.mxu0 0
        %8492 = vmatpush1.bf16.msra.mxu0 0
        %8493 = vmatprep.subr.bf16.mxu0 0
        %8494 = vmatpush1.bf16.msra.mxu0 0
        %8495 = vmatprep.subr.bf16.mxu0 0
        %8496 = vmatpush1.bf16.msra.mxu0 0
        %8497 = vmatprep.subr.bf16.mxu0 0
        %8498 = vmatpush1.bf16.msra.mxu0 0
        %8499 = vmatprep.subr.bf16.mxu0 0
        %8500 = vmatpush1.bf16.msra.mxu0 0
        %8501 = vmatprep.subr.bf16.mxu0 %v8473
        %8502 = vmatpush1.bf16.msra.mxu0 %v8472
        %8503 = vmatprep.subr.bf16.mxu0 %v8469
        %8504 = vmatpush1.bf16.msra.mxu0 %v8468
        %8505 = vmatprep.subr.bf16.mxu0 %v8465
        %8506 = vmatpush1.bf16.msra.mxu0 %v8464
        %8507 = vmatprep.subr.bf16.mxu0 0
        %8508 = vmatpush2.bf16.msra.mxu0 0
        %8509 = vmatprep.subr.bf16.mxu0 0
        %8510 = vmatpush2.bf16.msra.mxu0 0
        %8511 = vmatprep.subr.bf16.mxu0 0
        %8512 = vmatpush2.bf16.msra.mxu0 0
        %8513 = vmatprep.subr.bf16.mxu0 0
        %8514 = vmatpush2.bf16.msra.mxu0 0
        %8515 = vmatprep.subr.bf16.mxu0 0
        %8516 = vmatpush2.bf16.msra.mxu0 0
        %8517 = vmatprep.subr.bf16.mxu0 0
        %8518 = vmatpush2.bf16.msra.mxu0 0
        %8519 = vmatprep.subr.bf16.mxu0 0
        %8520 = vmatpush2.bf16.msra.mxu0 0
        %8521 = vmatprep.subr.bf16.mxu0 0
        %8522 = vmatpush2.bf16.msra.mxu0 0
        %8523 = vmatprep.mubr.bf16.mxu0 0
        %8524 = vmatmul.mubr.bf16.gmra.mxu0 %v8489
        %v8525 = vpop.f32.mrf.mxu0
        %v8526 = vadd.f32 0.0, %v8525
        %v8527 = vpop.f32.mrf.mxu0
        %v8528 = vadd.f32 0.0, %v8527
        %v8529 = vpop.f32.mrf.mxu0
        %v8530 = vadd.f32 0.0, %v8529
        %v8531 = vpop.f32.mrf.mxu0
        %v8532 = vadd.f32 0.0, %v8531
        %8533 = vdwg.mxu0
        %8534 = vmatprep.subr.bf16.mxu0 0
        %8535 = vmatpush1.bf16.msra.mxu0 0
        %8536 = vmatprep.subr.bf16.mxu0 0
        %8537 = vmatpush1.bf16.msra.mxu0 0
        %8538 = vmatprep.subr.bf16.mxu0 0
        %8539 = vmatpush1.bf16.msra.mxu0 0
        %8540 = vmatprep.subr.bf16.mxu0 0
        %8541 = vmatpush1.bf16.msra.mxu0 0
        %8542 = vmatprep.subr.bf16.mxu0 0
        %8543 = vmatpush1.bf16.msra.mxu0 0
        %8544 = vmatprep.subr.bf16.mxu0 %v8475
        %8545 = vmatpush1.bf16.msra.mxu0 %v8474
        %8546 = vmatprep.subr.bf16.mxu0 %v8471
        %8547 = vmatpush1.bf16.msra.mxu0 %v8470
        %8548 = vmatprep.subr.bf16.mxu0 %v8467
        %8549 = vmatpush1.bf16.msra.mxu0 %v8466
        %8550 = vmatprep.subr.bf16.mxu0 0
        %8551 = vmatpush2.bf16.msra.mxu0 0
        %8552 = vmatprep.subr.bf16.mxu0 0
        %8553 = vmatpush2.bf16.msra.mxu0 0
        %8554 = vmatprep.subr.bf16.mxu0 0
        %8555 = vmatpush2.bf16.msra.mxu0 0
        %8556 = vmatprep.subr.bf16.mxu0 0
        %8557 = vmatpush2.bf16.msra.mxu0 0
        %8558 = vmatprep.subr.bf16.mxu0 0
        %8559 = vmatpush2.bf16.msra.mxu0 0
        %8560 = vmatprep.subr.bf16.mxu0 0
        %8561 = vmatpush2.bf16.msra.mxu0 0
        %8562 = vmatprep.subr.bf16.mxu0 0
        %8563 = vmatpush2.bf16.msra.mxu0 0
        %8564 = vmatprep.subr.bf16.mxu0 0
        %8565 = vmatpush2.bf16.msra.mxu0 0
        %8566 = vmatprep.mubr.bf16.mxu0 0
        %8567 = vmatmul.mubr.bf16.gmra.mxu0 %v8489
        %v8568 = vpop.f32.mrf.mxu0
        %v8569 = vadd.f32 0.0, %v8568
        %v8570 = vpop.f32.mrf.mxu0
        %v8571 = vadd.f32 0.0, %v8570
        %v8572 = vpop.f32.mrf.mxu0
        %v8573 = vadd.f32 0.0, %v8572
        %v8574 = vpop.f32.mrf.mxu0
        %v8575 = vadd.f32 0.0, %v8574
        %8576 = vdwg.mxu0
        %v8577 = vadd.f32 %v8276, %v8526
        %v8578 = vadd.f32 %v8277, %v8528
        %v8579 = vadd.f32 %v8278, %v8569
        %v8580 = vadd.f32 %v8279, %v8571
        %v8581 = vadd.f32 %v8280, %v8530
        %v8582 = vadd.f32 %v8281, %v8532
        %v8583 = vadd.f32 %v8282, %v8573
        %v8584 = vadd.f32 %v8283, %v8575
        %8585 = vst [vmem:[%s5 + $0x60] sm:$0xff] %v8577
        %8586 = vst [vmem:[%s5 + $0x68] sm:$0xff] %v8578
        %8587 = vst [vmem:[%s5 + $0x70] sm:$0xff] %v8581
        %8588 = vst [vmem:[%s5 + $0x78] sm:$0xff] %v8582
        %8589 = vst [vmem:[%s5298 + $0x60] sm:$0xff] %v8579
        %8590 = vst [vmem:[%s5298 + $0x68] sm:$0xff] %v8580
        %8591 = vst [vmem:[%s5298 + $0x70] sm:$0xff] %v8583
        %8592 = vst [vmem:[%s5298 + $0x78] sm:$0xff] %v8584
      $region52: #{dense_block_forward.1} parent=39 // pred_fallthru
        _
      // Predicated region
      $region53: #{dense_block_forward.1} parent=39 // pred_check
        %p8593 = pneg %p149
      $region54: #{dense_block_forward.1} parent=39 // pred_check_branch
        %8595 = sbr.rel (%p8593) target = $region56
      $region55: #{dense_block_forward.1} parent=39 // pred_region
        _
      $region56: #{dense_block_forward.1} parent=39 // pred_fallthru
        _
      // Predicated region
      $region57: #{dense_block_forward.1} parent=39 // pred_check
        %p8596 = pneg %p149
      $region58: #{dense_block_forward.1} parent=39 // pred_check_branch
        %8598 = sbr.rel (%p8596) target = $region60
      $region59: #{dense_block_forward.1} parent=39 // pred_region
        _
      $region60: #{dense_block_forward.1} parent=39 // pred_fallthru
        _
    $region40: #{dense_block_forward.1} parent=5 // pred_fallthru
      _
    %p8599 = scmp.le.s32.totalorder 2, %s11
    // Predicated region
    $region61: #{dense_block_forward.1} parent=5 // pred_check
      %p8600 = pneg %p8599
    $region62: #{dense_block_forward.1} parent=5 // pred_check_branch
      %8602 = sbr.rel (%p8600) target = $region64
    $region63: #{dense_block_forward.1} parent=5 // pred_region
      %s8603 = ssub.s32 %s11, 2
    $region64: #{dense_block_forward.1} parent=5 // pred_fallthru
      _
  $region6: #{dense_block_forward.1} parent=0 // loop_footer
    %s15 = sadd.s32 1, %s11
  $region7: #{dense_block_forward.1} parent=0 // loop_footer_branch
    %10 = sbr.rel target = $region3
  $region8: #{dense_block_forward.1} parent=0 // loop_exit
    _

</llo_original>
